<compile_context>
chip_gen: v7x
topology: tpu7x:2x2x1
jax: 0.10.0
libtpu: 0.0.40
codegen_flags: <defaults>
</compile_context>

<pallas_src>
import functools

import jax
import jax.numpy as jnp
from jax import lax
from jax.experimental import pallas as pl

# ----------------------------- small config ---------------------------------
B = 2          # batch
S = 8          # sequence length
H = 32         # hidden size  (stands in for bert_out=768)
NH = 4         # attention heads
DH = H // NH   # head dim
FFN = 64       # feed-forward hidden dim (4*H)
VOCAB = 100    # vocab size
MAX_POS = 16   # max position embeddings
LAYERS = 2     # transformer layers
NCLS = 124     # classifier output size (torch.nn.Linear(bert_out, 124))
NCLS_PAD = 128 # lane-dense padded classifier width (sliced back to 124 outside)
LN_EPS = 1e-12


# ------------------------------ shared helper --------------------------------
def _layer_norm(h, g, b, eps):
    mu = jnp.mean(h, axis=-1, keepdims=True)
    var = jnp.mean((h - mu) ** 2, axis=-1, keepdims=True)
    return (h - mu) * lax.rsqrt(var + eps) * g + b


# ------------------------------ fused kernel ---------------------------------
def fused_forward_kernel(x_ref, bias_ref, emb_g_ref, emb_b_ref,
                         wq_ref, wk_ref, wv_ref, bq_ref, bk_ref, bv_ref,
                         wo_ref, bo_ref, sa_g_ref, sa_b_ref,
                         w1_ref, b1_ref, w2_ref, b2_ref, og_ref, ob_ref,
                         wp_ref, bp_ref, wc_ref, bc_ref, o_ref, *, eps):
    # ---- embedding LayerNorm (no dummy residual) ----
    h = _layer_norm(x_ref[...], emb_g_ref[...], emb_b_ref[...], eps)   # [B*S, H]

    # ---- attention-mask bias: broadcast ONCE per batch, reused by every
    #      layer and head (JAX does not CSE broadcast_in_dim) ----
    bias = bias_ref[...]                                               # [B, S]
    bias_bh = [jnp.broadcast_to(bias[b:b + 1, :].reshape(1, 1, S), (NH, S, S))
               for b in range(B)]

    # ---- transformer layers (Python-unrolled; static leading-dim indexing) ----
    for l in range(LAYERS):
        wq_l, wk_l, wv_l = wq_ref[l], wk_ref[l], wv_ref[l]             # [NH, H, DH]
        bq_l, bk_l, bv_l = bq_ref[l], bk_ref[l], bv_ref[l]             # [NH, 1, DH]
        wo_l = wo_ref[l]                                               # [NH, DH, H]

        attn_rows = []
        for b in range(B):
            xb = h[b * S:(b + 1) * S, :]                               # [S, H]
            xb_bc = jnp.broadcast_to(xb[None], (NH, S, H))             # [NH, S, H]
            # Per-head projections as batched matmuls (no lane-offset slicing);
            # 1/sqrt(DH) is already folded into wq/bq at init.
            q = jnp.einsum('nsh,nhd->nsd', xb_bc, wq_l,
                           preferred_element_type=jnp.float32) + bq_l
            k = jnp.einsum('nsh,nhd->nsd', xb_bc, wk_l,
                           preferred_element_type=jnp.float32) + bk_l
            v = jnp.einsum('nsh,nhd->nsd', xb_bc, wv_l,
                           preferred_element_type=jnp.float32) + bv_l
            s = jnp.einsum('nqd,nkd->nqk', q, k,
                           preferred_element_type=jnp.float32) + bias_bh[b]
            m = jnp.max(s, axis=-1, keepdims=True)
            p = jnp.exp(s - m)
            p = p * pl.reciprocal(jnp.sum(p, axis=-1, keepdims=True), approx=True)
            ctx = jnp.einsum('nqk,nkd->nqd', p, v,
                             preferred_element_type=jnp.float32)       # [NH, S, DH]
            # Per-head output projection summed over heads: no lane concat,
            # no ctx scratch store/reload.
            oh = jnp.einsum('nsd,ndh->nsh', ctx, wo_l,
                            preferred_element_type=jnp.float32)        # [NH, S, H]
            attn_rows.append(jnp.sum(oh, axis=0))                      # [S, H]
        attn_out = jnp.concatenate(attn_rows, axis=0) + bo_ref[l]      # [B*S, H]
        h = _layer_norm(h + attn_out, sa_g_ref[l], sa_b_ref[l], eps)

        # ---- FFN block ----
        h1 = jnp.dot(h, w1_ref[l], preferred_element_type=jnp.float32) + b1_ref[l]
        # TODO(synk): HF DistilBERT uses exact erf-GELU; tanh approximation
        # used here for robust TPU/EUP lowering.
        h1 = jax.nn.gelu(h1, approximate=True)
        h2 = jnp.dot(h1, w2_ref[l], preferred_element_type=jnp.float32) + b2_ref[l]
        h = _layer_norm(h + h2, og_ref[l], ob_ref[l], eps)

    # ---- CLS pooling + classification head (dropout = identity in eval) ----
    pooler = jnp.concatenate([h[b * S:b * S + 1, :] for b in range(B)], axis=0)
    ph = jnp.tanh(jnp.dot(pooler, wp_ref[...],
                          preferred_element_type=jnp.float32) + bp_ref[...])
    o_ref[...] = jnp.dot(ph, wc_ref[...],
                         preferred_element_type=jnp.float32) + bc_ref[...]


# ------------------------------ parameter init -------------------------------
def init_params(key):
    def dense(k, fan_in, fan_out):
        return (jax.random.normal(k, (fan_in, fan_out), jnp.float32) * 0.02,
                jnp.zeros((fan_out,), jnp.float32))

    keys = jax.random.split(key, 4 + LAYERS)
    params = {
        "word_emb": jax.random.normal(keys[0], (VOCAB, H), jnp.float32) * 0.02,
        "pos_emb": jax.random.normal(keys[1], (MAX_POS, H), jnp.float32) * 0.02,
        "emb_ln_g": jnp.ones((1, H), jnp.float32),
        "emb_ln_b": jnp.zeros((1, H), jnp.float32),
    }

    scale = 1.0 / (DH ** 0.5)
    acc = {n: [] for n in ("wq", "wk", "wv", "bq", "bk", "bv", "wo", "bo",
                           "sa_g", "sa_b", "w1", "b1", "w2", "b2", "og", "ob")}
    for li in range(LAYERS):
        lk = jax.random.split(keys[2 + li], 6)
        wq, bq = dense(lk[0], H, H)
        wk, bk = dense(lk[1], H, H)
        wv, bv = dense(lk[2], H, H)
        wo, bo = dense(lk[3], H, H)
        w1, b1 = dense(lk[4], H, FFN)
        w2, b2 = dense(lk[5], FFN, H)
        # Head-major weight layouts so the kernel never slices along lanes;
        # the 1/sqrt(DH) attention scale is folded into the Q projection.
        acc["wq"].append((wq * scale).reshape(H, NH, DH).transpose(1, 0, 2))
        acc["wk"].append(wk.reshape(H, NH, DH).transpose(1, 0, 2))
        acc["wv"].append(wv.reshape(H, NH, DH).transpose(1, 0, 2))
        acc["bq"].append((bq * scale).reshape(NH, 1, DH))
        acc["bk"].append(bk.reshape(NH, 1, DH))
        acc["bv"].append(bv.reshape(NH, 1, DH))
        acc["wo"].append(wo.reshape(NH, DH, H))
        acc["bo"].append(bo.reshape(1, H))
        acc["sa_g"].append(jnp.ones((1, H), jnp.float32))
        acc["sa_b"].append(jnp.zeros((1, H), jnp.float32))
        acc["w1"].append(w1)
        acc["b1"].append(b1.reshape(1, FFN))
        acc["w2"].append(w2)
        acc["b2"].append(b2.reshape(1, H))
        acc["og"].append(jnp.ones((1, H), jnp.float32))
        acc["ob"].append(jnp.zeros((1, H), jnp.float32))
    for n, v in acc.items():
        params[n] = jnp.stack(v, axis=0)          # leading layer axis [LAYERS,...]

    wp, bp = dense(jax.random.split(keys[2 + LAYERS], 2)[0], H, H)
    wc, bc = dense(jax.random.split(keys[3 + LAYERS], 2)[0], H, NCLS)
    params["wp"] = wp
    params["bp"] = bp.reshape(1, H)
    # Pad classifier 124 -> 128 for lane-dense stores; sliced back outside.
    params["wc_pad"] = jnp.pad(wc, ((0, 0), (0, NCLS_PAD - NCLS)))
    params["bc_pad"] = jnp.pad(bc, (0, NCLS_PAD - NCLS)).reshape(1, NCLS_PAD)
    return params


# ------------------------------- forward pass --------------------------------
def distilbert_class_forward(params, input_ids, attention_mask, token_type_ids):
    # token_type_ids accepted to match the torch signature; DistilBERT has no
    # token-type embeddings, so it is ignored.
    del token_type_ids

    # Embedding gathers are XLA glue; everything after is ONE pallas_call.
    pos = jnp.arange(S)
    x = params["word_emb"][input_ids] + params["pos_emb"][pos][None, :, :]
    x2 = x.reshape(B * S, H).astype(jnp.float32)

    # additive attention-mask bias: 0 where attended, -1e9 where masked  [B, S]
    bias = (attention_mask.astype(jnp.float32) - 1.0) * 1e9

    logits_pad = pl.pallas_call(
        functools.partial(fused_forward_kernel, eps=LN_EPS),
        out_shape=jax.ShapeDtypeStruct((B, NCLS_PAD), jnp.float32),
    )(x2, bias, params["emb_ln_g"], params["emb_ln_b"],
      params["wq"], params["wk"], params["wv"],
      params["bq"], params["bk"], params["bv"],
      params["wo"], params["bo"], params["sa_g"], params["sa_b"],
      params["w1"], params["b1"], params["w2"], params["b2"],
      params["og"], params["ob"],
      params["wp"], params["bp"], params["wc_pad"], params["bc_pad"])
    return logits_pad[:, :NCLS]                                      # [B, 124]


# ----------------------------------- main ------------------------------------
if __name__ == "__main__":
    key = jax.random.PRNGKey(0)
    pkey, ikey = jax.random.split(key)
    params = init_params(pkey)

    input_ids = jax.random.randint(ikey, (B, S), 0, VOCAB, dtype=jnp.int32)
    attention_mask = jnp.ones((B, S), jnp.int32).at[1, -2:].set(0)
    token_type_ids = jnp.zeros((B, S), jnp.int32)

    fwd = jax.jit(distilbert_class_forward)
    logits = jax.block_until_ready(
        fwd(params, input_ids, attention_mask, token_type_ids))
    assert logits.shape == (B, NCLS) and logits.dtype == jnp.float32
    assert bool(jnp.all(jnp.isfinite(logits)))
    print("KERNEL_OK")
</pallas_src>

<mosaic_0001>
module attributes {stable_mosaic.version = 11 : i64} {
  func.func @fused_forward_kernel(%arg0: memref<16x32xf32, #tpu.memory_space<vmem>>, %arg1: memref<2x8xf32, #tpu.memory_space<vmem>>, %arg2: memref<1x32xf32, #tpu.memory_space<vmem>>, %arg3: memref<1x32xf32, #tpu.memory_space<vmem>>, %arg4: memref<2x4x32x8xf32, #tpu.memory_space<vmem>>, %arg5: memref<2x4x32x8xf32, #tpu.memory_space<vmem>>, %arg6: memref<2x4x32x8xf32, #tpu.memory_space<vmem>>, %arg7: memref<2x4x1x8xf32, #tpu.memory_space<vmem>>, %arg8: memref<2x4x1x8xf32, #tpu.memory_space<vmem>>, %arg9: memref<2x4x1x8xf32, #tpu.memory_space<vmem>>, %arg10: memref<2x4x8x32xf32, #tpu.memory_space<vmem>>, %arg11: memref<2x1x32xf32, #tpu.memory_space<vmem>>, %arg12: memref<2x1x32xf32, #tpu.memory_space<vmem>>, %arg13: memref<2x1x32xf32, #tpu.memory_space<vmem>>, %arg14: memref<2x32x64xf32, #tpu.memory_space<vmem>>, %arg15: memref<2x1x64xf32, #tpu.memory_space<vmem>>, %arg16: memref<2x64x32xf32, #tpu.memory_space<vmem>>, %arg17: memref<2x1x32xf32, #tpu.memory_space<vmem>>, %arg18: memref<2x1x32xf32, #tpu.memory_space<vmem>>, %arg19: memref<2x1x32xf32, #tpu.memory_space<vmem>>, %arg20: memref<32x32xf32, #tpu.memory_space<vmem>>, %arg21: memref<1x32xf32, #tpu.memory_space<vmem>>, %arg22: memref<32x128xf32, #tpu.memory_space<vmem>>, %arg23: memref<1x128xf32, #tpu.memory_space<vmem>>, %arg24: memref<2x128xf32, #tpu.memory_space<vmem>>) attributes {dimension_semantics = [], scalar_prefetch = 0 : i64, scratch_operands = 0 : i64, tpu.core_type = #tpu.core_type<tc>} {
    %c0 = arith.constant 0 : index
    %c0_0 = arith.constant 0 : index
    %0 = vector.load %arg0[%c0, %c0_0] : memref<16x32xf32, #tpu.memory_space<vmem>>, vector<16x32xf32>
    %c0_1 = arith.constant 0 : index
    %c0_2 = arith.constant 0 : index
    %1 = vector.load %arg2[%c0_1, %c0_2] : memref<1x32xf32, #tpu.memory_space<vmem>>, vector<1x32xf32>
    %c0_3 = arith.constant 0 : index
    %c0_4 = arith.constant 0 : index
    %2 = vector.load %arg3[%c0_3, %c0_4] : memref<1x32xf32, #tpu.memory_space<vmem>>, vector<1x32xf32>
    %cst = arith.constant dense<0.000000e+00> : vector<16xf32>
    %3 = vector.multi_reduction <add>, %0, %cst [1] : vector<16x32xf32> to vector<16xf32>
    %4 = vector.shape_cast %3 : vector<16xf32> to vector<16x1xf32>
    %cst_5 = arith.constant 3.200000e+01 : f32
    %5 = vector.broadcast %cst_5 : f32 to vector<16x1xf32>
    %6 = arith.divf %4, %5 : vector<16x1xf32>
    %7 = vector.broadcast %6 : vector<16x1xf32> to vector<16x32xf32>
    %8 = arith.subf %0, %7 : vector<16x32xf32>
    %9 = arith.mulf %8, %8 : vector<16x32xf32>
    %cst_6 = arith.constant dense<0.000000e+00> : vector<16xf32>
    %10 = vector.multi_reduction <add>, %9, %cst_6 [1] : vector<16x32xf32> to vector<16xf32>
    %11 = vector.shape_cast %10 : vector<16xf32> to vector<16x1xf32>
    %cst_7 = arith.constant 3.200000e+01 : f32
    %12 = vector.broadcast %cst_7 : f32 to vector<16x1xf32>
    %13 = arith.divf %11, %12 : vector<16x1xf32>
    %14 = vector.broadcast %6 : vector<16x1xf32> to vector<16x32xf32>
    %15 = arith.subf %0, %14 : vector<16x32xf32>
    %cst_8 = arith.constant 9.99999996E-13 : f32
    %16 = vector.broadcast %cst_8 : f32 to vector<16x1xf32>
    %17 = arith.addf %13, %16 : vector<16x1xf32>
    %18 = math.rsqrt %17 : vector<16x1xf32>
    %19 = vector.broadcast %18 : vector<16x1xf32> to vector<16x32xf32>
    %20 = arith.mulf %15, %19 : vector<16x32xf32>
    %21 = vector.broadcast %1 : vector<1x32xf32> to vector<16x32xf32>
    %22 = arith.mulf %20, %21 : vector<16x32xf32>
    %23 = vector.broadcast %2 : vector<1x32xf32> to vector<16x32xf32>
    %24 = arith.addf %22, %23 : vector<16x32xf32>
    %c0_9 = arith.constant 0 : index
    %c0_10 = arith.constant 0 : index
    %25 = vector.load %arg1[%c0_9, %c0_10] : memref<2x8xf32, #tpu.memory_space<vmem>>, vector<2x8xf32>
    %26 = vector.extract_strided_slice %25 {offsets = [0, 0], sizes = [1, 8], strides = [1, 1]} : vector<2x8xf32> to vector<1x8xf32>
    %27 = vector.shape_cast %26 : vector<1x8xf32> to vector<1x1x8xf32>
    %28 = vector.shape_cast %27 : vector<1x1x8xf32> to vector<1x1x8xf32>
    %29 = vector.broadcast %28 : vector<1x1x8xf32> to vector<4x8x8xf32>
    %30 = vector.extract_strided_slice %25 {offsets = [1, 0], sizes = [1, 8], strides = [1, 1]} : vector<2x8xf32> to vector<1x8xf32>
    %31 = vector.shape_cast %30 : vector<1x8xf32> to vector<1x1x8xf32>
    %32 = vector.shape_cast %31 : vector<1x1x8xf32> to vector<1x1x8xf32>
    %33 = vector.broadcast %32 : vector<1x1x8xf32> to vector<4x8x8xf32>
    %c0_11 = arith.constant 0 : index
    %c0_12 = arith.constant 0 : index
    %c0_13 = arith.constant 0 : index
    %c0_14 = arith.constant 0 : index
    %34 = vector.load %arg4[%c0_11, %c0_12, %c0_13, %c0_14] : memref<2x4x32x8xf32, #tpu.memory_space<vmem>>, vector<1x4x32x8xf32>
    %35 = vector.shape_cast %34 : vector<1x4x32x8xf32> to vector<4x32x8xf32>
    %c0_15 = arith.constant 0 : index
    %c0_16 = arith.constant 0 : index
    %c0_17 = arith.constant 0 : index
    %c0_18 = arith.constant 0 : index
    %36 = vector.load %arg5[%c0_15, %c0_16, %c0_17, %c0_18] : memref<2x4x32x8xf32, #tpu.memory_space<vmem>>, vector<1x4x32x8xf32>
    %37 = vector.shape_cast %36 : vector<1x4x32x8xf32> to vector<4x32x8xf32>
    %c0_19 = arith.constant 0 : index
    %c0_20 = arith.constant 0 : index
    %c0_21 = arith.constant 0 : index
    %c0_22 = arith.constant 0 : index
    %38 = vector.load %arg6[%c0_19, %c0_20, %c0_21, %c0_22] : memref<2x4x32x8xf32, #tpu.memory_space<vmem>>, vector<1x4x32x8xf32>
    %39 = vector.shape_cast %38 : vector<1x4x32x8xf32> to vector<4x32x8xf32>
    %c0_23 = arith.constant 0 : index
    %c0_24 = arith.constant 0 : index
    %c0_25 = arith.constant 0 : index
    %c0_26 = arith.constant 0 : index
    %40 = vector.load %arg7[%c0_23, %c0_24, %c0_25, %c0_26] : memref<2x4x1x8xf32, #tpu.memory_space<vmem>>, vector<1x4x1x8xf32>
    %41 = vector.shape_cast %40 : vector<1x4x1x8xf32> to vector<4x1x8xf32>
    %c0_27 = arith.constant 0 : index
    %c0_28 = arith.constant 0 : index
    %c0_29 = arith.constant 0 : index
    %c0_30 = arith.constant 0 : index
    %42 = vector.load %arg8[%c0_27, %c0_28, %c0_29, %c0_30] : memref<2x4x1x8xf32, #tpu.memory_space<vmem>>, vector<1x4x1x8xf32>
    %43 = vector.shape_cast %42 : vector<1x4x1x8xf32> to vector<4x1x8xf32>
    %c0_31 = arith.constant 0 : index
    %c0_32 = arith.constant 0 : index
    %c0_33 = arith.constant 0 : index
    %c0_34 = arith.constant 0 : index
    %44 = vector.load %arg9[%c0_31, %c0_32, %c0_33, %c0_34] : memref<2x4x1x8xf32, #tpu.memory_space<vmem>>, vector<1x4x1x8xf32>
    %45 = vector.shape_cast %44 : vector<1x4x1x8xf32> to vector<4x1x8xf32>
    %c0_35 = arith.constant 0 : index
    %c0_36 = arith.constant 0 : index
    %c0_37 = arith.constant 0 : index
    %c0_38 = arith.constant 0 : index
    %46 = vector.load %arg10[%c0_35, %c0_36, %c0_37, %c0_38] : memref<2x4x8x32xf32, #tpu.memory_space<vmem>>, vector<1x4x8x32xf32>
    %47 = vector.shape_cast %46 : vector<1x4x8x32xf32> to vector<4x8x32xf32>
    %48 = vector.extract_strided_slice %24 {offsets = [0, 0], sizes = [8, 32], strides = [1, 1]} : vector<16x32xf32> to vector<8x32xf32>
    %49 = vector.shape_cast %48 : vector<8x32xf32> to vector<1x8x32xf32>
    %50 = vector.shape_cast %49 : vector<1x8x32xf32> to vector<1x8x32xf32>
    %51 = vector.broadcast %50 : vector<1x8x32xf32> to vector<4x8x32xf32>
    "tpu.trace_start"() <{level = 10 : i32, message = "nsh,nhd->nsd"}> : () -> ()
    %cst_39 = arith.constant dense<0.000000e+00> : vector<4x8x8xf32>
    %52 = tpu.matmul %51, %35, %cst_39 {dimension_numbers = #tpu.dot_dimension_numbers<[2], [1], [1], [2], [0, 0, 0, 1, 1, 2], [0], [0]>} : vector<4x8x32xf32>, vector<4x32x8xf32>, vector<4x8x8xf32> -> vector<4x8x8xf32>
    "tpu.trace_stop"() : () -> ()
    %53 = vector.broadcast %41 : vector<4x1x8xf32> to vector<4x8x8xf32>
    %54 = arith.addf %52, %53 : vector<4x8x8xf32>
    "tpu.trace_start"() <{level = 10 : i32, message = "nsh,nhd->nsd"}> : () -> ()
    %cst_40 = arith.constant dense<0.000000e+00> : vector<4x8x8xf32>
    %55 = tpu.matmul %51, %37, %cst_40 {dimension_numbers = #tpu.dot_dimension_numbers<[2], [1], [1], [2], [0, 0, 0, 1, 1, 2], [0], [0]>} : vector<4x8x32xf32>, vector<4x32x8xf32>, vector<4x8x8xf32> -> vector<4x8x8xf32>
    "tpu.trace_stop"() : () -> ()
    %56 = vector.broadcast %43 : vector<4x1x8xf32> to vector<4x8x8xf32>
    %57 = arith.addf %55, %56 : vector<4x8x8xf32>
    "tpu.trace_start"() <{level = 10 : i32, message = "nsh,nhd->nsd"}> : () -> ()
    %cst_41 = arith.constant dense<0.000000e+00> : vector<4x8x8xf32>
    %58 = tpu.matmul %51, %39, %cst_41 {dimension_numbers = #tpu.dot_dimension_numbers<[2], [1], [1], [2], [0, 0, 0, 1, 1, 2], [0], [0]>} : vector<4x8x32xf32>, vector<4x32x8xf32>, vector<4x8x8xf32> -> vector<4x8x8xf32>
    "tpu.trace_stop"() : () -> ()
    %59 = vector.broadcast %45 : vector<4x1x8xf32> to vector<4x8x8xf32>
    %60 = arith.addf %58, %59 : vector<4x8x8xf32>
    "tpu.trace_start"() <{level = 10 : i32, message = "nqd,nkd->nqk"}> : () -> ()
    %cst_42 = arith.constant dense<0.000000e+00> : vector<4x8x8xf32>
    %61 = tpu.matmul %54, %57, %cst_42 {dimension_numbers = #tpu.dot_dimension_numbers<[2], [2], [1], [1], [0, 0, 0, 1, 1, 1], [0], [0]>} : vector<4x8x8xf32>, vector<4x8x8xf32>, vector<4x8x8xf32> -> vector<4x8x8xf32>
    "tpu.trace_stop"() : () -> ()
    %62 = arith.addf %61, %29 : vector<4x8x8xf32>
    %cst_43 = arith.constant dense<0xFF800000> : vector<4x8xf32>
    %63 = vector.multi_reduction <maximumf>, %62, %cst_43 [2] : vector<4x8x8xf32> to vector<4x8xf32>
    %64 = vector.shape_cast %63 : vector<4x8xf32> to vector<4x8x1xf32>
    %65 = vector.broadcast %64 : vector<4x8x1xf32> to vector<4x8x8xf32>
    %66 = arith.subf %62, %65 : vector<4x8x8xf32>
    %67 = math.exp %66 : vector<4x8x8xf32>
    %cst_44 = arith.constant dense<0.000000e+00> : vector<4x8xf32>
    %68 = vector.multi_reduction <add>, %67, %cst_44 [2] : vector<4x8x8xf32> to vector<4x8xf32>
    %69 = vector.shape_cast %68 : vector<4x8xf32> to vector<4x8x1xf32>
    %70 = tpu.reciprocal %69 {approx = true} : vector<4x8x1xf32> -> vector<4x8x1xf32>
    %71 = vector.broadcast %70 : vector<4x8x1xf32> to vector<4x8x8xf32>
    %72 = arith.mulf %67, %71 : vector<4x8x8xf32>
    "tpu.trace_start"() <{level = 10 : i32, message = "nqk,nkd->nqd"}> : () -> ()
    %cst_45 = arith.constant dense<0.000000e+00> : vector<4x8x8xf32>
    %73 = tpu.matmul %72, %60, %cst_45 {dimension_numbers = #tpu.dot_dimension_numbers<[2], [1], [1], [2], [0, 0, 0, 1, 1, 2], [0], [0]>} : vector<4x8x8xf32>, vector<4x8x8xf32>, vector<4x8x8xf32> -> vector<4x8x8xf32>
    "tpu.trace_stop"() : () -> ()
    "tpu.trace_start"() <{level = 10 : i32, message = "nsd,ndh->nsh"}> : () -> ()
    %cst_46 = arith.constant dense<0.000000e+00> : vector<4x8x32xf32>
    %74 = tpu.matmul %73, %47, %cst_46 {dimension_numbers = #tpu.dot_dimension_numbers<[2], [1], [1], [2], [0, 0, 0, 1, 1, 2], [0], [0]>} : vector<4x8x8xf32>, vector<4x8x32xf32>, vector<4x8x32xf32> -> vector<4x8x32xf32>
    "tpu.trace_stop"() : () -> ()
    %cst_47 = arith.constant dense<0.000000e+00> : vector<8x32xf32>
    %75 = vector.multi_reduction <add>, %74, %cst_47 [0] : vector<4x8x32xf32> to vector<8x32xf32>
    %76 = vector.extract_strided_slice %24 {offsets = [8, 0], sizes = [8, 32], strides = [1, 1]} : vector<16x32xf32> to vector<8x32xf32>
    %77 = vector.shape_cast %76 : vector<8x32xf32> to vector<1x8x32xf32>
    %78 = vector.shape_cast %77 : vector<1x8x32xf32> to vector<1x8x32xf32>
    %79 = vector.broadcast %78 : vector<1x8x32xf32> to vector<4x8x32xf32>
    "tpu.trace_start"() <{level = 10 : i32, message = "nsh,nhd->nsd"}> : () -> ()
    %cst_48 = arith.constant dense<0.000000e+00> : vector<4x8x8xf32>
    %80 = tpu.matmul %79, %35, %cst_48 {dimension_numbers = #tpu.dot_dimension_numbers<[2], [1], [1], [2], [0, 0, 0, 1, 1, 2], [0], [0]>} : vector<4x8x32xf32>, vector<4x32x8xf32>, vector<4x8x8xf32> -> vector<4x8x8xf32>
    "tpu.trace_stop"() : () -> ()
    %81 = vector.broadcast %41 : vector<4x1x8xf32> to vector<4x8x8xf32>
    %82 = arith.addf %80, %81 : vector<4x8x8xf32>
    "tpu.trace_start"() <{level = 10 : i32, message = "nsh,nhd->nsd"}> : () -> ()
    %cst_49 = arith.constant dense<0.000000e+00> : vector<4x8x8xf32>
    %83 = tpu.matmul %79, %37, %cst_49 {dimension_numbers = #tpu.dot_dimension_numbers<[2], [1], [1], [2], [0, 0, 0, 1, 1, 2], [0], [0]>} : vector<4x8x32xf32>, vector<4x32x8xf32>, vector<4x8x8xf32> -> vector<4x8x8xf32>
    "tpu.trace_stop"() : () -> ()
    %84 = vector.broadcast %43 : vector<4x1x8xf32> to vector<4x8x8xf32>
    %85 = arith.addf %83, %84 : vector<4x8x8xf32>
    "tpu.trace_start"() <{level = 10 : i32, message = "nsh,nhd->nsd"}> : () -> ()
    %cst_50 = arith.constant dense<0.000000e+00> : vector<4x8x8xf32>
    %86 = tpu.matmul %79, %39, %cst_50 {dimension_numbers = #tpu.dot_dimension_numbers<[2], [1], [1], [2], [0, 0, 0, 1, 1, 2], [0], [0]>} : vector<4x8x32xf32>, vector<4x32x8xf32>, vector<4x8x8xf32> -> vector<4x8x8xf32>
    "tpu.trace_stop"() : () -> ()
    %87 = vector.broadcast %45 : vector<4x1x8xf32> to vector<4x8x8xf32>
    %88 = arith.addf %86, %87 : vector<4x8x8xf32>
    "tpu.trace_start"() <{level = 10 : i32, message = "nqd,nkd->nqk"}> : () -> ()
    %cst_51 = arith.constant dense<0.000000e+00> : vector<4x8x8xf32>
    %89 = tpu.matmul %82, %85, %cst_51 {dimension_numbers = #tpu.dot_dimension_numbers<[2], [2], [1], [1], [0, 0, 0, 1, 1, 1], [0], [0]>} : vector<4x8x8xf32>, vector<4x8x8xf32>, vector<4x8x8xf32> -> vector<4x8x8xf32>
    "tpu.trace_stop"() : () -> ()
    %90 = arith.addf %89, %33 : vector<4x8x8xf32>
    %cst_52 = arith.constant dense<0xFF800000> : vector<4x8xf32>
    %91 = vector.multi_reduction <maximumf>, %90, %cst_52 [2] : vector<4x8x8xf32> to vector<4x8xf32>
    %92 = vector.shape_cast %91 : vector<4x8xf32> to vector<4x8x1xf32>
    %93 = vector.broadcast %92 : vector<4x8x1xf32> to vector<4x8x8xf32>
    %94 = arith.subf %90, %93 : vector<4x8x8xf32>
    %95 = math.exp %94 : vector<4x8x8xf32>
    %cst_53 = arith.constant dense<0.000000e+00> : vector<4x8xf32>
    %96 = vector.multi_reduction <add>, %95, %cst_53 [2] : vector<4x8x8xf32> to vector<4x8xf32>
    %97 = vector.shape_cast %96 : vector<4x8xf32> to vector<4x8x1xf32>
    %98 = tpu.reciprocal %97 {approx = true} : vector<4x8x1xf32> -> vector<4x8x1xf32>
    %99 = vector.broadcast %98 : vector<4x8x1xf32> to vector<4x8x8xf32>
    %100 = arith.mulf %95, %99 : vector<4x8x8xf32>
    "tpu.trace_start"() <{level = 10 : i32, message = "nqk,nkd->nqd"}> : () -> ()
    %cst_54 = arith.constant dense<0.000000e+00> : vector<4x8x8xf32>
    %101 = tpu.matmul %100, %88, %cst_54 {dimension_numbers = #tpu.dot_dimension_numbers<[2], [1], [1], [2], [0, 0, 0, 1, 1, 2], [0], [0]>} : vector<4x8x8xf32>, vector<4x8x8xf32>, vector<4x8x8xf32> -> vector<4x8x8xf32>
    "tpu.trace_stop"() : () -> ()
    "tpu.trace_start"() <{level = 10 : i32, message = "nsd,ndh->nsh"}> : () -> ()
    %cst_55 = arith.constant dense<0.000000e+00> : vector<4x8x32xf32>
    %102 = tpu.matmul %101, %47, %cst_55 {dimension_numbers = #tpu.dot_dimension_numbers<[2], [1], [1], [2], [0, 0, 0, 1, 1, 2], [0], [0]>} : vector<4x8x8xf32>, vector<4x8x32xf32>, vector<4x8x32xf32> -> vector<4x8x32xf32>
    "tpu.trace_stop"() : () -> ()
    %cst_56 = arith.constant dense<0.000000e+00> : vector<8x32xf32>
    %103 = vector.multi_reduction <add>, %102, %cst_56 [0] : vector<4x8x32xf32> to vector<8x32xf32>
    %104 = tpu.concatenate %75, %103 in 0 : vector<8x32xf32>, vector<8x32xf32> -> vector<16x32xf32>
    %c0_57 = arith.constant 0 : index
    %c0_58 = arith.constant 0 : index
    %c0_59 = arith.constant 0 : index
    %105 = vector.load %arg11[%c0_57, %c0_58, %c0_59] : memref<2x1x32xf32, #tpu.memory_space<vmem>>, vector<1x1x32xf32>
    %106 = vector.shape_cast %105 : vector<1x1x32xf32> to vector<1x32xf32>
    %107 = vector.broadcast %106 : vector<1x32xf32> to vector<16x32xf32>
    %108 = arith.addf %104, %107 : vector<16x32xf32>
    %109 = arith.addf %24, %108 : vector<16x32xf32>
    %c0_60 = arith.constant 0 : index
    %c0_61 = arith.constant 0 : index
    %c0_62 = arith.constant 0 : index
    %110 = vector.load %arg12[%c0_60, %c0_61, %c0_62] : memref<2x1x32xf32, #tpu.memory_space<vmem>>, vector<1x1x32xf32>
    %111 = vector.shape_cast %110 : vector<1x1x32xf32> to vector<1x32xf32>
    %c0_63 = arith.constant 0 : index
    %c0_64 = arith.constant 0 : index
    %c0_65 = arith.constant 0 : index
    %112 = vector.load %arg13[%c0_63, %c0_64, %c0_65] : memref<2x1x32xf32, #tpu.memory_space<vmem>>, vector<1x1x32xf32>
    %113 = vector.shape_cast %112 : vector<1x1x32xf32> to vector<1x32xf32>
    %cst_66 = arith.constant dense<0.000000e+00> : vector<16xf32>
    %114 = vector.multi_reduction <add>, %109, %cst_66 [1] : vector<16x32xf32> to vector<16xf32>
    %115 = vector.shape_cast %114 : vector<16xf32> to vector<16x1xf32>
    %cst_67 = arith.constant 3.200000e+01 : f32
    %116 = vector.broadcast %cst_67 : f32 to vector<16x1xf32>
    %117 = arith.divf %115, %116 : vector<16x1xf32>
    %118 = vector.broadcast %117 : vector<16x1xf32> to vector<16x32xf32>
    %119 = arith.subf %109, %118 : vector<16x32xf32>
    %120 = arith.mulf %119, %119 : vector<16x32xf32>
    %cst_68 = arith.constant dense<0.000000e+00> : vector<16xf32>
    %121 = vector.multi_reduction <add>, %120, %cst_68 [1] : vector<16x32xf32> to vector<16xf32>
    %122 = vector.shape_cast %121 : vector<16xf32> to vector<16x1xf32>
    %cst_69 = arith.constant 3.200000e+01 : f32
    %123 = vector.broadcast %cst_69 : f32 to vector<16x1xf32>
    %124 = arith.divf %122, %123 : vector<16x1xf32>
    %125 = vector.broadcast %117 : vector<16x1xf32> to vector<16x32xf32>
    %126 = arith.subf %109, %125 : vector<16x32xf32>
    %cst_70 = arith.constant 9.99999996E-13 : f32
    %127 = vector.broadcast %cst_70 : f32 to vector<16x1xf32>
    %128 = arith.addf %124, %127 : vector<16x1xf32>
    %129 = math.rsqrt %128 : vector<16x1xf32>
    %130 = vector.broadcast %129 : vector<16x1xf32> to vector<16x32xf32>
    %131 = arith.mulf %126, %130 : vector<16x32xf32>
    %132 = vector.broadcast %111 : vector<1x32xf32> to vector<16x32xf32>
    %133 = arith.mulf %131, %132 : vector<16x32xf32>
    %134 = vector.broadcast %113 : vector<1x32xf32> to vector<16x32xf32>
    %135 = arith.addf %133, %134 : vector<16x32xf32>
    %c0_71 = arith.constant 0 : index
    %c0_72 = arith.constant 0 : index
    %c0_73 = arith.constant 0 : index
    %136 = vector.load %arg14[%c0_71, %c0_72, %c0_73] : memref<2x32x64xf32, #tpu.memory_space<vmem>>, vector<1x32x64xf32>
    %137 = vector.shape_cast %136 : vector<1x32x64xf32> to vector<32x64xf32>
    %cst_74 = arith.constant dense<0.000000e+00> : vector<16x64xf32>
    %138 = tpu.matmul %135, %137, %cst_74 {dimension_numbers = #tpu.dot_dimension_numbers<[1], [0], [0], [1], [0, 0, 1, 1], [], []>} : vector<16x32xf32>, vector<32x64xf32>, vector<16x64xf32> -> vector<16x64xf32>
    %c0_75 = arith.constant 0 : index
    %c0_76 = arith.constant 0 : index
    %c0_77 = arith.constant 0 : index
    %139 = vector.load %arg15[%c0_75, %c0_76, %c0_77] : memref<2x1x64xf32, #tpu.memory_space<vmem>>, vector<1x1x64xf32>
    %140 = vector.shape_cast %139 : vector<1x1x64xf32> to vector<1x64xf32>
    %141 = vector.broadcast %140 : vector<1x64xf32> to vector<16x64xf32>
    %142 = arith.addf %138, %141 : vector<16x64xf32>
    %143 = arith.mulf %142, %142 : vector<16x64xf32>
    %144 = arith.mulf %142, %143 : vector<16x64xf32>
    %cst_78 = arith.constant 4.471500e-02 : f32
    %145 = vector.broadcast %cst_78 : f32 to vector<16x64xf32>
    %146 = arith.mulf %145, %144 : vector<16x64xf32>
    %147 = arith.addf %142, %146 : vector<16x64xf32>
    %cst_79 = arith.constant 0.797884583 : f32
    %148 = vector.broadcast %cst_79 : f32 to vector<16x64xf32>
    %149 = arith.mulf %148, %147 : vector<16x64xf32>
    %150 = math.tanh %149 : vector<16x64xf32>
    %cst_80 = arith.constant 1.000000e+00 : f32
    %151 = vector.broadcast %cst_80 : f32 to vector<16x64xf32>
    %152 = arith.addf %151, %150 : vector<16x64xf32>
    %cst_81 = arith.constant 5.000000e-01 : f32
    %153 = vector.broadcast %cst_81 : f32 to vector<16x64xf32>
    %154 = arith.mulf %153, %152 : vector<16x64xf32>
    %155 = arith.mulf %142, %154 : vector<16x64xf32>
    %c0_82 = arith.constant 0 : index
    %c0_83 = arith.constant 0 : index
    %c0_84 = arith.constant 0 : index
    %156 = vector.load %arg16[%c0_82, %c0_83, %c0_84] : memref<2x64x32xf32, #tpu.memory_space<vmem>>, vector<1x64x32xf32>
    %157 = vector.shape_cast %156 : vector<1x64x32xf32> to vector<64x32xf32>
    %cst_85 = arith.constant dense<0.000000e+00> : vector<16x32xf32>
    %158 = tpu.matmul %155, %157, %cst_85 {dimension_numbers = #tpu.dot_dimension_numbers<[1], [0], [0], [1], [0, 0, 1, 1], [], []>} : vector<16x64xf32>, vector<64x32xf32>, vector<16x32xf32> -> vector<16x32xf32>
    %c0_86 = arith.constant 0 : index
    %c0_87 = arith.constant 0 : index
    %c0_88 = arith.constant 0 : index
    %159 = vector.load %arg17[%c0_86, %c0_87, %c0_88] : memref<2x1x32xf32, #tpu.memory_space<vmem>>, vector<1x1x32xf32>
    %160 = vector.shape_cast %159 : vector<1x1x32xf32> to vector<1x32xf32>
    %161 = vector.broadcast %160 : vector<1x32xf32> to vector<16x32xf32>
    %162 = arith.addf %158, %161 : vector<16x32xf32>
    %163 = arith.addf %135, %162 : vector<16x32xf32>
    %c0_89 = arith.constant 0 : index
    %c0_90 = arith.constant 0 : index
    %c0_91 = arith.constant 0 : index
    %164 = vector.load %arg18[%c0_89, %c0_90, %c0_91] : memref<2x1x32xf32, #tpu.memory_space<vmem>>, vector<1x1x32xf32>
    %165 = vector.shape_cast %164 : vector<1x1x32xf32> to vector<1x32xf32>
    %c0_92 = arith.constant 0 : index
    %c0_93 = arith.constant 0 : index
    %c0_94 = arith.constant 0 : index
    %166 = vector.load %arg19[%c0_92, %c0_93, %c0_94] : memref<2x1x32xf32, #tpu.memory_space<vmem>>, vector<1x1x32xf32>
    %167 = vector.shape_cast %166 : vector<1x1x32xf32> to vector<1x32xf32>
    %cst_95 = arith.constant dense<0.000000e+00> : vector<16xf32>
    %168 = vector.multi_reduction <add>, %163, %cst_95 [1] : vector<16x32xf32> to vector<16xf32>
    %169 = vector.shape_cast %168 : vector<16xf32> to vector<16x1xf32>
    %cst_96 = arith.constant 3.200000e+01 : f32
    %170 = vector.broadcast %cst_96 : f32 to vector<16x1xf32>
    %171 = arith.divf %169, %170 : vector<16x1xf32>
    %172 = vector.broadcast %171 : vector<16x1xf32> to vector<16x32xf32>
    %173 = arith.subf %163, %172 : vector<16x32xf32>
    %174 = arith.mulf %173, %173 : vector<16x32xf32>
    %cst_97 = arith.constant dense<0.000000e+00> : vector<16xf32>
    %175 = vector.multi_reduction <add>, %174, %cst_97 [1] : vector<16x32xf32> to vector<16xf32>
    %176 = vector.shape_cast %175 : vector<16xf32> to vector<16x1xf32>
    %cst_98 = arith.constant 3.200000e+01 : f32
    %177 = vector.broadcast %cst_98 : f32 to vector<16x1xf32>
    %178 = arith.divf %176, %177 : vector<16x1xf32>
    %179 = vector.broadcast %171 : vector<16x1xf32> to vector<16x32xf32>
    %180 = arith.subf %163, %179 : vector<16x32xf32>
    %cst_99 = arith.constant 9.99999996E-13 : f32
    %181 = vector.broadcast %cst_99 : f32 to vector<16x1xf32>
    %182 = arith.addf %178, %181 : vector<16x1xf32>
    %183 = math.rsqrt %182 : vector<16x1xf32>
    %184 = vector.broadcast %183 : vector<16x1xf32> to vector<16x32xf32>
    %185 = arith.mulf %180, %184 : vector<16x32xf32>
    %186 = vector.broadcast %165 : vector<1x32xf32> to vector<16x32xf32>
    %187 = arith.mulf %185, %186 : vector<16x32xf32>
    %188 = vector.broadcast %167 : vector<1x32xf32> to vector<16x32xf32>
    %189 = arith.addf %187, %188 : vector<16x32xf32>
    %c1 = arith.constant 1 : index
    %c0_100 = arith.constant 0 : index
    %c0_101 = arith.constant 0 : index
    %c0_102 = arith.constant 0 : index
    %190 = vector.load %arg4[%c1, %c0_100, %c0_101, %c0_102] : memref<2x4x32x8xf32, #tpu.memory_space<vmem>>, vector<1x4x32x8xf32>
    %191 = vector.shape_cast %190 : vector<1x4x32x8xf32> to vector<4x32x8xf32>
    %c1_103 = arith.constant 1 : index
    %c0_104 = arith.constant 0 : index
    %c0_105 = arith.constant 0 : index
    %c0_106 = arith.constant 0 : index
    %192 = vector.load %arg5[%c1_103, %c0_104, %c0_105, %c0_106] : memref<2x4x32x8xf32, #tpu.memory_space<vmem>>, vector<1x4x32x8xf32>
    %193 = vector.shape_cast %192 : vector<1x4x32x8xf32> to vector<4x32x8xf32>
    %c1_107 = arith.constant 1 : index
    %c0_108 = arith.constant 0 : index
    %c0_109 = arith.constant 0 : index
    %c0_110 = arith.constant 0 : index
    %194 = vector.load %arg6[%c1_107, %c0_108, %c0_109, %c0_110] : memref<2x4x32x8xf32, #tpu.memory_space<vmem>>, vector<1x4x32x8xf32>
    %195 = vector.shape_cast %194 : vector<1x4x32x8xf32> to vector<4x32x8xf32>
    %c1_111 = arith.constant 1 : index
    %c0_112 = arith.constant 0 : index
    %c0_113 = arith.constant 0 : index
    %c0_114 = arith.constant 0 : index
    %196 = vector.load %arg7[%c1_111, %c0_112, %c0_113, %c0_114] : memref<2x4x1x8xf32, #tpu.memory_space<vmem>>, vector<1x4x1x8xf32>
    %197 = vector.shape_cast %196 : vector<1x4x1x8xf32> to vector<4x1x8xf32>
    %c1_115 = arith.constant 1 : index
    %c0_116 = arith.constant 0 : index
    %c0_117 = arith.constant 0 : index
    %c0_118 = arith.constant 0 : index
    %198 = vector.load %arg8[%c1_115, %c0_116, %c0_117, %c0_118] : memref<2x4x1x8xf32, #tpu.memory_space<vmem>>, vector<1x4x1x8xf32>
    %199 = vector.shape_cast %198 : vector<1x4x1x8xf32> to vector<4x1x8xf32>
    %c1_119 = arith.constant 1 : index
    %c0_120 = arith.constant 0 : index
    %c0_121 = arith.constant 0 : index
    %c0_122 = arith.constant 0 : index
    %200 = vector.load %arg9[%c1_119, %c0_120, %c0_121, %c0_122] : memref<2x4x1x8xf32, #tpu.memory_space<vmem>>, vector<1x4x1x8xf32>
    %201 = vector.shape_cast %200 : vector<1x4x1x8xf32> to vector<4x1x8xf32>
    %c1_123 = arith.constant 1 : index
    %c0_124 = arith.constant 0 : index
    %c0_125 = arith.constant 0 : index
    %c0_126 = arith.constant 0 : index
    %202 = vector.load %arg10[%c1_123, %c0_124, %c0_125, %c0_126] : memref<2x4x8x32xf32, #tpu.memory_space<vmem>>, vector<1x4x8x32xf32>
    %203 = vector.shape_cast %202 : vector<1x4x8x32xf32> to vector<4x8x32xf32>
    %204 = vector.extract_strided_slice %189 {offsets = [0, 0], sizes = [8, 32], strides = [1, 1]} : vector<16x32xf32> to vector<8x32xf32>
    %205 = vector.shape_cast %204 : vector<8x32xf32> to vector<1x8x32xf32>
    %206 = vector.shape_cast %205 : vector<1x8x32xf32> to vector<1x8x32xf32>
    %207 = vector.broadcast %206 : vector<1x8x32xf32> to vector<4x8x32xf32>
    "tpu.trace_start"() <{level = 10 : i32, message = "nsh,nhd->nsd"}> : () -> ()
    %cst_127 = arith.constant dense<0.000000e+00> : vector<4x8x8xf32>
    %208 = tpu.matmul %207, %191, %cst_127 {dimension_numbers = #tpu.dot_dimension_numbers<[2], [1], [1], [2], [0, 0, 0, 1, 1, 2], [0], [0]>} : vector<4x8x32xf32>, vector<4x32x8xf32>, vector<4x8x8xf32> -> vector<4x8x8xf32>
    "tpu.trace_stop"() : () -> ()
    %209 = vector.broadcast %197 : vector<4x1x8xf32> to vector<4x8x8xf32>
    %210 = arith.addf %208, %209 : vector<4x8x8xf32>
    "tpu.trace_start"() <{level = 10 : i32, message = "nsh,nhd->nsd"}> : () -> ()
    %cst_128 = arith.constant dense<0.000000e+00> : vector<4x8x8xf32>
    %211 = tpu.matmul %207, %193, %cst_128 {dimension_numbers = #tpu.dot_dimension_numbers<[2], [1], [1], [2], [0, 0, 0, 1, 1, 2], [0], [0]>} : vector<4x8x32xf32>, vector<4x32x8xf32>, vector<4x8x8xf32> -> vector<4x8x8xf32>
    "tpu.trace_stop"() : () -> ()
    %212 = vector.broadcast %199 : vector<4x1x8xf32> to vector<4x8x8xf32>
    %213 = arith.addf %211, %212 : vector<4x8x8xf32>
    "tpu.trace_start"() <{level = 10 : i32, message = "nsh,nhd->nsd"}> : () -> ()
    %cst_129 = arith.constant dense<0.000000e+00> : vector<4x8x8xf32>
    %214 = tpu.matmul %207, %195, %cst_129 {dimension_numbers = #tpu.dot_dimension_numbers<[2], [1], [1], [2], [0, 0, 0, 1, 1, 2], [0], [0]>} : vector<4x8x32xf32>, vector<4x32x8xf32>, vector<4x8x8xf32> -> vector<4x8x8xf32>
    "tpu.trace_stop"() : () -> ()
    %215 = vector.broadcast %201 : vector<4x1x8xf32> to vector<4x8x8xf32>
    %216 = arith.addf %214, %215 : vector<4x8x8xf32>
    "tpu.trace_start"() <{level = 10 : i32, message = "nqd,nkd->nqk"}> : () -> ()
    %cst_130 = arith.constant dense<0.000000e+00> : vector<4x8x8xf32>
    %217 = tpu.matmul %210, %213, %cst_130 {dimension_numbers = #tpu.dot_dimension_numbers<[2], [2], [1], [1], [0, 0, 0, 1, 1, 1], [0], [0]>} : vector<4x8x8xf32>, vector<4x8x8xf32>, vector<4x8x8xf32> -> vector<4x8x8xf32>
    "tpu.trace_stop"() : () -> ()
    %218 = arith.addf %217, %29 : vector<4x8x8xf32>
    %cst_131 = arith.constant dense<0xFF800000> : vector<4x8xf32>
    %219 = vector.multi_reduction <maximumf>, %218, %cst_131 [2] : vector<4x8x8xf32> to vector<4x8xf32>
    %220 = vector.shape_cast %219 : vector<4x8xf32> to vector<4x8x1xf32>
    %221 = vector.broadcast %220 : vector<4x8x1xf32> to vector<4x8x8xf32>
    %222 = arith.subf %218, %221 : vector<4x8x8xf32>
    %223 = math.exp %222 : vector<4x8x8xf32>
    %cst_132 = arith.constant dense<0.000000e+00> : vector<4x8xf32>
    %224 = vector.multi_reduction <add>, %223, %cst_132 [2] : vector<4x8x8xf32> to vector<4x8xf32>
    %225 = vector.shape_cast %224 : vector<4x8xf32> to vector<4x8x1xf32>
    %226 = tpu.reciprocal %225 {approx = true} : vector<4x8x1xf32> -> vector<4x8x1xf32>
    %227 = vector.broadcast %226 : vector<4x8x1xf32> to vector<4x8x8xf32>
    %228 = arith.mulf %223, %227 : vector<4x8x8xf32>
    "tpu.trace_start"() <{level = 10 : i32, message = "nqk,nkd->nqd"}> : () -> ()
    %cst_133 = arith.constant dense<0.000000e+00> : vector<4x8x8xf32>
    %229 = tpu.matmul %228, %216, %cst_133 {dimension_numbers = #tpu.dot_dimension_numbers<[2], [1], [1], [2], [0, 0, 0, 1, 1, 2], [0], [0]>} : vector<4x8x8xf32>, vector<4x8x8xf32>, vector<4x8x8xf32> -> vector<4x8x8xf32>
    "tpu.trace_stop"() : () -> ()
    "tpu.trace_start"() <{level = 10 : i32, message = "nsd,ndh->nsh"}> : () -> ()
    %cst_134 = arith.constant dense<0.000000e+00> : vector<4x8x32xf32>
    %230 = tpu.matmul %229, %203, %cst_134 {dimension_numbers = #tpu.dot_dimension_numbers<[2], [1], [1], [2], [0, 0, 0, 1, 1, 2], [0], [0]>} : vector<4x8x8xf32>, vector<4x8x32xf32>, vector<4x8x32xf32> -> vector<4x8x32xf32>
    "tpu.trace_stop"() : () -> ()
    %cst_135 = arith.constant dense<0.000000e+00> : vector<8x32xf32>
    %231 = vector.multi_reduction <add>, %230, %cst_135 [0] : vector<4x8x32xf32> to vector<8x32xf32>
    %232 = vector.extract_strided_slice %189 {offsets = [8, 0], sizes = [8, 32], strides = [1, 1]} : vector<16x32xf32> to vector<8x32xf32>
    %233 = vector.shape_cast %232 : vector<8x32xf32> to vector<1x8x32xf32>
    %234 = vector.shape_cast %233 : vector<1x8x32xf32> to vector<1x8x32xf32>
    %235 = vector.broadcast %234 : vector<1x8x32xf32> to vector<4x8x32xf32>
    "tpu.trace_start"() <{level = 10 : i32, message = "nsh,nhd->nsd"}> : () -> ()
    %cst_136 = arith.constant dense<0.000000e+00> : vector<4x8x8xf32>
    %236 = tpu.matmul %235, %191, %cst_136 {dimension_numbers = #tpu.dot_dimension_numbers<[2], [1], [1], [2], [0, 0, 0, 1, 1, 2], [0], [0]>} : vector<4x8x32xf32>, vector<4x32x8xf32>, vector<4x8x8xf32> -> vector<4x8x8xf32>
    "tpu.trace_stop"() : () -> ()
    %237 = vector.broadcast %197 : vector<4x1x8xf32> to vector<4x8x8xf32>
    %238 = arith.addf %236, %237 : vector<4x8x8xf32>
    "tpu.trace_start"() <{level = 10 : i32, message = "nsh,nhd->nsd"}> : () -> ()
    %cst_137 = arith.constant dense<0.000000e+00> : vector<4x8x8xf32>
    %239 = tpu.matmul %235, %193, %cst_137 {dimension_numbers = #tpu.dot_dimension_numbers<[2], [1], [1], [2], [0, 0, 0, 1, 1, 2], [0], [0]>} : vector<4x8x32xf32>, vector<4x32x8xf32>, vector<4x8x8xf32> -> vector<4x8x8xf32>
    "tpu.trace_stop"() : () -> ()
    %240 = vector.broadcast %199 : vector<4x1x8xf32> to vector<4x8x8xf32>
    %241 = arith.addf %239, %240 : vector<4x8x8xf32>
    "tpu.trace_start"() <{level = 10 : i32, message = "nsh,nhd->nsd"}> : () -> ()
    %cst_138 = arith.constant dense<0.000000e+00> : vector<4x8x8xf32>
    %242 = tpu.matmul %235, %195, %cst_138 {dimension_numbers = #tpu.dot_dimension_numbers<[2], [1], [1], [2], [0, 0, 0, 1, 1, 2], [0], [0]>} : vector<4x8x32xf32>, vector<4x32x8xf32>, vector<4x8x8xf32> -> vector<4x8x8xf32>
    "tpu.trace_stop"() : () -> ()
    %243 = vector.broadcast %201 : vector<4x1x8xf32> to vector<4x8x8xf32>
    %244 = arith.addf %242, %243 : vector<4x8x8xf32>
    "tpu.trace_start"() <{level = 10 : i32, message = "nqd,nkd->nqk"}> : () -> ()
    %cst_139 = arith.constant dense<0.000000e+00> : vector<4x8x8xf32>
    %245 = tpu.matmul %238, %241, %cst_139 {dimension_numbers = #tpu.dot_dimension_numbers<[2], [2], [1], [1], [0, 0, 0, 1, 1, 1], [0], [0]>} : vector<4x8x8xf32>, vector<4x8x8xf32>, vector<4x8x8xf32> -> vector<4x8x8xf32>
    "tpu.trace_stop"() : () -> ()
    %246 = arith.addf %245, %33 : vector<4x8x8xf32>
    %cst_140 = arith.constant dense<0xFF800000> : vector<4x8xf32>
    %247 = vector.multi_reduction <maximumf>, %246, %cst_140 [2] : vector<4x8x8xf32> to vector<4x8xf32>
    %248 = vector.shape_cast %247 : vector<4x8xf32> to vector<4x8x1xf32>
    %249 = vector.broadcast %248 : vector<4x8x1xf32> to vector<4x8x8xf32>
    %250 = arith.subf %246, %249 : vector<4x8x8xf32>
    %251 = math.exp %250 : vector<4x8x8xf32>
    %cst_141 = arith.constant dense<0.000000e+00> : vector<4x8xf32>
    %252 = vector.multi_reduction <add>, %251, %cst_141 [2] : vector<4x8x8xf32> to vector<4x8xf32>
    %253 = vector.shape_cast %252 : vector<4x8xf32> to vector<4x8x1xf32>
    %254 = tpu.reciprocal %253 {approx = true} : vector<4x8x1xf32> -> vector<4x8x1xf32>
    %255 = vector.broadcast %254 : vector<4x8x1xf32> to vector<4x8x8xf32>
    %256 = arith.mulf %251, %255 : vector<4x8x8xf32>
    "tpu.trace_start"() <{level = 10 : i32, message = "nqk,nkd->nqd"}> : () -> ()
    %cst_142 = arith.constant dense<0.000000e+00> : vector<4x8x8xf32>
    %257 = tpu.matmul %256, %244, %cst_142 {dimension_numbers = #tpu.dot_dimension_numbers<[2], [1], [1], [2], [0, 0, 0, 1, 1, 2], [0], [0]>} : vector<4x8x8xf32>, vector<4x8x8xf32>, vector<4x8x8xf32> -> vector<4x8x8xf32>
    "tpu.trace_stop"() : () -> ()
    "tpu.trace_start"() <{level = 10 : i32, message = "nsd,ndh->nsh"}> : () -> ()
    %cst_143 = arith.constant dense<0.000000e+00> : vector<4x8x32xf32>
    %258 = tpu.matmul %257, %203, %cst_143 {dimension_numbers = #tpu.dot_dimension_numbers<[2], [1], [1], [2], [0, 0, 0, 1, 1, 2], [0], [0]>} : vector<4x8x8xf32>, vector<4x8x32xf32>, vector<4x8x32xf32> -> vector<4x8x32xf32>
    "tpu.trace_stop"() : () -> ()
    %cst_144 = arith.constant dense<0.000000e+00> : vector<8x32xf32>
    %259 = vector.multi_reduction <add>, %258, %cst_144 [0] : vector<4x8x32xf32> to vector<8x32xf32>
    %260 = tpu.concatenate %231, %259 in 0 : vector<8x32xf32>, vector<8x32xf32> -> vector<16x32xf32>
    %c1_145 = arith.constant 1 : index
    %c0_146 = arith.constant 0 : index
    %c0_147 = arith.constant 0 : index
    %261 = vector.load %arg11[%c1_145, %c0_146, %c0_147] : memref<2x1x32xf32, #tpu.memory_space<vmem>>, vector<1x1x32xf32>
    %262 = vector.shape_cast %261 : vector<1x1x32xf32> to vector<1x32xf32>
    %263 = vector.broadcast %262 : vector<1x32xf32> to vector<16x32xf32>
    %264 = arith.addf %260, %263 : vector<16x32xf32>
    %265 = arith.addf %189, %264 : vector<16x32xf32>
    %c1_148 = arith.constant 1 : index
    %c0_149 = arith.constant 0 : index
    %c0_150 = arith.constant 0 : index
    %266 = vector.load %arg12[%c1_148, %c0_149, %c0_150] : memref<2x1x32xf32, #tpu.memory_space<vmem>>, vector<1x1x32xf32>
    %267 = vector.shape_cast %266 : vector<1x1x32xf32> to vector<1x32xf32>
    %c1_151 = arith.constant 1 : index
    %c0_152 = arith.constant 0 : index
    %c0_153 = arith.constant 0 : index
    %268 = vector.load %arg13[%c1_151, %c0_152, %c0_153] : memref<2x1x32xf32, #tpu.memory_space<vmem>>, vector<1x1x32xf32>
    %269 = vector.shape_cast %268 : vector<1x1x32xf32> to vector<1x32xf32>
    %cst_154 = arith.constant dense<0.000000e+00> : vector<16xf32>
    %270 = vector.multi_reduction <add>, %265, %cst_154 [1] : vector<16x32xf32> to vector<16xf32>
    %271 = vector.shape_cast %270 : vector<16xf32> to vector<16x1xf32>
    %cst_155 = arith.constant 3.200000e+01 : f32
    %272 = vector.broadcast %cst_155 : f32 to vector<16x1xf32>
    %273 = arith.divf %271, %272 : vector<16x1xf32>
    %274 = vector.broadcast %273 : vector<16x1xf32> to vector<16x32xf32>
    %275 = arith.subf %265, %274 : vector<16x32xf32>
    %276 = arith.mulf %275, %275 : vector<16x32xf32>
    %cst_156 = arith.constant dense<0.000000e+00> : vector<16xf32>
    %277 = vector.multi_reduction <add>, %276, %cst_156 [1] : vector<16x32xf32> to vector<16xf32>
    %278 = vector.shape_cast %277 : vector<16xf32> to vector<16x1xf32>
    %cst_157 = arith.constant 3.200000e+01 : f32
    %279 = vector.broadcast %cst_157 : f32 to vector<16x1xf32>
    %280 = arith.divf %278, %279 : vector<16x1xf32>
    %281 = vector.broadcast %273 : vector<16x1xf32> to vector<16x32xf32>
    %282 = arith.subf %265, %281 : vector<16x32xf32>
    %cst_158 = arith.constant 9.99999996E-13 : f32
    %283 = vector.broadcast %cst_158 : f32 to vector<16x1xf32>
    %284 = arith.addf %280, %283 : vector<16x1xf32>
    %285 = math.rsqrt %284 : vector<16x1xf32>
    %286 = vector.broadcast %285 : vector<16x1xf32> to vector<16x32xf32>
    %287 = arith.mulf %282, %286 : vector<16x32xf32>
    %288 = vector.broadcast %267 : vector<1x32xf32> to vector<16x32xf32>
    %289 = arith.mulf %287, %288 : vector<16x32xf32>
    %290 = vector.broadcast %269 : vector<1x32xf32> to vector<16x32xf32>
    %291 = arith.addf %289, %290 : vector<16x32xf32>
    %c1_159 = arith.constant 1 : index
    %c0_160 = arith.constant 0 : index
    %c0_161 = arith.constant 0 : index
    %292 = vector.load %arg14[%c1_159, %c0_160, %c0_161] : memref<2x32x64xf32, #tpu.memory_space<vmem>>, vector<1x32x64xf32>
    %293 = vector.shape_cast %292 : vector<1x32x64xf32> to vector<32x64xf32>
    %cst_162 = arith.constant dense<0.000000e+00> : vector<16x64xf32>
    %294 = tpu.matmul %291, %293, %cst_162 {dimension_numbers = #tpu.dot_dimension_numbers<[1], [0], [0], [1], [0, 0, 1, 1], [], []>} : vector<16x32xf32>, vector<32x64xf32>, vector<16x64xf32> -> vector<16x64xf32>
    %c1_163 = arith.constant 1 : index
    %c0_164 = arith.constant 0 : index
    %c0_165 = arith.constant 0 : index
    %295 = vector.load %arg15[%c1_163, %c0_164, %c0_165] : memref<2x1x64xf32, #tpu.memory_space<vmem>>, vector<1x1x64xf32>
    %296 = vector.shape_cast %295 : vector<1x1x64xf32> to vector<1x64xf32>
    %297 = vector.broadcast %296 : vector<1x64xf32> to vector<16x64xf32>
    %298 = arith.addf %294, %297 : vector<16x64xf32>
    %299 = arith.mulf %298, %298 : vector<16x64xf32>
    %300 = arith.mulf %298, %299 : vector<16x64xf32>
    %cst_166 = arith.constant 4.471500e-02 : f32
    %301 = vector.broadcast %cst_166 : f32 to vector<16x64xf32>
    %302 = arith.mulf %301, %300 : vector<16x64xf32>
    %303 = arith.addf %298, %302 : vector<16x64xf32>
    %cst_167 = arith.constant 0.797884583 : f32
    %304 = vector.broadcast %cst_167 : f32 to vector<16x64xf32>
    %305 = arith.mulf %304, %303 : vector<16x64xf32>
    %306 = math.tanh %305 : vector<16x64xf32>
    %cst_168 = arith.constant 1.000000e+00 : f32
    %307 = vector.broadcast %cst_168 : f32 to vector<16x64xf32>
    %308 = arith.addf %307, %306 : vector<16x64xf32>
    %cst_169 = arith.constant 5.000000e-01 : f32
    %309 = vector.broadcast %cst_169 : f32 to vector<16x64xf32>
    %310 = arith.mulf %309, %308 : vector<16x64xf32>
    %311 = arith.mulf %298, %310 : vector<16x64xf32>
    %c1_170 = arith.constant 1 : index
    %c0_171 = arith.constant 0 : index
    %c0_172 = arith.constant 0 : index
    %312 = vector.load %arg16[%c1_170, %c0_171, %c0_172] : memref<2x64x32xf32, #tpu.memory_space<vmem>>, vector<1x64x32xf32>
    %313 = vector.shape_cast %312 : vector<1x64x32xf32> to vector<64x32xf32>
    %cst_173 = arith.constant dense<0.000000e+00> : vector<16x32xf32>
    %314 = tpu.matmul %311, %313, %cst_173 {dimension_numbers = #tpu.dot_dimension_numbers<[1], [0], [0], [1], [0, 0, 1, 1], [], []>} : vector<16x64xf32>, vector<64x32xf32>, vector<16x32xf32> -> vector<16x32xf32>
    %c1_174 = arith.constant 1 : index
    %c0_175 = arith.constant 0 : index
    %c0_176 = arith.constant 0 : index
    %315 = vector.load %arg17[%c1_174, %c0_175, %c0_176] : memref<2x1x32xf32, #tpu.memory_space<vmem>>, vector<1x1x32xf32>
    %316 = vector.shape_cast %315 : vector<1x1x32xf32> to vector<1x32xf32>
    %317 = vector.broadcast %316 : vector<1x32xf32> to vector<16x32xf32>
    %318 = arith.addf %314, %317 : vector<16x32xf32>
    %319 = arith.addf %291, %318 : vector<16x32xf32>
    %c1_177 = arith.constant 1 : index
    %c0_178 = arith.constant 0 : index
    %c0_179 = arith.constant 0 : index
    %320 = vector.load %arg18[%c1_177, %c0_178, %c0_179] : memref<2x1x32xf32, #tpu.memory_space<vmem>>, vector<1x1x32xf32>
    %321 = vector.shape_cast %320 : vector<1x1x32xf32> to vector<1x32xf32>
    %c1_180 = arith.constant 1 : index
    %c0_181 = arith.constant 0 : index
    %c0_182 = arith.constant 0 : index
    %322 = vector.load %arg19[%c1_180, %c0_181, %c0_182] : memref<2x1x32xf32, #tpu.memory_space<vmem>>, vector<1x1x32xf32>
    %323 = vector.shape_cast %322 : vector<1x1x32xf32> to vector<1x32xf32>
    %cst_183 = arith.constant dense<0.000000e+00> : vector<16xf32>
    %324 = vector.multi_reduction <add>, %319, %cst_183 [1] : vector<16x32xf32> to vector<16xf32>
    %325 = vector.shape_cast %324 : vector<16xf32> to vector<16x1xf32>
    %cst_184 = arith.constant 3.200000e+01 : f32
    %326 = vector.broadcast %cst_184 : f32 to vector<16x1xf32>
    %327 = arith.divf %325, %326 : vector<16x1xf32>
    %328 = vector.broadcast %327 : vector<16x1xf32> to vector<16x32xf32>
    %329 = arith.subf %319, %328 : vector<16x32xf32>
    %330 = arith.mulf %329, %329 : vector<16x32xf32>
    %cst_185 = arith.constant dense<0.000000e+00> : vector<16xf32>
    %331 = vector.multi_reduction <add>, %330, %cst_185 [1] : vector<16x32xf32> to vector<16xf32>
    %332 = vector.shape_cast %331 : vector<16xf32> to vector<16x1xf32>
    %cst_186 = arith.constant 3.200000e+01 : f32
    %333 = vector.broadcast %cst_186 : f32 to vector<16x1xf32>
    %334 = arith.divf %332, %333 : vector<16x1xf32>
    %335 = vector.broadcast %327 : vector<16x1xf32> to vector<16x32xf32>
    %336 = arith.subf %319, %335 : vector<16x32xf32>
    %cst_187 = arith.constant 9.99999996E-13 : f32
    %337 = vector.broadcast %cst_187 : f32 to vector<16x1xf32>
    %338 = arith.addf %334, %337 : vector<16x1xf32>
    %339 = math.rsqrt %338 : vector<16x1xf32>
    %340 = vector.broadcast %339 : vector<16x1xf32> to vector<16x32xf32>
    %341 = arith.mulf %336, %340 : vector<16x32xf32>
    %342 = vector.broadcast %321 : vector<1x32xf32> to vector<16x32xf32>
    %343 = arith.mulf %341, %342 : vector<16x32xf32>
    %344 = vector.broadcast %323 : vector<1x32xf32> to vector<16x32xf32>
    %345 = arith.addf %343, %344 : vector<16x32xf32>
    %346 = vector.extract_strided_slice %345 {offsets = [0, 0], sizes = [1, 32], strides = [1, 1]} : vector<16x32xf32> to vector<1x32xf32>
    %347 = vector.extract_strided_slice %345 {offsets = [8, 0], sizes = [1, 32], strides = [1, 1]} : vector<16x32xf32> to vector<1x32xf32>
    %348 = tpu.concatenate %346, %347 in 0 : vector<1x32xf32>, vector<1x32xf32> -> vector<2x32xf32>
    %c0_188 = arith.constant 0 : index
    %c0_189 = arith.constant 0 : index
    %349 = vector.load %arg20[%c0_188, %c0_189] : memref<32x32xf32, #tpu.memory_space<vmem>>, vector<32x32xf32>
    %cst_190 = arith.constant dense<0.000000e+00> : vector<2x32xf32>
    %350 = tpu.matmul %348, %349, %cst_190 {dimension_numbers = #tpu.dot_dimension_numbers<[1], [0], [0], [1], [0, 0, 1, 1], [], []>} : vector<2x32xf32>, vector<32x32xf32>, vector<2x32xf32> -> vector<2x32xf32>
    %c0_191 = arith.constant 0 : index
    %c0_192 = arith.constant 0 : index
    %351 = vector.load %arg21[%c0_191, %c0_192] : memref<1x32xf32, #tpu.memory_space<vmem>>, vector<1x32xf32>
    %352 = vector.broadcast %351 : vector<1x32xf32> to vector<2x32xf32>
    %353 = arith.addf %350, %352 : vector<2x32xf32>
    %354 = math.tanh %353 : vector<2x32xf32>
    %c0_193 = arith.constant 0 : index
    %c0_194 = arith.constant 0 : index
    %355 = vector.load %arg22[%c0_193, %c0_194] : memref<32x128xf32, #tpu.memory_space<vmem>>, vector<32x128xf32>
    %cst_195 = arith.constant dense<0.000000e+00> : vector<2x128xf32>
    %356 = tpu.matmul %354, %355, %cst_195 {dimension_numbers = #tpu.dot_dimension_numbers<[1], [0], [0], [1], [0, 0, 1, 1], [], []>} : vector<2x32xf32>, vector<32x128xf32>, vector<2x128xf32> -> vector<2x128xf32>
    %c0_196 = arith.constant 0 : index
    %c0_197 = arith.constant 0 : index
    %357 = vector.load %arg23[%c0_196, %c0_197] : memref<1x128xf32, #tpu.memory_space<vmem>>, vector<1x128xf32>
    %358 = vector.broadcast %357 : vector<1x128xf32> to vector<2x128xf32>
    %359 = arith.addf %356, %358 : vector<2x128xf32>
    %c0_198 = arith.constant 0 : index
    %c0_199 = arith.constant 0 : index
    %360 = vector.load %arg24[%c0_198, %c0_199] : memref<2x128xf32, #tpu.memory_space<vmem>>, vector<2x128xf32>
    tpu.vector_store %arg24[%c0_198, %c0_199], %359 {strides = array<i32>} : memref<2x128xf32, #tpu.memory_space<vmem>>, vector<2x128xf32>,
    return
  }
}

</mosaic_0001>

<llo_original>
// kernel: distilbert_class_forward.1
$region0: #{distilbert_class_forward.1}
  #allocation0 [shape = 'u32[]', space=smem, size = 0x4, offset = 0x4, fixed_abs, tag = 'smem constant byte address 0x4 - core index']
  #allocation1 [shape = 'u32[144,128]{1,0:T(1,128)}', space=vmem, size = 0x12000, scoped, tag = 'internal scratch']
  %s0 = inlined_call_operand.vmem [shape: f32[16,32], index: 0, kind: input, shape index: {}]
  %s1 = inlined_call_operand.vmem [shape: f32[2,8], index: 1, kind: input, shape index: {}]
  %s2 = inlined_call_operand.vmem [shape: f32[1,32], index: 2, kind: input, shape index: {}]
  %s3 = inlined_call_operand.vmem [shape: f32[1,32], index: 3, kind: input, shape index: {}]
  %s4 = inlined_call_operand.vmem [shape: f32[2,4,32,8], index: 4, kind: input, shape index: {}]
  %s5 = inlined_call_operand.vmem [shape: f32[2,4,32,8], index: 5, kind: input, shape index: {}]
  %s6 = inlined_call_operand.vmem [shape: f32[2,4,32,8], index: 6, kind: input, shape index: {}]
  %s7 = inlined_call_operand.vmem [shape: f32[2,4,1,8], index: 7, kind: input, shape index: {}]
  %s8 = inlined_call_operand.vmem [shape: f32[2,4,1,8], index: 8, kind: input, shape index: {}]
  %s9 = inlined_call_operand.vmem [shape: f32[2,4,1,8], index: 9, kind: input, shape index: {}]
  %s10 = inlined_call_operand.vmem [shape: f32[2,4,8,32], index: 10, kind: input, shape index: {}]
  %s11 = inlined_call_operand.vmem [shape: f32[2,1,32], index: 11, kind: input, shape index: {}]
  %s12 = inlined_call_operand.vmem [shape: f32[2,1,32], index: 12, kind: input, shape index: {}]
  %s13 = inlined_call_operand.vmem [shape: f32[2,1,32], index: 13, kind: input, shape index: {}]
  %s14 = inlined_call_operand.vmem [shape: f32[2,32,64], index: 14, kind: input, shape index: {}]
  %s15 = inlined_call_operand.vmem [shape: f32[2,1,64], index: 15, kind: input, shape index: {}]
  %s16 = inlined_call_operand.vmem [shape: f32[2,64,32], index: 16, kind: input, shape index: {}]
  %s17 = inlined_call_operand.vmem [shape: f32[2,1,32], index: 17, kind: input, shape index: {}]
  %s18 = inlined_call_operand.vmem [shape: f32[2,1,32], index: 18, kind: input, shape index: {}]
  %s19 = inlined_call_operand.vmem [shape: f32[2,1,32], index: 19, kind: input, shape index: {}]
  %s20 = inlined_call_operand.vmem [shape: f32[32,32], index: 20, kind: input, shape index: {}]
  %s21 = inlined_call_operand.vmem [shape: f32[1,32], index: 21, kind: input, shape index: {}]
  %s22 = inlined_call_operand.vmem [shape: f32[32,128], index: 22, kind: input, shape index: {}]
  %s23 = inlined_call_operand.vmem [shape: f32[1,128], index: 23, kind: input, shape index: {}]
  %s24 = inlined_call_operand.hbm [shape: f32[2,128], index: 24, kind: output, shape index: {}]
  %s25 = sld [smem:[#allocation0]]
  $region106: #{distilbert_class_forward.1} parent=0
    _
  %s27 = ssub.s32 1, %s25
  %s28 = scalar_select 0, %s27, %s25
  $region1: #{distilbert_class_forward.1} parent=0
    #allocation2 [shape = 'u8[1024]{0}', space=vmem, size = 0x400, scoped, tag = 'output window, operand 0, single buffered']
    #allocation3 [shape = 's32[1]{0}', space=sflag, size = 0x4, scoped, tag = 'scoped memory for distilbert_class_forward.1']
    %29 = vsyncpa [#allocation3], 0
    // Predicated region
    $region2: #{distilbert_class_forward.1} parent=1 // pred_check
      _
    $region3: #{distilbert_class_forward.1} parent=1 // pred_check_branch
      %31 = sbr.rel (0) target = $region5
    $region4: #{distilbert_class_forward.1} parent=1 // pred_region
      _
    $region5: #{distilbert_class_forward.1} parent=1 // pred_fallthru
      _
    // Predicated region
    $region6: #{distilbert_class_forward.1} parent=1 // pred_check
      _
    $region7: #{distilbert_class_forward.1} parent=1 // pred_check_branch
      %33 = sbr.rel (0) target = $region9
    $region8: #{distilbert_class_forward.1} parent=1 // pred_region
      _
    $region9: #{distilbert_class_forward.1} parent=1 // pred_fallthru
      _
    // Predicated region
    $region10: #{distilbert_class_forward.1} parent=1 // pred_check
      _
    $region11: #{distilbert_class_forward.1} parent=1 // pred_check_branch
      %35 = sbr.rel (0) target = $region13
    $region12: #{distilbert_class_forward.1} parent=1 // pred_region
      _
    $region13: #{distilbert_class_forward.1} parent=1 // pred_fallthru
      _
    // Predicated region
    $region14: #{distilbert_class_forward.1} parent=1 // pred_check
      _
    $region15: #{distilbert_class_forward.1} parent=1 // pred_check_branch
      %37 = sbr.rel (0) target = $region17
    $region16: #{distilbert_class_forward.1} parent=1 // pred_region
      _
    $region17: #{distilbert_class_forward.1} parent=1 // pred_fallthru
      _
    // Predicated region
    $region18: #{distilbert_class_forward.1} parent=1 // pred_check
      _
    $region19: #{distilbert_class_forward.1} parent=1 // pred_check_branch
      %39 = sbr.rel (0) target = $region21
    $region20: #{distilbert_class_forward.1} parent=1 // pred_region
      _
    $region21: #{distilbert_class_forward.1} parent=1 // pred_fallthru
      _
    // Predicated region
    $region22: #{distilbert_class_forward.1} parent=1 // pred_check
      _
    $region23: #{distilbert_class_forward.1} parent=1 // pred_check_branch
      %41 = sbr.rel (0) target = $region25
    $region24: #{distilbert_class_forward.1} parent=1 // pred_region
      _
    $region25: #{distilbert_class_forward.1} parent=1 // pred_fallthru
      _
    // Predicated region
    $region26: #{distilbert_class_forward.1} parent=1 // pred_check
      _
    $region27: #{distilbert_class_forward.1} parent=1 // pred_check_branch
      %43 = sbr.rel (0) target = $region29
    $region28: #{distilbert_class_forward.1} parent=1 // pred_region
      _
    $region29: #{distilbert_class_forward.1} parent=1 // pred_fallthru
      _
    // Predicated region
    $region30: #{distilbert_class_forward.1} parent=1 // pred_check
      _
    $region31: #{distilbert_class_forward.1} parent=1 // pred_check_branch
      %45 = sbr.rel (0) target = $region33
    $region32: #{distilbert_class_forward.1} parent=1 // pred_region
      _
    $region33: #{distilbert_class_forward.1} parent=1 // pred_fallthru
      _
    // Predicated region
    $region34: #{distilbert_class_forward.1} parent=1 // pred_check
      _
    $region35: #{distilbert_class_forward.1} parent=1 // pred_check_branch
      %47 = sbr.rel (0) target = $region37
    $region36: #{distilbert_class_forward.1} parent=1 // pred_region
      _
    $region37: #{distilbert_class_forward.1} parent=1 // pred_fallthru
      _
    // Predicated region
    $region38: #{distilbert_class_forward.1} parent=1 // pred_check
      _
    $region39: #{distilbert_class_forward.1} parent=1 // pred_check_branch
      %49 = sbr.rel (0) target = $region41
    $region40: #{distilbert_class_forward.1} parent=1 // pred_region
      _
    $region41: #{distilbert_class_forward.1} parent=1 // pred_fallthru
      _
    // Predicated region
    $region42: #{distilbert_class_forward.1} parent=1 // pred_check
      _
    $region43: #{distilbert_class_forward.1} parent=1 // pred_check_branch
      %51 = sbr.rel (0) target = $region45
    $region44: #{distilbert_class_forward.1} parent=1 // pred_region
      _
    $region45: #{distilbert_class_forward.1} parent=1 // pred_fallthru
      _
    // Predicated region
    $region46: #{distilbert_class_forward.1} parent=1 // pred_check
      _
    $region47: #{distilbert_class_forward.1} parent=1 // pred_check_branch
      %53 = sbr.rel (0) target = $region49
    $region48: #{distilbert_class_forward.1} parent=1 // pred_region
      _
    $region49: #{distilbert_class_forward.1} parent=1 // pred_fallthru
      _
    // Predicated region
    $region50: #{distilbert_class_forward.1} parent=1 // pred_check
      _
    $region51: #{distilbert_class_forward.1} parent=1 // pred_check_branch
      %55 = sbr.rel (0) target = $region53
    $region52: #{distilbert_class_forward.1} parent=1 // pred_region
      _
    $region53: #{distilbert_class_forward.1} parent=1 // pred_fallthru
      _
    // Predicated region
    $region54: #{distilbert_class_forward.1} parent=1 // pred_check
      _
    $region55: #{distilbert_class_forward.1} parent=1 // pred_check_branch
      %57 = sbr.rel (0) target = $region57
    $region56: #{distilbert_class_forward.1} parent=1 // pred_region
      _
    $region57: #{distilbert_class_forward.1} parent=1 // pred_fallthru
      _
    // Predicated region
    $region58: #{distilbert_class_forward.1} parent=1 // pred_check
      _
    $region59: #{distilbert_class_forward.1} parent=1 // pred_check_branch
      %59 = sbr.rel (0) target = $region61
    $region60: #{distilbert_class_forward.1} parent=1 // pred_region
      _
    $region61: #{distilbert_class_forward.1} parent=1 // pred_fallthru
      _
    // Predicated region
    $region62: #{distilbert_class_forward.1} parent=1 // pred_check
      _
    $region63: #{distilbert_class_forward.1} parent=1 // pred_check_branch
      %61 = sbr.rel (0) target = $region65
    $region64: #{distilbert_class_forward.1} parent=1 // pred_region
      _
    $region65: #{distilbert_class_forward.1} parent=1 // pred_fallthru
      _
    // Predicated region
    $region66: #{distilbert_class_forward.1} parent=1 // pred_check
      _
    $region67: #{distilbert_class_forward.1} parent=1 // pred_check_branch
      %63 = sbr.rel (0) target = $region69
    $region68: #{distilbert_class_forward.1} parent=1 // pred_region
      _
    $region69: #{distilbert_class_forward.1} parent=1 // pred_fallthru
      _
    // Predicated region
    $region70: #{distilbert_class_forward.1} parent=1 // pred_check
      _
    $region71: #{distilbert_class_forward.1} parent=1 // pred_check_branch
      %65 = sbr.rel (0) target = $region73
    $region72: #{distilbert_class_forward.1} parent=1 // pred_region
      _
    $region73: #{distilbert_class_forward.1} parent=1 // pred_fallthru
      _
    // Predicated region
    $region74: #{distilbert_class_forward.1} parent=1 // pred_check
      _
    $region75: #{distilbert_class_forward.1} parent=1 // pred_check_branch
      %67 = sbr.rel (0) target = $region77
    $region76: #{distilbert_class_forward.1} parent=1 // pred_region
      _
    $region77: #{distilbert_class_forward.1} parent=1 // pred_fallthru
      _
    // Predicated region
    $region78: #{distilbert_class_forward.1} parent=1 // pred_check
      _
    $region79: #{distilbert_class_forward.1} parent=1 // pred_check_branch
      %69 = sbr.rel (0) target = $region81
    $region80: #{distilbert_class_forward.1} parent=1 // pred_region
      _
    $region81: #{distilbert_class_forward.1} parent=1 // pred_fallthru
      _
    // Predicated region
    $region82: #{distilbert_class_forward.1} parent=1 // pred_check
      _
    $region83: #{distilbert_class_forward.1} parent=1 // pred_check_branch
      %71 = sbr.rel (0) target = $region85
    $region84: #{distilbert_class_forward.1} parent=1 // pred_region
      _
    $region85: #{distilbert_class_forward.1} parent=1 // pred_fallthru
      _
    // Predicated region
    $region86: #{distilbert_class_forward.1} parent=1 // pred_check
      _
    $region87: #{distilbert_class_forward.1} parent=1 // pred_check_branch
      %73 = sbr.rel (0) target = $region89
    $region88: #{distilbert_class_forward.1} parent=1 // pred_region
      _
    $region89: #{distilbert_class_forward.1} parent=1 // pred_fallthru
      _
    // Predicated region
    $region90: #{distilbert_class_forward.1} parent=1 // pred_check
      _
    $region91: #{distilbert_class_forward.1} parent=1 // pred_check_branch
      %75 = sbr.rel (0) target = $region93
    $region92: #{distilbert_class_forward.1} parent=1 // pred_region
      _
    $region93: #{distilbert_class_forward.1} parent=1 // pred_fallthru
      _
    // Predicated region
    $region94: #{distilbert_class_forward.1} parent=1 // pred_check
      _
    $region95: #{distilbert_class_forward.1} parent=1 // pred_check_branch
      %77 = sbr.rel (0) target = $region97
    $region96: #{distilbert_class_forward.1} parent=1 // pred_region
      _
    $region97: #{distilbert_class_forward.1} parent=1 // pred_fallthru
      _
    %v78 = vld [vmem:[%s0] sm:$0xff]
    %v79 = vld [vmem:[%s0 + $0x8] sm:$0xff]
    %v80 = vld [vmem:[%s2] sm:$0x1]
    %v81 = vld [vmem:[%s3] sm:$0x1]
    %vm82 = vcmask 261120
    %v83 = vsel %vm82, %v78, 0.0
    %84 = vadd.xlane.f32.xlu0 %v83
    %v85 = vpop.xlane.xlu0 %84
    %v86 = vsel %vm82, %v79, 0.0
    %87 = vadd.xlane.f32.xlu0 %v86
    %v88 = vpop.xlane.xlu0 %87
    %v89 = vrcp.pop 32.0
    %v90 = vmul.f32 %v85, %v89
    %v91 = vmul.f32 %v88, %v89
    %v92 = vsub.f32 %v78, %v90
    %v93 = vsub.f32 %v79, %v91
    %v94 = vmul.f32 %v92, %v92
    %v95 = vmul.f32 %v93, %v93
    %v96 = vsel %vm82, %v94, 0.0
    %97 = vadd.xlane.f32.xlu0 %v96
    %v98 = vpop.xlane.xlu0 %97
    %v99 = vsel %vm82, %v95, 0.0
    %100 = vadd.xlane.f32.xlu0 %v99
    %v101 = vpop.xlane.xlu0 %100
    %v102 = vmul.f32 %v98, %v89
    %v103 = vmul.f32 %v101, %v89
    %v104 = vadd.f32 %v102, 1e-12
    %v105 = vadd.f32 %v103, 1e-12
    %v106 = vrsqrt.pop %v104
    %v107 = vrsqrt.pop %v105
    %v108 = vmul.f32 %v92, %v106
    %v109 = vmul.f32 %v93, %v107
    %v111 = vlaneseq
    %v112 = vshrl.u32 %v111, 7
    %v113 = vsub.s32 0, %v112
    %v114 = vrot.slane %v80, %v113
    %v116 = vmul.f32 %v108, %v114
    %v117 = vmul.f32 %v109, %v114
    %v119 = vlaneseq
    %v120 = vshrl.u32 %v119, 7
    %v121 = vsub.s32 0, %v120
    %v122 = vrot.slane %v81, %v121
    %v124 = vadd.f32 %v116, %v122
    %v125 = vadd.f32 %v117, %v122
    %v126 = vld [vmem:[%s1] sm:$0x3]
    %v127 = vlaneseq
    %v128 = vshrl.u32 %v127, 7
    %v129 = vsub.s32 0, %v128
    %v130 = vrot.slane %v126, %v129
    %v131 = vlaneseq
    %v132 = vshrl.u32 %v131, 7
    %v133 = vsub.s32 1, %v132
    %v134 = vrot.slane %v126, %v133
    %v135 = vld [vmem:[%s4] sm:$0xff]
    %v136 = vld [vmem:[%s4 + $0x8] sm:$0xff]
    %v137 = vld [vmem:[%s4 + $0x10] sm:$0xff]
    %v138 = vld [vmem:[%s4 + $0x18] sm:$0xff]
    %v139 = vld [vmem:[%s4 + $0x20] sm:$0xff]
    %v140 = vld [vmem:[%s4 + $0x28] sm:$0xff]
    %v141 = vld [vmem:[%s4 + $0x30] sm:$0xff]
    %v142 = vld [vmem:[%s4 + $0x38] sm:$0xff]
    %v143 = vld [vmem:[%s4 + $0x40] sm:$0xff]
    %v144 = vld [vmem:[%s4 + $0x48] sm:$0xff]
    %v145 = vld [vmem:[%s4 + $0x50] sm:$0xff]
    %v146 = vld [vmem:[%s4 + $0x58] sm:$0xff]
    %v147 = vld [vmem:[%s4 + $0x60] sm:$0xff]
    %v148 = vld [vmem:[%s4 + $0x68] sm:$0xff]
    %v149 = vld [vmem:[%s4 + $0x70] sm:$0xff]
    %v150 = vld [vmem:[%s4 + $0x78] sm:$0xff]
    %v151 = vld [vmem:[%s5] sm:$0xff]
    %v152 = vld [vmem:[%s5 + $0x8] sm:$0xff]
    %v153 = vld [vmem:[%s5 + $0x10] sm:$0xff]
    %v154 = vld [vmem:[%s5 + $0x18] sm:$0xff]
    %v155 = vld [vmem:[%s5 + $0x20] sm:$0xff]
    %v156 = vld [vmem:[%s5 + $0x28] sm:$0xff]
    %v157 = vld [vmem:[%s5 + $0x30] sm:$0xff]
    %v158 = vld [vmem:[%s5 + $0x38] sm:$0xff]
    %v159 = vld [vmem:[%s5 + $0x40] sm:$0xff]
    %v160 = vld [vmem:[%s5 + $0x48] sm:$0xff]
    %v161 = vld [vmem:[%s5 + $0x50] sm:$0xff]
    %v162 = vld [vmem:[%s5 + $0x58] sm:$0xff]
    %v163 = vld [vmem:[%s5 + $0x60] sm:$0xff]
    %v164 = vld [vmem:[%s5 + $0x68] sm:$0xff]
    %v165 = vld [vmem:[%s5 + $0x70] sm:$0xff]
    %v166 = vld [vmem:[%s5 + $0x78] sm:$0xff]
    %v167 = vld [vmem:[%s6] sm:$0xff]
    %v168 = vld [vmem:[%s6 + $0x8] sm:$0xff]
    %v169 = vld [vmem:[%s6 + $0x10] sm:$0xff]
    %v170 = vld [vmem:[%s6 + $0x18] sm:$0xff]
    %v171 = vld [vmem:[%s6 + $0x20] sm:$0xff]
    %v172 = vld [vmem:[%s6 + $0x28] sm:$0xff]
    %v173 = vld [vmem:[%s6 + $0x30] sm:$0xff]
    %v174 = vld [vmem:[%s6 + $0x38] sm:$0xff]
    %v175 = vld [vmem:[%s6 + $0x40] sm:$0xff]
    %v176 = vld [vmem:[%s6 + $0x48] sm:$0xff]
    %v177 = vld [vmem:[%s6 + $0x50] sm:$0xff]
    %v178 = vld [vmem:[%s6 + $0x58] sm:$0xff]
    %v179 = vld [vmem:[%s6 + $0x60] sm:$0xff]
    %v180 = vld [vmem:[%s6 + $0x68] sm:$0xff]
    %v181 = vld [vmem:[%s6 + $0x70] sm:$0xff]
    %v182 = vld [vmem:[%s6 + $0x78] sm:$0xff]
    %v183 = vld [vmem:[%s7] sm:$0x1]
    %v184 = vld [vmem:[%s7 + $0x1] sm:$0x1]
    %v185 = vld [vmem:[%s7 + $0x2] sm:$0x1]
    %v186 = vld [vmem:[%s7 + $0x3] sm:$0x1]
    %v187 = vld [vmem:[%s8] sm:$0x1]
    %v188 = vld [vmem:[%s8 + $0x1] sm:$0x1]
    %v189 = vld [vmem:[%s8 + $0x2] sm:$0x1]
    %v190 = vld [vmem:[%s8 + $0x3] sm:$0x1]
    %v191 = vld [vmem:[%s9] sm:$0x1]
    %v192 = vld [vmem:[%s9 + $0x1] sm:$0x1]
    %v193 = vld [vmem:[%s9 + $0x2] sm:$0x1]
    %v194 = vld [vmem:[%s9 + $0x3] sm:$0x1]
    %v195 = vld [vmem:[%s10] sm:$0xff]
    %v196 = vld [vmem:[%s10 + $0x8] sm:$0xff]
    %v197 = vld [vmem:[%s10 + $0x10] sm:$0xff]
    %v198 = vld [vmem:[%s10 + $0x18] sm:$0xff]
    %v203 = vlaneseq
    %v204 = vshrl.u32 %v203, 7
    %v205 = vsub.s32 0, %v204
    %v206 = vrot.slane %v183, %v205
    %v207 = vlaneseq
    %v208 = vshrl.u32 %v207, 7
    %v209 = vsub.s32 0, %v208
    %v210 = vrot.slane %v184, %v209
    %v211 = vlaneseq
    %v212 = vshrl.u32 %v211, 7
    %v213 = vsub.s32 0, %v212
    %v214 = vrot.slane %v185, %v213
    %v215 = vlaneseq
    %v216 = vshrl.u32 %v215, 7
    %v217 = vsub.s32 0, %v216
    %v218 = vrot.slane %v186, %v217
    %v224 = vsel %vm82, %v124, 0
    %226 = vmatprep.subr.mxu0 0.0
    %227 = vmatpush1.msra.mxu0 %v135
    %228 = vmatprep.subr.mxu0 0.0
    %229 = vmatpush1.msra.mxu0 %v136
    %230 = vmatprep.subr.mxu0 0.0
    %231 = vmatpush1.msra.mxu0 %v137
    %232 = vmatprep.subr.mxu0 0.0
    %233 = vmatpush1.msra.mxu0 %v138
    %234 = vmatprep.subr.mxu0 0.0
    %235 = vmatpush1.msra.mxu0 0.0
    %236 = vmatprep.subr.mxu0 0.0
    %237 = vmatpush1.msra.mxu0 0.0
    %238 = vmatprep.subr.mxu0 0.0
    %239 = vmatpush1.msra.mxu0 0.0
    %240 = vmatprep.subr.mxu0 0.0
    %241 = vmatpush1.msra.mxu0 0.0
    %242 = vmatprep.subr.mxu0 0.0
    %243 = vmatpush1.msra.mxu0 0.0
    %244 = vmatprep.subr.mxu0 0.0
    %245 = vmatpush1.msra.mxu0 0.0
    %246 = vmatprep.subr.mxu0 0.0
    %247 = vmatpush1.msra.mxu0 0.0
    %248 = vmatprep.subr.mxu0 0.0
    %249 = vmatpush1.msra.mxu0 0.0
    %250 = vmatprep.subr.mxu0 0.0
    %251 = vmatpush1.msra.mxu0 0.0
    %252 = vmatprep.subr.mxu0 0.0
    %253 = vmatpush1.msra.mxu0 0.0
    %254 = vmatprep.subr.mxu0 0.0
    %255 = vmatpush1.msra.mxu0 0.0
    %256 = vmatprep.subr.mxu0 0.0
    %257 = vmatpush1.msra.mxu0 0.0
    %258 = vmatprep.subr.mxu0 0.0
    %259 = vmatpush1.msra.mxu0 0.0
    %260 = vmatprep.subr.mxu0 0.0
    %261 = vmatpush1.msra.mxu0 0.0
    %262 = vmatprep.subr.mxu0 0.0
    %263 = vmatpush1.msra.mxu0 0.0
    %264 = vmatprep.subr.mxu0 0.0
    %265 = vmatpush1.msra.mxu0 0.0
    %266 = vmatprep.subr.mxu0 0.0
    %267 = vmatpush1.msra.mxu0 0.0
    %268 = vmatprep.subr.mxu0 0.0
    %269 = vmatpush1.msra.mxu0 0.0
    %270 = vmatprep.subr.mxu0 0.0
    %271 = vmatpush1.msra.mxu0 0.0
    %272 = vmatprep.subr.mxu0 0.0
    %273 = vmatpush1.msra.mxu0 0.0
    %274 = vmatprep.subr.mxu0 0.0
    %275 = vmatpush1.msra.mxu0 0.0
    %276 = vmatprep.subr.mxu0 0.0
    %277 = vmatpush1.msra.mxu0 0.0
    %278 = vmatprep.subr.mxu0 0.0
    %279 = vmatpush1.msra.mxu0 0.0
    %280 = vmatprep.subr.mxu0 0.0
    %281 = vmatpush1.msra.mxu0 0.0
    %282 = vmatprep.subr.mxu0 0.0
    %283 = vmatpush1.msra.mxu0 0.0
    %284 = vmatprep.subr.mxu0 0.0
    %285 = vmatpush1.msra.mxu0 0.0
    %286 = vmatprep.subr.mxu0 0.0
    %287 = vmatpush1.msra.mxu0 0.0
    %288 = vmatprep.subr.mxu0 0.0
    %289 = vmatpush1.msra.mxu0 0.0
    %290 = vmatprep.mubr.f32.mxu0 0.0
    %291 = vmatmul.mubr.f32.gmra.mrb[0].mxu0 %v224
    %v292 = vpop.f32.mrb[0].mxu0
    %v293 = vadd.f32 %v206, %v292
    %v294 = vpop.f32.mrb[0].mxu0
    %295 = vdwg.mxu0
    %296 = vmatprep.subr.mxu0 0.0
    %297 = vmatpush1.msra.mxu0 %v139
    %298 = vmatprep.subr.mxu0 0.0
    %299 = vmatpush1.msra.mxu0 %v140
    %300 = vmatprep.subr.mxu0 0.0
    %301 = vmatpush1.msra.mxu0 %v141
    %302 = vmatprep.subr.mxu0 0.0
    %303 = vmatpush1.msra.mxu0 %v142
    %304 = vmatprep.subr.mxu0 0.0
    %305 = vmatpush1.msra.mxu0 0.0
    %306 = vmatprep.subr.mxu0 0.0
    %307 = vmatpush1.msra.mxu0 0.0
    %308 = vmatprep.subr.mxu0 0.0
    %309 = vmatpush1.msra.mxu0 0.0
    %310 = vmatprep.subr.mxu0 0.0
    %311 = vmatpush1.msra.mxu0 0.0
    %312 = vmatprep.subr.mxu0 0.0
    %313 = vmatpush1.msra.mxu0 0.0
    %314 = vmatprep.subr.mxu0 0.0
    %315 = vmatpush1.msra.mxu0 0.0
    %316 = vmatprep.subr.mxu0 0.0
    %317 = vmatpush1.msra.mxu0 0.0
    %318 = vmatprep.subr.mxu0 0.0
    %319 = vmatpush1.msra.mxu0 0.0
    %320 = vmatprep.subr.mxu0 0.0
    %321 = vmatpush1.msra.mxu0 0.0
    %322 = vmatprep.subr.mxu0 0.0
    %323 = vmatpush1.msra.mxu0 0.0
    %324 = vmatprep.subr.mxu0 0.0
    %325 = vmatpush1.msra.mxu0 0.0
    %326 = vmatprep.subr.mxu0 0.0
    %327 = vmatpush1.msra.mxu0 0.0
    %328 = vmatprep.subr.mxu0 0.0
    %329 = vmatpush1.msra.mxu0 0.0
    %330 = vmatprep.subr.mxu0 0.0
    %331 = vmatpush1.msra.mxu0 0.0
    %332 = vmatprep.subr.mxu0 0.0
    %333 = vmatpush1.msra.mxu0 0.0
    %334 = vmatprep.subr.mxu0 0.0
    %335 = vmatpush1.msra.mxu0 0.0
    %336 = vmatprep.subr.mxu0 0.0
    %337 = vmatpush1.msra.mxu0 0.0
    %338 = vmatprep.subr.mxu0 0.0
    %339 = vmatpush1.msra.mxu0 0.0
    %340 = vmatprep.subr.mxu0 0.0
    %341 = vmatpush1.msra.mxu0 0.0
    %342 = vmatprep.subr.mxu0 0.0
    %343 = vmatpush1.msra.mxu0 0.0
    %344 = vmatprep.subr.mxu0 0.0
    %345 = vmatpush1.msra.mxu0 0.0
    %346 = vmatprep.subr.mxu0 0.0
    %347 = vmatpush1.msra.mxu0 0.0
    %348 = vmatprep.subr.mxu0 0.0
    %349 = vmatpush1.msra.mxu0 0.0
    %350 = vmatprep.subr.mxu0 0.0
    %351 = vmatpush1.msra.mxu0 0.0
    %352 = vmatprep.subr.mxu0 0.0
    %353 = vmatpush1.msra.mxu0 0.0
    %354 = vmatprep.subr.mxu0 0.0
    %355 = vmatpush1.msra.mxu0 0.0
    %356 = vmatprep.subr.mxu0 0.0
    %357 = vmatpush1.msra.mxu0 0.0
    %358 = vmatprep.subr.mxu0 0.0
    %359 = vmatpush1.msra.mxu0 0.0
    %360 = vmatprep.mubr.f32.mxu0 0.0
    %361 = vmatmul.mubr.f32.gmra.mrb[0].mxu0 %v224
    %v362 = vpop.f32.mrb[0].mxu0
    %v363 = vadd.f32 %v210, %v362
    %v364 = vpop.f32.mrb[0].mxu0
    %365 = vdwg.mxu0
    %366 = vmatprep.subr.mxu0 0.0
    %367 = vmatpush1.msra.mxu0 %v143
    %368 = vmatprep.subr.mxu0 0.0
    %369 = vmatpush1.msra.mxu0 %v144
    %370 = vmatprep.subr.mxu0 0.0
    %371 = vmatpush1.msra.mxu0 %v145
    %372 = vmatprep.subr.mxu0 0.0
    %373 = vmatpush1.msra.mxu0 %v146
    %374 = vmatprep.subr.mxu0 0.0
    %375 = vmatpush1.msra.mxu0 0.0
    %376 = vmatprep.subr.mxu0 0.0
    %377 = vmatpush1.msra.mxu0 0.0
    %378 = vmatprep.subr.mxu0 0.0
    %379 = vmatpush1.msra.mxu0 0.0
    %380 = vmatprep.subr.mxu0 0.0
    %381 = vmatpush1.msra.mxu0 0.0
    %382 = vmatprep.subr.mxu0 0.0
    %383 = vmatpush1.msra.mxu0 0.0
    %384 = vmatprep.subr.mxu0 0.0
    %385 = vmatpush1.msra.mxu0 0.0
    %386 = vmatprep.subr.mxu0 0.0
    %387 = vmatpush1.msra.mxu0 0.0
    %388 = vmatprep.subr.mxu0 0.0
    %389 = vmatpush1.msra.mxu0 0.0
    %390 = vmatprep.subr.mxu0 0.0
    %391 = vmatpush1.msra.mxu0 0.0
    %392 = vmatprep.subr.mxu0 0.0
    %393 = vmatpush1.msra.mxu0 0.0
    %394 = vmatprep.subr.mxu0 0.0
    %395 = vmatpush1.msra.mxu0 0.0
    %396 = vmatprep.subr.mxu0 0.0
    %397 = vmatpush1.msra.mxu0 0.0
    %398 = vmatprep.subr.mxu0 0.0
    %399 = vmatpush1.msra.mxu0 0.0
    %400 = vmatprep.subr.mxu0 0.0
    %401 = vmatpush1.msra.mxu0 0.0
    %402 = vmatprep.subr.mxu0 0.0
    %403 = vmatpush1.msra.mxu0 0.0
    %404 = vmatprep.subr.mxu0 0.0
    %405 = vmatpush1.msra.mxu0 0.0
    %406 = vmatprep.subr.mxu0 0.0
    %407 = vmatpush1.msra.mxu0 0.0
    %408 = vmatprep.subr.mxu0 0.0
    %409 = vmatpush1.msra.mxu0 0.0
    %410 = vmatprep.subr.mxu0 0.0
    %411 = vmatpush1.msra.mxu0 0.0
    %412 = vmatprep.subr.mxu0 0.0
    %413 = vmatpush1.msra.mxu0 0.0
    %414 = vmatprep.subr.mxu0 0.0
    %415 = vmatpush1.msra.mxu0 0.0
    %416 = vmatprep.subr.mxu0 0.0
    %417 = vmatpush1.msra.mxu0 0.0
    %418 = vmatprep.subr.mxu0 0.0
    %419 = vmatpush1.msra.mxu0 0.0
    %420 = vmatprep.subr.mxu0 0.0
    %421 = vmatpush1.msra.mxu0 0.0
    %422 = vmatprep.subr.mxu0 0.0
    %423 = vmatpush1.msra.mxu0 0.0
    %424 = vmatprep.subr.mxu0 0.0
    %425 = vmatpush1.msra.mxu0 0.0
    %426 = vmatprep.subr.mxu0 0.0
    %427 = vmatpush1.msra.mxu0 0.0
    %428 = vmatprep.subr.mxu0 0.0
    %429 = vmatpush1.msra.mxu0 0.0
    %430 = vmatprep.mubr.f32.mxu0 0.0
    %431 = vmatmul.mubr.f32.gmra.mrb[0].mxu0 %v224
    %v432 = vpop.f32.mrb[0].mxu0
    %v433 = vadd.f32 %v214, %v432
    %v434 = vpop.f32.mrb[0].mxu0
    %435 = vdwg.mxu0
    %436 = vmatprep.subr.mxu0 0.0
    %437 = vmatpush1.msra.mxu0 %v147
    %438 = vmatprep.subr.mxu0 0.0
    %439 = vmatpush1.msra.mxu0 %v148
    %440 = vmatprep.subr.mxu0 0.0
    %441 = vmatpush1.msra.mxu0 %v149
    %442 = vmatprep.subr.mxu0 0.0
    %443 = vmatpush1.msra.mxu0 %v150
    %444 = vmatprep.subr.mxu0 0.0
    %445 = vmatpush1.msra.mxu0 0.0
    %446 = vmatprep.subr.mxu0 0.0
    %447 = vmatpush1.msra.mxu0 0.0
    %448 = vmatprep.subr.mxu0 0.0
    %449 = vmatpush1.msra.mxu0 0.0
    %450 = vmatprep.subr.mxu0 0.0
    %451 = vmatpush1.msra.mxu0 0.0
    %452 = vmatprep.subr.mxu0 0.0
    %453 = vmatpush1.msra.mxu0 0.0
    %454 = vmatprep.subr.mxu0 0.0
    %455 = vmatpush1.msra.mxu0 0.0
    %456 = vmatprep.subr.mxu0 0.0
    %457 = vmatpush1.msra.mxu0 0.0
    %458 = vmatprep.subr.mxu0 0.0
    %459 = vmatpush1.msra.mxu0 0.0
    %460 = vmatprep.subr.mxu0 0.0
    %461 = vmatpush1.msra.mxu0 0.0
    %462 = vmatprep.subr.mxu0 0.0
    %463 = vmatpush1.msra.mxu0 0.0
    %464 = vmatprep.subr.mxu0 0.0
    %465 = vmatpush1.msra.mxu0 0.0
    %466 = vmatprep.subr.mxu0 0.0
    %467 = vmatpush1.msra.mxu0 0.0
    %468 = vmatprep.subr.mxu0 0.0
    %469 = vmatpush1.msra.mxu0 0.0
    %470 = vmatprep.subr.mxu0 0.0
    %471 = vmatpush1.msra.mxu0 0.0
    %472 = vmatprep.subr.mxu0 0.0
    %473 = vmatpush1.msra.mxu0 0.0
    %474 = vmatprep.subr.mxu0 0.0
    %475 = vmatpush1.msra.mxu0 0.0
    %476 = vmatprep.subr.mxu0 0.0
    %477 = vmatpush1.msra.mxu0 0.0
    %478 = vmatprep.subr.mxu0 0.0
    %479 = vmatpush1.msra.mxu0 0.0
    %480 = vmatprep.subr.mxu0 0.0
    %481 = vmatpush1.msra.mxu0 0.0
    %482 = vmatprep.subr.mxu0 0.0
    %483 = vmatpush1.msra.mxu0 0.0
    %484 = vmatprep.subr.mxu0 0.0
    %485 = vmatpush1.msra.mxu0 0.0
    %486 = vmatprep.subr.mxu0 0.0
    %487 = vmatpush1.msra.mxu0 0.0
    %488 = vmatprep.subr.mxu0 0.0
    %489 = vmatpush1.msra.mxu0 0.0
    %490 = vmatprep.subr.mxu0 0.0
    %491 = vmatpush1.msra.mxu0 0.0
    %492 = vmatprep.subr.mxu0 0.0
    %493 = vmatpush1.msra.mxu0 0.0
    %494 = vmatprep.subr.mxu0 0.0
    %495 = vmatpush1.msra.mxu0 0.0
    %496 = vmatprep.subr.mxu0 0.0
    %497 = vmatpush1.msra.mxu0 0.0
    %498 = vmatprep.subr.mxu0 0.0
    %499 = vmatpush1.msra.mxu0 0.0
    %500 = vmatprep.mubr.f32.mxu0 0.0
    %501 = vmatmul.mubr.f32.gmra.mrb[0].mxu0 %v224
    %v502 = vpop.f32.mrb[0].mxu0
    %v503 = vadd.f32 %v218, %v502
    %v504 = vpop.f32.mrb[0].mxu0
    %505 = vdwg.mxu0
    %v510 = vlaneseq
    %v511 = vshrl.u32 %v510, 7
    %v512 = vsub.s32 0, %v511
    %v513 = vrot.slane %v187, %v512
    %v514 = vlaneseq
    %v515 = vshrl.u32 %v514, 7
    %v516 = vsub.s32 0, %v515
    %v517 = vrot.slane %v188, %v516
    %v518 = vlaneseq
    %v519 = vshrl.u32 %v518, 7
    %v520 = vsub.s32 0, %v519
    %v521 = vrot.slane %v189, %v520
    %v522 = vlaneseq
    %v523 = vshrl.u32 %v522, 7
    %v524 = vsub.s32 0, %v523
    %v525 = vrot.slane %v190, %v524
    %530 = vmatprep.subr.mxu0 0.0
    %531 = vmatpush1.msra.mxu0 %v151
    %532 = vmatprep.subr.mxu0 0.0
    %533 = vmatpush1.msra.mxu0 %v152
    %534 = vmatprep.subr.mxu0 0.0
    %535 = vmatpush1.msra.mxu0 %v153
    %536 = vmatprep.subr.mxu0 0.0
    %537 = vmatpush1.msra.mxu0 %v154
    %538 = vmatprep.subr.mxu0 0.0
    %539 = vmatpush1.msra.mxu0 0.0
    %540 = vmatprep.subr.mxu0 0.0
    %541 = vmatpush1.msra.mxu0 0.0
    %542 = vmatprep.subr.mxu0 0.0
    %543 = vmatpush1.msra.mxu0 0.0
    %544 = vmatprep.subr.mxu0 0.0
    %545 = vmatpush1.msra.mxu0 0.0
    %546 = vmatprep.subr.mxu0 0.0
    %547 = vmatpush1.msra.mxu0 0.0
    %548 = vmatprep.subr.mxu0 0.0
    %549 = vmatpush1.msra.mxu0 0.0
    %550 = vmatprep.subr.mxu0 0.0
    %551 = vmatpush1.msra.mxu0 0.0
    %552 = vmatprep.subr.mxu0 0.0
    %553 = vmatpush1.msra.mxu0 0.0
    %554 = vmatprep.subr.mxu0 0.0
    %555 = vmatpush1.msra.mxu0 0.0
    %556 = vmatprep.subr.mxu0 0.0
    %557 = vmatpush1.msra.mxu0 0.0
    %558 = vmatprep.subr.mxu0 0.0
    %559 = vmatpush1.msra.mxu0 0.0
    %560 = vmatprep.subr.mxu0 0.0
    %561 = vmatpush1.msra.mxu0 0.0
    %562 = vmatprep.subr.mxu0 0.0
    %563 = vmatpush1.msra.mxu0 0.0
    %564 = vmatprep.subr.mxu0 0.0
    %565 = vmatpush1.msra.mxu0 0.0
    %566 = vmatprep.subr.mxu0 0.0
    %567 = vmatpush1.msra.mxu0 0.0
    %568 = vmatprep.subr.mxu0 0.0
    %569 = vmatpush1.msra.mxu0 0.0
    %570 = vmatprep.subr.mxu0 0.0
    %571 = vmatpush1.msra.mxu0 0.0
    %572 = vmatprep.subr.mxu0 0.0
    %573 = vmatpush1.msra.mxu0 0.0
    %574 = vmatprep.subr.mxu0 0.0
    %575 = vmatpush1.msra.mxu0 0.0
    %576 = vmatprep.subr.mxu0 0.0
    %577 = vmatpush1.msra.mxu0 0.0
    %578 = vmatprep.subr.mxu0 0.0
    %579 = vmatpush1.msra.mxu0 0.0
    %580 = vmatprep.subr.mxu0 0.0
    %581 = vmatpush1.msra.mxu0 0.0
    %582 = vmatprep.subr.mxu0 0.0
    %583 = vmatpush1.msra.mxu0 0.0
    %584 = vmatprep.subr.mxu0 0.0
    %585 = vmatpush1.msra.mxu0 0.0
    %586 = vmatprep.subr.mxu0 0.0
    %587 = vmatpush1.msra.mxu0 0.0
    %588 = vmatprep.subr.mxu0 0.0
    %589 = vmatpush1.msra.mxu0 0.0
    %590 = vmatprep.subr.mxu0 0.0
    %591 = vmatpush1.msra.mxu0 0.0
    %592 = vmatprep.subr.mxu0 0.0
    %593 = vmatpush1.msra.mxu0 0.0
    %594 = vmatprep.mubr.f32.mxu0 0.0
    %595 = vmatmul.mubr.f32.gmra.mrb[0].mxu0 %v224
    %v596 = vpop.f32.mrb[0].mxu0
    %v597 = vadd.f32 %v513, %v596
    %v598 = vpop.f32.mrb[0].mxu0
    %599 = vdwg.mxu0
    %600 = vmatprep.subr.mxu0 0.0
    %601 = vmatpush1.msra.mxu0 %v155
    %602 = vmatprep.subr.mxu0 0.0
    %603 = vmatpush1.msra.mxu0 %v156
    %604 = vmatprep.subr.mxu0 0.0
    %605 = vmatpush1.msra.mxu0 %v157
    %606 = vmatprep.subr.mxu0 0.0
    %607 = vmatpush1.msra.mxu0 %v158
    %608 = vmatprep.subr.mxu0 0.0
    %609 = vmatpush1.msra.mxu0 0.0
    %610 = vmatprep.subr.mxu0 0.0
    %611 = vmatpush1.msra.mxu0 0.0
    %612 = vmatprep.subr.mxu0 0.0
    %613 = vmatpush1.msra.mxu0 0.0
    %614 = vmatprep.subr.mxu0 0.0
    %615 = vmatpush1.msra.mxu0 0.0
    %616 = vmatprep.subr.mxu0 0.0
    %617 = vmatpush1.msra.mxu0 0.0
    %618 = vmatprep.subr.mxu0 0.0
    %619 = vmatpush1.msra.mxu0 0.0
    %620 = vmatprep.subr.mxu0 0.0
    %621 = vmatpush1.msra.mxu0 0.0
    %622 = vmatprep.subr.mxu0 0.0
    %623 = vmatpush1.msra.mxu0 0.0
    %624 = vmatprep.subr.mxu0 0.0
    %625 = vmatpush1.msra.mxu0 0.0
    %626 = vmatprep.subr.mxu0 0.0
    %627 = vmatpush1.msra.mxu0 0.0
    %628 = vmatprep.subr.mxu0 0.0
    %629 = vmatpush1.msra.mxu0 0.0
    %630 = vmatprep.subr.mxu0 0.0
    %631 = vmatpush1.msra.mxu0 0.0
    %632 = vmatprep.subr.mxu0 0.0
    %633 = vmatpush1.msra.mxu0 0.0
    %634 = vmatprep.subr.mxu0 0.0
    %635 = vmatpush1.msra.mxu0 0.0
    %636 = vmatprep.subr.mxu0 0.0
    %637 = vmatpush1.msra.mxu0 0.0
    %638 = vmatprep.subr.mxu0 0.0
    %639 = vmatpush1.msra.mxu0 0.0
    %640 = vmatprep.subr.mxu0 0.0
    %641 = vmatpush1.msra.mxu0 0.0
    %642 = vmatprep.subr.mxu0 0.0
    %643 = vmatpush1.msra.mxu0 0.0
    %644 = vmatprep.subr.mxu0 0.0
    %645 = vmatpush1.msra.mxu0 0.0
    %646 = vmatprep.subr.mxu0 0.0
    %647 = vmatpush1.msra.mxu0 0.0
    %648 = vmatprep.subr.mxu0 0.0
    %649 = vmatpush1.msra.mxu0 0.0
    %650 = vmatprep.subr.mxu0 0.0
    %651 = vmatpush1.msra.mxu0 0.0
    %652 = vmatprep.subr.mxu0 0.0
    %653 = vmatpush1.msra.mxu0 0.0
    %654 = vmatprep.subr.mxu0 0.0
    %655 = vmatpush1.msra.mxu0 0.0
    %656 = vmatprep.subr.mxu0 0.0
    %657 = vmatpush1.msra.mxu0 0.0
    %658 = vmatprep.subr.mxu0 0.0
    %659 = vmatpush1.msra.mxu0 0.0
    %660 = vmatprep.subr.mxu0 0.0
    %661 = vmatpush1.msra.mxu0 0.0
    %662 = vmatprep.subr.mxu0 0.0
    %663 = vmatpush1.msra.mxu0 0.0
    %664 = vmatprep.mubr.f32.mxu0 0.0
    %665 = vmatmul.mubr.f32.gmra.mrb[0].mxu0 %v224
    %v666 = vpop.f32.mrb[0].mxu0
    %v667 = vadd.f32 %v517, %v666
    %v668 = vpop.f32.mrb[0].mxu0
    %669 = vdwg.mxu0
    %670 = vmatprep.subr.mxu0 0.0
    %671 = vmatpush1.msra.mxu0 %v159
    %672 = vmatprep.subr.mxu0 0.0
    %673 = vmatpush1.msra.mxu0 %v160
    %674 = vmatprep.subr.mxu0 0.0
    %675 = vmatpush1.msra.mxu0 %v161
    %676 = vmatprep.subr.mxu0 0.0
    %677 = vmatpush1.msra.mxu0 %v162
    %678 = vmatprep.subr.mxu0 0.0
    %679 = vmatpush1.msra.mxu0 0.0
    %680 = vmatprep.subr.mxu0 0.0
    %681 = vmatpush1.msra.mxu0 0.0
    %682 = vmatprep.subr.mxu0 0.0
    %683 = vmatpush1.msra.mxu0 0.0
    %684 = vmatprep.subr.mxu0 0.0
    %685 = vmatpush1.msra.mxu0 0.0
    %686 = vmatprep.subr.mxu0 0.0
    %687 = vmatpush1.msra.mxu0 0.0
    %688 = vmatprep.subr.mxu0 0.0
    %689 = vmatpush1.msra.mxu0 0.0
    %690 = vmatprep.subr.mxu0 0.0
    %691 = vmatpush1.msra.mxu0 0.0
    %692 = vmatprep.subr.mxu0 0.0
    %693 = vmatpush1.msra.mxu0 0.0
    %694 = vmatprep.subr.mxu0 0.0
    %695 = vmatpush1.msra.mxu0 0.0
    %696 = vmatprep.subr.mxu0 0.0
    %697 = vmatpush1.msra.mxu0 0.0
    %698 = vmatprep.subr.mxu0 0.0
    %699 = vmatpush1.msra.mxu0 0.0
    %700 = vmatprep.subr.mxu0 0.0
    %701 = vmatpush1.msra.mxu0 0.0
    %702 = vmatprep.subr.mxu0 0.0
    %703 = vmatpush1.msra.mxu0 0.0
    %704 = vmatprep.subr.mxu0 0.0
    %705 = vmatpush1.msra.mxu0 0.0
    %706 = vmatprep.subr.mxu0 0.0
    %707 = vmatpush1.msra.mxu0 0.0
    %708 = vmatprep.subr.mxu0 0.0
    %709 = vmatpush1.msra.mxu0 0.0
    %710 = vmatprep.subr.mxu0 0.0
    %711 = vmatpush1.msra.mxu0 0.0
    %712 = vmatprep.subr.mxu0 0.0
    %713 = vmatpush1.msra.mxu0 0.0
    %714 = vmatprep.subr.mxu0 0.0
    %715 = vmatpush1.msra.mxu0 0.0
    %716 = vmatprep.subr.mxu0 0.0
    %717 = vmatpush1.msra.mxu0 0.0
    %718 = vmatprep.subr.mxu0 0.0
    %719 = vmatpush1.msra.mxu0 0.0
    %720 = vmatprep.subr.mxu0 0.0
    %721 = vmatpush1.msra.mxu0 0.0
    %722 = vmatprep.subr.mxu0 0.0
    %723 = vmatpush1.msra.mxu0 0.0
    %724 = vmatprep.subr.mxu0 0.0
    %725 = vmatpush1.msra.mxu0 0.0
    %726 = vmatprep.subr.mxu0 0.0
    %727 = vmatpush1.msra.mxu0 0.0
    %728 = vmatprep.subr.mxu0 0.0
    %729 = vmatpush1.msra.mxu0 0.0
    %730 = vmatprep.subr.mxu0 0.0
    %731 = vmatpush1.msra.mxu0 0.0
    %732 = vmatprep.subr.mxu0 0.0
    %733 = vmatpush1.msra.mxu0 0.0
    %734 = vmatprep.mubr.f32.mxu0 0.0
    %735 = vmatmul.mubr.f32.gmra.mrb[0].mxu0 %v224
    %v736 = vpop.f32.mrb[0].mxu0
    %v737 = vadd.f32 %v521, %v736
    %v738 = vpop.f32.mrb[0].mxu0
    %739 = vdwg.mxu0
    %740 = vmatprep.subr.mxu0 0.0
    %741 = vmatpush1.msra.mxu0 %v163
    %742 = vmatprep.subr.mxu0 0.0
    %743 = vmatpush1.msra.mxu0 %v164
    %744 = vmatprep.subr.mxu0 0.0
    %745 = vmatpush1.msra.mxu0 %v165
    %746 = vmatprep.subr.mxu0 0.0
    %747 = vmatpush1.msra.mxu0 %v166
    %748 = vmatprep.subr.mxu0 0.0
    %749 = vmatpush1.msra.mxu0 0.0
    %750 = vmatprep.subr.mxu0 0.0
    %751 = vmatpush1.msra.mxu0 0.0
    %752 = vmatprep.subr.mxu0 0.0
    %753 = vmatpush1.msra.mxu0 0.0
    %754 = vmatprep.subr.mxu0 0.0
    %755 = vmatpush1.msra.mxu0 0.0
    %756 = vmatprep.subr.mxu0 0.0
    %757 = vmatpush1.msra.mxu0 0.0
    %758 = vmatprep.subr.mxu0 0.0
    %759 = vmatpush1.msra.mxu0 0.0
    %760 = vmatprep.subr.mxu0 0.0
    %761 = vmatpush1.msra.mxu0 0.0
    %762 = vmatprep.subr.mxu0 0.0
    %763 = vmatpush1.msra.mxu0 0.0
    %764 = vmatprep.subr.mxu0 0.0
    %765 = vmatpush1.msra.mxu0 0.0
    %766 = vmatprep.subr.mxu0 0.0
    %767 = vmatpush1.msra.mxu0 0.0
    %768 = vmatprep.subr.mxu0 0.0
    %769 = vmatpush1.msra.mxu0 0.0
    %770 = vmatprep.subr.mxu0 0.0
    %771 = vmatpush1.msra.mxu0 0.0
    %772 = vmatprep.subr.mxu0 0.0
    %773 = vmatpush1.msra.mxu0 0.0
    %774 = vmatprep.subr.mxu0 0.0
    %775 = vmatpush1.msra.mxu0 0.0
    %776 = vmatprep.subr.mxu0 0.0
    %777 = vmatpush1.msra.mxu0 0.0
    %778 = vmatprep.subr.mxu0 0.0
    %779 = vmatpush1.msra.mxu0 0.0
    %780 = vmatprep.subr.mxu0 0.0
    %781 = vmatpush1.msra.mxu0 0.0
    %782 = vmatprep.subr.mxu0 0.0
    %783 = vmatpush1.msra.mxu0 0.0
    %784 = vmatprep.subr.mxu0 0.0
    %785 = vmatpush1.msra.mxu0 0.0
    %786 = vmatprep.subr.mxu0 0.0
    %787 = vmatpush1.msra.mxu0 0.0
    %788 = vmatprep.subr.mxu0 0.0
    %789 = vmatpush1.msra.mxu0 0.0
    %790 = vmatprep.subr.mxu0 0.0
    %791 = vmatpush1.msra.mxu0 0.0
    %792 = vmatprep.subr.mxu0 0.0
    %793 = vmatpush1.msra.mxu0 0.0
    %794 = vmatprep.subr.mxu0 0.0
    %795 = vmatpush1.msra.mxu0 0.0
    %796 = vmatprep.subr.mxu0 0.0
    %797 = vmatpush1.msra.mxu0 0.0
    %798 = vmatprep.subr.mxu0 0.0
    %799 = vmatpush1.msra.mxu0 0.0
    %800 = vmatprep.subr.mxu0 0.0
    %801 = vmatpush1.msra.mxu0 0.0
    %802 = vmatprep.subr.mxu0 0.0
    %803 = vmatpush1.msra.mxu0 0.0
    %804 = vmatprep.mubr.f32.mxu0 0.0
    %805 = vmatmul.mubr.f32.gmra.mrb[0].mxu0 %v224
    %v806 = vpop.f32.mrb[0].mxu0
    %v807 = vadd.f32 %v525, %v806
    %v808 = vpop.f32.mrb[0].mxu0
    %809 = vdwg.mxu0
    %v814 = vlaneseq
    %v815 = vshrl.u32 %v814, 7
    %v816 = vsub.s32 0, %v815
    %v817 = vrot.slane %v191, %v816
    %v818 = vlaneseq
    %v819 = vshrl.u32 %v818, 7
    %v820 = vsub.s32 0, %v819
    %v821 = vrot.slane %v192, %v820
    %v822 = vlaneseq
    %v823 = vshrl.u32 %v822, 7
    %v824 = vsub.s32 0, %v823
    %v825 = vrot.slane %v193, %v824
    %v826 = vlaneseq
    %v827 = vshrl.u32 %v826, 7
    %v828 = vsub.s32 0, %v827
    %v829 = vrot.slane %v194, %v828
    %834 = vmatprep.subr.mxu0 0.0
    %835 = vmatpush1.msra.mxu0 %v167
    %836 = vmatprep.subr.mxu0 0.0
    %837 = vmatpush1.msra.mxu0 %v168
    %838 = vmatprep.subr.mxu0 0.0
    %839 = vmatpush1.msra.mxu0 %v169
    %840 = vmatprep.subr.mxu0 0.0
    %841 = vmatpush1.msra.mxu0 %v170
    %842 = vmatprep.subr.mxu0 0.0
    %843 = vmatpush1.msra.mxu0 0.0
    %844 = vmatprep.subr.mxu0 0.0
    %845 = vmatpush1.msra.mxu0 0.0
    %846 = vmatprep.subr.mxu0 0.0
    %847 = vmatpush1.msra.mxu0 0.0
    %848 = vmatprep.subr.mxu0 0.0
    %849 = vmatpush1.msra.mxu0 0.0
    %850 = vmatprep.subr.mxu0 0.0
    %851 = vmatpush1.msra.mxu0 0.0
    %852 = vmatprep.subr.mxu0 0.0
    %853 = vmatpush1.msra.mxu0 0.0
    %854 = vmatprep.subr.mxu0 0.0
    %855 = vmatpush1.msra.mxu0 0.0
    %856 = vmatprep.subr.mxu0 0.0
    %857 = vmatpush1.msra.mxu0 0.0
    %858 = vmatprep.subr.mxu0 0.0
    %859 = vmatpush1.msra.mxu0 0.0
    %860 = vmatprep.subr.mxu0 0.0
    %861 = vmatpush1.msra.mxu0 0.0
    %862 = vmatprep.subr.mxu0 0.0
    %863 = vmatpush1.msra.mxu0 0.0
    %864 = vmatprep.subr.mxu0 0.0
    %865 = vmatpush1.msra.mxu0 0.0
    %866 = vmatprep.subr.mxu0 0.0
    %867 = vmatpush1.msra.mxu0 0.0
    %868 = vmatprep.subr.mxu0 0.0
    %869 = vmatpush1.msra.mxu0 0.0
    %870 = vmatprep.subr.mxu0 0.0
    %871 = vmatpush1.msra.mxu0 0.0
    %872 = vmatprep.subr.mxu0 0.0
    %873 = vmatpush1.msra.mxu0 0.0
    %874 = vmatprep.subr.mxu0 0.0
    %875 = vmatpush1.msra.mxu0 0.0
    %876 = vmatprep.subr.mxu0 0.0
    %877 = vmatpush1.msra.mxu0 0.0
    %878 = vmatprep.subr.mxu0 0.0
    %879 = vmatpush1.msra.mxu0 0.0
    %880 = vmatprep.subr.mxu0 0.0
    %881 = vmatpush1.msra.mxu0 0.0
    %882 = vmatprep.subr.mxu0 0.0
    %883 = vmatpush1.msra.mxu0 0.0
    %884 = vmatprep.subr.mxu0 0.0
    %885 = vmatpush1.msra.mxu0 0.0
    %886 = vmatprep.subr.mxu0 0.0
    %887 = vmatpush1.msra.mxu0 0.0
    %888 = vmatprep.subr.mxu0 0.0
    %889 = vmatpush1.msra.mxu0 0.0
    %890 = vmatprep.subr.mxu0 0.0
    %891 = vmatpush1.msra.mxu0 0.0
    %892 = vmatprep.subr.mxu0 0.0
    %893 = vmatpush1.msra.mxu0 0.0
    %894 = vmatprep.subr.mxu0 0.0
    %895 = vmatpush1.msra.mxu0 0.0
    %896 = vmatprep.subr.mxu0 0.0
    %897 = vmatpush1.msra.mxu0 0.0
    %898 = vmatprep.mubr.f32.mxu0 0.0
    %899 = vmatmul.mubr.f32.gmra.mrb[0].mxu0 %v224
    %v900 = vpop.f32.mrb[0].mxu0
    %v901 = vadd.f32 %v817, %v900
    %v902 = vpop.f32.mrb[0].mxu0
    %903 = vdwg.mxu0
    %904 = vmatprep.subr.mxu0 0.0
    %905 = vmatpush1.msra.mxu0 %v171
    %906 = vmatprep.subr.mxu0 0.0
    %907 = vmatpush1.msra.mxu0 %v172
    %908 = vmatprep.subr.mxu0 0.0
    %909 = vmatpush1.msra.mxu0 %v173
    %910 = vmatprep.subr.mxu0 0.0
    %911 = vmatpush1.msra.mxu0 %v174
    %912 = vmatprep.subr.mxu0 0.0
    %913 = vmatpush1.msra.mxu0 0.0
    %914 = vmatprep.subr.mxu0 0.0
    %915 = vmatpush1.msra.mxu0 0.0
    %916 = vmatprep.subr.mxu0 0.0
    %917 = vmatpush1.msra.mxu0 0.0
    %918 = vmatprep.subr.mxu0 0.0
    %919 = vmatpush1.msra.mxu0 0.0
    %920 = vmatprep.subr.mxu0 0.0
    %921 = vmatpush1.msra.mxu0 0.0
    %922 = vmatprep.subr.mxu0 0.0
    %923 = vmatpush1.msra.mxu0 0.0
    %924 = vmatprep.subr.mxu0 0.0
    %925 = vmatpush1.msra.mxu0 0.0
    %926 = vmatprep.subr.mxu0 0.0
    %927 = vmatpush1.msra.mxu0 0.0
    %928 = vmatprep.subr.mxu0 0.0
    %929 = vmatpush1.msra.mxu0 0.0
    %930 = vmatprep.subr.mxu0 0.0
    %931 = vmatpush1.msra.mxu0 0.0
    %932 = vmatprep.subr.mxu0 0.0
    %933 = vmatpush1.msra.mxu0 0.0
    %934 = vmatprep.subr.mxu0 0.0
    %935 = vmatpush1.msra.mxu0 0.0
    %936 = vmatprep.subr.mxu0 0.0
    %937 = vmatpush1.msra.mxu0 0.0
    %938 = vmatprep.subr.mxu0 0.0
    %939 = vmatpush1.msra.mxu0 0.0
    %940 = vmatprep.subr.mxu0 0.0
    %941 = vmatpush1.msra.mxu0 0.0
    %942 = vmatprep.subr.mxu0 0.0
    %943 = vmatpush1.msra.mxu0 0.0
    %944 = vmatprep.subr.mxu0 0.0
    %945 = vmatpush1.msra.mxu0 0.0
    %946 = vmatprep.subr.mxu0 0.0
    %947 = vmatpush1.msra.mxu0 0.0
    %948 = vmatprep.subr.mxu0 0.0
    %949 = vmatpush1.msra.mxu0 0.0
    %950 = vmatprep.subr.mxu0 0.0
    %951 = vmatpush1.msra.mxu0 0.0
    %952 = vmatprep.subr.mxu0 0.0
    %953 = vmatpush1.msra.mxu0 0.0
    %954 = vmatprep.subr.mxu0 0.0
    %955 = vmatpush1.msra.mxu0 0.0
    %956 = vmatprep.subr.mxu0 0.0
    %957 = vmatpush1.msra.mxu0 0.0
    %958 = vmatprep.subr.mxu0 0.0
    %959 = vmatpush1.msra.mxu0 0.0
    %960 = vmatprep.subr.mxu0 0.0
    %961 = vmatpush1.msra.mxu0 0.0
    %962 = vmatprep.subr.mxu0 0.0
    %963 = vmatpush1.msra.mxu0 0.0
    %964 = vmatprep.subr.mxu0 0.0
    %965 = vmatpush1.msra.mxu0 0.0
    %966 = vmatprep.subr.mxu0 0.0
    %967 = vmatpush1.msra.mxu0 0.0
    %968 = vmatprep.mubr.f32.mxu0 0.0
    %969 = vmatmul.mubr.f32.gmra.mrb[0].mxu0 %v224
    %v970 = vpop.f32.mrb[0].mxu0
    %v971 = vadd.f32 %v821, %v970
    %v972 = vpop.f32.mrb[0].mxu0
    %973 = vdwg.mxu0
    %974 = vmatprep.subr.mxu0 0.0
    %975 = vmatpush1.msra.mxu0 %v175
    %976 = vmatprep.subr.mxu0 0.0
    %977 = vmatpush1.msra.mxu0 %v176
    %978 = vmatprep.subr.mxu0 0.0
    %979 = vmatpush1.msra.mxu0 %v177
    %980 = vmatprep.subr.mxu0 0.0
    %981 = vmatpush1.msra.mxu0 %v178
    %982 = vmatprep.subr.mxu0 0.0
    %983 = vmatpush1.msra.mxu0 0.0
    %984 = vmatprep.subr.mxu0 0.0
    %985 = vmatpush1.msra.mxu0 0.0
    %986 = vmatprep.subr.mxu0 0.0
    %987 = vmatpush1.msra.mxu0 0.0
    %988 = vmatprep.subr.mxu0 0.0
    %989 = vmatpush1.msra.mxu0 0.0
    %990 = vmatprep.subr.mxu0 0.0
    %991 = vmatpush1.msra.mxu0 0.0
    %992 = vmatprep.subr.mxu0 0.0
    %993 = vmatpush1.msra.mxu0 0.0
    %994 = vmatprep.subr.mxu0 0.0
    %995 = vmatpush1.msra.mxu0 0.0
    %996 = vmatprep.subr.mxu0 0.0
    %997 = vmatpush1.msra.mxu0 0.0
    %998 = vmatprep.subr.mxu0 0.0
    %999 = vmatpush1.msra.mxu0 0.0
    %1000 = vmatprep.subr.mxu0 0.0
    %1001 = vmatpush1.msra.mxu0 0.0
    %1002 = vmatprep.subr.mxu0 0.0
    %1003 = vmatpush1.msra.mxu0 0.0
    %1004 = vmatprep.subr.mxu0 0.0
    %1005 = vmatpush1.msra.mxu0 0.0
    %1006 = vmatprep.subr.mxu0 0.0
    %1007 = vmatpush1.msra.mxu0 0.0
    %1008 = vmatprep.subr.mxu0 0.0
    %1009 = vmatpush1.msra.mxu0 0.0
    %1010 = vmatprep.subr.mxu0 0.0
    %1011 = vmatpush1.msra.mxu0 0.0
    %1012 = vmatprep.subr.mxu0 0.0
    %1013 = vmatpush1.msra.mxu0 0.0
    %1014 = vmatprep.subr.mxu0 0.0
    %1015 = vmatpush1.msra.mxu0 0.0
    %1016 = vmatprep.subr.mxu0 0.0
    %1017 = vmatpush1.msra.mxu0 0.0
    %1018 = vmatprep.subr.mxu0 0.0
    %1019 = vmatpush1.msra.mxu0 0.0
    %1020 = vmatprep.subr.mxu0 0.0
    %1021 = vmatpush1.msra.mxu0 0.0
    %1022 = vmatprep.subr.mxu0 0.0
    %1023 = vmatpush1.msra.mxu0 0.0
    %1024 = vmatprep.subr.mxu0 0.0
    %1025 = vmatpush1.msra.mxu0 0.0
    %1026 = vmatprep.subr.mxu0 0.0
    %1027 = vmatpush1.msra.mxu0 0.0
    %1028 = vmatprep.subr.mxu0 0.0
    %1029 = vmatpush1.msra.mxu0 0.0
    %1030 = vmatprep.subr.mxu0 0.0
    %1031 = vmatpush1.msra.mxu0 0.0
    %1032 = vmatprep.subr.mxu0 0.0
    %1033 = vmatpush1.msra.mxu0 0.0
    %1034 = vmatprep.subr.mxu0 0.0
    %1035 = vmatpush1.msra.mxu0 0.0
    %1036 = vmatprep.subr.mxu0 0.0
    %1037 = vmatpush1.msra.mxu0 0.0
    %1038 = vmatprep.mubr.f32.mxu0 0.0
    %1039 = vmatmul.mubr.f32.gmra.mrb[0].mxu0 %v224
    %v1040 = vpop.f32.mrb[0].mxu0
    %v1041 = vadd.f32 %v825, %v1040
    %v1042 = vpop.f32.mrb[0].mxu0
    %1043 = vdwg.mxu0
    %1044 = vmatprep.subr.mxu0 0.0
    %1045 = vmatpush1.msra.mxu0 %v179
    %1046 = vmatprep.subr.mxu0 0.0
    %1047 = vmatpush1.msra.mxu0 %v180
    %1048 = vmatprep.subr.mxu0 0.0
    %1049 = vmatpush1.msra.mxu0 %v181
    %1050 = vmatprep.subr.mxu0 0.0
    %1051 = vmatpush1.msra.mxu0 %v182
    %1052 = vmatprep.subr.mxu0 0.0
    %1053 = vmatpush1.msra.mxu0 0.0
    %1054 = vmatprep.subr.mxu0 0.0
    %1055 = vmatpush1.msra.mxu0 0.0
    %1056 = vmatprep.subr.mxu0 0.0
    %1057 = vmatpush1.msra.mxu0 0.0
    %1058 = vmatprep.subr.mxu0 0.0
    %1059 = vmatpush1.msra.mxu0 0.0
    %1060 = vmatprep.subr.mxu0 0.0
    %1061 = vmatpush1.msra.mxu0 0.0
    %1062 = vmatprep.subr.mxu0 0.0
    %1063 = vmatpush1.msra.mxu0 0.0
    %1064 = vmatprep.subr.mxu0 0.0
    %1065 = vmatpush1.msra.mxu0 0.0
    %1066 = vmatprep.subr.mxu0 0.0
    %1067 = vmatpush1.msra.mxu0 0.0
    %1068 = vmatprep.subr.mxu0 0.0
    %1069 = vmatpush1.msra.mxu0 0.0
    %1070 = vmatprep.subr.mxu0 0.0
    %1071 = vmatpush1.msra.mxu0 0.0
    %1072 = vmatprep.subr.mxu0 0.0
    %1073 = vmatpush1.msra.mxu0 0.0
    %1074 = vmatprep.subr.mxu0 0.0
    %1075 = vmatpush1.msra.mxu0 0.0
    %1076 = vmatprep.subr.mxu0 0.0
    %1077 = vmatpush1.msra.mxu0 0.0
    %1078 = vmatprep.subr.mxu0 0.0
    %1079 = vmatpush1.msra.mxu0 0.0
    %1080 = vmatprep.subr.mxu0 0.0
    %1081 = vmatpush1.msra.mxu0 0.0
    %1082 = vmatprep.subr.mxu0 0.0
    %1083 = vmatpush1.msra.mxu0 0.0
    %1084 = vmatprep.subr.mxu0 0.0
    %1085 = vmatpush1.msra.mxu0 0.0
    %1086 = vmatprep.subr.mxu0 0.0
    %1087 = vmatpush1.msra.mxu0 0.0
    %1088 = vmatprep.subr.mxu0 0.0
    %1089 = vmatpush1.msra.mxu0 0.0
    %1090 = vmatprep.subr.mxu0 0.0
    %1091 = vmatpush1.msra.mxu0 0.0
    %1092 = vmatprep.subr.mxu0 0.0
    %1093 = vmatpush1.msra.mxu0 0.0
    %1094 = vmatprep.subr.mxu0 0.0
    %1095 = vmatpush1.msra.mxu0 0.0
    %1096 = vmatprep.subr.mxu0 0.0
    %1097 = vmatpush1.msra.mxu0 0.0
    %1098 = vmatprep.subr.mxu0 0.0
    %1099 = vmatpush1.msra.mxu0 0.0
    %1100 = vmatprep.subr.mxu0 0.0
    %1101 = vmatpush1.msra.mxu0 0.0
    %1102 = vmatprep.subr.mxu0 0.0
    %1103 = vmatpush1.msra.mxu0 0.0
    %1104 = vmatprep.subr.mxu0 0.0
    %1105 = vmatpush1.msra.mxu0 0.0
    %1106 = vmatprep.subr.mxu0 0.0
    %1107 = vmatpush1.msra.mxu0 0.0
    %1108 = vmatprep.mubr.f32.mxu0 0.0
    %1109 = vmatmul.mubr.f32.gmra.mrb[0].mxu0 %v224
    %v1110 = vpop.f32.mrb[0].mxu0
    %v1111 = vadd.f32 %v829, %v1110
    %v1112 = vpop.f32.mrb[0].mxu0
    %1113 = vdwg.mxu0
    %vm1114 = vcmask 64512
    %v1116 = vsel %vm1114, %v293, 0
    %v1119 = vsel %vm1114, %v597, 0
    %1121 = vmatprep.subr.mxu0 0.0
    %1122 = vmatpush1.xpose.msra.mxu0 %v1119
    %1123 = vmatprep.subr.mxu0 0.0
    %1124 = vmatpush1.xpose.msra.mxu0 0.0
    %1125 = vmatprep.subr.mxu0 0.0
    %1126 = vmatpush1.xpose.msra.mxu0 0.0
    %1127 = vmatprep.subr.mxu0 0.0
    %1128 = vmatpush1.xpose.msra.mxu0 0.0
    %1129 = vmatprep.subr.mxu0 0.0
    %1130 = vmatpush1.xpose.msra.mxu0 0.0
    %1131 = vmatprep.subr.mxu0 0.0
    %1132 = vmatpush1.xpose.msra.mxu0 0.0
    %1133 = vmatprep.subr.mxu0 0.0
    %1134 = vmatpush1.xpose.msra.mxu0 0.0
    %1135 = vmatprep.subr.mxu0 0.0
    %1136 = vmatpush1.xpose.msra.mxu0 0.0
    %1137 = vmatprep.subr.mxu0 0.0
    %1138 = vmatpush1.xpose.msra.mxu0 0.0
    %1139 = vmatprep.subr.mxu0 0.0
    %1140 = vmatpush1.xpose.msra.mxu0 0.0
    %1141 = vmatprep.subr.mxu0 0.0
    %1142 = vmatpush1.xpose.msra.mxu0 0.0
    %1143 = vmatprep.subr.mxu0 0.0
    %1144 = vmatpush1.xpose.msra.mxu0 0.0
    %1145 = vmatprep.subr.mxu0 0.0
    %1146 = vmatpush1.xpose.msra.mxu0 0.0
    %1147 = vmatprep.subr.mxu0 0.0
    %1148 = vmatpush1.xpose.msra.mxu0 0.0
    %1149 = vmatprep.subr.mxu0 0.0
    %1150 = vmatpush1.xpose.msra.mxu0 0.0
    %1151 = vmatprep.subr.mxu0 0.0
    %1152 = vmatpush1.xpose.msra.mxu0 0.0
    %1153 = vmatprep.subr.mxu0 0.0
    %1154 = vmatpush1.xpose.msra.mxu0 0.0
    %1155 = vmatprep.subr.mxu0 0.0
    %1156 = vmatpush1.xpose.msra.mxu0 0.0
    %1157 = vmatprep.subr.mxu0 0.0
    %1158 = vmatpush1.xpose.msra.mxu0 0.0
    %1159 = vmatprep.subr.mxu0 0.0
    %1160 = vmatpush1.xpose.msra.mxu0 0.0
    %1161 = vmatprep.subr.mxu0 0.0
    %1162 = vmatpush1.xpose.msra.mxu0 0.0
    %1163 = vmatprep.subr.mxu0 0.0
    %1164 = vmatpush1.xpose.msra.mxu0 0.0
    %1165 = vmatprep.subr.mxu0 0.0
    %1166 = vmatpush1.xpose.msra.mxu0 0.0
    %1167 = vmatprep.subr.mxu0 0.0
    %1168 = vmatpush1.xpose.msra.mxu0 0.0
    %1169 = vmatprep.subr.mxu0 0.0
    %1170 = vmatpush1.xpose.msra.mxu0 0.0
    %1171 = vmatprep.subr.mxu0 0.0
    %1172 = vmatpush1.xpose.msra.mxu0 0.0
    %1173 = vmatprep.subr.mxu0 0.0
    %1174 = vmatpush1.xpose.msra.mxu0 0.0
    %1175 = vmatprep.subr.mxu0 0.0
    %1176 = vmatpush1.xpose.msra.mxu0 0.0
    %1177 = vmatprep.subr.mxu0 0.0
    %1178 = vmatpush1.xpose.msra.mxu0 0.0
    %1179 = vmatprep.subr.mxu0 0.0
    %1180 = vmatpush1.xpose.msra.mxu0 0.0
    %1181 = vmatprep.subr.mxu0 0.0
    %1182 = vmatpush1.xpose.msra.mxu0 0.0
    %1183 = vmatprep.subr.mxu0 0.0
    %1184 = vmatpush1.xpose.msra.mxu0 0.0
    %1185 = vmatprep.mubr.f32.mxu0 0.0
    %1186 = vmatmul.mubr.f32.gmra.mrb[0].mxu0 %v1116
    %v1187 = vpop.f32.mrb[0].mxu0
    %v1188 = vadd.f32 %v130, %v1187
    %v1189 = vpop.f32.mrb[0].mxu0
    %1190 = vdwg.mxu0
    %v1192 = vsel %vm1114, %v363, 0
    %v1195 = vsel %vm1114, %v667, 0
    %1197 = vmatprep.subr.mxu0 0.0
    %1198 = vmatpush1.xpose.msra.mxu0 %v1195
    %1199 = vmatprep.subr.mxu0 0.0
    %1200 = vmatpush1.xpose.msra.mxu0 0.0
    %1201 = vmatprep.subr.mxu0 0.0
    %1202 = vmatpush1.xpose.msra.mxu0 0.0
    %1203 = vmatprep.subr.mxu0 0.0
    %1204 = vmatpush1.xpose.msra.mxu0 0.0
    %1205 = vmatprep.subr.mxu0 0.0
    %1206 = vmatpush1.xpose.msra.mxu0 0.0
    %1207 = vmatprep.subr.mxu0 0.0
    %1208 = vmatpush1.xpose.msra.mxu0 0.0
    %1209 = vmatprep.subr.mxu0 0.0
    %1210 = vmatpush1.xpose.msra.mxu0 0.0
    %1211 = vmatprep.subr.mxu0 0.0
    %1212 = vmatpush1.xpose.msra.mxu0 0.0
    %1213 = vmatprep.subr.mxu0 0.0
    %1214 = vmatpush1.xpose.msra.mxu0 0.0
    %1215 = vmatprep.subr.mxu0 0.0
    %1216 = vmatpush1.xpose.msra.mxu0 0.0
    %1217 = vmatprep.subr.mxu0 0.0
    %1218 = vmatpush1.xpose.msra.mxu0 0.0
    %1219 = vmatprep.subr.mxu0 0.0
    %1220 = vmatpush1.xpose.msra.mxu0 0.0
    %1221 = vmatprep.subr.mxu0 0.0
    %1222 = vmatpush1.xpose.msra.mxu0 0.0
    %1223 = vmatprep.subr.mxu0 0.0
    %1224 = vmatpush1.xpose.msra.mxu0 0.0
    %1225 = vmatprep.subr.mxu0 0.0
    %1226 = vmatpush1.xpose.msra.mxu0 0.0
    %1227 = vmatprep.subr.mxu0 0.0
    %1228 = vmatpush1.xpose.msra.mxu0 0.0
    %1229 = vmatprep.subr.mxu0 0.0
    %1230 = vmatpush1.xpose.msra.mxu0 0.0
    %1231 = vmatprep.subr.mxu0 0.0
    %1232 = vmatpush1.xpose.msra.mxu0 0.0
    %1233 = vmatprep.subr.mxu0 0.0
    %1234 = vmatpush1.xpose.msra.mxu0 0.0
    %1235 = vmatprep.subr.mxu0 0.0
    %1236 = vmatpush1.xpose.msra.mxu0 0.0
    %1237 = vmatprep.subr.mxu0 0.0
    %1238 = vmatpush1.xpose.msra.mxu0 0.0
    %1239 = vmatprep.subr.mxu0 0.0
    %1240 = vmatpush1.xpose.msra.mxu0 0.0
    %1241 = vmatprep.subr.mxu0 0.0
    %1242 = vmatpush1.xpose.msra.mxu0 0.0
    %1243 = vmatprep.subr.mxu0 0.0
    %1244 = vmatpush1.xpose.msra.mxu0 0.0
    %1245 = vmatprep.subr.mxu0 0.0
    %1246 = vmatpush1.xpose.msra.mxu0 0.0
    %1247 = vmatprep.subr.mxu0 0.0
    %1248 = vmatpush1.xpose.msra.mxu0 0.0
    %1249 = vmatprep.subr.mxu0 0.0
    %1250 = vmatpush1.xpose.msra.mxu0 0.0
    %1251 = vmatprep.subr.mxu0 0.0
    %1252 = vmatpush1.xpose.msra.mxu0 0.0
    %1253 = vmatprep.subr.mxu0 0.0
    %1254 = vmatpush1.xpose.msra.mxu0 0.0
    %1255 = vmatprep.subr.mxu0 0.0
    %1256 = vmatpush1.xpose.msra.mxu0 0.0
    %1257 = vmatprep.subr.mxu0 0.0
    %1258 = vmatpush1.xpose.msra.mxu0 0.0
    %1259 = vmatprep.subr.mxu0 0.0
    %1260 = vmatpush1.xpose.msra.mxu0 0.0
    %1261 = vmatprep.mubr.f32.mxu0 0.0
    %1262 = vmatmul.mubr.f32.gmra.mrb[0].mxu0 %v1192
    %v1263 = vpop.f32.mrb[0].mxu0
    %v1264 = vadd.f32 %v130, %v1263
    %v1265 = vpop.f32.mrb[0].mxu0
    %1266 = vdwg.mxu0
    %v1268 = vsel %vm1114, %v433, 0
    %v1271 = vsel %vm1114, %v737, 0
    %1273 = vmatprep.subr.mxu0 0.0
    %1274 = vmatpush1.xpose.msra.mxu0 %v1271
    %1275 = vmatprep.subr.mxu0 0.0
    %1276 = vmatpush1.xpose.msra.mxu0 0.0
    %1277 = vmatprep.subr.mxu0 0.0
    %1278 = vmatpush1.xpose.msra.mxu0 0.0
    %1279 = vmatprep.subr.mxu0 0.0
    %1280 = vmatpush1.xpose.msra.mxu0 0.0
    %1281 = vmatprep.subr.mxu0 0.0
    %1282 = vmatpush1.xpose.msra.mxu0 0.0
    %1283 = vmatprep.subr.mxu0 0.0
    %1284 = vmatpush1.xpose.msra.mxu0 0.0
    %1285 = vmatprep.subr.mxu0 0.0
    %1286 = vmatpush1.xpose.msra.mxu0 0.0
    %1287 = vmatprep.subr.mxu0 0.0
    %1288 = vmatpush1.xpose.msra.mxu0 0.0
    %1289 = vmatprep.subr.mxu0 0.0
    %1290 = vmatpush1.xpose.msra.mxu0 0.0
    %1291 = vmatprep.subr.mxu0 0.0
    %1292 = vmatpush1.xpose.msra.mxu0 0.0
    %1293 = vmatprep.subr.mxu0 0.0
    %1294 = vmatpush1.xpose.msra.mxu0 0.0
    %1295 = vmatprep.subr.mxu0 0.0
    %1296 = vmatpush1.xpose.msra.mxu0 0.0
    %1297 = vmatprep.subr.mxu0 0.0
    %1298 = vmatpush1.xpose.msra.mxu0 0.0
    %1299 = vmatprep.subr.mxu0 0.0
    %1300 = vmatpush1.xpose.msra.mxu0 0.0
    %1301 = vmatprep.subr.mxu0 0.0
    %1302 = vmatpush1.xpose.msra.mxu0 0.0
    %1303 = vmatprep.subr.mxu0 0.0
    %1304 = vmatpush1.xpose.msra.mxu0 0.0
    %1305 = vmatprep.subr.mxu0 0.0
    %1306 = vmatpush1.xpose.msra.mxu0 0.0
    %1307 = vmatprep.subr.mxu0 0.0
    %1308 = vmatpush1.xpose.msra.mxu0 0.0
    %1309 = vmatprep.subr.mxu0 0.0
    %1310 = vmatpush1.xpose.msra.mxu0 0.0
    %1311 = vmatprep.subr.mxu0 0.0
    %1312 = vmatpush1.xpose.msra.mxu0 0.0
    %1313 = vmatprep.subr.mxu0 0.0
    %1314 = vmatpush1.xpose.msra.mxu0 0.0
    %1315 = vmatprep.subr.mxu0 0.0
    %1316 = vmatpush1.xpose.msra.mxu0 0.0
    %1317 = vmatprep.subr.mxu0 0.0
    %1318 = vmatpush1.xpose.msra.mxu0 0.0
    %1319 = vmatprep.subr.mxu0 0.0
    %1320 = vmatpush1.xpose.msra.mxu0 0.0
    %1321 = vmatprep.subr.mxu0 0.0
    %1322 = vmatpush1.xpose.msra.mxu0 0.0
    %1323 = vmatprep.subr.mxu0 0.0
    %1324 = vmatpush1.xpose.msra.mxu0 0.0
    %1325 = vmatprep.subr.mxu0 0.0
    %1326 = vmatpush1.xpose.msra.mxu0 0.0
    %1327 = vmatprep.subr.mxu0 0.0
    %1328 = vmatpush1.xpose.msra.mxu0 0.0
    %1329 = vmatprep.subr.mxu0 0.0
    %1330 = vmatpush1.xpose.msra.mxu0 0.0
    %1331 = vmatprep.subr.mxu0 0.0
    %1332 = vmatpush1.xpose.msra.mxu0 0.0
    %1333 = vmatprep.subr.mxu0 0.0
    %1334 = vmatpush1.xpose.msra.mxu0 0.0
    %1335 = vmatprep.subr.mxu0 0.0
    %1336 = vmatpush1.xpose.msra.mxu0 0.0
    %1337 = vmatprep.mubr.f32.mxu0 0.0
    %1338 = vmatmul.mubr.f32.gmra.mrb[0].mxu0 %v1268
    %v1339 = vpop.f32.mrb[0].mxu0
    %v1340 = vadd.f32 %v130, %v1339
    %v1341 = vpop.f32.mrb[0].mxu0
    %1342 = vdwg.mxu0
    %v1344 = vsel %vm1114, %v503, 0
    %v1347 = vsel %vm1114, %v807, 0
    %1349 = vmatprep.subr.mxu0 0.0
    %1350 = vmatpush1.xpose.msra.mxu0 %v1347
    %1351 = vmatprep.subr.mxu0 0.0
    %1352 = vmatpush1.xpose.msra.mxu0 0.0
    %1353 = vmatprep.subr.mxu0 0.0
    %1354 = vmatpush1.xpose.msra.mxu0 0.0
    %1355 = vmatprep.subr.mxu0 0.0
    %1356 = vmatpush1.xpose.msra.mxu0 0.0
    %1357 = vmatprep.subr.mxu0 0.0
    %1358 = vmatpush1.xpose.msra.mxu0 0.0
    %1359 = vmatprep.subr.mxu0 0.0
    %1360 = vmatpush1.xpose.msra.mxu0 0.0
    %1361 = vmatprep.subr.mxu0 0.0
    %1362 = vmatpush1.xpose.msra.mxu0 0.0
    %1363 = vmatprep.subr.mxu0 0.0
    %1364 = vmatpush1.xpose.msra.mxu0 0.0
    %1365 = vmatprep.subr.mxu0 0.0
    %1366 = vmatpush1.xpose.msra.mxu0 0.0
    %1367 = vmatprep.subr.mxu0 0.0
    %1368 = vmatpush1.xpose.msra.mxu0 0.0
    %1369 = vmatprep.subr.mxu0 0.0
    %1370 = vmatpush1.xpose.msra.mxu0 0.0
    %1371 = vmatprep.subr.mxu0 0.0
    %1372 = vmatpush1.xpose.msra.mxu0 0.0
    %1373 = vmatprep.subr.mxu0 0.0
    %1374 = vmatpush1.xpose.msra.mxu0 0.0
    %1375 = vmatprep.subr.mxu0 0.0
    %1376 = vmatpush1.xpose.msra.mxu0 0.0
    %1377 = vmatprep.subr.mxu0 0.0
    %1378 = vmatpush1.xpose.msra.mxu0 0.0
    %1379 = vmatprep.subr.mxu0 0.0
    %1380 = vmatpush1.xpose.msra.mxu0 0.0
    %1381 = vmatprep.subr.mxu0 0.0
    %1382 = vmatpush1.xpose.msra.mxu0 0.0
    %1383 = vmatprep.subr.mxu0 0.0
    %1384 = vmatpush1.xpose.msra.mxu0 0.0
    %1385 = vmatprep.subr.mxu0 0.0
    %1386 = vmatpush1.xpose.msra.mxu0 0.0
    %1387 = vmatprep.subr.mxu0 0.0
    %1388 = vmatpush1.xpose.msra.mxu0 0.0
    %1389 = vmatprep.subr.mxu0 0.0
    %1390 = vmatpush1.xpose.msra.mxu0 0.0
    %1391 = vmatprep.subr.mxu0 0.0
    %1392 = vmatpush1.xpose.msra.mxu0 0.0
    %1393 = vmatprep.subr.mxu0 0.0
    %1394 = vmatpush1.xpose.msra.mxu0 0.0
    %1395 = vmatprep.subr.mxu0 0.0
    %1396 = vmatpush1.xpose.msra.mxu0 0.0
    %1397 = vmatprep.subr.mxu0 0.0
    %1398 = vmatpush1.xpose.msra.mxu0 0.0
    %1399 = vmatprep.subr.mxu0 0.0
    %1400 = vmatpush1.xpose.msra.mxu0 0.0
    %1401 = vmatprep.subr.mxu0 0.0
    %1402 = vmatpush1.xpose.msra.mxu0 0.0
    %1403 = vmatprep.subr.mxu0 0.0
    %1404 = vmatpush1.xpose.msra.mxu0 0.0
    %1405 = vmatprep.subr.mxu0 0.0
    %1406 = vmatpush1.xpose.msra.mxu0 0.0
    %1407 = vmatprep.subr.mxu0 0.0
    %1408 = vmatpush1.xpose.msra.mxu0 0.0
    %1409 = vmatprep.subr.mxu0 0.0
    %1410 = vmatpush1.xpose.msra.mxu0 0.0
    %1411 = vmatprep.subr.mxu0 0.0
    %1412 = vmatpush1.xpose.msra.mxu0 0.0
    %1413 = vmatprep.mubr.f32.mxu0 0.0
    %1414 = vmatmul.mubr.f32.gmra.mrb[0].mxu0 %v1344
    %v1415 = vpop.f32.mrb[0].mxu0
    %v1416 = vadd.f32 %v130, %v1415
    %v1417 = vpop.f32.mrb[0].mxu0
    %1418 = vdwg.mxu0
    %v1419 = vsel %vm1114, %v1188, -inf
    %1420 = vmax.xlane.f32.xlu0 %v1419
    %v1421 = vpop.xlane.xlu0 %1420
    %v1422 = vsel %vm1114, %v1264, -inf
    %1423 = vmax.xlane.f32.xlu0 %v1422
    %v1424 = vpop.xlane.xlu0 %1423
    %v1425 = vsel %vm1114, %v1340, -inf
    %1426 = vmax.xlane.f32.xlu0 %v1425
    %v1427 = vpop.xlane.xlu0 %1426
    %v1428 = vsel %vm1114, %v1416, -inf
    %1429 = vmax.xlane.f32.xlu0 %v1428
    %v1430 = vpop.xlane.xlu0 %1429
    %v1431 = vsub.f32 %v1188, %v1421
    %v1432 = vsub.f32 %v1264, %v1424
    %v1433 = vsub.f32 %v1340, %v1427
    %v1434 = vsub.f32 %v1416, %v1430
    %v1435 = vmul.f32 %v1431, 1.442695
    %v1436 = vpow.pop %v1435
    %v1437 = vmul.f32 %v1432, 1.442695
    %v1438 = vpow.pop %v1437
    %v1439 = vmul.f32 %v1433, 1.442695
    %v1440 = vpow.pop %v1439
    %v1441 = vmul.f32 %v1434, 1.442695
    %v1442 = vpow.pop %v1441
    %v1443 = vsel %vm1114, %v1436, 0.0
    %1444 = vadd.xlane.f32.xlu0 %v1443
    %v1445 = vpop.xlane.xlu0 %1444
    %v1446 = vsel %vm1114, %v1438, 0.0
    %1447 = vadd.xlane.f32.xlu0 %v1446
    %v1448 = vpop.xlane.xlu0 %1447
    %v1449 = vsel %vm1114, %v1440, 0.0
    %1450 = vadd.xlane.f32.xlu0 %v1449
    %v1451 = vpop.xlane.xlu0 %1450
    %v1452 = vsel %vm1114, %v1442, 0.0
    %1453 = vadd.xlane.f32.xlu0 %v1452
    %v1454 = vpop.xlane.xlu0 %1453
    %v1455 = vrcp.pop %v1445
    %v1456 = vrcp.pop %v1448
    %v1457 = vrcp.pop %v1451
    %v1458 = vrcp.pop %v1454
    %v1459 = vmul.f32 %v1436, %v1455
    %v1460 = vmul.f32 %v1438, %v1456
    %v1461 = vmul.f32 %v1440, %v1457
    %v1462 = vmul.f32 %v1442, %v1458
    %v1464 = vsel %vm1114, %v1459, 0
    %1466 = vmatprep.subr.mxu0 0.0
    %1467 = vmatpush1.msra.mxu0 %v901
    %1468 = vmatprep.subr.mxu0 0.0
    %1469 = vmatpush1.msra.mxu0 0.0
    %1470 = vmatprep.subr.mxu0 0.0
    %1471 = vmatpush1.msra.mxu0 0.0
    %1472 = vmatprep.subr.mxu0 0.0
    %1473 = vmatpush1.msra.mxu0 0.0
    %1474 = vmatprep.subr.mxu0 0.0
    %1475 = vmatpush1.msra.mxu0 0.0
    %1476 = vmatprep.subr.mxu0 0.0
    %1477 = vmatpush1.msra.mxu0 0.0
    %1478 = vmatprep.subr.mxu0 0.0
    %1479 = vmatpush1.msra.mxu0 0.0
    %1480 = vmatprep.subr.mxu0 0.0
    %1481 = vmatpush1.msra.mxu0 0.0
    %1482 = vmatprep.subr.mxu0 0.0
    %1483 = vmatpush1.msra.mxu0 0.0
    %1484 = vmatprep.subr.mxu0 0.0
    %1485 = vmatpush1.msra.mxu0 0.0
    %1486 = vmatprep.subr.mxu0 0.0
    %1487 = vmatpush1.msra.mxu0 0.0
    %1488 = vmatprep.subr.mxu0 0.0
    %1489 = vmatpush1.msra.mxu0 0.0
    %1490 = vmatprep.subr.mxu0 0.0
    %1491 = vmatpush1.msra.mxu0 0.0
    %1492 = vmatprep.subr.mxu0 0.0
    %1493 = vmatpush1.msra.mxu0 0.0
    %1494 = vmatprep.subr.mxu0 0.0
    %1495 = vmatpush1.msra.mxu0 0.0
    %1496 = vmatprep.subr.mxu0 0.0
    %1497 = vmatpush1.msra.mxu0 0.0
    %1498 = vmatprep.subr.mxu0 0.0
    %1499 = vmatpush1.msra.mxu0 0.0
    %1500 = vmatprep.subr.mxu0 0.0
    %1501 = vmatpush1.msra.mxu0 0.0
    %1502 = vmatprep.subr.mxu0 0.0
    %1503 = vmatpush1.msra.mxu0 0.0
    %1504 = vmatprep.subr.mxu0 0.0
    %1505 = vmatpush1.msra.mxu0 0.0
    %1506 = vmatprep.subr.mxu0 0.0
    %1507 = vmatpush1.msra.mxu0 0.0
    %1508 = vmatprep.subr.mxu0 0.0
    %1509 = vmatpush1.msra.mxu0 0.0
    %1510 = vmatprep.subr.mxu0 0.0
    %1511 = vmatpush1.msra.mxu0 0.0
    %1512 = vmatprep.subr.mxu0 0.0
    %1513 = vmatpush1.msra.mxu0 0.0
    %1514 = vmatprep.subr.mxu0 0.0
    %1515 = vmatpush1.msra.mxu0 0.0
    %1516 = vmatprep.subr.mxu0 0.0
    %1517 = vmatpush1.msra.mxu0 0.0
    %1518 = vmatprep.subr.mxu0 0.0
    %1519 = vmatpush1.msra.mxu0 0.0
    %1520 = vmatprep.subr.mxu0 0.0
    %1521 = vmatpush1.msra.mxu0 0.0
    %1522 = vmatprep.subr.mxu0 0.0
    %1523 = vmatpush1.msra.mxu0 0.0
    %1524 = vmatprep.subr.mxu0 0.0
    %1525 = vmatpush1.msra.mxu0 0.0
    %1526 = vmatprep.subr.mxu0 0.0
    %1527 = vmatpush1.msra.mxu0 0.0
    %1528 = vmatprep.subr.mxu0 0.0
    %1529 = vmatpush1.msra.mxu0 0.0
    %1530 = vmatprep.mubr.f32.mxu0 0.0
    %1531 = vmatmul.mubr.f32.gmra.mrb[0].mxu0 %v1464
    %v1532 = vpop.f32.mrb[0].mxu0
    %v1533 = vadd.f32 0.0, %v1532
    %v1534 = vpop.f32.mrb[0].mxu0
    %1535 = vdwg.mxu0
    %v1537 = vsel %vm1114, %v1460, 0
    %1539 = vmatprep.subr.mxu0 0.0
    %1540 = vmatpush1.msra.mxu0 %v971
    %1541 = vmatprep.subr.mxu0 0.0
    %1542 = vmatpush1.msra.mxu0 0.0
    %1543 = vmatprep.subr.mxu0 0.0
    %1544 = vmatpush1.msra.mxu0 0.0
    %1545 = vmatprep.subr.mxu0 0.0
    %1546 = vmatpush1.msra.mxu0 0.0
    %1547 = vmatprep.subr.mxu0 0.0
    %1548 = vmatpush1.msra.mxu0 0.0
    %1549 = vmatprep.subr.mxu0 0.0
    %1550 = vmatpush1.msra.mxu0 0.0
    %1551 = vmatprep.subr.mxu0 0.0
    %1552 = vmatpush1.msra.mxu0 0.0
    %1553 = vmatprep.subr.mxu0 0.0
    %1554 = vmatpush1.msra.mxu0 0.0
    %1555 = vmatprep.subr.mxu0 0.0
    %1556 = vmatpush1.msra.mxu0 0.0
    %1557 = vmatprep.subr.mxu0 0.0
    %1558 = vmatpush1.msra.mxu0 0.0
    %1559 = vmatprep.subr.mxu0 0.0
    %1560 = vmatpush1.msra.mxu0 0.0
    %1561 = vmatprep.subr.mxu0 0.0
    %1562 = vmatpush1.msra.mxu0 0.0
    %1563 = vmatprep.subr.mxu0 0.0
    %1564 = vmatpush1.msra.mxu0 0.0
    %1565 = vmatprep.subr.mxu0 0.0
    %1566 = vmatpush1.msra.mxu0 0.0
    %1567 = vmatprep.subr.mxu0 0.0
    %1568 = vmatpush1.msra.mxu0 0.0
    %1569 = vmatprep.subr.mxu0 0.0
    %1570 = vmatpush1.msra.mxu0 0.0
    %1571 = vmatprep.subr.mxu0 0.0
    %1572 = vmatpush1.msra.mxu0 0.0
    %1573 = vmatprep.subr.mxu0 0.0
    %1574 = vmatpush1.msra.mxu0 0.0
    %1575 = vmatprep.subr.mxu0 0.0
    %1576 = vmatpush1.msra.mxu0 0.0
    %1577 = vmatprep.subr.mxu0 0.0
    %1578 = vmatpush1.msra.mxu0 0.0
    %1579 = vmatprep.subr.mxu0 0.0
    %1580 = vmatpush1.msra.mxu0 0.0
    %1581 = vmatprep.subr.mxu0 0.0
    %1582 = vmatpush1.msra.mxu0 0.0
    %1583 = vmatprep.subr.mxu0 0.0
    %1584 = vmatpush1.msra.mxu0 0.0
    %1585 = vmatprep.subr.mxu0 0.0
    %1586 = vmatpush1.msra.mxu0 0.0
    %1587 = vmatprep.subr.mxu0 0.0
    %1588 = vmatpush1.msra.mxu0 0.0
    %1589 = vmatprep.subr.mxu0 0.0
    %1590 = vmatpush1.msra.mxu0 0.0
    %1591 = vmatprep.subr.mxu0 0.0
    %1592 = vmatpush1.msra.mxu0 0.0
    %1593 = vmatprep.subr.mxu0 0.0
    %1594 = vmatpush1.msra.mxu0 0.0
    %1595 = vmatprep.subr.mxu0 0.0
    %1596 = vmatpush1.msra.mxu0 0.0
    %1597 = vmatprep.subr.mxu0 0.0
    %1598 = vmatpush1.msra.mxu0 0.0
    %1599 = vmatprep.subr.mxu0 0.0
    %1600 = vmatpush1.msra.mxu0 0.0
    %1601 = vmatprep.subr.mxu0 0.0
    %1602 = vmatpush1.msra.mxu0 0.0
    %1603 = vmatprep.mubr.f32.mxu0 0.0
    %1604 = vmatmul.mubr.f32.gmra.mrb[0].mxu0 %v1537
    %v1605 = vpop.f32.mrb[0].mxu0
    %v1606 = vadd.f32 0.0, %v1605
    %v1607 = vpop.f32.mrb[0].mxu0
    %1608 = vdwg.mxu0
    %v1610 = vsel %vm1114, %v1461, 0
    %1612 = vmatprep.subr.mxu0 0.0
    %1613 = vmatpush1.msra.mxu0 %v1041
    %1614 = vmatprep.subr.mxu0 0.0
    %1615 = vmatpush1.msra.mxu0 0.0
    %1616 = vmatprep.subr.mxu0 0.0
    %1617 = vmatpush1.msra.mxu0 0.0
    %1618 = vmatprep.subr.mxu0 0.0
    %1619 = vmatpush1.msra.mxu0 0.0
    %1620 = vmatprep.subr.mxu0 0.0
    %1621 = vmatpush1.msra.mxu0 0.0
    %1622 = vmatprep.subr.mxu0 0.0
    %1623 = vmatpush1.msra.mxu0 0.0
    %1624 = vmatprep.subr.mxu0 0.0
    %1625 = vmatpush1.msra.mxu0 0.0
    %1626 = vmatprep.subr.mxu0 0.0
    %1627 = vmatpush1.msra.mxu0 0.0
    %1628 = vmatprep.subr.mxu0 0.0
    %1629 = vmatpush1.msra.mxu0 0.0
    %1630 = vmatprep.subr.mxu0 0.0
    %1631 = vmatpush1.msra.mxu0 0.0
    %1632 = vmatprep.subr.mxu0 0.0
    %1633 = vmatpush1.msra.mxu0 0.0
    %1634 = vmatprep.subr.mxu0 0.0
    %1635 = vmatpush1.msra.mxu0 0.0
    %1636 = vmatprep.subr.mxu0 0.0
    %1637 = vmatpush1.msra.mxu0 0.0
    %1638 = vmatprep.subr.mxu0 0.0
    %1639 = vmatpush1.msra.mxu0 0.0
    %1640 = vmatprep.subr.mxu0 0.0
    %1641 = vmatpush1.msra.mxu0 0.0
    %1642 = vmatprep.subr.mxu0 0.0
    %1643 = vmatpush1.msra.mxu0 0.0
    %1644 = vmatprep.subr.mxu0 0.0
    %1645 = vmatpush1.msra.mxu0 0.0
    %1646 = vmatprep.subr.mxu0 0.0
    %1647 = vmatpush1.msra.mxu0 0.0
    %1648 = vmatprep.subr.mxu0 0.0
    %1649 = vmatpush1.msra.mxu0 0.0
    %1650 = vmatprep.subr.mxu0 0.0
    %1651 = vmatpush1.msra.mxu0 0.0
    %1652 = vmatprep.subr.mxu0 0.0
    %1653 = vmatpush1.msra.mxu0 0.0
    %1654 = vmatprep.subr.mxu0 0.0
    %1655 = vmatpush1.msra.mxu0 0.0
    %1656 = vmatprep.subr.mxu0 0.0
    %1657 = vmatpush1.msra.mxu0 0.0
    %1658 = vmatprep.subr.mxu0 0.0
    %1659 = vmatpush1.msra.mxu0 0.0
    %1660 = vmatprep.subr.mxu0 0.0
    %1661 = vmatpush1.msra.mxu0 0.0
    %1662 = vmatprep.subr.mxu0 0.0
    %1663 = vmatpush1.msra.mxu0 0.0
    %1664 = vmatprep.subr.mxu0 0.0
    %1665 = vmatpush1.msra.mxu0 0.0
    %1666 = vmatprep.subr.mxu0 0.0
    %1667 = vmatpush1.msra.mxu0 0.0
    %1668 = vmatprep.subr.mxu0 0.0
    %1669 = vmatpush1.msra.mxu0 0.0
    %1670 = vmatprep.subr.mxu0 0.0
    %1671 = vmatpush1.msra.mxu0 0.0
    %1672 = vmatprep.subr.mxu0 0.0
    %1673 = vmatpush1.msra.mxu0 0.0
    %1674 = vmatprep.subr.mxu0 0.0
    %1675 = vmatpush1.msra.mxu0 0.0
    %1676 = vmatprep.mubr.f32.mxu0 0.0
    %1677 = vmatmul.mubr.f32.gmra.mrb[0].mxu0 %v1610
    %v1678 = vpop.f32.mrb[0].mxu0
    %v1679 = vadd.f32 0.0, %v1678
    %v1680 = vpop.f32.mrb[0].mxu0
    %1681 = vdwg.mxu0
    %v1683 = vsel %vm1114, %v1462, 0
    %1685 = vmatprep.subr.mxu0 0.0
    %1686 = vmatpush1.msra.mxu0 %v1111
    %1687 = vmatprep.subr.mxu0 0.0
    %1688 = vmatpush1.msra.mxu0 0.0
    %1689 = vmatprep.subr.mxu0 0.0
    %1690 = vmatpush1.msra.mxu0 0.0
    %1691 = vmatprep.subr.mxu0 0.0
    %1692 = vmatpush1.msra.mxu0 0.0
    %1693 = vmatprep.subr.mxu0 0.0
    %1694 = vmatpush1.msra.mxu0 0.0
    %1695 = vmatprep.subr.mxu0 0.0
    %1696 = vmatpush1.msra.mxu0 0.0
    %1697 = vmatprep.subr.mxu0 0.0
    %1698 = vmatpush1.msra.mxu0 0.0
    %1699 = vmatprep.subr.mxu0 0.0
    %1700 = vmatpush1.msra.mxu0 0.0
    %1701 = vmatprep.subr.mxu0 0.0
    %1702 = vmatpush1.msra.mxu0 0.0
    %1703 = vmatprep.subr.mxu0 0.0
    %1704 = vmatpush1.msra.mxu0 0.0
    %1705 = vmatprep.subr.mxu0 0.0
    %1706 = vmatpush1.msra.mxu0 0.0
    %1707 = vmatprep.subr.mxu0 0.0
    %1708 = vmatpush1.msra.mxu0 0.0
    %1709 = vmatprep.subr.mxu0 0.0
    %1710 = vmatpush1.msra.mxu0 0.0
    %1711 = vmatprep.subr.mxu0 0.0
    %1712 = vmatpush1.msra.mxu0 0.0
    %1713 = vmatprep.subr.mxu0 0.0
    %1714 = vmatpush1.msra.mxu0 0.0
    %1715 = vmatprep.subr.mxu0 0.0
    %1716 = vmatpush1.msra.mxu0 0.0
    %1717 = vmatprep.subr.mxu0 0.0
    %1718 = vmatpush1.msra.mxu0 0.0
    %1719 = vmatprep.subr.mxu0 0.0
    %1720 = vmatpush1.msra.mxu0 0.0
    %1721 = vmatprep.subr.mxu0 0.0
    %1722 = vmatpush1.msra.mxu0 0.0
    %1723 = vmatprep.subr.mxu0 0.0
    %1724 = vmatpush1.msra.mxu0 0.0
    %1725 = vmatprep.subr.mxu0 0.0
    %1726 = vmatpush1.msra.mxu0 0.0
    %1727 = vmatprep.subr.mxu0 0.0
    %1728 = vmatpush1.msra.mxu0 0.0
    %1729 = vmatprep.subr.mxu0 0.0
    %1730 = vmatpush1.msra.mxu0 0.0
    %1731 = vmatprep.subr.mxu0 0.0
    %1732 = vmatpush1.msra.mxu0 0.0
    %1733 = vmatprep.subr.mxu0 0.0
    %1734 = vmatpush1.msra.mxu0 0.0
    %1735 = vmatprep.subr.mxu0 0.0
    %1736 = vmatpush1.msra.mxu0 0.0
    %1737 = vmatprep.subr.mxu0 0.0
    %1738 = vmatpush1.msra.mxu0 0.0
    %1739 = vmatprep.subr.mxu0 0.0
    %1740 = vmatpush1.msra.mxu0 0.0
    %1741 = vmatprep.subr.mxu0 0.0
    %1742 = vmatpush1.msra.mxu0 0.0
    %1743 = vmatprep.subr.mxu0 0.0
    %1744 = vmatpush1.msra.mxu0 0.0
    %1745 = vmatprep.subr.mxu0 0.0
    %1746 = vmatpush1.msra.mxu0 0.0
    %1747 = vmatprep.subr.mxu0 0.0
    %1748 = vmatpush1.msra.mxu0 0.0
    %1749 = vmatprep.mubr.f32.mxu0 0.0
    %1750 = vmatmul.mubr.f32.gmra.mrb[0].mxu0 %v1683
    %v1751 = vpop.f32.mrb[0].mxu0
    %v1752 = vadd.f32 0.0, %v1751
    %v1753 = vpop.f32.mrb[0].mxu0
    %1754 = vdwg.mxu0
    %v1756 = vsel %vm1114, %v1533, 0
    %1758 = vmatprep.subr.mxu0 0.0
    %1759 = vmatpush1.msra.mxu0 %v195
    %1760 = vmatprep.subr.mxu0 0.0
    %1761 = vmatpush1.msra.mxu0 0.0
    %1762 = vmatprep.subr.mxu0 0.0
    %1763 = vmatpush1.msra.mxu0 0.0
    %1764 = vmatprep.subr.mxu0 0.0
    %1765 = vmatpush1.msra.mxu0 0.0
    %1766 = vmatprep.subr.mxu0 0.0
    %1767 = vmatpush1.msra.mxu0 0.0
    %1768 = vmatprep.subr.mxu0 0.0
    %1769 = vmatpush1.msra.mxu0 0.0
    %1770 = vmatprep.subr.mxu0 0.0
    %1771 = vmatpush1.msra.mxu0 0.0
    %1772 = vmatprep.subr.mxu0 0.0
    %1773 = vmatpush1.msra.mxu0 0.0
    %1774 = vmatprep.subr.mxu0 0.0
    %1775 = vmatpush1.msra.mxu0 0.0
    %1776 = vmatprep.subr.mxu0 0.0
    %1777 = vmatpush1.msra.mxu0 0.0
    %1778 = vmatprep.subr.mxu0 0.0
    %1779 = vmatpush1.msra.mxu0 0.0
    %1780 = vmatprep.subr.mxu0 0.0
    %1781 = vmatpush1.msra.mxu0 0.0
    %1782 = vmatprep.subr.mxu0 0.0
    %1783 = vmatpush1.msra.mxu0 0.0
    %1784 = vmatprep.subr.mxu0 0.0
    %1785 = vmatpush1.msra.mxu0 0.0
    %1786 = vmatprep.subr.mxu0 0.0
    %1787 = vmatpush1.msra.mxu0 0.0
    %1788 = vmatprep.subr.mxu0 0.0
    %1789 = vmatpush1.msra.mxu0 0.0
    %1790 = vmatprep.subr.mxu0 0.0
    %1791 = vmatpush1.msra.mxu0 0.0
    %1792 = vmatprep.subr.mxu0 0.0
    %1793 = vmatpush1.msra.mxu0 0.0
    %1794 = vmatprep.subr.mxu0 0.0
    %1795 = vmatpush1.msra.mxu0 0.0
    %1796 = vmatprep.subr.mxu0 0.0
    %1797 = vmatpush1.msra.mxu0 0.0
    %1798 = vmatprep.subr.mxu0 0.0
    %1799 = vmatpush1.msra.mxu0 0.0
    %1800 = vmatprep.subr.mxu0 0.0
    %1801 = vmatpush1.msra.mxu0 0.0
    %1802 = vmatprep.subr.mxu0 0.0
    %1803 = vmatpush1.msra.mxu0 0.0
    %1804 = vmatprep.subr.mxu0 0.0
    %1805 = vmatpush1.msra.mxu0 0.0
    %1806 = vmatprep.subr.mxu0 0.0
    %1807 = vmatpush1.msra.mxu0 0.0
    %1808 = vmatprep.subr.mxu0 0.0
    %1809 = vmatpush1.msra.mxu0 0.0
    %1810 = vmatprep.subr.mxu0 0.0
    %1811 = vmatpush1.msra.mxu0 0.0
    %1812 = vmatprep.subr.mxu0 0.0
    %1813 = vmatpush1.msra.mxu0 0.0
    %1814 = vmatprep.subr.mxu0 0.0
    %1815 = vmatpush1.msra.mxu0 0.0
    %1816 = vmatprep.subr.mxu0 0.0
    %1817 = vmatpush1.msra.mxu0 0.0
    %1818 = vmatprep.subr.mxu0 0.0
    %1819 = vmatpush1.msra.mxu0 0.0
    %1820 = vmatprep.subr.mxu0 0.0
    %1821 = vmatpush1.msra.mxu0 0.0
    %1822 = vmatprep.mubr.f32.mxu0 0.0
    %1823 = vmatmul.mubr.f32.gmra.mrb[0].mxu0 %v1756
    %v1824 = vpop.f32.mrb[0].mxu0
    %v1825 = vadd.f32 0.0, %v1824
    %v1826 = vpop.f32.mrb[0].mxu0
    %1827 = vdwg.mxu0
    %v1829 = vsel %vm1114, %v1606, 0
    %1831 = vmatprep.subr.mxu0 0.0
    %1832 = vmatpush1.msra.mxu0 %v196
    %1833 = vmatprep.subr.mxu0 0.0
    %1834 = vmatpush1.msra.mxu0 0.0
    %1835 = vmatprep.subr.mxu0 0.0
    %1836 = vmatpush1.msra.mxu0 0.0
    %1837 = vmatprep.subr.mxu0 0.0
    %1838 = vmatpush1.msra.mxu0 0.0
    %1839 = vmatprep.subr.mxu0 0.0
    %1840 = vmatpush1.msra.mxu0 0.0
    %1841 = vmatprep.subr.mxu0 0.0
    %1842 = vmatpush1.msra.mxu0 0.0
    %1843 = vmatprep.subr.mxu0 0.0
    %1844 = vmatpush1.msra.mxu0 0.0
    %1845 = vmatprep.subr.mxu0 0.0
    %1846 = vmatpush1.msra.mxu0 0.0
    %1847 = vmatprep.subr.mxu0 0.0
    %1848 = vmatpush1.msra.mxu0 0.0
    %1849 = vmatprep.subr.mxu0 0.0
    %1850 = vmatpush1.msra.mxu0 0.0
    %1851 = vmatprep.subr.mxu0 0.0
    %1852 = vmatpush1.msra.mxu0 0.0
    %1853 = vmatprep.subr.mxu0 0.0
    %1854 = vmatpush1.msra.mxu0 0.0
    %1855 = vmatprep.subr.mxu0 0.0
    %1856 = vmatpush1.msra.mxu0 0.0
    %1857 = vmatprep.subr.mxu0 0.0
    %1858 = vmatpush1.msra.mxu0 0.0
    %1859 = vmatprep.subr.mxu0 0.0
    %1860 = vmatpush1.msra.mxu0 0.0
    %1861 = vmatprep.subr.mxu0 0.0
    %1862 = vmatpush1.msra.mxu0 0.0
    %1863 = vmatprep.subr.mxu0 0.0
    %1864 = vmatpush1.msra.mxu0 0.0
    %1865 = vmatprep.subr.mxu0 0.0
    %1866 = vmatpush1.msra.mxu0 0.0
    %1867 = vmatprep.subr.mxu0 0.0
    %1868 = vmatpush1.msra.mxu0 0.0
    %1869 = vmatprep.subr.mxu0 0.0
    %1870 = vmatpush1.msra.mxu0 0.0
    %1871 = vmatprep.subr.mxu0 0.0
    %1872 = vmatpush1.msra.mxu0 0.0
    %1873 = vmatprep.subr.mxu0 0.0
    %1874 = vmatpush1.msra.mxu0 0.0
    %1875 = vmatprep.subr.mxu0 0.0
    %1876 = vmatpush1.msra.mxu0 0.0
    %1877 = vmatprep.subr.mxu0 0.0
    %1878 = vmatpush1.msra.mxu0 0.0
    %1879 = vmatprep.subr.mxu0 0.0
    %1880 = vmatpush1.msra.mxu0 0.0
    %1881 = vmatprep.subr.mxu0 0.0
    %1882 = vmatpush1.msra.mxu0 0.0
    %1883 = vmatprep.subr.mxu0 0.0
    %1884 = vmatpush1.msra.mxu0 0.0
    %1885 = vmatprep.subr.mxu0 0.0
    %1886 = vmatpush1.msra.mxu0 0.0
    %1887 = vmatprep.subr.mxu0 0.0
    %1888 = vmatpush1.msra.mxu0 0.0
    %1889 = vmatprep.subr.mxu0 0.0
    %1890 = vmatpush1.msra.mxu0 0.0
    %1891 = vmatprep.subr.mxu0 0.0
    %1892 = vmatpush1.msra.mxu0 0.0
    %1893 = vmatprep.subr.mxu0 0.0
    %1894 = vmatpush1.msra.mxu0 0.0
    %1895 = vmatprep.mubr.f32.mxu0 0.0
    %1896 = vmatmul.mubr.f32.gmra.mrb[0].mxu0 %v1829
    %v1897 = vpop.f32.mrb[0].mxu0
    %v1898 = vadd.f32 0.0, %v1897
    %v1899 = vpop.f32.mrb[0].mxu0
    %1900 = vdwg.mxu0
    %v1902 = vsel %vm1114, %v1679, 0
    %1904 = vmatprep.subr.mxu0 0.0
    %1905 = vmatpush1.msra.mxu0 %v197
    %1906 = vmatprep.subr.mxu0 0.0
    %1907 = vmatpush1.msra.mxu0 0.0
    %1908 = vmatprep.subr.mxu0 0.0
    %1909 = vmatpush1.msra.mxu0 0.0
    %1910 = vmatprep.subr.mxu0 0.0
    %1911 = vmatpush1.msra.mxu0 0.0
    %1912 = vmatprep.subr.mxu0 0.0
    %1913 = vmatpush1.msra.mxu0 0.0
    %1914 = vmatprep.subr.mxu0 0.0
    %1915 = vmatpush1.msra.mxu0 0.0
    %1916 = vmatprep.subr.mxu0 0.0
    %1917 = vmatpush1.msra.mxu0 0.0
    %1918 = vmatprep.subr.mxu0 0.0
    %1919 = vmatpush1.msra.mxu0 0.0
    %1920 = vmatprep.subr.mxu0 0.0
    %1921 = vmatpush1.msra.mxu0 0.0
    %1922 = vmatprep.subr.mxu0 0.0
    %1923 = vmatpush1.msra.mxu0 0.0
    %1924 = vmatprep.subr.mxu0 0.0
    %1925 = vmatpush1.msra.mxu0 0.0
    %1926 = vmatprep.subr.mxu0 0.0
    %1927 = vmatpush1.msra.mxu0 0.0
    %1928 = vmatprep.subr.mxu0 0.0
    %1929 = vmatpush1.msra.mxu0 0.0
    %1930 = vmatprep.subr.mxu0 0.0
    %1931 = vmatpush1.msra.mxu0 0.0
    %1932 = vmatprep.subr.mxu0 0.0
    %1933 = vmatpush1.msra.mxu0 0.0
    %1934 = vmatprep.subr.mxu0 0.0
    %1935 = vmatpush1.msra.mxu0 0.0
    %1936 = vmatprep.subr.mxu0 0.0
    %1937 = vmatpush1.msra.mxu0 0.0
    %1938 = vmatprep.subr.mxu0 0.0
    %1939 = vmatpush1.msra.mxu0 0.0
    %1940 = vmatprep.subr.mxu0 0.0
    %1941 = vmatpush1.msra.mxu0 0.0
    %1942 = vmatprep.subr.mxu0 0.0
    %1943 = vmatpush1.msra.mxu0 0.0
    %1944 = vmatprep.subr.mxu0 0.0
    %1945 = vmatpush1.msra.mxu0 0.0
    %1946 = vmatprep.subr.mxu0 0.0
    %1947 = vmatpush1.msra.mxu0 0.0
    %1948 = vmatprep.subr.mxu0 0.0
    %1949 = vmatpush1.msra.mxu0 0.0
    %1950 = vmatprep.subr.mxu0 0.0
    %1951 = vmatpush1.msra.mxu0 0.0
    %1952 = vmatprep.subr.mxu0 0.0
    %1953 = vmatpush1.msra.mxu0 0.0
    %1954 = vmatprep.subr.mxu0 0.0
    %1955 = vmatpush1.msra.mxu0 0.0
    %1956 = vmatprep.subr.mxu0 0.0
    %1957 = vmatpush1.msra.mxu0 0.0
    %1958 = vmatprep.subr.mxu0 0.0
    %1959 = vmatpush1.msra.mxu0 0.0
    %1960 = vmatprep.subr.mxu0 0.0
    %1961 = vmatpush1.msra.mxu0 0.0
    %1962 = vmatprep.subr.mxu0 0.0
    %1963 = vmatpush1.msra.mxu0 0.0
    %1964 = vmatprep.subr.mxu0 0.0
    %1965 = vmatpush1.msra.mxu0 0.0
    %1966 = vmatprep.subr.mxu0 0.0
    %1967 = vmatpush1.msra.mxu0 0.0
    %1968 = vmatprep.mubr.f32.mxu0 0.0
    %1969 = vmatmul.mubr.f32.gmra.mrb[0].mxu0 %v1902
    %v1970 = vpop.f32.mrb[0].mxu0
    %v1971 = vadd.f32 0.0, %v1970
    %v1972 = vpop.f32.mrb[0].mxu0
    %1973 = vdwg.mxu0
    %v1975 = vsel %vm1114, %v1752, 0
    %1977 = vmatprep.subr.mxu0 0.0
    %1978 = vmatpush1.msra.mxu0 %v198
    %1979 = vmatprep.subr.mxu0 0.0
    %1980 = vmatpush1.msra.mxu0 0.0
    %1981 = vmatprep.subr.mxu0 0.0
    %1982 = vmatpush1.msra.mxu0 0.0
    %1983 = vmatprep.subr.mxu0 0.0
    %1984 = vmatpush1.msra.mxu0 0.0
    %1985 = vmatprep.subr.mxu0 0.0
    %1986 = vmatpush1.msra.mxu0 0.0
    %1987 = vmatprep.subr.mxu0 0.0
    %1988 = vmatpush1.msra.mxu0 0.0
    %1989 = vmatprep.subr.mxu0 0.0
    %1990 = vmatpush1.msra.mxu0 0.0
    %1991 = vmatprep.subr.mxu0 0.0
    %1992 = vmatpush1.msra.mxu0 0.0
    %1993 = vmatprep.subr.mxu0 0.0
    %1994 = vmatpush1.msra.mxu0 0.0
    %1995 = vmatprep.subr.mxu0 0.0
    %1996 = vmatpush1.msra.mxu0 0.0
    %1997 = vmatprep.subr.mxu0 0.0
    %1998 = vmatpush1.msra.mxu0 0.0
    %1999 = vmatprep.subr.mxu0 0.0
    %2000 = vmatpush1.msra.mxu0 0.0
    %2001 = vmatprep.subr.mxu0 0.0
    %2002 = vmatpush1.msra.mxu0 0.0
    %2003 = vmatprep.subr.mxu0 0.0
    %2004 = vmatpush1.msra.mxu0 0.0
    %2005 = vmatprep.subr.mxu0 0.0
    %2006 = vmatpush1.msra.mxu0 0.0
    %2007 = vmatprep.subr.mxu0 0.0
    %2008 = vmatpush1.msra.mxu0 0.0
    %2009 = vmatprep.subr.mxu0 0.0
    %2010 = vmatpush1.msra.mxu0 0.0
    %2011 = vmatprep.subr.mxu0 0.0
    %2012 = vmatpush1.msra.mxu0 0.0
    %2013 = vmatprep.subr.mxu0 0.0
    %2014 = vmatpush1.msra.mxu0 0.0
    %2015 = vmatprep.subr.mxu0 0.0
    %2016 = vmatpush1.msra.mxu0 0.0
    %2017 = vmatprep.subr.mxu0 0.0
    %2018 = vmatpush1.msra.mxu0 0.0
    %2019 = vmatprep.subr.mxu0 0.0
    %2020 = vmatpush1.msra.mxu0 0.0
    %2021 = vmatprep.subr.mxu0 0.0
    %2022 = vmatpush1.msra.mxu0 0.0
    %2023 = vmatprep.subr.mxu0 0.0
    %2024 = vmatpush1.msra.mxu0 0.0
    %2025 = vmatprep.subr.mxu0 0.0
    %2026 = vmatpush1.msra.mxu0 0.0
    %2027 = vmatprep.subr.mxu0 0.0
    %2028 = vmatpush1.msra.mxu0 0.0
    %2029 = vmatprep.subr.mxu0 0.0
    %2030 = vmatpush1.msra.mxu0 0.0
    %2031 = vmatprep.subr.mxu0 0.0
    %2032 = vmatpush1.msra.mxu0 0.0
    %2033 = vmatprep.subr.mxu0 0.0
    %2034 = vmatpush1.msra.mxu0 0.0
    %2035 = vmatprep.subr.mxu0 0.0
    %2036 = vmatpush1.msra.mxu0 0.0
    %2037 = vmatprep.subr.mxu0 0.0
    %2038 = vmatpush1.msra.mxu0 0.0
    %2039 = vmatprep.subr.mxu0 0.0
    %2040 = vmatpush1.msra.mxu0 0.0
    %2041 = vmatprep.mubr.f32.mxu0 0.0
    %2042 = vmatmul.mubr.f32.gmra.mrb[0].mxu0 %v1975
    %v2043 = vpop.f32.mrb[0].mxu0
    %v2044 = vadd.f32 0.0, %v2043
    %v2045 = vpop.f32.mrb[0].mxu0
    %2046 = vdwg.mxu0
    %v2047 = vsel %vm82, %v1825, 0.0
    %v2048 = vsel %vm82, %v1898, 0.0
    %v2049 = vadd.f32 %v2047, %v2048
    %v2050 = vsel %vm82, %v1971, 0.0
    %v2051 = vadd.f32 %v2049, %v2050
    %v2052 = vsel %vm82, %v2044, 0.0
    %v2053 = vadd.f32 %v2051, %v2052
    %v2055 = vsel %vm82, %v125, 0
    %2057 = vmatprep.subr.mxu0 0.0
    %2058 = vmatpush1.msra.mxu0 %v135
    %2059 = vmatprep.subr.mxu0 0.0
    %2060 = vmatpush1.msra.mxu0 %v136
    %2061 = vmatprep.subr.mxu0 0.0
    %2062 = vmatpush1.msra.mxu0 %v137
    %2063 = vmatprep.subr.mxu0 0.0
    %2064 = vmatpush1.msra.mxu0 %v138
    %2065 = vmatprep.subr.mxu0 0.0
    %2066 = vmatpush1.msra.mxu0 0.0
    %2067 = vmatprep.subr.mxu0 0.0
    %2068 = vmatpush1.msra.mxu0 0.0
    %2069 = vmatprep.subr.mxu0 0.0
    %2070 = vmatpush1.msra.mxu0 0.0
    %2071 = vmatprep.subr.mxu0 0.0
    %2072 = vmatpush1.msra.mxu0 0.0
    %2073 = vmatprep.subr.mxu0 0.0
    %2074 = vmatpush1.msra.mxu0 0.0
    %2075 = vmatprep.subr.mxu0 0.0
    %2076 = vmatpush1.msra.mxu0 0.0
    %2077 = vmatprep.subr.mxu0 0.0
    %2078 = vmatpush1.msra.mxu0 0.0
    %2079 = vmatprep.subr.mxu0 0.0
    %2080 = vmatpush1.msra.mxu0 0.0
    %2081 = vmatprep.subr.mxu0 0.0
    %2082 = vmatpush1.msra.mxu0 0.0
    %2083 = vmatprep.subr.mxu0 0.0
    %2084 = vmatpush1.msra.mxu0 0.0
    %2085 = vmatprep.subr.mxu0 0.0
    %2086 = vmatpush1.msra.mxu0 0.0
    %2087 = vmatprep.subr.mxu0 0.0
    %2088 = vmatpush1.msra.mxu0 0.0
    %2089 = vmatprep.subr.mxu0 0.0
    %2090 = vmatpush1.msra.mxu0 0.0
    %2091 = vmatprep.subr.mxu0 0.0
    %2092 = vmatpush1.msra.mxu0 0.0
    %2093 = vmatprep.subr.mxu0 0.0
    %2094 = vmatpush1.msra.mxu0 0.0
    %2095 = vmatprep.subr.mxu0 0.0
    %2096 = vmatpush1.msra.mxu0 0.0
    %2097 = vmatprep.subr.mxu0 0.0
    %2098 = vmatpush1.msra.mxu0 0.0
    %2099 = vmatprep.subr.mxu0 0.0
    %2100 = vmatpush1.msra.mxu0 0.0
    %2101 = vmatprep.subr.mxu0 0.0
    %2102 = vmatpush1.msra.mxu0 0.0
    %2103 = vmatprep.subr.mxu0 0.0
    %2104 = vmatpush1.msra.mxu0 0.0
    %2105 = vmatprep.subr.mxu0 0.0
    %2106 = vmatpush1.msra.mxu0 0.0
    %2107 = vmatprep.subr.mxu0 0.0
    %2108 = vmatpush1.msra.mxu0 0.0
    %2109 = vmatprep.subr.mxu0 0.0
    %2110 = vmatpush1.msra.mxu0 0.0
    %2111 = vmatprep.subr.mxu0 0.0
    %2112 = vmatpush1.msra.mxu0 0.0
    %2113 = vmatprep.subr.mxu0 0.0
    %2114 = vmatpush1.msra.mxu0 0.0
    %2115 = vmatprep.subr.mxu0 0.0
    %2116 = vmatpush1.msra.mxu0 0.0
    %2117 = vmatprep.subr.mxu0 0.0
    %2118 = vmatpush1.msra.mxu0 0.0
    %2119 = vmatprep.subr.mxu0 0.0
    %2120 = vmatpush1.msra.mxu0 0.0
    %2121 = vmatprep.mubr.f32.mxu0 0.0
    %2122 = vmatmul.mubr.f32.gmra.mrb[0].mxu0 %v2055
    %v2123 = vpop.f32.mrb[0].mxu0
    %v2124 = vadd.f32 %v206, %v2123
    %v2125 = vpop.f32.mrb[0].mxu0
    %2126 = vdwg.mxu0
    %2127 = vmatprep.subr.mxu0 0.0
    %2128 = vmatpush1.msra.mxu0 %v139
    %2129 = vmatprep.subr.mxu0 0.0
    %2130 = vmatpush1.msra.mxu0 %v140
    %2131 = vmatprep.subr.mxu0 0.0
    %2132 = vmatpush1.msra.mxu0 %v141
    %2133 = vmatprep.subr.mxu0 0.0
    %2134 = vmatpush1.msra.mxu0 %v142
    %2135 = vmatprep.subr.mxu0 0.0
    %2136 = vmatpush1.msra.mxu0 0.0
    %2137 = vmatprep.subr.mxu0 0.0
    %2138 = vmatpush1.msra.mxu0 0.0
    %2139 = vmatprep.subr.mxu0 0.0
    %2140 = vmatpush1.msra.mxu0 0.0
    %2141 = vmatprep.subr.mxu0 0.0
    %2142 = vmatpush1.msra.mxu0 0.0
    %2143 = vmatprep.subr.mxu0 0.0
    %2144 = vmatpush1.msra.mxu0 0.0
    %2145 = vmatprep.subr.mxu0 0.0
    %2146 = vmatpush1.msra.mxu0 0.0
    %2147 = vmatprep.subr.mxu0 0.0
    %2148 = vmatpush1.msra.mxu0 0.0
    %2149 = vmatprep.subr.mxu0 0.0
    %2150 = vmatpush1.msra.mxu0 0.0
    %2151 = vmatprep.subr.mxu0 0.0
    %2152 = vmatpush1.msra.mxu0 0.0
    %2153 = vmatprep.subr.mxu0 0.0
    %2154 = vmatpush1.msra.mxu0 0.0
    %2155 = vmatprep.subr.mxu0 0.0
    %2156 = vmatpush1.msra.mxu0 0.0
    %2157 = vmatprep.subr.mxu0 0.0
    %2158 = vmatpush1.msra.mxu0 0.0
    %2159 = vmatprep.subr.mxu0 0.0
    %2160 = vmatpush1.msra.mxu0 0.0
    %2161 = vmatprep.subr.mxu0 0.0
    %2162 = vmatpush1.msra.mxu0 0.0
    %2163 = vmatprep.subr.mxu0 0.0
    %2164 = vmatpush1.msra.mxu0 0.0
    %2165 = vmatprep.subr.mxu0 0.0
    %2166 = vmatpush1.msra.mxu0 0.0
    %2167 = vmatprep.subr.mxu0 0.0
    %2168 = vmatpush1.msra.mxu0 0.0
    %2169 = vmatprep.subr.mxu0 0.0
    %2170 = vmatpush1.msra.mxu0 0.0
    %2171 = vmatprep.subr.mxu0 0.0
    %2172 = vmatpush1.msra.mxu0 0.0
    %2173 = vmatprep.subr.mxu0 0.0
    %2174 = vmatpush1.msra.mxu0 0.0
    %2175 = vmatprep.subr.mxu0 0.0
    %2176 = vmatpush1.msra.mxu0 0.0
    %2177 = vmatprep.subr.mxu0 0.0
    %2178 = vmatpush1.msra.mxu0 0.0
    %2179 = vmatprep.subr.mxu0 0.0
    %2180 = vmatpush1.msra.mxu0 0.0
    %2181 = vmatprep.subr.mxu0 0.0
    %2182 = vmatpush1.msra.mxu0 0.0
    %2183 = vmatprep.subr.mxu0 0.0
    %2184 = vmatpush1.msra.mxu0 0.0
    %2185 = vmatprep.subr.mxu0 0.0
    %2186 = vmatpush1.msra.mxu0 0.0
    %2187 = vmatprep.subr.mxu0 0.0
    %2188 = vmatpush1.msra.mxu0 0.0
    %2189 = vmatprep.subr.mxu0 0.0
    %2190 = vmatpush1.msra.mxu0 0.0
    %2191 = vmatprep.mubr.f32.mxu0 0.0
    %2192 = vmatmul.mubr.f32.gmra.mrb[0].mxu0 %v2055
    %v2193 = vpop.f32.mrb[0].mxu0
    %v2194 = vadd.f32 %v210, %v2193
    %v2195 = vpop.f32.mrb[0].mxu0
    %2196 = vdwg.mxu0
    %2197 = vmatprep.subr.mxu0 0.0
    %2198 = vmatpush1.msra.mxu0 %v143
    %2199 = vmatprep.subr.mxu0 0.0
    %2200 = vmatpush1.msra.mxu0 %v144
    %2201 = vmatprep.subr.mxu0 0.0
    %2202 = vmatpush1.msra.mxu0 %v145
    %2203 = vmatprep.subr.mxu0 0.0
    %2204 = vmatpush1.msra.mxu0 %v146
    %2205 = vmatprep.subr.mxu0 0.0
    %2206 = vmatpush1.msra.mxu0 0.0
    %2207 = vmatprep.subr.mxu0 0.0
    %2208 = vmatpush1.msra.mxu0 0.0
    %2209 = vmatprep.subr.mxu0 0.0
    %2210 = vmatpush1.msra.mxu0 0.0
    %2211 = vmatprep.subr.mxu0 0.0
    %2212 = vmatpush1.msra.mxu0 0.0
    %2213 = vmatprep.subr.mxu0 0.0
    %2214 = vmatpush1.msra.mxu0 0.0
    %2215 = vmatprep.subr.mxu0 0.0
    %2216 = vmatpush1.msra.mxu0 0.0
    %2217 = vmatprep.subr.mxu0 0.0
    %2218 = vmatpush1.msra.mxu0 0.0
    %2219 = vmatprep.subr.mxu0 0.0
    %2220 = vmatpush1.msra.mxu0 0.0
    %2221 = vmatprep.subr.mxu0 0.0
    %2222 = vmatpush1.msra.mxu0 0.0
    %2223 = vmatprep.subr.mxu0 0.0
    %2224 = vmatpush1.msra.mxu0 0.0
    %2225 = vmatprep.subr.mxu0 0.0
    %2226 = vmatpush1.msra.mxu0 0.0
    %2227 = vmatprep.subr.mxu0 0.0
    %2228 = vmatpush1.msra.mxu0 0.0
    %2229 = vmatprep.subr.mxu0 0.0
    %2230 = vmatpush1.msra.mxu0 0.0
    %2231 = vmatprep.subr.mxu0 0.0
    %2232 = vmatpush1.msra.mxu0 0.0
    %2233 = vmatprep.subr.mxu0 0.0
    %2234 = vmatpush1.msra.mxu0 0.0
    %2235 = vmatprep.subr.mxu0 0.0
    %2236 = vmatpush1.msra.mxu0 0.0
    %2237 = vmatprep.subr.mxu0 0.0
    %2238 = vmatpush1.msra.mxu0 0.0
    %2239 = vmatprep.subr.mxu0 0.0
    %2240 = vmatpush1.msra.mxu0 0.0
    %2241 = vmatprep.subr.mxu0 0.0
    %2242 = vmatpush1.msra.mxu0 0.0
    %2243 = vmatprep.subr.mxu0 0.0
    %2244 = vmatpush1.msra.mxu0 0.0
    %2245 = vmatprep.subr.mxu0 0.0
    %2246 = vmatpush1.msra.mxu0 0.0
    %2247 = vmatprep.subr.mxu0 0.0
    %2248 = vmatpush1.msra.mxu0 0.0
    %2249 = vmatprep.subr.mxu0 0.0
    %2250 = vmatpush1.msra.mxu0 0.0
    %2251 = vmatprep.subr.mxu0 0.0
    %2252 = vmatpush1.msra.mxu0 0.0
    %2253 = vmatprep.subr.mxu0 0.0
    %2254 = vmatpush1.msra.mxu0 0.0
    %2255 = vmatprep.subr.mxu0 0.0
    %2256 = vmatpush1.msra.mxu0 0.0
    %2257 = vmatprep.subr.mxu0 0.0
    %2258 = vmatpush1.msra.mxu0 0.0
    %2259 = vmatprep.subr.mxu0 0.0
    %2260 = vmatpush1.msra.mxu0 0.0
    %2261 = vmatprep.mubr.f32.mxu0 0.0
    %2262 = vmatmul.mubr.f32.gmra.mrb[0].mxu0 %v2055
    %v2263 = vpop.f32.mrb[0].mxu0
    %v2264 = vadd.f32 %v214, %v2263
    %v2265 = vpop.f32.mrb[0].mxu0
    %2266 = vdwg.mxu0
    %2267 = vmatprep.subr.mxu0 0.0
    %2268 = vmatpush1.msra.mxu0 %v147
    %2269 = vmatprep.subr.mxu0 0.0
    %2270 = vmatpush1.msra.mxu0 %v148
    %2271 = vmatprep.subr.mxu0 0.0
    %2272 = vmatpush1.msra.mxu0 %v149
    %2273 = vmatprep.subr.mxu0 0.0
    %2274 = vmatpush1.msra.mxu0 %v150
    %2275 = vmatprep.subr.mxu0 0.0
    %2276 = vmatpush1.msra.mxu0 0.0
    %2277 = vmatprep.subr.mxu0 0.0
    %2278 = vmatpush1.msra.mxu0 0.0
    %2279 = vmatprep.subr.mxu0 0.0
    %2280 = vmatpush1.msra.mxu0 0.0
    %2281 = vmatprep.subr.mxu0 0.0
    %2282 = vmatpush1.msra.mxu0 0.0
    %2283 = vmatprep.subr.mxu0 0.0
    %2284 = vmatpush1.msra.mxu0 0.0
    %2285 = vmatprep.subr.mxu0 0.0
    %2286 = vmatpush1.msra.mxu0 0.0
    %2287 = vmatprep.subr.mxu0 0.0
    %2288 = vmatpush1.msra.mxu0 0.0
    %2289 = vmatprep.subr.mxu0 0.0
    %2290 = vmatpush1.msra.mxu0 0.0
    %2291 = vmatprep.subr.mxu0 0.0
    %2292 = vmatpush1.msra.mxu0 0.0
    %2293 = vmatprep.subr.mxu0 0.0
    %2294 = vmatpush1.msra.mxu0 0.0
    %2295 = vmatprep.subr.mxu0 0.0
    %2296 = vmatpush1.msra.mxu0 0.0
    %2297 = vmatprep.subr.mxu0 0.0
    %2298 = vmatpush1.msra.mxu0 0.0
    %2299 = vmatprep.subr.mxu0 0.0
    %2300 = vmatpush1.msra.mxu0 0.0
    %2301 = vmatprep.subr.mxu0 0.0
    %2302 = vmatpush1.msra.mxu0 0.0
    %2303 = vmatprep.subr.mxu0 0.0
    %2304 = vmatpush1.msra.mxu0 0.0
    %2305 = vmatprep.subr.mxu0 0.0
    %2306 = vmatpush1.msra.mxu0 0.0
    %2307 = vmatprep.subr.mxu0 0.0
    %2308 = vmatpush1.msra.mxu0 0.0
    %2309 = vmatprep.subr.mxu0 0.0
    %2310 = vmatpush1.msra.mxu0 0.0
    %2311 = vmatprep.subr.mxu0 0.0
    %2312 = vmatpush1.msra.mxu0 0.0
    %2313 = vmatprep.subr.mxu0 0.0
    %2314 = vmatpush1.msra.mxu0 0.0
    %2315 = vmatprep.subr.mxu0 0.0
    %2316 = vmatpush1.msra.mxu0 0.0
    %2317 = vmatprep.subr.mxu0 0.0
    %2318 = vmatpush1.msra.mxu0 0.0
    %2319 = vmatprep.subr.mxu0 0.0
    %2320 = vmatpush1.msra.mxu0 0.0
    %2321 = vmatprep.subr.mxu0 0.0
    %2322 = vmatpush1.msra.mxu0 0.0
    %2323 = vmatprep.subr.mxu0 0.0
    %2324 = vmatpush1.msra.mxu0 0.0
    %2325 = vmatprep.subr.mxu0 0.0
    %2326 = vmatpush1.msra.mxu0 0.0
    %2327 = vmatprep.subr.mxu0 0.0
    %2328 = vmatpush1.msra.mxu0 0.0
    %2329 = vmatprep.subr.mxu0 0.0
    %2330 = vmatpush1.msra.mxu0 0.0
    %2331 = vmatprep.mubr.f32.mxu0 0.0
    %2332 = vmatmul.mubr.f32.gmra.mrb[0].mxu0 %v2055
    %v2333 = vpop.f32.mrb[0].mxu0
    %v2334 = vadd.f32 %v218, %v2333
    %v2335 = vpop.f32.mrb[0].mxu0
    %2336 = vdwg.mxu0
    %2337 = vmatprep.subr.mxu0 0.0
    %2338 = vmatpush1.msra.mxu0 %v151
    %2339 = vmatprep.subr.mxu0 0.0
    %2340 = vmatpush1.msra.mxu0 %v152
    %2341 = vmatprep.subr.mxu0 0.0
    %2342 = vmatpush1.msra.mxu0 %v153
    %2343 = vmatprep.subr.mxu0 0.0
    %2344 = vmatpush1.msra.mxu0 %v154
    %2345 = vmatprep.subr.mxu0 0.0
    %2346 = vmatpush1.msra.mxu0 0.0
    %2347 = vmatprep.subr.mxu0 0.0
    %2348 = vmatpush1.msra.mxu0 0.0
    %2349 = vmatprep.subr.mxu0 0.0
    %2350 = vmatpush1.msra.mxu0 0.0
    %2351 = vmatprep.subr.mxu0 0.0
    %2352 = vmatpush1.msra.mxu0 0.0
    %2353 = vmatprep.subr.mxu0 0.0
    %2354 = vmatpush1.msra.mxu0 0.0
    %2355 = vmatprep.subr.mxu0 0.0
    %2356 = vmatpush1.msra.mxu0 0.0
    %2357 = vmatprep.subr.mxu0 0.0
    %2358 = vmatpush1.msra.mxu0 0.0
    %2359 = vmatprep.subr.mxu0 0.0
    %2360 = vmatpush1.msra.mxu0 0.0
    %2361 = vmatprep.subr.mxu0 0.0
    %2362 = vmatpush1.msra.mxu0 0.0
    %2363 = vmatprep.subr.mxu0 0.0
    %2364 = vmatpush1.msra.mxu0 0.0
    %2365 = vmatprep.subr.mxu0 0.0
    %2366 = vmatpush1.msra.mxu0 0.0
    %2367 = vmatprep.subr.mxu0 0.0
    %2368 = vmatpush1.msra.mxu0 0.0
    %2369 = vmatprep.subr.mxu0 0.0
    %2370 = vmatpush1.msra.mxu0 0.0
    %2371 = vmatprep.subr.mxu0 0.0
    %2372 = vmatpush1.msra.mxu0 0.0
    %2373 = vmatprep.subr.mxu0 0.0
    %2374 = vmatpush1.msra.mxu0 0.0
    %2375 = vmatprep.subr.mxu0 0.0
    %2376 = vmatpush1.msra.mxu0 0.0
    %2377 = vmatprep.subr.mxu0 0.0
    %2378 = vmatpush1.msra.mxu0 0.0
    %2379 = vmatprep.subr.mxu0 0.0
    %2380 = vmatpush1.msra.mxu0 0.0
    %2381 = vmatprep.subr.mxu0 0.0
    %2382 = vmatpush1.msra.mxu0 0.0
    %2383 = vmatprep.subr.mxu0 0.0
    %2384 = vmatpush1.msra.mxu0 0.0
    %2385 = vmatprep.subr.mxu0 0.0
    %2386 = vmatpush1.msra.mxu0 0.0
    %2387 = vmatprep.subr.mxu0 0.0
    %2388 = vmatpush1.msra.mxu0 0.0
    %2389 = vmatprep.subr.mxu0 0.0
    %2390 = vmatpush1.msra.mxu0 0.0
    %2391 = vmatprep.subr.mxu0 0.0
    %2392 = vmatpush1.msra.mxu0 0.0
    %2393 = vmatprep.subr.mxu0 0.0
    %2394 = vmatpush1.msra.mxu0 0.0
    %2395 = vmatprep.subr.mxu0 0.0
    %2396 = vmatpush1.msra.mxu0 0.0
    %2397 = vmatprep.subr.mxu0 0.0
    %2398 = vmatpush1.msra.mxu0 0.0
    %2399 = vmatprep.subr.mxu0 0.0
    %2400 = vmatpush1.msra.mxu0 0.0
    %2401 = vmatprep.mubr.f32.mxu0 0.0
    %2402 = vmatmul.mubr.f32.gmra.mrb[0].mxu0 %v2055
    %v2403 = vpop.f32.mrb[0].mxu0
    %v2404 = vadd.f32 %v513, %v2403
    %v2405 = vpop.f32.mrb[0].mxu0
    %2406 = vdwg.mxu0
    %2407 = vmatprep.subr.mxu0 0.0
    %2408 = vmatpush1.msra.mxu0 %v155
    %2409 = vmatprep.subr.mxu0 0.0
    %2410 = vmatpush1.msra.mxu0 %v156
    %2411 = vmatprep.subr.mxu0 0.0
    %2412 = vmatpush1.msra.mxu0 %v157
    %2413 = vmatprep.subr.mxu0 0.0
    %2414 = vmatpush1.msra.mxu0 %v158
    %2415 = vmatprep.subr.mxu0 0.0
    %2416 = vmatpush1.msra.mxu0 0.0
    %2417 = vmatprep.subr.mxu0 0.0
    %2418 = vmatpush1.msra.mxu0 0.0
    %2419 = vmatprep.subr.mxu0 0.0
    %2420 = vmatpush1.msra.mxu0 0.0
    %2421 = vmatprep.subr.mxu0 0.0
    %2422 = vmatpush1.msra.mxu0 0.0
    %2423 = vmatprep.subr.mxu0 0.0
    %2424 = vmatpush1.msra.mxu0 0.0
    %2425 = vmatprep.subr.mxu0 0.0
    %2426 = vmatpush1.msra.mxu0 0.0
    %2427 = vmatprep.subr.mxu0 0.0
    %2428 = vmatpush1.msra.mxu0 0.0
    %2429 = vmatprep.subr.mxu0 0.0
    %2430 = vmatpush1.msra.mxu0 0.0
    %2431 = vmatprep.subr.mxu0 0.0
    %2432 = vmatpush1.msra.mxu0 0.0
    %2433 = vmatprep.subr.mxu0 0.0
    %2434 = vmatpush1.msra.mxu0 0.0
    %2435 = vmatprep.subr.mxu0 0.0
    %2436 = vmatpush1.msra.mxu0 0.0
    %2437 = vmatprep.subr.mxu0 0.0
    %2438 = vmatpush1.msra.mxu0 0.0
    %2439 = vmatprep.subr.mxu0 0.0
    %2440 = vmatpush1.msra.mxu0 0.0
    %2441 = vmatprep.subr.mxu0 0.0
    %2442 = vmatpush1.msra.mxu0 0.0
    %2443 = vmatprep.subr.mxu0 0.0
    %2444 = vmatpush1.msra.mxu0 0.0
    %2445 = vmatprep.subr.mxu0 0.0
    %2446 = vmatpush1.msra.mxu0 0.0
    %2447 = vmatprep.subr.mxu0 0.0
    %2448 = vmatpush1.msra.mxu0 0.0
    %2449 = vmatprep.subr.mxu0 0.0
    %2450 = vmatpush1.msra.mxu0 0.0
    %2451 = vmatprep.subr.mxu0 0.0
    %2452 = vmatpush1.msra.mxu0 0.0
    %2453 = vmatprep.subr.mxu0 0.0
    %2454 = vmatpush1.msra.mxu0 0.0
    %2455 = vmatprep.subr.mxu0 0.0
    %2456 = vmatpush1.msra.mxu0 0.0
    %2457 = vmatprep.subr.mxu0 0.0
    %2458 = vmatpush1.msra.mxu0 0.0
    %2459 = vmatprep.subr.mxu0 0.0
    %2460 = vmatpush1.msra.mxu0 0.0
    %2461 = vmatprep.subr.mxu0 0.0
    %2462 = vmatpush1.msra.mxu0 0.0
    %2463 = vmatprep.subr.mxu0 0.0
    %2464 = vmatpush1.msra.mxu0 0.0
    %2465 = vmatprep.subr.mxu0 0.0
    %2466 = vmatpush1.msra.mxu0 0.0
    %2467 = vmatprep.subr.mxu0 0.0
    %2468 = vmatpush1.msra.mxu0 0.0
    %2469 = vmatprep.subr.mxu0 0.0
    %2470 = vmatpush1.msra.mxu0 0.0
    %2471 = vmatprep.mubr.f32.mxu0 0.0
    %2472 = vmatmul.mubr.f32.gmra.mrb[0].mxu0 %v2055
    %v2473 = vpop.f32.mrb[0].mxu0
    %v2474 = vadd.f32 %v517, %v2473
    %v2475 = vpop.f32.mrb[0].mxu0
    %2476 = vdwg.mxu0
    %2477 = vmatprep.subr.mxu0 0.0
    %2478 = vmatpush1.msra.mxu0 %v159
    %2479 = vmatprep.subr.mxu0 0.0
    %2480 = vmatpush1.msra.mxu0 %v160
    %2481 = vmatprep.subr.mxu0 0.0
    %2482 = vmatpush1.msra.mxu0 %v161
    %2483 = vmatprep.subr.mxu0 0.0
    %2484 = vmatpush1.msra.mxu0 %v162
    %2485 = vmatprep.subr.mxu0 0.0
    %2486 = vmatpush1.msra.mxu0 0.0
    %2487 = vmatprep.subr.mxu0 0.0
    %2488 = vmatpush1.msra.mxu0 0.0
    %2489 = vmatprep.subr.mxu0 0.0
    %2490 = vmatpush1.msra.mxu0 0.0
    %2491 = vmatprep.subr.mxu0 0.0
    %2492 = vmatpush1.msra.mxu0 0.0
    %2493 = vmatprep.subr.mxu0 0.0
    %2494 = vmatpush1.msra.mxu0 0.0
    %2495 = vmatprep.subr.mxu0 0.0
    %2496 = vmatpush1.msra.mxu0 0.0
    %2497 = vmatprep.subr.mxu0 0.0
    %2498 = vmatpush1.msra.mxu0 0.0
    %2499 = vmatprep.subr.mxu0 0.0
    %2500 = vmatpush1.msra.mxu0 0.0
    %2501 = vmatprep.subr.mxu0 0.0
    %2502 = vmatpush1.msra.mxu0 0.0
    %2503 = vmatprep.subr.mxu0 0.0
    %2504 = vmatpush1.msra.mxu0 0.0
    %2505 = vmatprep.subr.mxu0 0.0
    %2506 = vmatpush1.msra.mxu0 0.0
    %2507 = vmatprep.subr.mxu0 0.0
    %2508 = vmatpush1.msra.mxu0 0.0
    %2509 = vmatprep.subr.mxu0 0.0
    %2510 = vmatpush1.msra.mxu0 0.0
    %2511 = vmatprep.subr.mxu0 0.0
    %2512 = vmatpush1.msra.mxu0 0.0
    %2513 = vmatprep.subr.mxu0 0.0
    %2514 = vmatpush1.msra.mxu0 0.0
    %2515 = vmatprep.subr.mxu0 0.0
    %2516 = vmatpush1.msra.mxu0 0.0
    %2517 = vmatprep.subr.mxu0 0.0
    %2518 = vmatpush1.msra.mxu0 0.0
    %2519 = vmatprep.subr.mxu0 0.0
    %2520 = vmatpush1.msra.mxu0 0.0
    %2521 = vmatprep.subr.mxu0 0.0
    %2522 = vmatpush1.msra.mxu0 0.0
    %2523 = vmatprep.subr.mxu0 0.0
    %2524 = vmatpush1.msra.mxu0 0.0
    %2525 = vmatprep.subr.mxu0 0.0
    %2526 = vmatpush1.msra.mxu0 0.0
    %2527 = vmatprep.subr.mxu0 0.0
    %2528 = vmatpush1.msra.mxu0 0.0
    %2529 = vmatprep.subr.mxu0 0.0
    %2530 = vmatpush1.msra.mxu0 0.0
    %2531 = vmatprep.subr.mxu0 0.0
    %2532 = vmatpush1.msra.mxu0 0.0
    %2533 = vmatprep.subr.mxu0 0.0
    %2534 = vmatpush1.msra.mxu0 0.0
    %2535 = vmatprep.subr.mxu0 0.0
    %2536 = vmatpush1.msra.mxu0 0.0
    %2537 = vmatprep.subr.mxu0 0.0
    %2538 = vmatpush1.msra.mxu0 0.0
    %2539 = vmatprep.subr.mxu0 0.0
    %2540 = vmatpush1.msra.mxu0 0.0
    %2541 = vmatprep.mubr.f32.mxu0 0.0
    %2542 = vmatmul.mubr.f32.gmra.mrb[0].mxu0 %v2055
    %v2543 = vpop.f32.mrb[0].mxu0
    %v2544 = vadd.f32 %v521, %v2543
    %v2545 = vpop.f32.mrb[0].mxu0
    %2546 = vdwg.mxu0
    %2547 = vmatprep.subr.mxu0 0.0
    %2548 = vmatpush1.msra.mxu0 %v163
    %2549 = vmatprep.subr.mxu0 0.0
    %2550 = vmatpush1.msra.mxu0 %v164
    %2551 = vmatprep.subr.mxu0 0.0
    %2552 = vmatpush1.msra.mxu0 %v165
    %2553 = vmatprep.subr.mxu0 0.0
    %2554 = vmatpush1.msra.mxu0 %v166
    %2555 = vmatprep.subr.mxu0 0.0
    %2556 = vmatpush1.msra.mxu0 0.0
    %2557 = vmatprep.subr.mxu0 0.0
    %2558 = vmatpush1.msra.mxu0 0.0
    %2559 = vmatprep.subr.mxu0 0.0
    %2560 = vmatpush1.msra.mxu0 0.0
    %2561 = vmatprep.subr.mxu0 0.0
    %2562 = vmatpush1.msra.mxu0 0.0
    %2563 = vmatprep.subr.mxu0 0.0
    %2564 = vmatpush1.msra.mxu0 0.0
    %2565 = vmatprep.subr.mxu0 0.0
    %2566 = vmatpush1.msra.mxu0 0.0
    %2567 = vmatprep.subr.mxu0 0.0
    %2568 = vmatpush1.msra.mxu0 0.0
    %2569 = vmatprep.subr.mxu0 0.0
    %2570 = vmatpush1.msra.mxu0 0.0
    %2571 = vmatprep.subr.mxu0 0.0
    %2572 = vmatpush1.msra.mxu0 0.0
    %2573 = vmatprep.subr.mxu0 0.0
    %2574 = vmatpush1.msra.mxu0 0.0
    %2575 = vmatprep.subr.mxu0 0.0
    %2576 = vmatpush1.msra.mxu0 0.0
    %2577 = vmatprep.subr.mxu0 0.0
    %2578 = vmatpush1.msra.mxu0 0.0
    %2579 = vmatprep.subr.mxu0 0.0
    %2580 = vmatpush1.msra.mxu0 0.0
    %2581 = vmatprep.subr.mxu0 0.0
    %2582 = vmatpush1.msra.mxu0 0.0
    %2583 = vmatprep.subr.mxu0 0.0
    %2584 = vmatpush1.msra.mxu0 0.0
    %2585 = vmatprep.subr.mxu0 0.0
    %2586 = vmatpush1.msra.mxu0 0.0
    %2587 = vmatprep.subr.mxu0 0.0
    %2588 = vmatpush1.msra.mxu0 0.0
    %2589 = vmatprep.subr.mxu0 0.0
    %2590 = vmatpush1.msra.mxu0 0.0
    %2591 = vmatprep.subr.mxu0 0.0
    %2592 = vmatpush1.msra.mxu0 0.0
    %2593 = vmatprep.subr.mxu0 0.0
    %2594 = vmatpush1.msra.mxu0 0.0
    %2595 = vmatprep.subr.mxu0 0.0
    %2596 = vmatpush1.msra.mxu0 0.0
    %2597 = vmatprep.subr.mxu0 0.0
    %2598 = vmatpush1.msra.mxu0 0.0
    %2599 = vmatprep.subr.mxu0 0.0
    %2600 = vmatpush1.msra.mxu0 0.0
    %2601 = vmatprep.subr.mxu0 0.0
    %2602 = vmatpush1.msra.mxu0 0.0
    %2603 = vmatprep.subr.mxu0 0.0
    %2604 = vmatpush1.msra.mxu0 0.0
    %2605 = vmatprep.subr.mxu0 0.0
    %2606 = vmatpush1.msra.mxu0 0.0
    %2607 = vmatprep.subr.mxu0 0.0
    %2608 = vmatpush1.msra.mxu0 0.0
    %2609 = vmatprep.subr.mxu0 0.0
    %2610 = vmatpush1.msra.mxu0 0.0
    %2611 = vmatprep.mubr.f32.mxu0 0.0
    %2612 = vmatmul.mubr.f32.gmra.mrb[0].mxu0 %v2055
    %v2613 = vpop.f32.mrb[0].mxu0
    %v2614 = vadd.f32 %v525, %v2613
    %v2615 = vpop.f32.mrb[0].mxu0
    %2616 = vdwg.mxu0
    %2617 = vmatprep.subr.mxu0 0.0
    %2618 = vmatpush1.msra.mxu0 %v167
    %2619 = vmatprep.subr.mxu0 0.0
    %2620 = vmatpush1.msra.mxu0 %v168
    %2621 = vmatprep.subr.mxu0 0.0
    %2622 = vmatpush1.msra.mxu0 %v169
    %2623 = vmatprep.subr.mxu0 0.0
    %2624 = vmatpush1.msra.mxu0 %v170
    %2625 = vmatprep.subr.mxu0 0.0
    %2626 = vmatpush1.msra.mxu0 0.0
    %2627 = vmatprep.subr.mxu0 0.0
    %2628 = vmatpush1.msra.mxu0 0.0
    %2629 = vmatprep.subr.mxu0 0.0
    %2630 = vmatpush1.msra.mxu0 0.0
    %2631 = vmatprep.subr.mxu0 0.0
    %2632 = vmatpush1.msra.mxu0 0.0
    %2633 = vmatprep.subr.mxu0 0.0
    %2634 = vmatpush1.msra.mxu0 0.0
    %2635 = vmatprep.subr.mxu0 0.0
    %2636 = vmatpush1.msra.mxu0 0.0
    %2637 = vmatprep.subr.mxu0 0.0
    %2638 = vmatpush1.msra.mxu0 0.0
    %2639 = vmatprep.subr.mxu0 0.0
    %2640 = vmatpush1.msra.mxu0 0.0
    %2641 = vmatprep.subr.mxu0 0.0
    %2642 = vmatpush1.msra.mxu0 0.0
    %2643 = vmatprep.subr.mxu0 0.0
    %2644 = vmatpush1.msra.mxu0 0.0
    %2645 = vmatprep.subr.mxu0 0.0
    %2646 = vmatpush1.msra.mxu0 0.0
    %2647 = vmatprep.subr.mxu0 0.0
    %2648 = vmatpush1.msra.mxu0 0.0
    %2649 = vmatprep.subr.mxu0 0.0
    %2650 = vmatpush1.msra.mxu0 0.0
    %2651 = vmatprep.subr.mxu0 0.0
    %2652 = vmatpush1.msra.mxu0 0.0
    %2653 = vmatprep.subr.mxu0 0.0
    %2654 = vmatpush1.msra.mxu0 0.0
    %2655 = vmatprep.subr.mxu0 0.0
    %2656 = vmatpush1.msra.mxu0 0.0
    %2657 = vmatprep.subr.mxu0 0.0
    %2658 = vmatpush1.msra.mxu0 0.0
    %2659 = vmatprep.subr.mxu0 0.0
    %2660 = vmatpush1.msra.mxu0 0.0
    %2661 = vmatprep.subr.mxu0 0.0
    %2662 = vmatpush1.msra.mxu0 0.0
    %2663 = vmatprep.subr.mxu0 0.0
    %2664 = vmatpush1.msra.mxu0 0.0
    %2665 = vmatprep.subr.mxu0 0.0
    %2666 = vmatpush1.msra.mxu0 0.0
    %2667 = vmatprep.subr.mxu0 0.0
    %2668 = vmatpush1.msra.mxu0 0.0
    %2669 = vmatprep.subr.mxu0 0.0
    %2670 = vmatpush1.msra.mxu0 0.0
    %2671 = vmatprep.subr.mxu0 0.0
    %2672 = vmatpush1.msra.mxu0 0.0
    %2673 = vmatprep.subr.mxu0 0.0
    %2674 = vmatpush1.msra.mxu0 0.0
    %2675 = vmatprep.subr.mxu0 0.0
    %2676 = vmatpush1.msra.mxu0 0.0
    %2677 = vmatprep.subr.mxu0 0.0
    %2678 = vmatpush1.msra.mxu0 0.0
    %2679 = vmatprep.subr.mxu0 0.0
    %2680 = vmatpush1.msra.mxu0 0.0
    %2681 = vmatprep.mubr.f32.mxu0 0.0
    %2682 = vmatmul.mubr.f32.gmra.mrb[0].mxu0 %v2055
    %v2683 = vpop.f32.mrb[0].mxu0
    %v2684 = vadd.f32 %v817, %v2683
    %v2685 = vpop.f32.mrb[0].mxu0
    %2686 = vdwg.mxu0
    %2687 = vmatprep.subr.mxu0 0.0
    %2688 = vmatpush1.msra.mxu0 %v171
    %2689 = vmatprep.subr.mxu0 0.0
    %2690 = vmatpush1.msra.mxu0 %v172
    %2691 = vmatprep.subr.mxu0 0.0
    %2692 = vmatpush1.msra.mxu0 %v173
    %2693 = vmatprep.subr.mxu0 0.0
    %2694 = vmatpush1.msra.mxu0 %v174
    %2695 = vmatprep.subr.mxu0 0.0
    %2696 = vmatpush1.msra.mxu0 0.0
    %2697 = vmatprep.subr.mxu0 0.0
    %2698 = vmatpush1.msra.mxu0 0.0
    %2699 = vmatprep.subr.mxu0 0.0
    %2700 = vmatpush1.msra.mxu0 0.0
    %2701 = vmatprep.subr.mxu0 0.0
    %2702 = vmatpush1.msra.mxu0 0.0
    %2703 = vmatprep.subr.mxu0 0.0
    %2704 = vmatpush1.msra.mxu0 0.0
    %2705 = vmatprep.subr.mxu0 0.0
    %2706 = vmatpush1.msra.mxu0 0.0
    %2707 = vmatprep.subr.mxu0 0.0
    %2708 = vmatpush1.msra.mxu0 0.0
    %2709 = vmatprep.subr.mxu0 0.0
    %2710 = vmatpush1.msra.mxu0 0.0
    %2711 = vmatprep.subr.mxu0 0.0
    %2712 = vmatpush1.msra.mxu0 0.0
    %2713 = vmatprep.subr.mxu0 0.0
    %2714 = vmatpush1.msra.mxu0 0.0
    %2715 = vmatprep.subr.mxu0 0.0
    %2716 = vmatpush1.msra.mxu0 0.0
    %2717 = vmatprep.subr.mxu0 0.0
    %2718 = vmatpush1.msra.mxu0 0.0
    %2719 = vmatprep.subr.mxu0 0.0
    %2720 = vmatpush1.msra.mxu0 0.0
    %2721 = vmatprep.subr.mxu0 0.0
    %2722 = vmatpush1.msra.mxu0 0.0
    %2723 = vmatprep.subr.mxu0 0.0
    %2724 = vmatpush1.msra.mxu0 0.0
    %2725 = vmatprep.subr.mxu0 0.0
    %2726 = vmatpush1.msra.mxu0 0.0
    %2727 = vmatprep.subr.mxu0 0.0
    %2728 = vmatpush1.msra.mxu0 0.0
    %2729 = vmatprep.subr.mxu0 0.0
    %2730 = vmatpush1.msra.mxu0 0.0
    %2731 = vmatprep.subr.mxu0 0.0
    %2732 = vmatpush1.msra.mxu0 0.0
    %2733 = vmatprep.subr.mxu0 0.0
    %2734 = vmatpush1.msra.mxu0 0.0
    %2735 = vmatprep.subr.mxu0 0.0
    %2736 = vmatpush1.msra.mxu0 0.0
    %2737 = vmatprep.subr.mxu0 0.0
    %2738 = vmatpush1.msra.mxu0 0.0
    %2739 = vmatprep.subr.mxu0 0.0
    %2740 = vmatpush1.msra.mxu0 0.0
    %2741 = vmatprep.subr.mxu0 0.0
    %2742 = vmatpush1.msra.mxu0 0.0
    %2743 = vmatprep.subr.mxu0 0.0
    %2744 = vmatpush1.msra.mxu0 0.0
    %2745 = vmatprep.subr.mxu0 0.0
    %2746 = vmatpush1.msra.mxu0 0.0
    %2747 = vmatprep.subr.mxu0 0.0
    %2748 = vmatpush1.msra.mxu0 0.0
    %2749 = vmatprep.subr.mxu0 0.0
    %2750 = vmatpush1.msra.mxu0 0.0
    %2751 = vmatprep.mubr.f32.mxu0 0.0
    %2752 = vmatmul.mubr.f32.gmra.mrb[0].mxu0 %v2055
    %v2753 = vpop.f32.mrb[0].mxu0
    %v2754 = vadd.f32 %v821, %v2753
    %v2755 = vpop.f32.mrb[0].mxu0
    %2756 = vdwg.mxu0
    %2757 = vmatprep.subr.mxu0 0.0
    %2758 = vmatpush1.msra.mxu0 %v175
    %2759 = vmatprep.subr.mxu0 0.0
    %2760 = vmatpush1.msra.mxu0 %v176
    %2761 = vmatprep.subr.mxu0 0.0
    %2762 = vmatpush1.msra.mxu0 %v177
    %2763 = vmatprep.subr.mxu0 0.0
    %2764 = vmatpush1.msra.mxu0 %v178
    %2765 = vmatprep.subr.mxu0 0.0
    %2766 = vmatpush1.msra.mxu0 0.0
    %2767 = vmatprep.subr.mxu0 0.0
    %2768 = vmatpush1.msra.mxu0 0.0
    %2769 = vmatprep.subr.mxu0 0.0
    %2770 = vmatpush1.msra.mxu0 0.0
    %2771 = vmatprep.subr.mxu0 0.0
    %2772 = vmatpush1.msra.mxu0 0.0
    %2773 = vmatprep.subr.mxu0 0.0
    %2774 = vmatpush1.msra.mxu0 0.0
    %2775 = vmatprep.subr.mxu0 0.0
    %2776 = vmatpush1.msra.mxu0 0.0
    %2777 = vmatprep.subr.mxu0 0.0
    %2778 = vmatpush1.msra.mxu0 0.0
    %2779 = vmatprep.subr.mxu0 0.0
    %2780 = vmatpush1.msra.mxu0 0.0
    %2781 = vmatprep.subr.mxu0 0.0
    %2782 = vmatpush1.msra.mxu0 0.0
    %2783 = vmatprep.subr.mxu0 0.0
    %2784 = vmatpush1.msra.mxu0 0.0
    %2785 = vmatprep.subr.mxu0 0.0
    %2786 = vmatpush1.msra.mxu0 0.0
    %2787 = vmatprep.subr.mxu0 0.0
    %2788 = vmatpush1.msra.mxu0 0.0
    %2789 = vmatprep.subr.mxu0 0.0
    %2790 = vmatpush1.msra.mxu0 0.0
    %2791 = vmatprep.subr.mxu0 0.0
    %2792 = vmatpush1.msra.mxu0 0.0
    %2793 = vmatprep.subr.mxu0 0.0
    %2794 = vmatpush1.msra.mxu0 0.0
    %2795 = vmatprep.subr.mxu0 0.0
    %2796 = vmatpush1.msra.mxu0 0.0
    %2797 = vmatprep.subr.mxu0 0.0
    %2798 = vmatpush1.msra.mxu0 0.0
    %2799 = vmatprep.subr.mxu0 0.0
    %2800 = vmatpush1.msra.mxu0 0.0
    %2801 = vmatprep.subr.mxu0 0.0
    %2802 = vmatpush1.msra.mxu0 0.0
    %2803 = vmatprep.subr.mxu0 0.0
    %2804 = vmatpush1.msra.mxu0 0.0
    %2805 = vmatprep.subr.mxu0 0.0
    %2806 = vmatpush1.msra.mxu0 0.0
    %2807 = vmatprep.subr.mxu0 0.0
    %2808 = vmatpush1.msra.mxu0 0.0
    %2809 = vmatprep.subr.mxu0 0.0
    %2810 = vmatpush1.msra.mxu0 0.0
    %2811 = vmatprep.subr.mxu0 0.0
    %2812 = vmatpush1.msra.mxu0 0.0
    %2813 = vmatprep.subr.mxu0 0.0
    %2814 = vmatpush1.msra.mxu0 0.0
    %2815 = vmatprep.subr.mxu0 0.0
    %2816 = vmatpush1.msra.mxu0 0.0
    %2817 = vmatprep.subr.mxu0 0.0
    %2818 = vmatpush1.msra.mxu0 0.0
    %2819 = vmatprep.subr.mxu0 0.0
    %2820 = vmatpush1.msra.mxu0 0.0
    %2821 = vmatprep.mubr.f32.mxu0 0.0
    %2822 = vmatmul.mubr.f32.gmra.mrb[0].mxu0 %v2055
    %v2823 = vpop.f32.mrb[0].mxu0
    %v2824 = vadd.f32 %v825, %v2823
    %v2825 = vpop.f32.mrb[0].mxu0
    %2826 = vdwg.mxu0
    %2827 = vmatprep.subr.mxu0 0.0
    %2828 = vmatpush1.msra.mxu0 %v179
    %2829 = vmatprep.subr.mxu0 0.0
    %2830 = vmatpush1.msra.mxu0 %v180
    %2831 = vmatprep.subr.mxu0 0.0
    %2832 = vmatpush1.msra.mxu0 %v181
    %2833 = vmatprep.subr.mxu0 0.0
    %2834 = vmatpush1.msra.mxu0 %v182
    %2835 = vmatprep.subr.mxu0 0.0
    %2836 = vmatpush1.msra.mxu0 0.0
    %2837 = vmatprep.subr.mxu0 0.0
    %2838 = vmatpush1.msra.mxu0 0.0
    %2839 = vmatprep.subr.mxu0 0.0
    %2840 = vmatpush1.msra.mxu0 0.0
    %2841 = vmatprep.subr.mxu0 0.0
    %2842 = vmatpush1.msra.mxu0 0.0
    %2843 = vmatprep.subr.mxu0 0.0
    %2844 = vmatpush1.msra.mxu0 0.0
    %2845 = vmatprep.subr.mxu0 0.0
    %2846 = vmatpush1.msra.mxu0 0.0
    %2847 = vmatprep.subr.mxu0 0.0
    %2848 = vmatpush1.msra.mxu0 0.0
    %2849 = vmatprep.subr.mxu0 0.0
    %2850 = vmatpush1.msra.mxu0 0.0
    %2851 = vmatprep.subr.mxu0 0.0
    %2852 = vmatpush1.msra.mxu0 0.0
    %2853 = vmatprep.subr.mxu0 0.0
    %2854 = vmatpush1.msra.mxu0 0.0
    %2855 = vmatprep.subr.mxu0 0.0
    %2856 = vmatpush1.msra.mxu0 0.0
    %2857 = vmatprep.subr.mxu0 0.0
    %2858 = vmatpush1.msra.mxu0 0.0
    %2859 = vmatprep.subr.mxu0 0.0
    %2860 = vmatpush1.msra.mxu0 0.0
    %2861 = vmatprep.subr.mxu0 0.0
    %2862 = vmatpush1.msra.mxu0 0.0
    %2863 = vmatprep.subr.mxu0 0.0
    %2864 = vmatpush1.msra.mxu0 0.0
    %2865 = vmatprep.subr.mxu0 0.0
    %2866 = vmatpush1.msra.mxu0 0.0
    %2867 = vmatprep.subr.mxu0 0.0
    %2868 = vmatpush1.msra.mxu0 0.0
    %2869 = vmatprep.subr.mxu0 0.0
    %2870 = vmatpush1.msra.mxu0 0.0
    %2871 = vmatprep.subr.mxu0 0.0
    %2872 = vmatpush1.msra.mxu0 0.0
    %2873 = vmatprep.subr.mxu0 0.0
    %2874 = vmatpush1.msra.mxu0 0.0
    %2875 = vmatprep.subr.mxu0 0.0
    %2876 = vmatpush1.msra.mxu0 0.0
    %2877 = vmatprep.subr.mxu0 0.0
    %2878 = vmatpush1.msra.mxu0 0.0
    %2879 = vmatprep.subr.mxu0 0.0
    %2880 = vmatpush1.msra.mxu0 0.0
    %2881 = vmatprep.subr.mxu0 0.0
    %2882 = vmatpush1.msra.mxu0 0.0
    %2883 = vmatprep.subr.mxu0 0.0
    %2884 = vmatpush1.msra.mxu0 0.0
    %2885 = vmatprep.subr.mxu0 0.0
    %2886 = vmatpush1.msra.mxu0 0.0
    %2887 = vmatprep.subr.mxu0 0.0
    %2888 = vmatpush1.msra.mxu0 0.0
    %2889 = vmatprep.subr.mxu0 0.0
    %2890 = vmatpush1.msra.mxu0 0.0
    %2891 = vmatprep.mubr.f32.mxu0 0.0
    %2892 = vmatmul.mubr.f32.gmra.mrb[0].mxu0 %v2055
    %v2893 = vpop.f32.mrb[0].mxu0
    %v2894 = vadd.f32 %v829, %v2893
    %v2895 = vpop.f32.mrb[0].mxu0
    %2896 = vdwg.mxu0
    %v2898 = vsel %vm1114, %v2124, 0
    %v2901 = vsel %vm1114, %v2404, 0
    %2903 = vmatprep.subr.mxu0 0.0
    %2904 = vmatpush1.xpose.msra.mxu0 %v2901
    %2905 = vmatprep.subr.mxu0 0.0
    %2906 = vmatpush1.xpose.msra.mxu0 0.0
    %2907 = vmatprep.subr.mxu0 0.0
    %2908 = vmatpush1.xpose.msra.mxu0 0.0
    %2909 = vmatprep.subr.mxu0 0.0
    %2910 = vmatpush1.xpose.msra.mxu0 0.0
    %2911 = vmatprep.subr.mxu0 0.0
    %2912 = vmatpush1.xpose.msra.mxu0 0.0
    %2913 = vmatprep.subr.mxu0 0.0
    %2914 = vmatpush1.xpose.msra.mxu0 0.0
    %2915 = vmatprep.subr.mxu0 0.0
    %2916 = vmatpush1.xpose.msra.mxu0 0.0
    %2917 = vmatprep.subr.mxu0 0.0
    %2918 = vmatpush1.xpose.msra.mxu0 0.0
    %2919 = vmatprep.subr.mxu0 0.0
    %2920 = vmatpush1.xpose.msra.mxu0 0.0
    %2921 = vmatprep.subr.mxu0 0.0
    %2922 = vmatpush1.xpose.msra.mxu0 0.0
    %2923 = vmatprep.subr.mxu0 0.0
    %2924 = vmatpush1.xpose.msra.mxu0 0.0
    %2925 = vmatprep.subr.mxu0 0.0
    %2926 = vmatpush1.xpose.msra.mxu0 0.0
    %2927 = vmatprep.subr.mxu0 0.0
    %2928 = vmatpush1.xpose.msra.mxu0 0.0
    %2929 = vmatprep.subr.mxu0 0.0
    %2930 = vmatpush1.xpose.msra.mxu0 0.0
    %2931 = vmatprep.subr.mxu0 0.0
    %2932 = vmatpush1.xpose.msra.mxu0 0.0
    %2933 = vmatprep.subr.mxu0 0.0
    %2934 = vmatpush1.xpose.msra.mxu0 0.0
    %2935 = vmatprep.subr.mxu0 0.0
    %2936 = vmatpush1.xpose.msra.mxu0 0.0
    %2937 = vmatprep.subr.mxu0 0.0
    %2938 = vmatpush1.xpose.msra.mxu0 0.0
    %2939 = vmatprep.subr.mxu0 0.0
    %2940 = vmatpush1.xpose.msra.mxu0 0.0
    %2941 = vmatprep.subr.mxu0 0.0
    %2942 = vmatpush1.xpose.msra.mxu0 0.0
    %2943 = vmatprep.subr.mxu0 0.0
    %2944 = vmatpush1.xpose.msra.mxu0 0.0
    %2945 = vmatprep.subr.mxu0 0.0
    %2946 = vmatpush1.xpose.msra.mxu0 0.0
    %2947 = vmatprep.subr.mxu0 0.0
    %2948 = vmatpush1.xpose.msra.mxu0 0.0
    %2949 = vmatprep.subr.mxu0 0.0
    %2950 = vmatpush1.xpose.msra.mxu0 0.0
    %2951 = vmatprep.subr.mxu0 0.0
    %2952 = vmatpush1.xpose.msra.mxu0 0.0
    %2953 = vmatprep.subr.mxu0 0.0
    %2954 = vmatpush1.xpose.msra.mxu0 0.0
    %2955 = vmatprep.subr.mxu0 0.0
    %2956 = vmatpush1.xpose.msra.mxu0 0.0
    %2957 = vmatprep.subr.mxu0 0.0
    %2958 = vmatpush1.xpose.msra.mxu0 0.0
    %2959 = vmatprep.subr.mxu0 0.0
    %2960 = vmatpush1.xpose.msra.mxu0 0.0
    %2961 = vmatprep.subr.mxu0 0.0
    %2962 = vmatpush1.xpose.msra.mxu0 0.0
    %2963 = vmatprep.subr.mxu0 0.0
    %2964 = vmatpush1.xpose.msra.mxu0 0.0
    %2965 = vmatprep.subr.mxu0 0.0
    %2966 = vmatpush1.xpose.msra.mxu0 0.0
    %2967 = vmatprep.mubr.f32.mxu0 0.0
    %2968 = vmatmul.mubr.f32.gmra.mrb[0].mxu0 %v2898
    %v2969 = vpop.f32.mrb[0].mxu0
    %v2970 = vadd.f32 %v134, %v2969
    %v2971 = vpop.f32.mrb[0].mxu0
    %2972 = vdwg.mxu0
    %v2974 = vsel %vm1114, %v2194, 0
    %v2977 = vsel %vm1114, %v2474, 0
    %2979 = vmatprep.subr.mxu0 0.0
    %2980 = vmatpush1.xpose.msra.mxu0 %v2977
    %2981 = vmatprep.subr.mxu0 0.0
    %2982 = vmatpush1.xpose.msra.mxu0 0.0
    %2983 = vmatprep.subr.mxu0 0.0
    %2984 = vmatpush1.xpose.msra.mxu0 0.0
    %2985 = vmatprep.subr.mxu0 0.0
    %2986 = vmatpush1.xpose.msra.mxu0 0.0
    %2987 = vmatprep.subr.mxu0 0.0
    %2988 = vmatpush1.xpose.msra.mxu0 0.0
    %2989 = vmatprep.subr.mxu0 0.0
    %2990 = vmatpush1.xpose.msra.mxu0 0.0
    %2991 = vmatprep.subr.mxu0 0.0
    %2992 = vmatpush1.xpose.msra.mxu0 0.0
    %2993 = vmatprep.subr.mxu0 0.0
    %2994 = vmatpush1.xpose.msra.mxu0 0.0
    %2995 = vmatprep.subr.mxu0 0.0
    %2996 = vmatpush1.xpose.msra.mxu0 0.0
    %2997 = vmatprep.subr.mxu0 0.0
    %2998 = vmatpush1.xpose.msra.mxu0 0.0
    %2999 = vmatprep.subr.mxu0 0.0
    %3000 = vmatpush1.xpose.msra.mxu0 0.0
    %3001 = vmatprep.subr.mxu0 0.0
    %3002 = vmatpush1.xpose.msra.mxu0 0.0
    %3003 = vmatprep.subr.mxu0 0.0
    %3004 = vmatpush1.xpose.msra.mxu0 0.0
    %3005 = vmatprep.subr.mxu0 0.0
    %3006 = vmatpush1.xpose.msra.mxu0 0.0
    %3007 = vmatprep.subr.mxu0 0.0
    %3008 = vmatpush1.xpose.msra.mxu0 0.0
    %3009 = vmatprep.subr.mxu0 0.0
    %3010 = vmatpush1.xpose.msra.mxu0 0.0
    %3011 = vmatprep.subr.mxu0 0.0
    %3012 = vmatpush1.xpose.msra.mxu0 0.0
    %3013 = vmatprep.subr.mxu0 0.0
    %3014 = vmatpush1.xpose.msra.mxu0 0.0
    %3015 = vmatprep.subr.mxu0 0.0
    %3016 = vmatpush1.xpose.msra.mxu0 0.0
    %3017 = vmatprep.subr.mxu0 0.0
    %3018 = vmatpush1.xpose.msra.mxu0 0.0
    %3019 = vmatprep.subr.mxu0 0.0
    %3020 = vmatpush1.xpose.msra.mxu0 0.0
    %3021 = vmatprep.subr.mxu0 0.0
    %3022 = vmatpush1.xpose.msra.mxu0 0.0
    %3023 = vmatprep.subr.mxu0 0.0
    %3024 = vmatpush1.xpose.msra.mxu0 0.0
    %3025 = vmatprep.subr.mxu0 0.0
    %3026 = vmatpush1.xpose.msra.mxu0 0.0
    %3027 = vmatprep.subr.mxu0 0.0
    %3028 = vmatpush1.xpose.msra.mxu0 0.0
    %3029 = vmatprep.subr.mxu0 0.0
    %3030 = vmatpush1.xpose.msra.mxu0 0.0
    %3031 = vmatprep.subr.mxu0 0.0
    %3032 = vmatpush1.xpose.msra.mxu0 0.0
    %3033 = vmatprep.subr.mxu0 0.0
    %3034 = vmatpush1.xpose.msra.mxu0 0.0
    %3035 = vmatprep.subr.mxu0 0.0
    %3036 = vmatpush1.xpose.msra.mxu0 0.0
    %3037 = vmatprep.subr.mxu0 0.0
    %3038 = vmatpush1.xpose.msra.mxu0 0.0
    %3039 = vmatprep.subr.mxu0 0.0
    %3040 = vmatpush1.xpose.msra.mxu0 0.0
    %3041 = vmatprep.subr.mxu0 0.0
    %3042 = vmatpush1.xpose.msra.mxu0 0.0
    %3043 = vmatprep.mubr.f32.mxu0 0.0
    %3044 = vmatmul.mubr.f32.gmra.mrb[0].mxu0 %v2974
    %v3045 = vpop.f32.mrb[0].mxu0
    %v3046 = vadd.f32 %v134, %v3045
    %v3047 = vpop.f32.mrb[0].mxu0
    %3048 = vdwg.mxu0
    %v3050 = vsel %vm1114, %v2264, 0
    %v3053 = vsel %vm1114, %v2544, 0
    %3055 = vmatprep.subr.mxu0 0.0
    %3056 = vmatpush1.xpose.msra.mxu0 %v3053
    %3057 = vmatprep.subr.mxu0 0.0
    %3058 = vmatpush1.xpose.msra.mxu0 0.0
    %3059 = vmatprep.subr.mxu0 0.0
    %3060 = vmatpush1.xpose.msra.mxu0 0.0
    %3061 = vmatprep.subr.mxu0 0.0
    %3062 = vmatpush1.xpose.msra.mxu0 0.0
    %3063 = vmatprep.subr.mxu0 0.0
    %3064 = vmatpush1.xpose.msra.mxu0 0.0
    %3065 = vmatprep.subr.mxu0 0.0
    %3066 = vmatpush1.xpose.msra.mxu0 0.0
    %3067 = vmatprep.subr.mxu0 0.0
    %3068 = vmatpush1.xpose.msra.mxu0 0.0
    %3069 = vmatprep.subr.mxu0 0.0
    %3070 = vmatpush1.xpose.msra.mxu0 0.0
    %3071 = vmatprep.subr.mxu0 0.0
    %3072 = vmatpush1.xpose.msra.mxu0 0.0
    %3073 = vmatprep.subr.mxu0 0.0
    %3074 = vmatpush1.xpose.msra.mxu0 0.0
    %3075 = vmatprep.subr.mxu0 0.0
    %3076 = vmatpush1.xpose.msra.mxu0 0.0
    %3077 = vmatprep.subr.mxu0 0.0
    %3078 = vmatpush1.xpose.msra.mxu0 0.0
    %3079 = vmatprep.subr.mxu0 0.0
    %3080 = vmatpush1.xpose.msra.mxu0 0.0
    %3081 = vmatprep.subr.mxu0 0.0
    %3082 = vmatpush1.xpose.msra.mxu0 0.0
    %3083 = vmatprep.subr.mxu0 0.0
    %3084 = vmatpush1.xpose.msra.mxu0 0.0
    %3085 = vmatprep.subr.mxu0 0.0
    %3086 = vmatpush1.xpose.msra.mxu0 0.0
    %3087 = vmatprep.subr.mxu0 0.0
    %3088 = vmatpush1.xpose.msra.mxu0 0.0
    %3089 = vmatprep.subr.mxu0 0.0
    %3090 = vmatpush1.xpose.msra.mxu0 0.0
    %3091 = vmatprep.subr.mxu0 0.0
    %3092 = vmatpush1.xpose.msra.mxu0 0.0
    %3093 = vmatprep.subr.mxu0 0.0
    %3094 = vmatpush1.xpose.msra.mxu0 0.0
    %3095 = vmatprep.subr.mxu0 0.0
    %3096 = vmatpush1.xpose.msra.mxu0 0.0
    %3097 = vmatprep.subr.mxu0 0.0
    %3098 = vmatpush1.xpose.msra.mxu0 0.0
    %3099 = vmatprep.subr.mxu0 0.0
    %3100 = vmatpush1.xpose.msra.mxu0 0.0
    %3101 = vmatprep.subr.mxu0 0.0
    %3102 = vmatpush1.xpose.msra.mxu0 0.0
    %3103 = vmatprep.subr.mxu0 0.0
    %3104 = vmatpush1.xpose.msra.mxu0 0.0
    %3105 = vmatprep.subr.mxu0 0.0
    %3106 = vmatpush1.xpose.msra.mxu0 0.0
    %3107 = vmatprep.subr.mxu0 0.0
    %3108 = vmatpush1.xpose.msra.mxu0 0.0
    %3109 = vmatprep.subr.mxu0 0.0
    %3110 = vmatpush1.xpose.msra.mxu0 0.0
    %3111 = vmatprep.subr.mxu0 0.0
    %3112 = vmatpush1.xpose.msra.mxu0 0.0
    %3113 = vmatprep.subr.mxu0 0.0
    %3114 = vmatpush1.xpose.msra.mxu0 0.0
    %3115 = vmatprep.subr.mxu0 0.0
    %3116 = vmatpush1.xpose.msra.mxu0 0.0
    %3117 = vmatprep.subr.mxu0 0.0
    %3118 = vmatpush1.xpose.msra.mxu0 0.0
    %3119 = vmatprep.mubr.f32.mxu0 0.0
    %3120 = vmatmul.mubr.f32.gmra.mrb[0].mxu0 %v3050
    %v3121 = vpop.f32.mrb[0].mxu0
    %v3122 = vadd.f32 %v134, %v3121
    %v3123 = vpop.f32.mrb[0].mxu0
    %3124 = vdwg.mxu0
    %v3126 = vsel %vm1114, %v2334, 0
    %v3129 = vsel %vm1114, %v2614, 0
    %3131 = vmatprep.subr.mxu0 0.0
    %3132 = vmatpush1.xpose.msra.mxu0 %v3129
    %3133 = vmatprep.subr.mxu0 0.0
    %3134 = vmatpush1.xpose.msra.mxu0 0.0
    %3135 = vmatprep.subr.mxu0 0.0
    %3136 = vmatpush1.xpose.msra.mxu0 0.0
    %3137 = vmatprep.subr.mxu0 0.0
    %3138 = vmatpush1.xpose.msra.mxu0 0.0
    %3139 = vmatprep.subr.mxu0 0.0
    %3140 = vmatpush1.xpose.msra.mxu0 0.0
    %3141 = vmatprep.subr.mxu0 0.0
    %3142 = vmatpush1.xpose.msra.mxu0 0.0
    %3143 = vmatprep.subr.mxu0 0.0
    %3144 = vmatpush1.xpose.msra.mxu0 0.0
    %3145 = vmatprep.subr.mxu0 0.0
    %3146 = vmatpush1.xpose.msra.mxu0 0.0
    %3147 = vmatprep.subr.mxu0 0.0
    %3148 = vmatpush1.xpose.msra.mxu0 0.0
    %3149 = vmatprep.subr.mxu0 0.0
    %3150 = vmatpush1.xpose.msra.mxu0 0.0
    %3151 = vmatprep.subr.mxu0 0.0
    %3152 = vmatpush1.xpose.msra.mxu0 0.0
    %3153 = vmatprep.subr.mxu0 0.0
    %3154 = vmatpush1.xpose.msra.mxu0 0.0
    %3155 = vmatprep.subr.mxu0 0.0
    %3156 = vmatpush1.xpose.msra.mxu0 0.0
    %3157 = vmatprep.subr.mxu0 0.0
    %3158 = vmatpush1.xpose.msra.mxu0 0.0
    %3159 = vmatprep.subr.mxu0 0.0
    %3160 = vmatpush1.xpose.msra.mxu0 0.0
    %3161 = vmatprep.subr.mxu0 0.0
    %3162 = vmatpush1.xpose.msra.mxu0 0.0
    %3163 = vmatprep.subr.mxu0 0.0
    %3164 = vmatpush1.xpose.msra.mxu0 0.0
    %3165 = vmatprep.subr.mxu0 0.0
    %3166 = vmatpush1.xpose.msra.mxu0 0.0
    %3167 = vmatprep.subr.mxu0 0.0
    %3168 = vmatpush1.xpose.msra.mxu0 0.0
    %3169 = vmatprep.subr.mxu0 0.0
    %3170 = vmatpush1.xpose.msra.mxu0 0.0
    %3171 = vmatprep.subr.mxu0 0.0
    %3172 = vmatpush1.xpose.msra.mxu0 0.0
    %3173 = vmatprep.subr.mxu0 0.0
    %3174 = vmatpush1.xpose.msra.mxu0 0.0
    %3175 = vmatprep.subr.mxu0 0.0
    %3176 = vmatpush1.xpose.msra.mxu0 0.0
    %3177 = vmatprep.subr.mxu0 0.0
    %3178 = vmatpush1.xpose.msra.mxu0 0.0
    %3179 = vmatprep.subr.mxu0 0.0
    %3180 = vmatpush1.xpose.msra.mxu0 0.0
    %3181 = vmatprep.subr.mxu0 0.0
    %3182 = vmatpush1.xpose.msra.mxu0 0.0
    %3183 = vmatprep.subr.mxu0 0.0
    %3184 = vmatpush1.xpose.msra.mxu0 0.0
    %3185 = vmatprep.subr.mxu0 0.0
    %3186 = vmatpush1.xpose.msra.mxu0 0.0
    %3187 = vmatprep.subr.mxu0 0.0
    %3188 = vmatpush1.xpose.msra.mxu0 0.0
    %3189 = vmatprep.subr.mxu0 0.0
    %3190 = vmatpush1.xpose.msra.mxu0 0.0
    %3191 = vmatprep.subr.mxu0 0.0
    %3192 = vmatpush1.xpose.msra.mxu0 0.0
    %3193 = vmatprep.subr.mxu0 0.0
    %3194 = vmatpush1.xpose.msra.mxu0 0.0
    %3195 = vmatprep.mubr.f32.mxu0 0.0
    %3196 = vmatmul.mubr.f32.gmra.mrb[0].mxu0 %v3126
    %v3197 = vpop.f32.mrb[0].mxu0
    %v3198 = vadd.f32 %v134, %v3197
    %v3199 = vpop.f32.mrb[0].mxu0
    %3200 = vdwg.mxu0
    %v3201 = vsel %vm1114, %v2970, -inf
    %3202 = vmax.xlane.f32.xlu0 %v3201
    %v3203 = vpop.xlane.xlu0 %3202
    %v3204 = vsel %vm1114, %v3046, -inf
    %3205 = vmax.xlane.f32.xlu0 %v3204
    %v3206 = vpop.xlane.xlu0 %3205
    %v3207 = vsel %vm1114, %v3122, -inf
    %3208 = vmax.xlane.f32.xlu0 %v3207
    %v3209 = vpop.xlane.xlu0 %3208
    %v3210 = vsel %vm1114, %v3198, -inf
    %3211 = vmax.xlane.f32.xlu0 %v3210
    %v3212 = vpop.xlane.xlu0 %3211
    %v3213 = vsub.f32 %v2970, %v3203
    %v3214 = vsub.f32 %v3046, %v3206
    %v3215 = vsub.f32 %v3122, %v3209
    %v3216 = vsub.f32 %v3198, %v3212
    %v3217 = vmul.f32 %v3213, 1.442695
    %v3218 = vpow.pop %v3217
    %v3219 = vmul.f32 %v3214, 1.442695
    %v3220 = vpow.pop %v3219
    %v3221 = vmul.f32 %v3215, 1.442695
    %v3222 = vpow.pop %v3221
    %v3223 = vmul.f32 %v3216, 1.442695
    %v3224 = vpow.pop %v3223
    %v3225 = vsel %vm1114, %v3218, 0.0
    %3226 = vadd.xlane.f32.xlu0 %v3225
    %v3227 = vpop.xlane.xlu0 %3226
    %v3228 = vsel %vm1114, %v3220, 0.0
    %3229 = vadd.xlane.f32.xlu0 %v3228
    %v3230 = vpop.xlane.xlu0 %3229
    %v3231 = vsel %vm1114, %v3222, 0.0
    %3232 = vadd.xlane.f32.xlu0 %v3231
    %v3233 = vpop.xlane.xlu0 %3232
    %v3234 = vsel %vm1114, %v3224, 0.0
    %3235 = vadd.xlane.f32.xlu0 %v3234
    %v3236 = vpop.xlane.xlu0 %3235
    %v3237 = vrcp.pop %v3227
    %v3238 = vrcp.pop %v3230
    %v3239 = vrcp.pop %v3233
    %v3240 = vrcp.pop %v3236
    %v3241 = vmul.f32 %v3218, %v3237
    %v3242 = vmul.f32 %v3220, %v3238
    %v3243 = vmul.f32 %v3222, %v3239
    %v3244 = vmul.f32 %v3224, %v3240
    %v3246 = vsel %vm1114, %v3241, 0
    %3248 = vmatprep.subr.mxu0 0.0
    %3249 = vmatpush1.msra.mxu0 %v2684
    %3250 = vmatprep.subr.mxu0 0.0
    %3251 = vmatpush1.msra.mxu0 0.0
    %3252 = vmatprep.subr.mxu0 0.0
    %3253 = vmatpush1.msra.mxu0 0.0
    %3254 = vmatprep.subr.mxu0 0.0
    %3255 = vmatpush1.msra.mxu0 0.0
    %3256 = vmatprep.subr.mxu0 0.0
    %3257 = vmatpush1.msra.mxu0 0.0
    %3258 = vmatprep.subr.mxu0 0.0
    %3259 = vmatpush1.msra.mxu0 0.0
    %3260 = vmatprep.subr.mxu0 0.0
    %3261 = vmatpush1.msra.mxu0 0.0
    %3262 = vmatprep.subr.mxu0 0.0
    %3263 = vmatpush1.msra.mxu0 0.0
    %3264 = vmatprep.subr.mxu0 0.0
    %3265 = vmatpush1.msra.mxu0 0.0
    %3266 = vmatprep.subr.mxu0 0.0
    %3267 = vmatpush1.msra.mxu0 0.0
    %3268 = vmatprep.subr.mxu0 0.0
    %3269 = vmatpush1.msra.mxu0 0.0
    %3270 = vmatprep.subr.mxu0 0.0
    %3271 = vmatpush1.msra.mxu0 0.0
    %3272 = vmatprep.subr.mxu0 0.0
    %3273 = vmatpush1.msra.mxu0 0.0
    %3274 = vmatprep.subr.mxu0 0.0
    %3275 = vmatpush1.msra.mxu0 0.0
    %3276 = vmatprep.subr.mxu0 0.0
    %3277 = vmatpush1.msra.mxu0 0.0
    %3278 = vmatprep.subr.mxu0 0.0
    %3279 = vmatpush1.msra.mxu0 0.0
    %3280 = vmatprep.subr.mxu0 0.0
    %3281 = vmatpush1.msra.mxu0 0.0
    %3282 = vmatprep.subr.mxu0 0.0
    %3283 = vmatpush1.msra.mxu0 0.0
    %3284 = vmatprep.subr.mxu0 0.0
    %3285 = vmatpush1.msra.mxu0 0.0
    %3286 = vmatprep.subr.mxu0 0.0
    %3287 = vmatpush1.msra.mxu0 0.0
    %3288 = vmatprep.subr.mxu0 0.0
    %3289 = vmatpush1.msra.mxu0 0.0
    %3290 = vmatprep.subr.mxu0 0.0
    %3291 = vmatpush1.msra.mxu0 0.0
    %3292 = vmatprep.subr.mxu0 0.0
    %3293 = vmatpush1.msra.mxu0 0.0
    %3294 = vmatprep.subr.mxu0 0.0
    %3295 = vmatpush1.msra.mxu0 0.0
    %3296 = vmatprep.subr.mxu0 0.0
    %3297 = vmatpush1.msra.mxu0 0.0
    %3298 = vmatprep.subr.mxu0 0.0
    %3299 = vmatpush1.msra.mxu0 0.0
    %3300 = vmatprep.subr.mxu0 0.0
    %3301 = vmatpush1.msra.mxu0 0.0
    %3302 = vmatprep.subr.mxu0 0.0
    %3303 = vmatpush1.msra.mxu0 0.0
    %3304 = vmatprep.subr.mxu0 0.0
    %3305 = vmatpush1.msra.mxu0 0.0
    %3306 = vmatprep.subr.mxu0 0.0
    %3307 = vmatpush1.msra.mxu0 0.0
    %3308 = vmatprep.subr.mxu0 0.0
    %3309 = vmatpush1.msra.mxu0 0.0
    %3310 = vmatprep.subr.mxu0 0.0
    %3311 = vmatpush1.msra.mxu0 0.0
    %3312 = vmatprep.mubr.f32.mxu0 0.0
    %3313 = vmatmul.mubr.f32.gmra.mrb[0].mxu0 %v3246
    %v3314 = vpop.f32.mrb[0].mxu0
    %v3315 = vadd.f32 0.0, %v3314
    %v3316 = vpop.f32.mrb[0].mxu0
    %3317 = vdwg.mxu0
    %v3319 = vsel %vm1114, %v3242, 0
    %3321 = vmatprep.subr.mxu0 0.0
    %3322 = vmatpush1.msra.mxu0 %v2754
    %3323 = vmatprep.subr.mxu0 0.0
    %3324 = vmatpush1.msra.mxu0 0.0
    %3325 = vmatprep.subr.mxu0 0.0
    %3326 = vmatpush1.msra.mxu0 0.0
    %3327 = vmatprep.subr.mxu0 0.0
    %3328 = vmatpush1.msra.mxu0 0.0
    %3329 = vmatprep.subr.mxu0 0.0
    %3330 = vmatpush1.msra.mxu0 0.0
    %3331 = vmatprep.subr.mxu0 0.0
    %3332 = vmatpush1.msra.mxu0 0.0
    %3333 = vmatprep.subr.mxu0 0.0
    %3334 = vmatpush1.msra.mxu0 0.0
    %3335 = vmatprep.subr.mxu0 0.0
    %3336 = vmatpush1.msra.mxu0 0.0
    %3337 = vmatprep.subr.mxu0 0.0
    %3338 = vmatpush1.msra.mxu0 0.0
    %3339 = vmatprep.subr.mxu0 0.0
    %3340 = vmatpush1.msra.mxu0 0.0
    %3341 = vmatprep.subr.mxu0 0.0
    %3342 = vmatpush1.msra.mxu0 0.0
    %3343 = vmatprep.subr.mxu0 0.0
    %3344 = vmatpush1.msra.mxu0 0.0
    %3345 = vmatprep.subr.mxu0 0.0
    %3346 = vmatpush1.msra.mxu0 0.0
    %3347 = vmatprep.subr.mxu0 0.0
    %3348 = vmatpush1.msra.mxu0 0.0
    %3349 = vmatprep.subr.mxu0 0.0
    %3350 = vmatpush1.msra.mxu0 0.0
    %3351 = vmatprep.subr.mxu0 0.0
    %3352 = vmatpush1.msra.mxu0 0.0
    %3353 = vmatprep.subr.mxu0 0.0
    %3354 = vmatpush1.msra.mxu0 0.0
    %3355 = vmatprep.subr.mxu0 0.0
    %3356 = vmatpush1.msra.mxu0 0.0
    %3357 = vmatprep.subr.mxu0 0.0
    %3358 = vmatpush1.msra.mxu0 0.0
    %3359 = vmatprep.subr.mxu0 0.0
    %3360 = vmatpush1.msra.mxu0 0.0
    %3361 = vmatprep.subr.mxu0 0.0
    %3362 = vmatpush1.msra.mxu0 0.0
    %3363 = vmatprep.subr.mxu0 0.0
    %3364 = vmatpush1.msra.mxu0 0.0
    %3365 = vmatprep.subr.mxu0 0.0
    %3366 = vmatpush1.msra.mxu0 0.0
    %3367 = vmatprep.subr.mxu0 0.0
    %3368 = vmatpush1.msra.mxu0 0.0
    %3369 = vmatprep.subr.mxu0 0.0
    %3370 = vmatpush1.msra.mxu0 0.0
    %3371 = vmatprep.subr.mxu0 0.0
    %3372 = vmatpush1.msra.mxu0 0.0
    %3373 = vmatprep.subr.mxu0 0.0
    %3374 = vmatpush1.msra.mxu0 0.0
    %3375 = vmatprep.subr.mxu0 0.0
    %3376 = vmatpush1.msra.mxu0 0.0
    %3377 = vmatprep.subr.mxu0 0.0
    %3378 = vmatpush1.msra.mxu0 0.0
    %3379 = vmatprep.subr.mxu0 0.0
    %3380 = vmatpush1.msra.mxu0 0.0
    %3381 = vmatprep.subr.mxu0 0.0
    %3382 = vmatpush1.msra.mxu0 0.0
    %3383 = vmatprep.subr.mxu0 0.0
    %3384 = vmatpush1.msra.mxu0 0.0
    %3385 = vmatprep.mubr.f32.mxu0 0.0
    %3386 = vmatmul.mubr.f32.gmra.mrb[0].mxu0 %v3319
    %v3387 = vpop.f32.mrb[0].mxu0
    %v3388 = vadd.f32 0.0, %v3387
    %v3389 = vpop.f32.mrb[0].mxu0
    %3390 = vdwg.mxu0
    %v3392 = vsel %vm1114, %v3243, 0
    %3394 = vmatprep.subr.mxu0 0.0
    %3395 = vmatpush1.msra.mxu0 %v2824
    %3396 = vmatprep.subr.mxu0 0.0
    %3397 = vmatpush1.msra.mxu0 0.0
    %3398 = vmatprep.subr.mxu0 0.0
    %3399 = vmatpush1.msra.mxu0 0.0
    %3400 = vmatprep.subr.mxu0 0.0
    %3401 = vmatpush1.msra.mxu0 0.0
    %3402 = vmatprep.subr.mxu0 0.0
    %3403 = vmatpush1.msra.mxu0 0.0
    %3404 = vmatprep.subr.mxu0 0.0
    %3405 = vmatpush1.msra.mxu0 0.0
    %3406 = vmatprep.subr.mxu0 0.0
    %3407 = vmatpush1.msra.mxu0 0.0
    %3408 = vmatprep.subr.mxu0 0.0
    %3409 = vmatpush1.msra.mxu0 0.0
    %3410 = vmatprep.subr.mxu0 0.0
    %3411 = vmatpush1.msra.mxu0 0.0
    %3412 = vmatprep.subr.mxu0 0.0
    %3413 = vmatpush1.msra.mxu0 0.0
    %3414 = vmatprep.subr.mxu0 0.0
    %3415 = vmatpush1.msra.mxu0 0.0
    %3416 = vmatprep.subr.mxu0 0.0
    %3417 = vmatpush1.msra.mxu0 0.0
    %3418 = vmatprep.subr.mxu0 0.0
    %3419 = vmatpush1.msra.mxu0 0.0
    %3420 = vmatprep.subr.mxu0 0.0
    %3421 = vmatpush1.msra.mxu0 0.0
    %3422 = vmatprep.subr.mxu0 0.0
    %3423 = vmatpush1.msra.mxu0 0.0
    %3424 = vmatprep.subr.mxu0 0.0
    %3425 = vmatpush1.msra.mxu0 0.0
    %3426 = vmatprep.subr.mxu0 0.0
    %3427 = vmatpush1.msra.mxu0 0.0
    %3428 = vmatprep.subr.mxu0 0.0
    %3429 = vmatpush1.msra.mxu0 0.0
    %3430 = vmatprep.subr.mxu0 0.0
    %3431 = vmatpush1.msra.mxu0 0.0
    %3432 = vmatprep.subr.mxu0 0.0
    %3433 = vmatpush1.msra.mxu0 0.0
    %3434 = vmatprep.subr.mxu0 0.0
    %3435 = vmatpush1.msra.mxu0 0.0
    %3436 = vmatprep.subr.mxu0 0.0
    %3437 = vmatpush1.msra.mxu0 0.0
    %3438 = vmatprep.subr.mxu0 0.0
    %3439 = vmatpush1.msra.mxu0 0.0
    %3440 = vmatprep.subr.mxu0 0.0
    %3441 = vmatpush1.msra.mxu0 0.0
    %3442 = vmatprep.subr.mxu0 0.0
    %3443 = vmatpush1.msra.mxu0 0.0
    %3444 = vmatprep.subr.mxu0 0.0
    %3445 = vmatpush1.msra.mxu0 0.0
    %3446 = vmatprep.subr.mxu0 0.0
    %3447 = vmatpush1.msra.mxu0 0.0
    %3448 = vmatprep.subr.mxu0 0.0
    %3449 = vmatpush1.msra.mxu0 0.0
    %3450 = vmatprep.subr.mxu0 0.0
    %3451 = vmatpush1.msra.mxu0 0.0
    %3452 = vmatprep.subr.mxu0 0.0
    %3453 = vmatpush1.msra.mxu0 0.0
    %3454 = vmatprep.subr.mxu0 0.0
    %3455 = vmatpush1.msra.mxu0 0.0
    %3456 = vmatprep.subr.mxu0 0.0
    %3457 = vmatpush1.msra.mxu0 0.0
    %3458 = vmatprep.mubr.f32.mxu0 0.0
    %3459 = vmatmul.mubr.f32.gmra.mrb[0].mxu0 %v3392
    %v3460 = vpop.f32.mrb[0].mxu0
    %v3461 = vadd.f32 0.0, %v3460
    %v3462 = vpop.f32.mrb[0].mxu0
    %3463 = vdwg.mxu0
    %v3465 = vsel %vm1114, %v3244, 0
    %3467 = vmatprep.subr.mxu0 0.0
    %3468 = vmatpush1.msra.mxu0 %v2894
    %3469 = vmatprep.subr.mxu0 0.0
    %3470 = vmatpush1.msra.mxu0 0.0
    %3471 = vmatprep.subr.mxu0 0.0
    %3472 = vmatpush1.msra.mxu0 0.0
    %3473 = vmatprep.subr.mxu0 0.0
    %3474 = vmatpush1.msra.mxu0 0.0
    %3475 = vmatprep.subr.mxu0 0.0
    %3476 = vmatpush1.msra.mxu0 0.0
    %3477 = vmatprep.subr.mxu0 0.0
    %3478 = vmatpush1.msra.mxu0 0.0
    %3479 = vmatprep.subr.mxu0 0.0
    %3480 = vmatpush1.msra.mxu0 0.0
    %3481 = vmatprep.subr.mxu0 0.0
    %3482 = vmatpush1.msra.mxu0 0.0
    %3483 = vmatprep.subr.mxu0 0.0
    %3484 = vmatpush1.msra.mxu0 0.0
    %3485 = vmatprep.subr.mxu0 0.0
    %3486 = vmatpush1.msra.mxu0 0.0
    %3487 = vmatprep.subr.mxu0 0.0
    %3488 = vmatpush1.msra.mxu0 0.0
    %3489 = vmatprep.subr.mxu0 0.0
    %3490 = vmatpush1.msra.mxu0 0.0
    %3491 = vmatprep.subr.mxu0 0.0
    %3492 = vmatpush1.msra.mxu0 0.0
    %3493 = vmatprep.subr.mxu0 0.0
    %3494 = vmatpush1.msra.mxu0 0.0
    %3495 = vmatprep.subr.mxu0 0.0
    %3496 = vmatpush1.msra.mxu0 0.0
    %3497 = vmatprep.subr.mxu0 0.0
    %3498 = vmatpush1.msra.mxu0 0.0
    %3499 = vmatprep.subr.mxu0 0.0
    %3500 = vmatpush1.msra.mxu0 0.0
    %3501 = vmatprep.subr.mxu0 0.0
    %3502 = vmatpush1.msra.mxu0 0.0
    %3503 = vmatprep.subr.mxu0 0.0
    %3504 = vmatpush1.msra.mxu0 0.0
    %3505 = vmatprep.subr.mxu0 0.0
    %3506 = vmatpush1.msra.mxu0 0.0
    %3507 = vmatprep.subr.mxu0 0.0
    %3508 = vmatpush1.msra.mxu0 0.0
    %3509 = vmatprep.subr.mxu0 0.0
    %3510 = vmatpush1.msra.mxu0 0.0
    %3511 = vmatprep.subr.mxu0 0.0
    %3512 = vmatpush1.msra.mxu0 0.0
    %3513 = vmatprep.subr.mxu0 0.0
    %3514 = vmatpush1.msra.mxu0 0.0
    %3515 = vmatprep.subr.mxu0 0.0
    %3516 = vmatpush1.msra.mxu0 0.0
    %3517 = vmatprep.subr.mxu0 0.0
    %3518 = vmatpush1.msra.mxu0 0.0
    %3519 = vmatprep.subr.mxu0 0.0
    %3520 = vmatpush1.msra.mxu0 0.0
    %3521 = vmatprep.subr.mxu0 0.0
    %3522 = vmatpush1.msra.mxu0 0.0
    %3523 = vmatprep.subr.mxu0 0.0
    %3524 = vmatpush1.msra.mxu0 0.0
    %3525 = vmatprep.subr.mxu0 0.0
    %3526 = vmatpush1.msra.mxu0 0.0
    %3527 = vmatprep.subr.mxu0 0.0
    %3528 = vmatpush1.msra.mxu0 0.0
    %3529 = vmatprep.subr.mxu0 0.0
    %3530 = vmatpush1.msra.mxu0 0.0
    %3531 = vmatprep.mubr.f32.mxu0 0.0
    %3532 = vmatmul.mubr.f32.gmra.mrb[0].mxu0 %v3465
    %v3533 = vpop.f32.mrb[0].mxu0
    %v3534 = vadd.f32 0.0, %v3533
    %v3535 = vpop.f32.mrb[0].mxu0
    %3536 = vdwg.mxu0
    %v3538 = vsel %vm1114, %v3315, 0
    %3540 = vmatprep.subr.mxu0 0.0
    %3541 = vmatpush1.msra.mxu0 %v195
    %3542 = vmatprep.subr.mxu0 0.0
    %3543 = vmatpush1.msra.mxu0 0.0
    %3544 = vmatprep.subr.mxu0 0.0
    %3545 = vmatpush1.msra.mxu0 0.0
    %3546 = vmatprep.subr.mxu0 0.0
    %3547 = vmatpush1.msra.mxu0 0.0
    %3548 = vmatprep.subr.mxu0 0.0
    %3549 = vmatpush1.msra.mxu0 0.0
    %3550 = vmatprep.subr.mxu0 0.0
    %3551 = vmatpush1.msra.mxu0 0.0
    %3552 = vmatprep.subr.mxu0 0.0
    %3553 = vmatpush1.msra.mxu0 0.0
    %3554 = vmatprep.subr.mxu0 0.0
    %3555 = vmatpush1.msra.mxu0 0.0
    %3556 = vmatprep.subr.mxu0 0.0
    %3557 = vmatpush1.msra.mxu0 0.0
    %3558 = vmatprep.subr.mxu0 0.0
    %3559 = vmatpush1.msra.mxu0 0.0
    %3560 = vmatprep.subr.mxu0 0.0
    %3561 = vmatpush1.msra.mxu0 0.0
    %3562 = vmatprep.subr.mxu0 0.0
    %3563 = vmatpush1.msra.mxu0 0.0
    %3564 = vmatprep.subr.mxu0 0.0
    %3565 = vmatpush1.msra.mxu0 0.0
    %3566 = vmatprep.subr.mxu0 0.0
    %3567 = vmatpush1.msra.mxu0 0.0
    %3568 = vmatprep.subr.mxu0 0.0
    %3569 = vmatpush1.msra.mxu0 0.0
    %3570 = vmatprep.subr.mxu0 0.0
    %3571 = vmatpush1.msra.mxu0 0.0
    %3572 = vmatprep.subr.mxu0 0.0
    %3573 = vmatpush1.msra.mxu0 0.0
    %3574 = vmatprep.subr.mxu0 0.0
    %3575 = vmatpush1.msra.mxu0 0.0
    %3576 = vmatprep.subr.mxu0 0.0
    %3577 = vmatpush1.msra.mxu0 0.0
    %3578 = vmatprep.subr.mxu0 0.0
    %3579 = vmatpush1.msra.mxu0 0.0
    %3580 = vmatprep.subr.mxu0 0.0
    %3581 = vmatpush1.msra.mxu0 0.0
    %3582 = vmatprep.subr.mxu0 0.0
    %3583 = vmatpush1.msra.mxu0 0.0
    %3584 = vmatprep.subr.mxu0 0.0
    %3585 = vmatpush1.msra.mxu0 0.0
    %3586 = vmatprep.subr.mxu0 0.0
    %3587 = vmatpush1.msra.mxu0 0.0
    %3588 = vmatprep.subr.mxu0 0.0
    %3589 = vmatpush1.msra.mxu0 0.0
    %3590 = vmatprep.subr.mxu0 0.0
    %3591 = vmatpush1.msra.mxu0 0.0
    %3592 = vmatprep.subr.mxu0 0.0
    %3593 = vmatpush1.msra.mxu0 0.0
    %3594 = vmatprep.subr.mxu0 0.0
    %3595 = vmatpush1.msra.mxu0 0.0
    %3596 = vmatprep.subr.mxu0 0.0
    %3597 = vmatpush1.msra.mxu0 0.0
    %3598 = vmatprep.subr.mxu0 0.0
    %3599 = vmatpush1.msra.mxu0 0.0
    %3600 = vmatprep.subr.mxu0 0.0
    %3601 = vmatpush1.msra.mxu0 0.0
    %3602 = vmatprep.subr.mxu0 0.0
    %3603 = vmatpush1.msra.mxu0 0.0
    %3604 = vmatprep.mubr.f32.mxu0 0.0
    %3605 = vmatmul.mubr.f32.gmra.mrb[0].mxu0 %v3538
    %v3606 = vpop.f32.mrb[0].mxu0
    %v3607 = vadd.f32 0.0, %v3606
    %v3608 = vpop.f32.mrb[0].mxu0
    %3609 = vdwg.mxu0
    %v3611 = vsel %vm1114, %v3388, 0
    %3613 = vmatprep.subr.mxu0 0.0
    %3614 = vmatpush1.msra.mxu0 %v196
    %3615 = vmatprep.subr.mxu0 0.0
    %3616 = vmatpush1.msra.mxu0 0.0
    %3617 = vmatprep.subr.mxu0 0.0
    %3618 = vmatpush1.msra.mxu0 0.0
    %3619 = vmatprep.subr.mxu0 0.0
    %3620 = vmatpush1.msra.mxu0 0.0
    %3621 = vmatprep.subr.mxu0 0.0
    %3622 = vmatpush1.msra.mxu0 0.0
    %3623 = vmatprep.subr.mxu0 0.0
    %3624 = vmatpush1.msra.mxu0 0.0
    %3625 = vmatprep.subr.mxu0 0.0
    %3626 = vmatpush1.msra.mxu0 0.0
    %3627 = vmatprep.subr.mxu0 0.0
    %3628 = vmatpush1.msra.mxu0 0.0
    %3629 = vmatprep.subr.mxu0 0.0
    %3630 = vmatpush1.msra.mxu0 0.0
    %3631 = vmatprep.subr.mxu0 0.0
    %3632 = vmatpush1.msra.mxu0 0.0
    %3633 = vmatprep.subr.mxu0 0.0
    %3634 = vmatpush1.msra.mxu0 0.0
    %3635 = vmatprep.subr.mxu0 0.0
    %3636 = vmatpush1.msra.mxu0 0.0
    %3637 = vmatprep.subr.mxu0 0.0
    %3638 = vmatpush1.msra.mxu0 0.0
    %3639 = vmatprep.subr.mxu0 0.0
    %3640 = vmatpush1.msra.mxu0 0.0
    %3641 = vmatprep.subr.mxu0 0.0
    %3642 = vmatpush1.msra.mxu0 0.0
    %3643 = vmatprep.subr.mxu0 0.0
    %3644 = vmatpush1.msra.mxu0 0.0
    %3645 = vmatprep.subr.mxu0 0.0
    %3646 = vmatpush1.msra.mxu0 0.0
    %3647 = vmatprep.subr.mxu0 0.0
    %3648 = vmatpush1.msra.mxu0 0.0
    %3649 = vmatprep.subr.mxu0 0.0
    %3650 = vmatpush1.msra.mxu0 0.0
    %3651 = vmatprep.subr.mxu0 0.0
    %3652 = vmatpush1.msra.mxu0 0.0
    %3653 = vmatprep.subr.mxu0 0.0
    %3654 = vmatpush1.msra.mxu0 0.0
    %3655 = vmatprep.subr.mxu0 0.0
    %3656 = vmatpush1.msra.mxu0 0.0
    %3657 = vmatprep.subr.mxu0 0.0
    %3658 = vmatpush1.msra.mxu0 0.0
    %3659 = vmatprep.subr.mxu0 0.0
    %3660 = vmatpush1.msra.mxu0 0.0
    %3661 = vmatprep.subr.mxu0 0.0
    %3662 = vmatpush1.msra.mxu0 0.0
    %3663 = vmatprep.subr.mxu0 0.0
    %3664 = vmatpush1.msra.mxu0 0.0
    %3665 = vmatprep.subr.mxu0 0.0
    %3666 = vmatpush1.msra.mxu0 0.0
    %3667 = vmatprep.subr.mxu0 0.0
    %3668 = vmatpush1.msra.mxu0 0.0
    %3669 = vmatprep.subr.mxu0 0.0
    %3670 = vmatpush1.msra.mxu0 0.0
    %3671 = vmatprep.subr.mxu0 0.0
    %3672 = vmatpush1.msra.mxu0 0.0
    %3673 = vmatprep.subr.mxu0 0.0
    %3674 = vmatpush1.msra.mxu0 0.0
    %3675 = vmatprep.subr.mxu0 0.0
    %3676 = vmatpush1.msra.mxu0 0.0
    %3677 = vmatprep.mubr.f32.mxu0 0.0
    %3678 = vmatmul.mubr.f32.gmra.mrb[0].mxu0 %v3611
    %v3679 = vpop.f32.mrb[0].mxu0
    %v3680 = vadd.f32 0.0, %v3679
    %v3681 = vpop.f32.mrb[0].mxu0
    %3682 = vdwg.mxu0
    %v3684 = vsel %vm1114, %v3461, 0
    %3686 = vmatprep.subr.mxu0 0.0
    %3687 = vmatpush1.msra.mxu0 %v197
    %3688 = vmatprep.subr.mxu0 0.0
    %3689 = vmatpush1.msra.mxu0 0.0
    %3690 = vmatprep.subr.mxu0 0.0
    %3691 = vmatpush1.msra.mxu0 0.0
    %3692 = vmatprep.subr.mxu0 0.0
    %3693 = vmatpush1.msra.mxu0 0.0
    %3694 = vmatprep.subr.mxu0 0.0
    %3695 = vmatpush1.msra.mxu0 0.0
    %3696 = vmatprep.subr.mxu0 0.0
    %3697 = vmatpush1.msra.mxu0 0.0
    %3698 = vmatprep.subr.mxu0 0.0
    %3699 = vmatpush1.msra.mxu0 0.0
    %3700 = vmatprep.subr.mxu0 0.0
    %3701 = vmatpush1.msra.mxu0 0.0
    %3702 = vmatprep.subr.mxu0 0.0
    %3703 = vmatpush1.msra.mxu0 0.0
    %3704 = vmatprep.subr.mxu0 0.0
    %3705 = vmatpush1.msra.mxu0 0.0
    %3706 = vmatprep.subr.mxu0 0.0
    %3707 = vmatpush1.msra.mxu0 0.0
    %3708 = vmatprep.subr.mxu0 0.0
    %3709 = vmatpush1.msra.mxu0 0.0
    %3710 = vmatprep.subr.mxu0 0.0
    %3711 = vmatpush1.msra.mxu0 0.0
    %3712 = vmatprep.subr.mxu0 0.0
    %3713 = vmatpush1.msra.mxu0 0.0
    %3714 = vmatprep.subr.mxu0 0.0
    %3715 = vmatpush1.msra.mxu0 0.0
    %3716 = vmatprep.subr.mxu0 0.0
    %3717 = vmatpush1.msra.mxu0 0.0
    %3718 = vmatprep.subr.mxu0 0.0
    %3719 = vmatpush1.msra.mxu0 0.0
    %3720 = vmatprep.subr.mxu0 0.0
    %3721 = vmatpush1.msra.mxu0 0.0
    %3722 = vmatprep.subr.mxu0 0.0
    %3723 = vmatpush1.msra.mxu0 0.0
    %3724 = vmatprep.subr.mxu0 0.0
    %3725 = vmatpush1.msra.mxu0 0.0
    %3726 = vmatprep.subr.mxu0 0.0
    %3727 = vmatpush1.msra.mxu0 0.0
    %3728 = vmatprep.subr.mxu0 0.0
    %3729 = vmatpush1.msra.mxu0 0.0
    %3730 = vmatprep.subr.mxu0 0.0
    %3731 = vmatpush1.msra.mxu0 0.0
    %3732 = vmatprep.subr.mxu0 0.0
    %3733 = vmatpush1.msra.mxu0 0.0
    %3734 = vmatprep.subr.mxu0 0.0
    %3735 = vmatpush1.msra.mxu0 0.0
    %3736 = vmatprep.subr.mxu0 0.0
    %3737 = vmatpush1.msra.mxu0 0.0
    %3738 = vmatprep.subr.mxu0 0.0
    %3739 = vmatpush1.msra.mxu0 0.0
    %3740 = vmatprep.subr.mxu0 0.0
    %3741 = vmatpush1.msra.mxu0 0.0
    %3742 = vmatprep.subr.mxu0 0.0
    %3743 = vmatpush1.msra.mxu0 0.0
    %3744 = vmatprep.subr.mxu0 0.0
    %3745 = vmatpush1.msra.mxu0 0.0
    %3746 = vmatprep.subr.mxu0 0.0
    %3747 = vmatpush1.msra.mxu0 0.0
    %3748 = vmatprep.subr.mxu0 0.0
    %3749 = vmatpush1.msra.mxu0 0.0
    %3750 = vmatprep.mubr.f32.mxu0 0.0
    %3751 = vmatmul.mubr.f32.gmra.mrb[0].mxu0 %v3684
    %v3752 = vpop.f32.mrb[0].mxu0
    %v3753 = vadd.f32 0.0, %v3752
    %v3754 = vpop.f32.mrb[0].mxu0
    %3755 = vdwg.mxu0
    %v3757 = vsel %vm1114, %v3534, 0
    %3759 = vmatprep.subr.mxu0 0.0
    %3760 = vmatpush1.msra.mxu0 %v198
    %3761 = vmatprep.subr.mxu0 0.0
    %3762 = vmatpush1.msra.mxu0 0.0
    %3763 = vmatprep.subr.mxu0 0.0
    %3764 = vmatpush1.msra.mxu0 0.0
    %3765 = vmatprep.subr.mxu0 0.0
    %3766 = vmatpush1.msra.mxu0 0.0
    %3767 = vmatprep.subr.mxu0 0.0
    %3768 = vmatpush1.msra.mxu0 0.0
    %3769 = vmatprep.subr.mxu0 0.0
    %3770 = vmatpush1.msra.mxu0 0.0
    %3771 = vmatprep.subr.mxu0 0.0
    %3772 = vmatpush1.msra.mxu0 0.0
    %3773 = vmatprep.subr.mxu0 0.0
    %3774 = vmatpush1.msra.mxu0 0.0
    %3775 = vmatprep.subr.mxu0 0.0
    %3776 = vmatpush1.msra.mxu0 0.0
    %3777 = vmatprep.subr.mxu0 0.0
    %3778 = vmatpush1.msra.mxu0 0.0
    %3779 = vmatprep.subr.mxu0 0.0
    %3780 = vmatpush1.msra.mxu0 0.0
    %3781 = vmatprep.subr.mxu0 0.0
    %3782 = vmatpush1.msra.mxu0 0.0
    %3783 = vmatprep.subr.mxu0 0.0
    %3784 = vmatpush1.msra.mxu0 0.0
    %3785 = vmatprep.subr.mxu0 0.0
    %3786 = vmatpush1.msra.mxu0 0.0
    %3787 = vmatprep.subr.mxu0 0.0
    %3788 = vmatpush1.msra.mxu0 0.0
    %3789 = vmatprep.subr.mxu0 0.0
    %3790 = vmatpush1.msra.mxu0 0.0
    %3791 = vmatprep.subr.mxu0 0.0
    %3792 = vmatpush1.msra.mxu0 0.0
    %3793 = vmatprep.subr.mxu0 0.0
    %3794 = vmatpush1.msra.mxu0 0.0
    %3795 = vmatprep.subr.mxu0 0.0
    %3796 = vmatpush1.msra.mxu0 0.0
    %3797 = vmatprep.subr.mxu0 0.0
    %3798 = vmatpush1.msra.mxu0 0.0
    %3799 = vmatprep.subr.mxu0 0.0
    %3800 = vmatpush1.msra.mxu0 0.0
    %3801 = vmatprep.subr.mxu0 0.0
    %3802 = vmatpush1.msra.mxu0 0.0
    %3803 = vmatprep.subr.mxu0 0.0
    %3804 = vmatpush1.msra.mxu0 0.0
    %3805 = vmatprep.subr.mxu0 0.0
    %3806 = vmatpush1.msra.mxu0 0.0
    %3807 = vmatprep.subr.mxu0 0.0
    %3808 = vmatpush1.msra.mxu0 0.0
    %3809 = vmatprep.subr.mxu0 0.0
    %3810 = vmatpush1.msra.mxu0 0.0
    %3811 = vmatprep.subr.mxu0 0.0
    %3812 = vmatpush1.msra.mxu0 0.0
    %3813 = vmatprep.subr.mxu0 0.0
    %3814 = vmatpush1.msra.mxu0 0.0
    %3815 = vmatprep.subr.mxu0 0.0
    %3816 = vmatpush1.msra.mxu0 0.0
    %3817 = vmatprep.subr.mxu0 0.0
    %3818 = vmatpush1.msra.mxu0 0.0
    %3819 = vmatprep.subr.mxu0 0.0
    %3820 = vmatpush1.msra.mxu0 0.0
    %3821 = vmatprep.subr.mxu0 0.0
    %3822 = vmatpush1.msra.mxu0 0.0
    %3823 = vmatprep.mubr.f32.mxu0 0.0
    %3824 = vmatmul.mubr.f32.gmra.mrb[0].mxu0 %v3757
    %v3825 = vpop.f32.mrb[0].mxu0
    %v3826 = vadd.f32 0.0, %v3825
    %v3827 = vpop.f32.mrb[0].mxu0
    %3828 = vdwg.mxu0
    %v3829 = vsel %vm82, %v3607, 0.0
    %v3830 = vsel %vm82, %v3680, 0.0
    %v3831 = vadd.f32 %v3829, %v3830
    %v3832 = vsel %vm82, %v3753, 0.0
    %v3833 = vadd.f32 %v3831, %v3832
    %v3834 = vsel %vm82, %v3826, 0.0
    %v3835 = vadd.f32 %v3833, %v3834
    %v3836 = vld [vmem:[%s11] sm:$0x1]
    %v3838 = vlaneseq
    %v3839 = vshrl.u32 %v3838, 7
    %v3840 = vsub.s32 0, %v3839
    %v3841 = vrot.slane %v3836, %v3840
    %v3843 = vadd.f32 %v2053, %v3841
    %v3844 = vadd.f32 %v3835, %v3841
    %v3845 = vadd.f32 %v124, %v3843
    %v3846 = vadd.f32 %v125, %v3844
    %v3847 = vld [vmem:[%s12] sm:$0x1]
    %v3848 = vld [vmem:[%s13] sm:$0x1]
    %v3849 = vsel %vm82, %v3845, 0.0
    %3850 = vadd.xlane.f32.xlu0 %v3849
    %v3851 = vpop.xlane.xlu0 %3850
    %v3852 = vsel %vm82, %v3846, 0.0
    %3853 = vadd.xlane.f32.xlu0 %v3852
    %v3854 = vpop.xlane.xlu0 %3853
    %v3855 = vmul.f32 %v3851, %v89
    %v3856 = vmul.f32 %v3854, %v89
    %v3857 = vsub.f32 %v3845, %v3855
    %v3858 = vsub.f32 %v3846, %v3856
    %v3859 = vmul.f32 %v3857, %v3857
    %v3860 = vmul.f32 %v3858, %v3858
    %v3861 = vsel %vm82, %v3859, 0.0
    %3862 = vadd.xlane.f32.xlu0 %v3861
    %v3863 = vpop.xlane.xlu0 %3862
    %v3864 = vsel %vm82, %v3860, 0.0
    %3865 = vadd.xlane.f32.xlu0 %v3864
    %v3866 = vpop.xlane.xlu0 %3865
    %v3867 = vmul.f32 %v3863, %v89
    %v3868 = vmul.f32 %v3866, %v89
    %v3869 = vadd.f32 %v3867, 1e-12
    %v3870 = vadd.f32 %v3868, 1e-12
    %v3871 = vrsqrt.pop %v3869
    %v3872 = vrsqrt.pop %v3870
    %v3873 = vmul.f32 %v3857, %v3871
    %v3874 = vmul.f32 %v3858, %v3872
    %v3876 = vlaneseq
    %v3877 = vshrl.u32 %v3876, 7
    %v3878 = vsub.s32 0, %v3877
    %v3879 = vrot.slane %v3847, %v3878
    %v3881 = vmul.f32 %v3873, %v3879
    %v3882 = vmul.f32 %v3874, %v3879
    %v3884 = vlaneseq
    %v3885 = vshrl.u32 %v3884, 7
    %v3886 = vsub.s32 0, %v3885
    %v3887 = vrot.slane %v3848, %v3886
    %v3889 = vadd.f32 %v3881, %v3887
    %v3890 = vadd.f32 %v3882, %v3887
    %v3891 = vld [vmem:[%s14] sm:$0xff]
    %v3892 = vld [vmem:[%s14 + $0x8] sm:$0xff]
    %v3893 = vld [vmem:[%s14 + $0x10] sm:$0xff]
    %v3894 = vld [vmem:[%s14 + $0x18] sm:$0xff]
    %v3895 = vld [vmem:[%s15] sm:$0x1]
    %v3897 = vlaneseq
    %v3898 = vshrl.u32 %v3897, 7
    %v3899 = vsub.s32 0, %v3898
    %v3900 = vrot.slane %v3895, %v3899
    %v3903 = vsel %vm82, %v3889, 0
    %v3906 = vsel %vm82, %v3890, 0
    %3908 = vmatprep.subr.mxu0 0.0
    %3909 = vmatpush1.msra.mxu0 %v3891
    %3910 = vmatprep.subr.mxu0 0.0
    %3911 = vmatpush1.msra.mxu0 %v3892
    %3912 = vmatprep.subr.mxu0 0.0
    %3913 = vmatpush1.msra.mxu0 %v3893
    %3914 = vmatprep.subr.mxu0 0.0
    %3915 = vmatpush1.msra.mxu0 %v3894
    %3916 = vmatprep.subr.mxu0 0.0
    %3917 = vmatpush1.msra.mxu0 0.0
    %3918 = vmatprep.subr.mxu0 0.0
    %3919 = vmatpush1.msra.mxu0 0.0
    %3920 = vmatprep.subr.mxu0 0.0
    %3921 = vmatpush1.msra.mxu0 0.0
    %3922 = vmatprep.subr.mxu0 0.0
    %3923 = vmatpush1.msra.mxu0 0.0
    %3924 = vmatprep.subr.mxu0 0.0
    %3925 = vmatpush1.msra.mxu0 0.0
    %3926 = vmatprep.subr.mxu0 0.0
    %3927 = vmatpush1.msra.mxu0 0.0
    %3928 = vmatprep.subr.mxu0 0.0
    %3929 = vmatpush1.msra.mxu0 0.0
    %3930 = vmatprep.subr.mxu0 0.0
    %3931 = vmatpush1.msra.mxu0 0.0
    %3932 = vmatprep.subr.mxu0 0.0
    %3933 = vmatpush1.msra.mxu0 0.0
    %3934 = vmatprep.subr.mxu0 0.0
    %3935 = vmatpush1.msra.mxu0 0.0
    %3936 = vmatprep.subr.mxu0 0.0
    %3937 = vmatpush1.msra.mxu0 0.0
    %3938 = vmatprep.subr.mxu0 0.0
    %3939 = vmatpush1.msra.mxu0 0.0
    %3940 = vmatprep.subr.mxu0 0.0
    %3941 = vmatpush1.msra.mxu0 0.0
    %3942 = vmatprep.subr.mxu0 0.0
    %3943 = vmatpush1.msra.mxu0 0.0
    %3944 = vmatprep.subr.mxu0 0.0
    %3945 = vmatpush1.msra.mxu0 0.0
    %3946 = vmatprep.subr.mxu0 0.0
    %3947 = vmatpush1.msra.mxu0 0.0
    %3948 = vmatprep.subr.mxu0 0.0
    %3949 = vmatpush1.msra.mxu0 0.0
    %3950 = vmatprep.subr.mxu0 0.0
    %3951 = vmatpush1.msra.mxu0 0.0
    %3952 = vmatprep.subr.mxu0 0.0
    %3953 = vmatpush1.msra.mxu0 0.0
    %3954 = vmatprep.subr.mxu0 0.0
    %3955 = vmatpush1.msra.mxu0 0.0
    %3956 = vmatprep.subr.mxu0 0.0
    %3957 = vmatpush1.msra.mxu0 0.0
    %3958 = vmatprep.subr.mxu0 0.0
    %3959 = vmatpush1.msra.mxu0 0.0
    %3960 = vmatprep.subr.mxu0 0.0
    %3961 = vmatpush1.msra.mxu0 0.0
    %3962 = vmatprep.subr.mxu0 0.0
    %3963 = vmatpush1.msra.mxu0 0.0
    %3964 = vmatprep.subr.mxu0 0.0
    %3965 = vmatpush1.msra.mxu0 0.0
    %3966 = vmatprep.subr.mxu0 0.0
    %3967 = vmatpush1.msra.mxu0 0.0
    %3968 = vmatprep.subr.mxu0 0.0
    %3969 = vmatpush1.msra.mxu0 0.0
    %3970 = vmatprep.subr.mxu0 0.0
    %3971 = vmatpush1.msra.mxu0 0.0
    %3972 = vmatprep.mubr.f32.mxu0 0.0
    %3973 = vmatmul.mubr.f32.gmra.mrb[0].mxu0 %v3903
    %v3974 = vpop.f32.mrb[0].mxu0
    %v3975 = vadd.f32 %v3900, %v3974
    %v3976 = vpop.f32.mrb[0].mxu0
    %3977 = vmatprep.mubr.f32.mxu0 0.0
    %3978 = vmatmul.mubr.f32.gmra.mrb[0].mxu0 %v3906
    %v3979 = vpop.f32.mrb[0].mxu0
    %v3980 = vadd.f32 %v3900, %v3979
    %v3981 = vpop.f32.mrb[0].mxu0
    %3982 = vdwg.mxu0
    %v3983 = vmul.f32 %v3975, %v3975
    %v3984 = vmul.f32 %v3980, %v3980
    %v3985 = vmul.f32 %v3975, %v3983
    %v3986 = vmul.f32 %v3980, %v3984
    %v3987 = vmul.f32 %v3985, 0.044715
    %v3988 = vmul.f32 %v3986, 0.044715
    %v3989 = vadd.f32 %v3975, %v3987
    %v3990 = vadd.f32 %v3980, %v3988
    %v3991 = vmul.f32 %v3989, 0.7978846
    %v3992 = vmul.f32 %v3990, 0.7978846
    %v3993 = vtanh.pop %v3991
    %v3994 = vtanh.pop %v3992
    %v3995 = vadd.f32 %v3993, 1.0
    %v3996 = vadd.f32 %v3994, 1.0
    %v3997 = vmul.f32 %v3995, 0.5
    %v3998 = vmul.f32 %v3996, 0.5
    %v3999 = vmul.f32 %v3975, %v3997
    %v4000 = vmul.f32 %v3980, %v3998
    %v4001 = vld [vmem:[%s16] sm:$0xff]
    %v4002 = vld [vmem:[%s16 + $0x8] sm:$0xff]
    %v4003 = vld [vmem:[%s16 + $0x10] sm:$0xff]
    %v4004 = vld [vmem:[%s16 + $0x18] sm:$0xff]
    %v4005 = vld [vmem:[%s16 + $0x20] sm:$0xff]
    %v4006 = vld [vmem:[%s16 + $0x28] sm:$0xff]
    %v4007 = vld [vmem:[%s16 + $0x30] sm:$0xff]
    %v4008 = vld [vmem:[%s16 + $0x38] sm:$0xff]
    %v4009 = vld [vmem:[%s17] sm:$0x1]
    %v4011 = vlaneseq
    %v4012 = vshrl.u32 %v4011, 7
    %v4013 = vsub.s32 0, %v4012
    %v4014 = vrot.slane %v4009, %v4013
    %vm4016 = vcmask 523264
    %v4018 = vsel %vm4016, %v3999, 0
    %v4021 = vsel %vm4016, %v4000, 0
    %4023 = vmatprep.subr.mxu0 0.0
    %4024 = vmatpush1.msra.mxu0 %v4001
    %4025 = vmatprep.subr.mxu0 0.0
    %4026 = vmatpush1.msra.mxu0 %v4002
    %4027 = vmatprep.subr.mxu0 0.0
    %4028 = vmatpush1.msra.mxu0 %v4003
    %4029 = vmatprep.subr.mxu0 0.0
    %4030 = vmatpush1.msra.mxu0 %v4004
    %4031 = vmatprep.subr.mxu0 0.0
    %4032 = vmatpush1.msra.mxu0 %v4005
    %4033 = vmatprep.subr.mxu0 0.0
    %4034 = vmatpush1.msra.mxu0 %v4006
    %4035 = vmatprep.subr.mxu0 0.0
    %4036 = vmatpush1.msra.mxu0 %v4007
    %4037 = vmatprep.subr.mxu0 0.0
    %4038 = vmatpush1.msra.mxu0 %v4008
    %4039 = vmatprep.subr.mxu0 0.0
    %4040 = vmatpush1.msra.mxu0 0.0
    %4041 = vmatprep.subr.mxu0 0.0
    %4042 = vmatpush1.msra.mxu0 0.0
    %4043 = vmatprep.subr.mxu0 0.0
    %4044 = vmatpush1.msra.mxu0 0.0
    %4045 = vmatprep.subr.mxu0 0.0
    %4046 = vmatpush1.msra.mxu0 0.0
    %4047 = vmatprep.subr.mxu0 0.0
    %4048 = vmatpush1.msra.mxu0 0.0
    %4049 = vmatprep.subr.mxu0 0.0
    %4050 = vmatpush1.msra.mxu0 0.0
    %4051 = vmatprep.subr.mxu0 0.0
    %4052 = vmatpush1.msra.mxu0 0.0
    %4053 = vmatprep.subr.mxu0 0.0
    %4054 = vmatpush1.msra.mxu0 0.0
    %4055 = vmatprep.subr.mxu0 0.0
    %4056 = vmatpush1.msra.mxu0 0.0
    %4057 = vmatprep.subr.mxu0 0.0
    %4058 = vmatpush1.msra.mxu0 0.0
    %4059 = vmatprep.subr.mxu0 0.0
    %4060 = vmatpush1.msra.mxu0 0.0
    %4061 = vmatprep.subr.mxu0 0.0
    %4062 = vmatpush1.msra.mxu0 0.0
    %4063 = vmatprep.subr.mxu0 0.0
    %4064 = vmatpush1.msra.mxu0 0.0
    %4065 = vmatprep.subr.mxu0 0.0
    %4066 = vmatpush1.msra.mxu0 0.0
    %4067 = vmatprep.subr.mxu0 0.0
    %4068 = vmatpush1.msra.mxu0 0.0
    %4069 = vmatprep.subr.mxu0 0.0
    %4070 = vmatpush1.msra.mxu0 0.0
    %4071 = vmatprep.subr.mxu0 0.0
    %4072 = vmatpush1.msra.mxu0 0.0
    %4073 = vmatprep.subr.mxu0 0.0
    %4074 = vmatpush1.msra.mxu0 0.0
    %4075 = vmatprep.subr.mxu0 0.0
    %4076 = vmatpush1.msra.mxu0 0.0
    %4077 = vmatprep.subr.mxu0 0.0
    %4078 = vmatpush1.msra.mxu0 0.0
    %4079 = vmatprep.subr.mxu0 0.0
    %4080 = vmatpush1.msra.mxu0 0.0
    %4081 = vmatprep.subr.mxu0 0.0
    %4082 = vmatpush1.msra.mxu0 0.0
    %4083 = vmatprep.subr.mxu0 0.0
    %4084 = vmatpush1.msra.mxu0 0.0
    %4085 = vmatprep.subr.mxu0 0.0
    %4086 = vmatpush1.msra.mxu0 0.0
    %4087 = vmatprep.mubr.f32.mxu0 0.0
    %4088 = vmatmul.mubr.f32.gmra.mrb[0].mxu0 %v4018
    %v4089 = vpop.f32.mrb[0].mxu0
    %v4090 = vadd.f32 %v4014, %v4089
    %v4091 = vpop.f32.mrb[0].mxu0
    %4092 = vmatprep.mubr.f32.mxu0 0.0
    %4093 = vmatmul.mubr.f32.gmra.mrb[0].mxu0 %v4021
    %v4094 = vpop.f32.mrb[0].mxu0
    %v4095 = vadd.f32 %v4014, %v4094
    %v4096 = vpop.f32.mrb[0].mxu0
    %4097 = vdwg.mxu0
    %v4098 = vadd.f32 %v3889, %v4090
    %v4099 = vadd.f32 %v3890, %v4095
    %v4100 = vld [vmem:[%s18] sm:$0x1]
    %v4101 = vld [vmem:[%s19] sm:$0x1]
    %v4102 = vsel %vm82, %v4098, 0.0
    %4103 = vadd.xlane.f32.xlu0 %v4102
    %v4104 = vpop.xlane.xlu0 %4103
    %v4105 = vsel %vm82, %v4099, 0.0
    %4106 = vadd.xlane.f32.xlu0 %v4105
    %v4107 = vpop.xlane.xlu0 %4106
    %v4108 = vmul.f32 %v4104, %v89
    %v4109 = vmul.f32 %v4107, %v89
    %v4110 = vsub.f32 %v4098, %v4108
    %v4111 = vsub.f32 %v4099, %v4109
    %v4112 = vmul.f32 %v4110, %v4110
    %v4113 = vmul.f32 %v4111, %v4111
    %v4114 = vsel %vm82, %v4112, 0.0
    %4115 = vadd.xlane.f32.xlu0 %v4114
    %v4116 = vpop.xlane.xlu0 %4115
    %v4117 = vsel %vm82, %v4113, 0.0
    %4118 = vadd.xlane.f32.xlu0 %v4117
    %v4119 = vpop.xlane.xlu0 %4118
    %v4120 = vmul.f32 %v4116, %v89
    %v4121 = vmul.f32 %v4119, %v89
    %v4122 = vadd.f32 %v4120, 1e-12
    %v4123 = vadd.f32 %v4121, 1e-12
    %v4124 = vrsqrt.pop %v4122
    %v4125 = vrsqrt.pop %v4123
    %v4126 = vmul.f32 %v4110, %v4124
    %v4127 = vmul.f32 %v4111, %v4125
    %v4129 = vlaneseq
    %v4130 = vshrl.u32 %v4129, 7
    %v4131 = vsub.s32 0, %v4130
    %v4132 = vrot.slane %v4100, %v4131
    %v4134 = vmul.f32 %v4126, %v4132
    %v4135 = vmul.f32 %v4127, %v4132
    %v4137 = vlaneseq
    %v4138 = vshrl.u32 %v4137, 7
    %v4139 = vsub.s32 0, %v4138
    %v4140 = vrot.slane %v4101, %v4139
    %v4142 = vadd.f32 %v4134, %v4140
    %v4143 = vadd.f32 %v4135, %v4140
    %s4144 = scalar_lea.vmem %s4, 128
    %v4145 = vld [vmem:[%s4144] sm:$0xff]
    %v4146 = vld [vmem:[%s4144 + $0x8] sm:$0xff]
    %v4147 = vld [vmem:[%s4144 + $0x10] sm:$0xff]
    %v4148 = vld [vmem:[%s4144 + $0x18] sm:$0xff]
    %v4149 = vld [vmem:[%s4144 + $0x20] sm:$0xff]
    %v4150 = vld [vmem:[%s4144 + $0x28] sm:$0xff]
    %v4151 = vld [vmem:[%s4144 + $0x30] sm:$0xff]
    %v4152 = vld [vmem:[%s4144 + $0x38] sm:$0xff]
    %v4153 = vld [vmem:[%s4144 + $0x40] sm:$0xff]
    %v4154 = vld [vmem:[%s4144 + $0x48] sm:$0xff]
    %v4155 = vld [vmem:[%s4144 + $0x50] sm:$0xff]
    %v4156 = vld [vmem:[%s4144 + $0x58] sm:$0xff]
    %v4157 = vld [vmem:[%s4144 + $0x60] sm:$0xff]
    %v4158 = vld [vmem:[%s4144 + $0x68] sm:$0xff]
    %v4159 = vld [vmem:[%s4144 + $0x70] sm:$0xff]
    %v4160 = vld [vmem:[%s4144 + $0x78] sm:$0xff]
    %s4161 = scalar_lea.vmem %s5, 128
    %v4162 = vld [vmem:[%s4161] sm:$0xff]
    %v4163 = vld [vmem:[%s4161 + $0x8] sm:$0xff]
    %v4164 = vld [vmem:[%s4161 + $0x10] sm:$0xff]
    %v4165 = vld [vmem:[%s4161 + $0x18] sm:$0xff]
    %v4166 = vld [vmem:[%s4161 + $0x20] sm:$0xff]
    %v4167 = vld [vmem:[%s4161 + $0x28] sm:$0xff]
    %v4168 = vld [vmem:[%s4161 + $0x30] sm:$0xff]
    %v4169 = vld [vmem:[%s4161 + $0x38] sm:$0xff]
    %v4170 = vld [vmem:[%s4161 + $0x40] sm:$0xff]
    %v4171 = vld [vmem:[%s4161 + $0x48] sm:$0xff]
    %v4172 = vld [vmem:[%s4161 + $0x50] sm:$0xff]
    %v4173 = vld [vmem:[%s4161 + $0x58] sm:$0xff]
    %v4174 = vld [vmem:[%s4161 + $0x60] sm:$0xff]
    %v4175 = vld [vmem:[%s4161 + $0x68] sm:$0xff]
    %v4176 = vld [vmem:[%s4161 + $0x70] sm:$0xff]
    %v4177 = vld [vmem:[%s4161 + $0x78] sm:$0xff]
    %s4178 = scalar_lea.vmem %s6, 128
    %v4179 = vld [vmem:[%s4178] sm:$0xff]
    %v4180 = vld [vmem:[%s4178 + $0x8] sm:$0xff]
    %v4181 = vld [vmem:[%s4178 + $0x10] sm:$0xff]
    %v4182 = vld [vmem:[%s4178 + $0x18] sm:$0xff]
    %v4183 = vld [vmem:[%s4178 + $0x20] sm:$0xff]
    %v4184 = vld [vmem:[%s4178 + $0x28] sm:$0xff]
    %v4185 = vld [vmem:[%s4178 + $0x30] sm:$0xff]
    %v4186 = vld [vmem:[%s4178 + $0x38] sm:$0xff]
    %v4187 = vld [vmem:[%s4178 + $0x40] sm:$0xff]
    %v4188 = vld [vmem:[%s4178 + $0x48] sm:$0xff]
    %v4189 = vld [vmem:[%s4178 + $0x50] sm:$0xff]
    %v4190 = vld [vmem:[%s4178 + $0x58] sm:$0xff]
    %v4191 = vld [vmem:[%s4178 + $0x60] sm:$0xff]
    %v4192 = vld [vmem:[%s4178 + $0x68] sm:$0xff]
    %v4193 = vld [vmem:[%s4178 + $0x70] sm:$0xff]
    %v4194 = vld [vmem:[%s4178 + $0x78] sm:$0xff]
    %s4195 = scalar_lea.vmem %s7, 4
    %v4196 = vld [vmem:[%s4195] sm:$0x1]
    %v4197 = vld [vmem:[%s4195 + $0x1] sm:$0x1]
    %v4198 = vld [vmem:[%s4195 + $0x2] sm:$0x1]
    %v4199 = vld [vmem:[%s4195 + $0x3] sm:$0x1]
    %s4200 = scalar_lea.vmem %s8, 4
    %v4201 = vld [vmem:[%s4200] sm:$0x1]
    %v4202 = vld [vmem:[%s4200 + $0x1] sm:$0x1]
    %v4203 = vld [vmem:[%s4200 + $0x2] sm:$0x1]
    %v4204 = vld [vmem:[%s4200 + $0x3] sm:$0x1]
    %s4205 = scalar_lea.vmem %s9, 4
    %v4206 = vld [vmem:[%s4205] sm:$0x1]
    %v4207 = vld [vmem:[%s4205 + $0x1] sm:$0x1]
    %v4208 = vld [vmem:[%s4205 + $0x2] sm:$0x1]
    %v4209 = vld [vmem:[%s4205 + $0x3] sm:$0x1]
    %s4210 = scalar_lea.vmem %s10, 32
    %v4211 = vld [vmem:[%s4210] sm:$0xff]
    %v4212 = vld [vmem:[%s4210 + $0x8] sm:$0xff]
    %v4213 = vld [vmem:[%s4210 + $0x10] sm:$0xff]
    %v4214 = vld [vmem:[%s4210 + $0x18] sm:$0xff]
    %v4219 = vlaneseq
    %v4220 = vshrl.u32 %v4219, 7
    %v4221 = vsub.s32 0, %v4220
    %v4222 = vrot.slane %v4196, %v4221
    %v4223 = vlaneseq
    %v4224 = vshrl.u32 %v4223, 7
    %v4225 = vsub.s32 0, %v4224
    %v4226 = vrot.slane %v4197, %v4225
    %v4227 = vlaneseq
    %v4228 = vshrl.u32 %v4227, 7
    %v4229 = vsub.s32 0, %v4228
    %v4230 = vrot.slane %v4198, %v4229
    %v4231 = vlaneseq
    %v4232 = vshrl.u32 %v4231, 7
    %v4233 = vsub.s32 0, %v4232
    %v4234 = vrot.slane %v4199, %v4233
    %v4240 = vsel %vm82, %v4142, 0
    %4242 = vmatprep.subr.mxu0 0.0
    %4243 = vmatpush1.msra.mxu0 %v4145
    %4244 = vmatprep.subr.mxu0 0.0
    %4245 = vmatpush1.msra.mxu0 %v4146
    %4246 = vmatprep.subr.mxu0 0.0
    %4247 = vmatpush1.msra.mxu0 %v4147
    %4248 = vmatprep.subr.mxu0 0.0
    %4249 = vmatpush1.msra.mxu0 %v4148
    %4250 = vmatprep.subr.mxu0 0.0
    %4251 = vmatpush1.msra.mxu0 0.0
    %4252 = vmatprep.subr.mxu0 0.0
    %4253 = vmatpush1.msra.mxu0 0.0
    %4254 = vmatprep.subr.mxu0 0.0
    %4255 = vmatpush1.msra.mxu0 0.0
    %4256 = vmatprep.subr.mxu0 0.0
    %4257 = vmatpush1.msra.mxu0 0.0
    %4258 = vmatprep.subr.mxu0 0.0
    %4259 = vmatpush1.msra.mxu0 0.0
    %4260 = vmatprep.subr.mxu0 0.0
    %4261 = vmatpush1.msra.mxu0 0.0
    %4262 = vmatprep.subr.mxu0 0.0
    %4263 = vmatpush1.msra.mxu0 0.0
    %4264 = vmatprep.subr.mxu0 0.0
    %4265 = vmatpush1.msra.mxu0 0.0
    %4266 = vmatprep.subr.mxu0 0.0
    %4267 = vmatpush1.msra.mxu0 0.0
    %4268 = vmatprep.subr.mxu0 0.0
    %4269 = vmatpush1.msra.mxu0 0.0
    %4270 = vmatprep.subr.mxu0 0.0
    %4271 = vmatpush1.msra.mxu0 0.0
    %4272 = vmatprep.subr.mxu0 0.0
    %4273 = vmatpush1.msra.mxu0 0.0
    %4274 = vmatprep.subr.mxu0 0.0
    %4275 = vmatpush1.msra.mxu0 0.0
    %4276 = vmatprep.subr.mxu0 0.0
    %4277 = vmatpush1.msra.mxu0 0.0
    %4278 = vmatprep.subr.mxu0 0.0
    %4279 = vmatpush1.msra.mxu0 0.0
    %4280 = vmatprep.subr.mxu0 0.0
    %4281 = vmatpush1.msra.mxu0 0.0
    %4282 = vmatprep.subr.mxu0 0.0
    %4283 = vmatpush1.msra.mxu0 0.0
    %4284 = vmatprep.subr.mxu0 0.0
    %4285 = vmatpush1.msra.mxu0 0.0
    %4286 = vmatprep.subr.mxu0 0.0
    %4287 = vmatpush1.msra.mxu0 0.0
    %4288 = vmatprep.subr.mxu0 0.0
    %4289 = vmatpush1.msra.mxu0 0.0
    %4290 = vmatprep.subr.mxu0 0.0
    %4291 = vmatpush1.msra.mxu0 0.0
    %4292 = vmatprep.subr.mxu0 0.0
    %4293 = vmatpush1.msra.mxu0 0.0
    %4294 = vmatprep.subr.mxu0 0.0
    %4295 = vmatpush1.msra.mxu0 0.0
    %4296 = vmatprep.subr.mxu0 0.0
    %4297 = vmatpush1.msra.mxu0 0.0
    %4298 = vmatprep.subr.mxu0 0.0
    %4299 = vmatpush1.msra.mxu0 0.0
    %4300 = vmatprep.subr.mxu0 0.0
    %4301 = vmatpush1.msra.mxu0 0.0
    %4302 = vmatprep.subr.mxu0 0.0
    %4303 = vmatpush1.msra.mxu0 0.0
    %4304 = vmatprep.subr.mxu0 0.0
    %4305 = vmatpush1.msra.mxu0 0.0
    %4306 = vmatprep.mubr.f32.mxu0 0.0
    %4307 = vmatmul.mubr.f32.gmra.mrb[0].mxu0 %v4240
    %v4308 = vpop.f32.mrb[0].mxu0
    %v4309 = vadd.f32 %v4222, %v4308
    %v4310 = vpop.f32.mrb[0].mxu0
    %4311 = vdwg.mxu0
    %4312 = vmatprep.subr.mxu0 0.0
    %4313 = vmatpush1.msra.mxu0 %v4149
    %4314 = vmatprep.subr.mxu0 0.0
    %4315 = vmatpush1.msra.mxu0 %v4150
    %4316 = vmatprep.subr.mxu0 0.0
    %4317 = vmatpush1.msra.mxu0 %v4151
    %4318 = vmatprep.subr.mxu0 0.0
    %4319 = vmatpush1.msra.mxu0 %v4152
    %4320 = vmatprep.subr.mxu0 0.0
    %4321 = vmatpush1.msra.mxu0 0.0
    %4322 = vmatprep.subr.mxu0 0.0
    %4323 = vmatpush1.msra.mxu0 0.0
    %4324 = vmatprep.subr.mxu0 0.0
    %4325 = vmatpush1.msra.mxu0 0.0
    %4326 = vmatprep.subr.mxu0 0.0
    %4327 = vmatpush1.msra.mxu0 0.0
    %4328 = vmatprep.subr.mxu0 0.0
    %4329 = vmatpush1.msra.mxu0 0.0
    %4330 = vmatprep.subr.mxu0 0.0
    %4331 = vmatpush1.msra.mxu0 0.0
    %4332 = vmatprep.subr.mxu0 0.0
    %4333 = vmatpush1.msra.mxu0 0.0
    %4334 = vmatprep.subr.mxu0 0.0
    %4335 = vmatpush1.msra.mxu0 0.0
    %4336 = vmatprep.subr.mxu0 0.0
    %4337 = vmatpush1.msra.mxu0 0.0
    %4338 = vmatprep.subr.mxu0 0.0
    %4339 = vmatpush1.msra.mxu0 0.0
    %4340 = vmatprep.subr.mxu0 0.0
    %4341 = vmatpush1.msra.mxu0 0.0
    %4342 = vmatprep.subr.mxu0 0.0
    %4343 = vmatpush1.msra.mxu0 0.0
    %4344 = vmatprep.subr.mxu0 0.0
    %4345 = vmatpush1.msra.mxu0 0.0
    %4346 = vmatprep.subr.mxu0 0.0
    %4347 = vmatpush1.msra.mxu0 0.0
    %4348 = vmatprep.subr.mxu0 0.0
    %4349 = vmatpush1.msra.mxu0 0.0
    %4350 = vmatprep.subr.mxu0 0.0
    %4351 = vmatpush1.msra.mxu0 0.0
    %4352 = vmatprep.subr.mxu0 0.0
    %4353 = vmatpush1.msra.mxu0 0.0
    %4354 = vmatprep.subr.mxu0 0.0
    %4355 = vmatpush1.msra.mxu0 0.0
    %4356 = vmatprep.subr.mxu0 0.0
    %4357 = vmatpush1.msra.mxu0 0.0
    %4358 = vmatprep.subr.mxu0 0.0
    %4359 = vmatpush1.msra.mxu0 0.0
    %4360 = vmatprep.subr.mxu0 0.0
    %4361 = vmatpush1.msra.mxu0 0.0
    %4362 = vmatprep.subr.mxu0 0.0
    %4363 = vmatpush1.msra.mxu0 0.0
    %4364 = vmatprep.subr.mxu0 0.0
    %4365 = vmatpush1.msra.mxu0 0.0
    %4366 = vmatprep.subr.mxu0 0.0
    %4367 = vmatpush1.msra.mxu0 0.0
    %4368 = vmatprep.subr.mxu0 0.0
    %4369 = vmatpush1.msra.mxu0 0.0
    %4370 = vmatprep.subr.mxu0 0.0
    %4371 = vmatpush1.msra.mxu0 0.0
    %4372 = vmatprep.subr.mxu0 0.0
    %4373 = vmatpush1.msra.mxu0 0.0
    %4374 = vmatprep.subr.mxu0 0.0
    %4375 = vmatpush1.msra.mxu0 0.0
    %4376 = vmatprep.mubr.f32.mxu0 0.0
    %4377 = vmatmul.mubr.f32.gmra.mrb[0].mxu0 %v4240
    %v4378 = vpop.f32.mrb[0].mxu0
    %v4379 = vadd.f32 %v4226, %v4378
    %v4380 = vpop.f32.mrb[0].mxu0
    %4381 = vdwg.mxu0
    %4382 = vmatprep.subr.mxu0 0.0
    %4383 = vmatpush1.msra.mxu0 %v4153
    %4384 = vmatprep.subr.mxu0 0.0
    %4385 = vmatpush1.msra.mxu0 %v4154
    %4386 = vmatprep.subr.mxu0 0.0
    %4387 = vmatpush1.msra.mxu0 %v4155
    %4388 = vmatprep.subr.mxu0 0.0
    %4389 = vmatpush1.msra.mxu0 %v4156
    %4390 = vmatprep.subr.mxu0 0.0
    %4391 = vmatpush1.msra.mxu0 0.0
    %4392 = vmatprep.subr.mxu0 0.0
    %4393 = vmatpush1.msra.mxu0 0.0
    %4394 = vmatprep.subr.mxu0 0.0
    %4395 = vmatpush1.msra.mxu0 0.0
    %4396 = vmatprep.subr.mxu0 0.0
    %4397 = vmatpush1.msra.mxu0 0.0
    %4398 = vmatprep.subr.mxu0 0.0
    %4399 = vmatpush1.msra.mxu0 0.0
    %4400 = vmatprep.subr.mxu0 0.0
    %4401 = vmatpush1.msra.mxu0 0.0
    %4402 = vmatprep.subr.mxu0 0.0
    %4403 = vmatpush1.msra.mxu0 0.0
    %4404 = vmatprep.subr.mxu0 0.0
    %4405 = vmatpush1.msra.mxu0 0.0
    %4406 = vmatprep.subr.mxu0 0.0
    %4407 = vmatpush1.msra.mxu0 0.0
    %4408 = vmatprep.subr.mxu0 0.0
    %4409 = vmatpush1.msra.mxu0 0.0
    %4410 = vmatprep.subr.mxu0 0.0
    %4411 = vmatpush1.msra.mxu0 0.0
    %4412 = vmatprep.subr.mxu0 0.0
    %4413 = vmatpush1.msra.mxu0 0.0
    %4414 = vmatprep.subr.mxu0 0.0
    %4415 = vmatpush1.msra.mxu0 0.0
    %4416 = vmatprep.subr.mxu0 0.0
    %4417 = vmatpush1.msra.mxu0 0.0
    %4418 = vmatprep.subr.mxu0 0.0
    %4419 = vmatpush1.msra.mxu0 0.0
    %4420 = vmatprep.subr.mxu0 0.0
    %4421 = vmatpush1.msra.mxu0 0.0
    %4422 = vmatprep.subr.mxu0 0.0
    %4423 = vmatpush1.msra.mxu0 0.0
    %4424 = vmatprep.subr.mxu0 0.0
    %4425 = vmatpush1.msra.mxu0 0.0
    %4426 = vmatprep.subr.mxu0 0.0
    %4427 = vmatpush1.msra.mxu0 0.0
    %4428 = vmatprep.subr.mxu0 0.0
    %4429 = vmatpush1.msra.mxu0 0.0
    %4430 = vmatprep.subr.mxu0 0.0
    %4431 = vmatpush1.msra.mxu0 0.0
    %4432 = vmatprep.subr.mxu0 0.0
    %4433 = vmatpush1.msra.mxu0 0.0
    %4434 = vmatprep.subr.mxu0 0.0
    %4435 = vmatpush1.msra.mxu0 0.0
    %4436 = vmatprep.subr.mxu0 0.0
    %4437 = vmatpush1.msra.mxu0 0.0
    %4438 = vmatprep.subr.mxu0 0.0
    %4439 = vmatpush1.msra.mxu0 0.0
    %4440 = vmatprep.subr.mxu0 0.0
    %4441 = vmatpush1.msra.mxu0 0.0
    %4442 = vmatprep.subr.mxu0 0.0
    %4443 = vmatpush1.msra.mxu0 0.0
    %4444 = vmatprep.subr.mxu0 0.0
    %4445 = vmatpush1.msra.mxu0 0.0
    %4446 = vmatprep.mubr.f32.mxu0 0.0
    %4447 = vmatmul.mubr.f32.gmra.mrb[0].mxu0 %v4240
    %v4448 = vpop.f32.mrb[0].mxu0
    %v4449 = vadd.f32 %v4230, %v4448
    %v4450 = vpop.f32.mrb[0].mxu0
    %4451 = vdwg.mxu0
    %4452 = vmatprep.subr.mxu0 0.0
    %4453 = vmatpush1.msra.mxu0 %v4157
    %4454 = vmatprep.subr.mxu0 0.0
    %4455 = vmatpush1.msra.mxu0 %v4158
    %4456 = vmatprep.subr.mxu0 0.0
    %4457 = vmatpush1.msra.mxu0 %v4159
    %4458 = vmatprep.subr.mxu0 0.0
    %4459 = vmatpush1.msra.mxu0 %v4160
    %4460 = vmatprep.subr.mxu0 0.0
    %4461 = vmatpush1.msra.mxu0 0.0
    %4462 = vmatprep.subr.mxu0 0.0
    %4463 = vmatpush1.msra.mxu0 0.0
    %4464 = vmatprep.subr.mxu0 0.0
    %4465 = vmatpush1.msra.mxu0 0.0
    %4466 = vmatprep.subr.mxu0 0.0
    %4467 = vmatpush1.msra.mxu0 0.0
    %4468 = vmatprep.subr.mxu0 0.0
    %4469 = vmatpush1.msra.mxu0 0.0
    %4470 = vmatprep.subr.mxu0 0.0
    %4471 = vmatpush1.msra.mxu0 0.0
    %4472 = vmatprep.subr.mxu0 0.0
    %4473 = vmatpush1.msra.mxu0 0.0
    %4474 = vmatprep.subr.mxu0 0.0
    %4475 = vmatpush1.msra.mxu0 0.0
    %4476 = vmatprep.subr.mxu0 0.0
    %4477 = vmatpush1.msra.mxu0 0.0
    %4478 = vmatprep.subr.mxu0 0.0
    %4479 = vmatpush1.msra.mxu0 0.0
    %4480 = vmatprep.subr.mxu0 0.0
    %4481 = vmatpush1.msra.mxu0 0.0
    %4482 = vmatprep.subr.mxu0 0.0
    %4483 = vmatpush1.msra.mxu0 0.0
    %4484 = vmatprep.subr.mxu0 0.0
    %4485 = vmatpush1.msra.mxu0 0.0
    %4486 = vmatprep.subr.mxu0 0.0
    %4487 = vmatpush1.msra.mxu0 0.0
    %4488 = vmatprep.subr.mxu0 0.0
    %4489 = vmatpush1.msra.mxu0 0.0
    %4490 = vmatprep.subr.mxu0 0.0
    %4491 = vmatpush1.msra.mxu0 0.0
    %4492 = vmatprep.subr.mxu0 0.0
    %4493 = vmatpush1.msra.mxu0 0.0
    %4494 = vmatprep.subr.mxu0 0.0
    %4495 = vmatpush1.msra.mxu0 0.0
    %4496 = vmatprep.subr.mxu0 0.0
    %4497 = vmatpush1.msra.mxu0 0.0
    %4498 = vmatprep.subr.mxu0 0.0
    %4499 = vmatpush1.msra.mxu0 0.0
    %4500 = vmatprep.subr.mxu0 0.0
    %4501 = vmatpush1.msra.mxu0 0.0
    %4502 = vmatprep.subr.mxu0 0.0
    %4503 = vmatpush1.msra.mxu0 0.0
    %4504 = vmatprep.subr.mxu0 0.0
    %4505 = vmatpush1.msra.mxu0 0.0
    %4506 = vmatprep.subr.mxu0 0.0
    %4507 = vmatpush1.msra.mxu0 0.0
    %4508 = vmatprep.subr.mxu0 0.0
    %4509 = vmatpush1.msra.mxu0 0.0
    %4510 = vmatprep.subr.mxu0 0.0
    %4511 = vmatpush1.msra.mxu0 0.0
    %4512 = vmatprep.subr.mxu0 0.0
    %4513 = vmatpush1.msra.mxu0 0.0
    %4514 = vmatprep.subr.mxu0 0.0
    %4515 = vmatpush1.msra.mxu0 0.0
    %4516 = vmatprep.mubr.f32.mxu0 0.0
    %4517 = vmatmul.mubr.f32.gmra.mrb[0].mxu0 %v4240
    %v4518 = vpop.f32.mrb[0].mxu0
    %v4519 = vadd.f32 %v4234, %v4518
    %v4520 = vpop.f32.mrb[0].mxu0
    %4521 = vdwg.mxu0
    %v4526 = vlaneseq
    %v4527 = vshrl.u32 %v4526, 7
    %v4528 = vsub.s32 0, %v4527
    %v4529 = vrot.slane %v4201, %v4528
    %v4530 = vlaneseq
    %v4531 = vshrl.u32 %v4530, 7
    %v4532 = vsub.s32 0, %v4531
    %v4533 = vrot.slane %v4202, %v4532
    %v4534 = vlaneseq
    %v4535 = vshrl.u32 %v4534, 7
    %v4536 = vsub.s32 0, %v4535
    %v4537 = vrot.slane %v4203, %v4536
    %v4538 = vlaneseq
    %v4539 = vshrl.u32 %v4538, 7
    %v4540 = vsub.s32 0, %v4539
    %v4541 = vrot.slane %v4204, %v4540
    %4546 = vmatprep.subr.mxu0 0.0
    %4547 = vmatpush1.msra.mxu0 %v4162
    %4548 = vmatprep.subr.mxu0 0.0
    %4549 = vmatpush1.msra.mxu0 %v4163
    %4550 = vmatprep.subr.mxu0 0.0
    %4551 = vmatpush1.msra.mxu0 %v4164
    %4552 = vmatprep.subr.mxu0 0.0
    %4553 = vmatpush1.msra.mxu0 %v4165
    %4554 = vmatprep.subr.mxu0 0.0
    %4555 = vmatpush1.msra.mxu0 0.0
    %4556 = vmatprep.subr.mxu0 0.0
    %4557 = vmatpush1.msra.mxu0 0.0
    %4558 = vmatprep.subr.mxu0 0.0
    %4559 = vmatpush1.msra.mxu0 0.0
    %4560 = vmatprep.subr.mxu0 0.0
    %4561 = vmatpush1.msra.mxu0 0.0
    %4562 = vmatprep.subr.mxu0 0.0
    %4563 = vmatpush1.msra.mxu0 0.0
    %4564 = vmatprep.subr.mxu0 0.0
    %4565 = vmatpush1.msra.mxu0 0.0
    %4566 = vmatprep.subr.mxu0 0.0
    %4567 = vmatpush1.msra.mxu0 0.0
    %4568 = vmatprep.subr.mxu0 0.0
    %4569 = vmatpush1.msra.mxu0 0.0
    %4570 = vmatprep.subr.mxu0 0.0
    %4571 = vmatpush1.msra.mxu0 0.0
    %4572 = vmatprep.subr.mxu0 0.0
    %4573 = vmatpush1.msra.mxu0 0.0
    %4574 = vmatprep.subr.mxu0 0.0
    %4575 = vmatpush1.msra.mxu0 0.0
    %4576 = vmatprep.subr.mxu0 0.0
    %4577 = vmatpush1.msra.mxu0 0.0
    %4578 = vmatprep.subr.mxu0 0.0
    %4579 = vmatpush1.msra.mxu0 0.0
    %4580 = vmatprep.subr.mxu0 0.0
    %4581 = vmatpush1.msra.mxu0 0.0
    %4582 = vmatprep.subr.mxu0 0.0
    %4583 = vmatpush1.msra.mxu0 0.0
    %4584 = vmatprep.subr.mxu0 0.0
    %4585 = vmatpush1.msra.mxu0 0.0
    %4586 = vmatprep.subr.mxu0 0.0
    %4587 = vmatpush1.msra.mxu0 0.0
    %4588 = vmatprep.subr.mxu0 0.0
    %4589 = vmatpush1.msra.mxu0 0.0
    %4590 = vmatprep.subr.mxu0 0.0
    %4591 = vmatpush1.msra.mxu0 0.0
    %4592 = vmatprep.subr.mxu0 0.0
    %4593 = vmatpush1.msra.mxu0 0.0
    %4594 = vmatprep.subr.mxu0 0.0
    %4595 = vmatpush1.msra.mxu0 0.0
    %4596 = vmatprep.subr.mxu0 0.0
    %4597 = vmatpush1.msra.mxu0 0.0
    %4598 = vmatprep.subr.mxu0 0.0
    %4599 = vmatpush1.msra.mxu0 0.0
    %4600 = vmatprep.subr.mxu0 0.0
    %4601 = vmatpush1.msra.mxu0 0.0
    %4602 = vmatprep.subr.mxu0 0.0
    %4603 = vmatpush1.msra.mxu0 0.0
    %4604 = vmatprep.subr.mxu0 0.0
    %4605 = vmatpush1.msra.mxu0 0.0
    %4606 = vmatprep.subr.mxu0 0.0
    %4607 = vmatpush1.msra.mxu0 0.0
    %4608 = vmatprep.subr.mxu0 0.0
    %4609 = vmatpush1.msra.mxu0 0.0
    %4610 = vmatprep.mubr.f32.mxu0 0.0
    %4611 = vmatmul.mubr.f32.gmra.mrb[0].mxu0 %v4240
    %v4612 = vpop.f32.mrb[0].mxu0
    %v4613 = vadd.f32 %v4529, %v4612
    %v4614 = vpop.f32.mrb[0].mxu0
    %4615 = vdwg.mxu0
    %4616 = vmatprep.subr.mxu0 0.0
    %4617 = vmatpush1.msra.mxu0 %v4166
    %4618 = vmatprep.subr.mxu0 0.0
    %4619 = vmatpush1.msra.mxu0 %v4167
    %4620 = vmatprep.subr.mxu0 0.0
    %4621 = vmatpush1.msra.mxu0 %v4168
    %4622 = vmatprep.subr.mxu0 0.0
    %4623 = vmatpush1.msra.mxu0 %v4169
    %4624 = vmatprep.subr.mxu0 0.0
    %4625 = vmatpush1.msra.mxu0 0.0
    %4626 = vmatprep.subr.mxu0 0.0
    %4627 = vmatpush1.msra.mxu0 0.0
    %4628 = vmatprep.subr.mxu0 0.0
    %4629 = vmatpush1.msra.mxu0 0.0
    %4630 = vmatprep.subr.mxu0 0.0
    %4631 = vmatpush1.msra.mxu0 0.0
    %4632 = vmatprep.subr.mxu0 0.0
    %4633 = vmatpush1.msra.mxu0 0.0
    %4634 = vmatprep.subr.mxu0 0.0
    %4635 = vmatpush1.msra.mxu0 0.0
    %4636 = vmatprep.subr.mxu0 0.0
    %4637 = vmatpush1.msra.mxu0 0.0
    %4638 = vmatprep.subr.mxu0 0.0
    %4639 = vmatpush1.msra.mxu0 0.0
    %4640 = vmatprep.subr.mxu0 0.0
    %4641 = vmatpush1.msra.mxu0 0.0
    %4642 = vmatprep.subr.mxu0 0.0
    %4643 = vmatpush1.msra.mxu0 0.0
    %4644 = vmatprep.subr.mxu0 0.0
    %4645 = vmatpush1.msra.mxu0 0.0
    %4646 = vmatprep.subr.mxu0 0.0
    %4647 = vmatpush1.msra.mxu0 0.0
    %4648 = vmatprep.subr.mxu0 0.0
    %4649 = vmatpush1.msra.mxu0 0.0
    %4650 = vmatprep.subr.mxu0 0.0
    %4651 = vmatpush1.msra.mxu0 0.0
    %4652 = vmatprep.subr.mxu0 0.0
    %4653 = vmatpush1.msra.mxu0 0.0
    %4654 = vmatprep.subr.mxu0 0.0
    %4655 = vmatpush1.msra.mxu0 0.0
    %4656 = vmatprep.subr.mxu0 0.0
    %4657 = vmatpush1.msra.mxu0 0.0
    %4658 = vmatprep.subr.mxu0 0.0
    %4659 = vmatpush1.msra.mxu0 0.0
    %4660 = vmatprep.subr.mxu0 0.0
    %4661 = vmatpush1.msra.mxu0 0.0
    %4662 = vmatprep.subr.mxu0 0.0
    %4663 = vmatpush1.msra.mxu0 0.0
    %4664 = vmatprep.subr.mxu0 0.0
    %4665 = vmatpush1.msra.mxu0 0.0
    %4666 = vmatprep.subr.mxu0 0.0
    %4667 = vmatpush1.msra.mxu0 0.0
    %4668 = vmatprep.subr.mxu0 0.0
    %4669 = vmatpush1.msra.mxu0 0.0
    %4670 = vmatprep.subr.mxu0 0.0
    %4671 = vmatpush1.msra.mxu0 0.0
    %4672 = vmatprep.subr.mxu0 0.0
    %4673 = vmatpush1.msra.mxu0 0.0
    %4674 = vmatprep.subr.mxu0 0.0
    %4675 = vmatpush1.msra.mxu0 0.0
    %4676 = vmatprep.subr.mxu0 0.0
    %4677 = vmatpush1.msra.mxu0 0.0
    %4678 = vmatprep.subr.mxu0 0.0
    %4679 = vmatpush1.msra.mxu0 0.0
    %4680 = vmatprep.mubr.f32.mxu0 0.0
    %4681 = vmatmul.mubr.f32.gmra.mrb[0].mxu0 %v4240
    %v4682 = vpop.f32.mrb[0].mxu0
    %v4683 = vadd.f32 %v4533, %v4682
    %v4684 = vpop.f32.mrb[0].mxu0
    %4685 = vdwg.mxu0
    %4686 = vmatprep.subr.mxu0 0.0
    %4687 = vmatpush1.msra.mxu0 %v4170
    %4688 = vmatprep.subr.mxu0 0.0
    %4689 = vmatpush1.msra.mxu0 %v4171
    %4690 = vmatprep.subr.mxu0 0.0
    %4691 = vmatpush1.msra.mxu0 %v4172
    %4692 = vmatprep.subr.mxu0 0.0
    %4693 = vmatpush1.msra.mxu0 %v4173
    %4694 = vmatprep.subr.mxu0 0.0
    %4695 = vmatpush1.msra.mxu0 0.0
    %4696 = vmatprep.subr.mxu0 0.0
    %4697 = vmatpush1.msra.mxu0 0.0
    %4698 = vmatprep.subr.mxu0 0.0
    %4699 = vmatpush1.msra.mxu0 0.0
    %4700 = vmatprep.subr.mxu0 0.0
    %4701 = vmatpush1.msra.mxu0 0.0
    %4702 = vmatprep.subr.mxu0 0.0
    %4703 = vmatpush1.msra.mxu0 0.0
    %4704 = vmatprep.subr.mxu0 0.0
    %4705 = vmatpush1.msra.mxu0 0.0
    %4706 = vmatprep.subr.mxu0 0.0
    %4707 = vmatpush1.msra.mxu0 0.0
    %4708 = vmatprep.subr.mxu0 0.0
    %4709 = vmatpush1.msra.mxu0 0.0
    %4710 = vmatprep.subr.mxu0 0.0
    %4711 = vmatpush1.msra.mxu0 0.0
    %4712 = vmatprep.subr.mxu0 0.0
    %4713 = vmatpush1.msra.mxu0 0.0
    %4714 = vmatprep.subr.mxu0 0.0
    %4715 = vmatpush1.msra.mxu0 0.0
    %4716 = vmatprep.subr.mxu0 0.0
    %4717 = vmatpush1.msra.mxu0 0.0
    %4718 = vmatprep.subr.mxu0 0.0
    %4719 = vmatpush1.msra.mxu0 0.0
    %4720 = vmatprep.subr.mxu0 0.0
    %4721 = vmatpush1.msra.mxu0 0.0
    %4722 = vmatprep.subr.mxu0 0.0
    %4723 = vmatpush1.msra.mxu0 0.0
    %4724 = vmatprep.subr.mxu0 0.0
    %4725 = vmatpush1.msra.mxu0 0.0
    %4726 = vmatprep.subr.mxu0 0.0
    %4727 = vmatpush1.msra.mxu0 0.0
    %4728 = vmatprep.subr.mxu0 0.0
    %4729 = vmatpush1.msra.mxu0 0.0
    %4730 = vmatprep.subr.mxu0 0.0
    %4731 = vmatpush1.msra.mxu0 0.0
    %4732 = vmatprep.subr.mxu0 0.0
    %4733 = vmatpush1.msra.mxu0 0.0
    %4734 = vmatprep.subr.mxu0 0.0
    %4735 = vmatpush1.msra.mxu0 0.0
    %4736 = vmatprep.subr.mxu0 0.0
    %4737 = vmatpush1.msra.mxu0 0.0
    %4738 = vmatprep.subr.mxu0 0.0
    %4739 = vmatpush1.msra.mxu0 0.0
    %4740 = vmatprep.subr.mxu0 0.0
    %4741 = vmatpush1.msra.mxu0 0.0
    %4742 = vmatprep.subr.mxu0 0.0
    %4743 = vmatpush1.msra.mxu0 0.0
    %4744 = vmatprep.subr.mxu0 0.0
    %4745 = vmatpush1.msra.mxu0 0.0
    %4746 = vmatprep.subr.mxu0 0.0
    %4747 = vmatpush1.msra.mxu0 0.0
    %4748 = vmatprep.subr.mxu0 0.0
    %4749 = vmatpush1.msra.mxu0 0.0
    %4750 = vmatprep.mubr.f32.mxu0 0.0
    %4751 = vmatmul.mubr.f32.gmra.mrb[0].mxu0 %v4240
    %v4752 = vpop.f32.mrb[0].mxu0
    %v4753 = vadd.f32 %v4537, %v4752
    %v4754 = vpop.f32.mrb[0].mxu0
    %4755 = vdwg.mxu0
    %4756 = vmatprep.subr.mxu0 0.0
    %4757 = vmatpush1.msra.mxu0 %v4174
    %4758 = vmatprep.subr.mxu0 0.0
    %4759 = vmatpush1.msra.mxu0 %v4175
    %4760 = vmatprep.subr.mxu0 0.0
    %4761 = vmatpush1.msra.mxu0 %v4176
    %4762 = vmatprep.subr.mxu0 0.0
    %4763 = vmatpush1.msra.mxu0 %v4177
    %4764 = vmatprep.subr.mxu0 0.0
    %4765 = vmatpush1.msra.mxu0 0.0
    %4766 = vmatprep.subr.mxu0 0.0
    %4767 = vmatpush1.msra.mxu0 0.0
    %4768 = vmatprep.subr.mxu0 0.0
    %4769 = vmatpush1.msra.mxu0 0.0
    %4770 = vmatprep.subr.mxu0 0.0
    %4771 = vmatpush1.msra.mxu0 0.0
    %4772 = vmatprep.subr.mxu0 0.0
    %4773 = vmatpush1.msra.mxu0 0.0
    %4774 = vmatprep.subr.mxu0 0.0
    %4775 = vmatpush1.msra.mxu0 0.0
    %4776 = vmatprep.subr.mxu0 0.0
    %4777 = vmatpush1.msra.mxu0 0.0
    %4778 = vmatprep.subr.mxu0 0.0
    %4779 = vmatpush1.msra.mxu0 0.0
    %4780 = vmatprep.subr.mxu0 0.0
    %4781 = vmatpush1.msra.mxu0 0.0
    %4782 = vmatprep.subr.mxu0 0.0
    %4783 = vmatpush1.msra.mxu0 0.0
    %4784 = vmatprep.subr.mxu0 0.0
    %4785 = vmatpush1.msra.mxu0 0.0
    %4786 = vmatprep.subr.mxu0 0.0
    %4787 = vmatpush1.msra.mxu0 0.0
    %4788 = vmatprep.subr.mxu0 0.0
    %4789 = vmatpush1.msra.mxu0 0.0
    %4790 = vmatprep.subr.mxu0 0.0
    %4791 = vmatpush1.msra.mxu0 0.0
    %4792 = vmatprep.subr.mxu0 0.0
    %4793 = vmatpush1.msra.mxu0 0.0
    %4794 = vmatprep.subr.mxu0 0.0
    %4795 = vmatpush1.msra.mxu0 0.0
    %4796 = vmatprep.subr.mxu0 0.0
    %4797 = vmatpush1.msra.mxu0 0.0
    %4798 = vmatprep.subr.mxu0 0.0
    %4799 = vmatpush1.msra.mxu0 0.0
    %4800 = vmatprep.subr.mxu0 0.0
    %4801 = vmatpush1.msra.mxu0 0.0
    %4802 = vmatprep.subr.mxu0 0.0
    %4803 = vmatpush1.msra.mxu0 0.0
    %4804 = vmatprep.subr.mxu0 0.0
    %4805 = vmatpush1.msra.mxu0 0.0
    %4806 = vmatprep.subr.mxu0 0.0
    %4807 = vmatpush1.msra.mxu0 0.0
    %4808 = vmatprep.subr.mxu0 0.0
    %4809 = vmatpush1.msra.mxu0 0.0
    %4810 = vmatprep.subr.mxu0 0.0
    %4811 = vmatpush1.msra.mxu0 0.0
    %4812 = vmatprep.subr.mxu0 0.0
    %4813 = vmatpush1.msra.mxu0 0.0
    %4814 = vmatprep.subr.mxu0 0.0
    %4815 = vmatpush1.msra.mxu0 0.0
    %4816 = vmatprep.subr.mxu0 0.0
    %4817 = vmatpush1.msra.mxu0 0.0
    %4818 = vmatprep.subr.mxu0 0.0
    %4819 = vmatpush1.msra.mxu0 0.0
    %4820 = vmatprep.mubr.f32.mxu0 0.0
    %4821 = vmatmul.mubr.f32.gmra.mrb[0].mxu0 %v4240
    %v4822 = vpop.f32.mrb[0].mxu0
    %v4823 = vadd.f32 %v4541, %v4822
    %v4824 = vpop.f32.mrb[0].mxu0
    %4825 = vdwg.mxu0
    %v4830 = vlaneseq
    %v4831 = vshrl.u32 %v4830, 7
    %v4832 = vsub.s32 0, %v4831
    %v4833 = vrot.slane %v4206, %v4832
    %v4834 = vlaneseq
    %v4835 = vshrl.u32 %v4834, 7
    %v4836 = vsub.s32 0, %v4835
    %v4837 = vrot.slane %v4207, %v4836
    %v4838 = vlaneseq
    %v4839 = vshrl.u32 %v4838, 7
    %v4840 = vsub.s32 0, %v4839
    %v4841 = vrot.slane %v4208, %v4840
    %v4842 = vlaneseq
    %v4843 = vshrl.u32 %v4842, 7
    %v4844 = vsub.s32 0, %v4843
    %v4845 = vrot.slane %v4209, %v4844
    %4850 = vmatprep.subr.mxu0 0.0
    %4851 = vmatpush1.msra.mxu0 %v4179
    %4852 = vmatprep.subr.mxu0 0.0
    %4853 = vmatpush1.msra.mxu0 %v4180
    %4854 = vmatprep.subr.mxu0 0.0
    %4855 = vmatpush1.msra.mxu0 %v4181
    %4856 = vmatprep.subr.mxu0 0.0
    %4857 = vmatpush1.msra.mxu0 %v4182
    %4858 = vmatprep.subr.mxu0 0.0
    %4859 = vmatpush1.msra.mxu0 0.0
    %4860 = vmatprep.subr.mxu0 0.0
    %4861 = vmatpush1.msra.mxu0 0.0
    %4862 = vmatprep.subr.mxu0 0.0
    %4863 = vmatpush1.msra.mxu0 0.0
    %4864 = vmatprep.subr.mxu0 0.0
    %4865 = vmatpush1.msra.mxu0 0.0
    %4866 = vmatprep.subr.mxu0 0.0
    %4867 = vmatpush1.msra.mxu0 0.0
    %4868 = vmatprep.subr.mxu0 0.0
    %4869 = vmatpush1.msra.mxu0 0.0
    %4870 = vmatprep.subr.mxu0 0.0
    %4871 = vmatpush1.msra.mxu0 0.0
    %4872 = vmatprep.subr.mxu0 0.0
    %4873 = vmatpush1.msra.mxu0 0.0
    %4874 = vmatprep.subr.mxu0 0.0
    %4875 = vmatpush1.msra.mxu0 0.0
    %4876 = vmatprep.subr.mxu0 0.0
    %4877 = vmatpush1.msra.mxu0 0.0
    %4878 = vmatprep.subr.mxu0 0.0
    %4879 = vmatpush1.msra.mxu0 0.0
    %4880 = vmatprep.subr.mxu0 0.0
    %4881 = vmatpush1.msra.mxu0 0.0
    %4882 = vmatprep.subr.mxu0 0.0
    %4883 = vmatpush1.msra.mxu0 0.0
    %4884 = vmatprep.subr.mxu0 0.0
    %4885 = vmatpush1.msra.mxu0 0.0
    %4886 = vmatprep.subr.mxu0 0.0
    %4887 = vmatpush1.msra.mxu0 0.0
    %4888 = vmatprep.subr.mxu0 0.0
    %4889 = vmatpush1.msra.mxu0 0.0
    %4890 = vmatprep.subr.mxu0 0.0
    %4891 = vmatpush1.msra.mxu0 0.0
    %4892 = vmatprep.subr.mxu0 0.0
    %4893 = vmatpush1.msra.mxu0 0.0
    %4894 = vmatprep.subr.mxu0 0.0
    %4895 = vmatpush1.msra.mxu0 0.0
    %4896 = vmatprep.subr.mxu0 0.0
    %4897 = vmatpush1.msra.mxu0 0.0
    %4898 = vmatprep.subr.mxu0 0.0
    %4899 = vmatpush1.msra.mxu0 0.0
    %4900 = vmatprep.subr.mxu0 0.0
    %4901 = vmatpush1.msra.mxu0 0.0
    %4902 = vmatprep.subr.mxu0 0.0
    %4903 = vmatpush1.msra.mxu0 0.0
    %4904 = vmatprep.subr.mxu0 0.0
    %4905 = vmatpush1.msra.mxu0 0.0
    %4906 = vmatprep.subr.mxu0 0.0
    %4907 = vmatpush1.msra.mxu0 0.0
    %4908 = vmatprep.subr.mxu0 0.0
    %4909 = vmatpush1.msra.mxu0 0.0
    %4910 = vmatprep.subr.mxu0 0.0
    %4911 = vmatpush1.msra.mxu0 0.0
    %4912 = vmatprep.subr.mxu0 0.0
    %4913 = vmatpush1.msra.mxu0 0.0
    %4914 = vmatprep.mubr.f32.mxu0 0.0
    %4915 = vmatmul.mubr.f32.gmra.mrb[0].mxu0 %v4240
    %v4916 = vpop.f32.mrb[0].mxu0
    %v4917 = vadd.f32 %v4833, %v4916
    %v4918 = vpop.f32.mrb[0].mxu0
    %4919 = vdwg.mxu0
    %4920 = vmatprep.subr.mxu0 0.0
    %4921 = vmatpush1.msra.mxu0 %v4183
    %4922 = vmatprep.subr.mxu0 0.0
    %4923 = vmatpush1.msra.mxu0 %v4184
    %4924 = vmatprep.subr.mxu0 0.0
    %4925 = vmatpush1.msra.mxu0 %v4185
    %4926 = vmatprep.subr.mxu0 0.0
    %4927 = vmatpush1.msra.mxu0 %v4186
    %4928 = vmatprep.subr.mxu0 0.0
    %4929 = vmatpush1.msra.mxu0 0.0
    %4930 = vmatprep.subr.mxu0 0.0
    %4931 = vmatpush1.msra.mxu0 0.0
    %4932 = vmatprep.subr.mxu0 0.0
    %4933 = vmatpush1.msra.mxu0 0.0
    %4934 = vmatprep.subr.mxu0 0.0
    %4935 = vmatpush1.msra.mxu0 0.0
    %4936 = vmatprep.subr.mxu0 0.0
    %4937 = vmatpush1.msra.mxu0 0.0
    %4938 = vmatprep.subr.mxu0 0.0
    %4939 = vmatpush1.msra.mxu0 0.0
    %4940 = vmatprep.subr.mxu0 0.0
    %4941 = vmatpush1.msra.mxu0 0.0
    %4942 = vmatprep.subr.mxu0 0.0
    %4943 = vmatpush1.msra.mxu0 0.0
    %4944 = vmatprep.subr.mxu0 0.0
    %4945 = vmatpush1.msra.mxu0 0.0
    %4946 = vmatprep.subr.mxu0 0.0
    %4947 = vmatpush1.msra.mxu0 0.0
    %4948 = vmatprep.subr.mxu0 0.0
    %4949 = vmatpush1.msra.mxu0 0.0
    %4950 = vmatprep.subr.mxu0 0.0
    %4951 = vmatpush1.msra.mxu0 0.0
    %4952 = vmatprep.subr.mxu0 0.0
    %4953 = vmatpush1.msra.mxu0 0.0
    %4954 = vmatprep.subr.mxu0 0.0
    %4955 = vmatpush1.msra.mxu0 0.0
    %4956 = vmatprep.subr.mxu0 0.0
    %4957 = vmatpush1.msra.mxu0 0.0
    %4958 = vmatprep.subr.mxu0 0.0
    %4959 = vmatpush1.msra.mxu0 0.0
    %4960 = vmatprep.subr.mxu0 0.0
    %4961 = vmatpush1.msra.mxu0 0.0
    %4962 = vmatprep.subr.mxu0 0.0
    %4963 = vmatpush1.msra.mxu0 0.0
    %4964 = vmatprep.subr.mxu0 0.0
    %4965 = vmatpush1.msra.mxu0 0.0
    %4966 = vmatprep.subr.mxu0 0.0
    %4967 = vmatpush1.msra.mxu0 0.0
    %4968 = vmatprep.subr.mxu0 0.0
    %4969 = vmatpush1.msra.mxu0 0.0
    %4970 = vmatprep.subr.mxu0 0.0
    %4971 = vmatpush1.msra.mxu0 0.0
    %4972 = vmatprep.subr.mxu0 0.0
    %4973 = vmatpush1.msra.mxu0 0.0
    %4974 = vmatprep.subr.mxu0 0.0
    %4975 = vmatpush1.msra.mxu0 0.0
    %4976 = vmatprep.subr.mxu0 0.0
    %4977 = vmatpush1.msra.mxu0 0.0
    %4978 = vmatprep.subr.mxu0 0.0
    %4979 = vmatpush1.msra.mxu0 0.0
    %4980 = vmatprep.subr.mxu0 0.0
    %4981 = vmatpush1.msra.mxu0 0.0
    %4982 = vmatprep.subr.mxu0 0.0
    %4983 = vmatpush1.msra.mxu0 0.0
    %4984 = vmatprep.mubr.f32.mxu0 0.0
    %4985 = vmatmul.mubr.f32.gmra.mrb[0].mxu0 %v4240
    %v4986 = vpop.f32.mrb[0].mxu0
    %v4987 = vadd.f32 %v4837, %v4986
    %v4988 = vpop.f32.mrb[0].mxu0
    %4989 = vdwg.mxu0
    %4990 = vmatprep.subr.mxu0 0.0
    %4991 = vmatpush1.msra.mxu0 %v4187
    %4992 = vmatprep.subr.mxu0 0.0
    %4993 = vmatpush1.msra.mxu0 %v4188
    %4994 = vmatprep.subr.mxu0 0.0
    %4995 = vmatpush1.msra.mxu0 %v4189
    %4996 = vmatprep.subr.mxu0 0.0
    %4997 = vmatpush1.msra.mxu0 %v4190
    %4998 = vmatprep.subr.mxu0 0.0
    %4999 = vmatpush1.msra.mxu0 0.0
    %5000 = vmatprep.subr.mxu0 0.0
    %5001 = vmatpush1.msra.mxu0 0.0
    %5002 = vmatprep.subr.mxu0 0.0
    %5003 = vmatpush1.msra.mxu0 0.0
    %5004 = vmatprep.subr.mxu0 0.0
    %5005 = vmatpush1.msra.mxu0 0.0
    %5006 = vmatprep.subr.mxu0 0.0
    %5007 = vmatpush1.msra.mxu0 0.0
    %5008 = vmatprep.subr.mxu0 0.0
    %5009 = vmatpush1.msra.mxu0 0.0
    %5010 = vmatprep.subr.mxu0 0.0
    %5011 = vmatpush1.msra.mxu0 0.0
    %5012 = vmatprep.subr.mxu0 0.0
    %5013 = vmatpush1.msra.mxu0 0.0
    %5014 = vmatprep.subr.mxu0 0.0
    %5015 = vmatpush1.msra.mxu0 0.0
    %5016 = vmatprep.subr.mxu0 0.0
    %5017 = vmatpush1.msra.mxu0 0.0
    %5018 = vmatprep.subr.mxu0 0.0
    %5019 = vmatpush1.msra.mxu0 0.0
    %5020 = vmatprep.subr.mxu0 0.0
    %5021 = vmatpush1.msra.mxu0 0.0
    %5022 = vmatprep.subr.mxu0 0.0
    %5023 = vmatpush1.msra.mxu0 0.0
    %5024 = vmatprep.subr.mxu0 0.0
    %5025 = vmatpush1.msra.mxu0 0.0
    %5026 = vmatprep.subr.mxu0 0.0
    %5027 = vmatpush1.msra.mxu0 0.0
    %5028 = vmatprep.subr.mxu0 0.0
    %5029 = vmatpush1.msra.mxu0 0.0
    %5030 = vmatprep.subr.mxu0 0.0
    %5031 = vmatpush1.msra.mxu0 0.0
    %5032 = vmatprep.subr.mxu0 0.0
    %5033 = vmatpush1.msra.mxu0 0.0
    %5034 = vmatprep.subr.mxu0 0.0
    %5035 = vmatpush1.msra.mxu0 0.0
    %5036 = vmatprep.subr.mxu0 0.0
    %5037 = vmatpush1.msra.mxu0 0.0
    %5038 = vmatprep.subr.mxu0 0.0
    %5039 = vmatpush1.msra.mxu0 0.0
    %5040 = vmatprep.subr.mxu0 0.0
    %5041 = vmatpush1.msra.mxu0 0.0
    %5042 = vmatprep.subr.mxu0 0.0
    %5043 = vmatpush1.msra.mxu0 0.0
    %5044 = vmatprep.subr.mxu0 0.0
    %5045 = vmatpush1.msra.mxu0 0.0
    %5046 = vmatprep.subr.mxu0 0.0
    %5047 = vmatpush1.msra.mxu0 0.0
    %5048 = vmatprep.subr.mxu0 0.0
    %5049 = vmatpush1.msra.mxu0 0.0
    %5050 = vmatprep.subr.mxu0 0.0
    %5051 = vmatpush1.msra.mxu0 0.0
    %5052 = vmatprep.subr.mxu0 0.0
    %5053 = vmatpush1.msra.mxu0 0.0
    %5054 = vmatprep.mubr.f32.mxu0 0.0
    %5055 = vmatmul.mubr.f32.gmra.mrb[0].mxu0 %v4240
    %v5056 = vpop.f32.mrb[0].mxu0
    %v5057 = vadd.f32 %v4841, %v5056
    %v5058 = vpop.f32.mrb[0].mxu0
    %5059 = vdwg.mxu0
    %5060 = vmatprep.subr.mxu0 0.0
    %5061 = vmatpush1.msra.mxu0 %v4191
    %5062 = vmatprep.subr.mxu0 0.0
    %5063 = vmatpush1.msra.mxu0 %v4192
    %5064 = vmatprep.subr.mxu0 0.0
    %5065 = vmatpush1.msra.mxu0 %v4193
    %5066 = vmatprep.subr.mxu0 0.0
    %5067 = vmatpush1.msra.mxu0 %v4194
    %5068 = vmatprep.subr.mxu0 0.0
    %5069 = vmatpush1.msra.mxu0 0.0
    %5070 = vmatprep.subr.mxu0 0.0
    %5071 = vmatpush1.msra.mxu0 0.0
    %5072 = vmatprep.subr.mxu0 0.0
    %5073 = vmatpush1.msra.mxu0 0.0
    %5074 = vmatprep.subr.mxu0 0.0
    %5075 = vmatpush1.msra.mxu0 0.0
    %5076 = vmatprep.subr.mxu0 0.0
    %5077 = vmatpush1.msra.mxu0 0.0
    %5078 = vmatprep.subr.mxu0 0.0
    %5079 = vmatpush1.msra.mxu0 0.0
    %5080 = vmatprep.subr.mxu0 0.0
    %5081 = vmatpush1.msra.mxu0 0.0
    %5082 = vmatprep.subr.mxu0 0.0
    %5083 = vmatpush1.msra.mxu0 0.0
    %5084 = vmatprep.subr.mxu0 0.0
    %5085 = vmatpush1.msra.mxu0 0.0
    %5086 = vmatprep.subr.mxu0 0.0
    %5087 = vmatpush1.msra.mxu0 0.0
    %5088 = vmatprep.subr.mxu0 0.0
    %5089 = vmatpush1.msra.mxu0 0.0
    %5090 = vmatprep.subr.mxu0 0.0
    %5091 = vmatpush1.msra.mxu0 0.0
    %5092 = vmatprep.subr.mxu0 0.0
    %5093 = vmatpush1.msra.mxu0 0.0
    %5094 = vmatprep.subr.mxu0 0.0
    %5095 = vmatpush1.msra.mxu0 0.0
    %5096 = vmatprep.subr.mxu0 0.0
    %5097 = vmatpush1.msra.mxu0 0.0
    %5098 = vmatprep.subr.mxu0 0.0
    %5099 = vmatpush1.msra.mxu0 0.0
    %5100 = vmatprep.subr.mxu0 0.0
    %5101 = vmatpush1.msra.mxu0 0.0
    %5102 = vmatprep.subr.mxu0 0.0
    %5103 = vmatpush1.msra.mxu0 0.0
    %5104 = vmatprep.subr.mxu0 0.0
    %5105 = vmatpush1.msra.mxu0 0.0
    %5106 = vmatprep.subr.mxu0 0.0
    %5107 = vmatpush1.msra.mxu0 0.0
    %5108 = vmatprep.subr.mxu0 0.0
    %5109 = vmatpush1.msra.mxu0 0.0
    %5110 = vmatprep.subr.mxu0 0.0
    %5111 = vmatpush1.msra.mxu0 0.0
    %5112 = vmatprep.subr.mxu0 0.0
    %5113 = vmatpush1.msra.mxu0 0.0
    %5114 = vmatprep.subr.mxu0 0.0
    %5115 = vmatpush1.msra.mxu0 0.0
    %5116 = vmatprep.subr.mxu0 0.0
    %5117 = vmatpush1.msra.mxu0 0.0
    %5118 = vmatprep.subr.mxu0 0.0
    %5119 = vmatpush1.msra.mxu0 0.0
    %5120 = vmatprep.subr.mxu0 0.0
    %5121 = vmatpush1.msra.mxu0 0.0
    %5122 = vmatprep.subr.mxu0 0.0
    %5123 = vmatpush1.msra.mxu0 0.0
    %5124 = vmatprep.mubr.f32.mxu0 0.0
    %5125 = vmatmul.mubr.f32.gmra.mrb[0].mxu0 %v4240
    %v5126 = vpop.f32.mrb[0].mxu0
    %v5127 = vadd.f32 %v4845, %v5126
    %v5128 = vpop.f32.mrb[0].mxu0
    %5129 = vdwg.mxu0
    %v5131 = vsel %vm1114, %v4309, 0
    %v5134 = vsel %vm1114, %v4613, 0
    %5136 = vmatprep.subr.mxu0 0.0
    %5137 = vmatpush1.xpose.msra.mxu0 %v5134
    %5138 = vmatprep.subr.mxu0 0.0
    %5139 = vmatpush1.xpose.msra.mxu0 0.0
    %5140 = vmatprep.subr.mxu0 0.0
    %5141 = vmatpush1.xpose.msra.mxu0 0.0
    %5142 = vmatprep.subr.mxu0 0.0
    %5143 = vmatpush1.xpose.msra.mxu0 0.0
    %5144 = vmatprep.subr.mxu0 0.0
    %5145 = vmatpush1.xpose.msra.mxu0 0.0
    %5146 = vmatprep.subr.mxu0 0.0
    %5147 = vmatpush1.xpose.msra.mxu0 0.0
    %5148 = vmatprep.subr.mxu0 0.0
    %5149 = vmatpush1.xpose.msra.mxu0 0.0
    %5150 = vmatprep.subr.mxu0 0.0
    %5151 = vmatpush1.xpose.msra.mxu0 0.0
    %5152 = vmatprep.subr.mxu0 0.0
    %5153 = vmatpush1.xpose.msra.mxu0 0.0
    %5154 = vmatprep.subr.mxu0 0.0
    %5155 = vmatpush1.xpose.msra.mxu0 0.0
    %5156 = vmatprep.subr.mxu0 0.0
    %5157 = vmatpush1.xpose.msra.mxu0 0.0
    %5158 = vmatprep.subr.mxu0 0.0
    %5159 = vmatpush1.xpose.msra.mxu0 0.0
    %5160 = vmatprep.subr.mxu0 0.0
    %5161 = vmatpush1.xpose.msra.mxu0 0.0
    %5162 = vmatprep.subr.mxu0 0.0
    %5163 = vmatpush1.xpose.msra.mxu0 0.0
    %5164 = vmatprep.subr.mxu0 0.0
    %5165 = vmatpush1.xpose.msra.mxu0 0.0
    %5166 = vmatprep.subr.mxu0 0.0
    %5167 = vmatpush1.xpose.msra.mxu0 0.0
    %5168 = vmatprep.subr.mxu0 0.0
    %5169 = vmatpush1.xpose.msra.mxu0 0.0
    %5170 = vmatprep.subr.mxu0 0.0
    %5171 = vmatpush1.xpose.msra.mxu0 0.0
    %5172 = vmatprep.subr.mxu0 0.0
    %5173 = vmatpush1.xpose.msra.mxu0 0.0
    %5174 = vmatprep.subr.mxu0 0.0
    %5175 = vmatpush1.xpose.msra.mxu0 0.0
    %5176 = vmatprep.subr.mxu0 0.0
    %5177 = vmatpush1.xpose.msra.mxu0 0.0
    %5178 = vmatprep.subr.mxu0 0.0
    %5179 = vmatpush1.xpose.msra.mxu0 0.0
    %5180 = vmatprep.subr.mxu0 0.0
    %5181 = vmatpush1.xpose.msra.mxu0 0.0
    %5182 = vmatprep.subr.mxu0 0.0
    %5183 = vmatpush1.xpose.msra.mxu0 0.0
    %5184 = vmatprep.subr.mxu0 0.0
    %5185 = vmatpush1.xpose.msra.mxu0 0.0
    %5186 = vmatprep.subr.mxu0 0.0
    %5187 = vmatpush1.xpose.msra.mxu0 0.0
    %5188 = vmatprep.subr.mxu0 0.0
    %5189 = vmatpush1.xpose.msra.mxu0 0.0
    %5190 = vmatprep.subr.mxu0 0.0
    %5191 = vmatpush1.xpose.msra.mxu0 0.0
    %5192 = vmatprep.subr.mxu0 0.0
    %5193 = vmatpush1.xpose.msra.mxu0 0.0
    %5194 = vmatprep.subr.mxu0 0.0
    %5195 = vmatpush1.xpose.msra.mxu0 0.0
    %5196 = vmatprep.subr.mxu0 0.0
    %5197 = vmatpush1.xpose.msra.mxu0 0.0
    %5198 = vmatprep.subr.mxu0 0.0
    %5199 = vmatpush1.xpose.msra.mxu0 0.0
    %5200 = vmatprep.mubr.f32.mxu0 0.0
    %5201 = vmatmul.mubr.f32.gmra.mrb[0].mxu0 %v5131
    %v5202 = vpop.f32.mrb[0].mxu0
    %v5203 = vadd.f32 %v130, %v5202
    %v5204 = vpop.f32.mrb[0].mxu0
    %5205 = vdwg.mxu0
    %v5207 = vsel %vm1114, %v4379, 0
    %v5210 = vsel %vm1114, %v4683, 0
    %5212 = vmatprep.subr.mxu0 0.0
    %5213 = vmatpush1.xpose.msra.mxu0 %v5210
    %5214 = vmatprep.subr.mxu0 0.0
    %5215 = vmatpush1.xpose.msra.mxu0 0.0
    %5216 = vmatprep.subr.mxu0 0.0
    %5217 = vmatpush1.xpose.msra.mxu0 0.0
    %5218 = vmatprep.subr.mxu0 0.0
    %5219 = vmatpush1.xpose.msra.mxu0 0.0
    %5220 = vmatprep.subr.mxu0 0.0
    %5221 = vmatpush1.xpose.msra.mxu0 0.0
    %5222 = vmatprep.subr.mxu0 0.0
    %5223 = vmatpush1.xpose.msra.mxu0 0.0
    %5224 = vmatprep.subr.mxu0 0.0
    %5225 = vmatpush1.xpose.msra.mxu0 0.0
    %5226 = vmatprep.subr.mxu0 0.0
    %5227 = vmatpush1.xpose.msra.mxu0 0.0
    %5228 = vmatprep.subr.mxu0 0.0
    %5229 = vmatpush1.xpose.msra.mxu0 0.0
    %5230 = vmatprep.subr.mxu0 0.0
    %5231 = vmatpush1.xpose.msra.mxu0 0.0
    %5232 = vmatprep.subr.mxu0 0.0
    %5233 = vmatpush1.xpose.msra.mxu0 0.0
    %5234 = vmatprep.subr.mxu0 0.0
    %5235 = vmatpush1.xpose.msra.mxu0 0.0
    %5236 = vmatprep.subr.mxu0 0.0
    %5237 = vmatpush1.xpose.msra.mxu0 0.0
    %5238 = vmatprep.subr.mxu0 0.0
    %5239 = vmatpush1.xpose.msra.mxu0 0.0
    %5240 = vmatprep.subr.mxu0 0.0
    %5241 = vmatpush1.xpose.msra.mxu0 0.0
    %5242 = vmatprep.subr.mxu0 0.0
    %5243 = vmatpush1.xpose.msra.mxu0 0.0
    %5244 = vmatprep.subr.mxu0 0.0
    %5245 = vmatpush1.xpose.msra.mxu0 0.0
    %5246 = vmatprep.subr.mxu0 0.0
    %5247 = vmatpush1.xpose.msra.mxu0 0.0
    %5248 = vmatprep.subr.mxu0 0.0
    %5249 = vmatpush1.xpose.msra.mxu0 0.0
    %5250 = vmatprep.subr.mxu0 0.0
    %5251 = vmatpush1.xpose.msra.mxu0 0.0
    %5252 = vmatprep.subr.mxu0 0.0
    %5253 = vmatpush1.xpose.msra.mxu0 0.0
    %5254 = vmatprep.subr.mxu0 0.0
    %5255 = vmatpush1.xpose.msra.mxu0 0.0
    %5256 = vmatprep.subr.mxu0 0.0
    %5257 = vmatpush1.xpose.msra.mxu0 0.0
    %5258 = vmatprep.subr.mxu0 0.0
    %5259 = vmatpush1.xpose.msra.mxu0 0.0
    %5260 = vmatprep.subr.mxu0 0.0
    %5261 = vmatpush1.xpose.msra.mxu0 0.0
    %5262 = vmatprep.subr.mxu0 0.0
    %5263 = vmatpush1.xpose.msra.mxu0 0.0
    %5264 = vmatprep.subr.mxu0 0.0
    %5265 = vmatpush1.xpose.msra.mxu0 0.0
    %5266 = vmatprep.subr.mxu0 0.0
    %5267 = vmatpush1.xpose.msra.mxu0 0.0
    %5268 = vmatprep.subr.mxu0 0.0
    %5269 = vmatpush1.xpose.msra.mxu0 0.0
    %5270 = vmatprep.subr.mxu0 0.0
    %5271 = vmatpush1.xpose.msra.mxu0 0.0
    %5272 = vmatprep.subr.mxu0 0.0
    %5273 = vmatpush1.xpose.msra.mxu0 0.0
    %5274 = vmatprep.subr.mxu0 0.0
    %5275 = vmatpush1.xpose.msra.mxu0 0.0
    %5276 = vmatprep.mubr.f32.mxu0 0.0
    %5277 = vmatmul.mubr.f32.gmra.mrb[0].mxu0 %v5207
    %v5278 = vpop.f32.mrb[0].mxu0
    %v5279 = vadd.f32 %v130, %v5278
    %v5280 = vpop.f32.mrb[0].mxu0
    %5281 = vdwg.mxu0
    %v5283 = vsel %vm1114, %v4449, 0
    %v5286 = vsel %vm1114, %v4753, 0
    %5288 = vmatprep.subr.mxu0 0.0
    %5289 = vmatpush1.xpose.msra.mxu0 %v5286
    %5290 = vmatprep.subr.mxu0 0.0
    %5291 = vmatpush1.xpose.msra.mxu0 0.0
    %5292 = vmatprep.subr.mxu0 0.0
    %5293 = vmatpush1.xpose.msra.mxu0 0.0
    %5294 = vmatprep.subr.mxu0 0.0
    %5295 = vmatpush1.xpose.msra.mxu0 0.0
    %5296 = vmatprep.subr.mxu0 0.0
    %5297 = vmatpush1.xpose.msra.mxu0 0.0
    %5298 = vmatprep.subr.mxu0 0.0
    %5299 = vmatpush1.xpose.msra.mxu0 0.0
    %5300 = vmatprep.subr.mxu0 0.0
    %5301 = vmatpush1.xpose.msra.mxu0 0.0
    %5302 = vmatprep.subr.mxu0 0.0
    %5303 = vmatpush1.xpose.msra.mxu0 0.0
    %5304 = vmatprep.subr.mxu0 0.0
    %5305 = vmatpush1.xpose.msra.mxu0 0.0
    %5306 = vmatprep.subr.mxu0 0.0
    %5307 = vmatpush1.xpose.msra.mxu0 0.0
    %5308 = vmatprep.subr.mxu0 0.0
    %5309 = vmatpush1.xpose.msra.mxu0 0.0
    %5310 = vmatprep.subr.mxu0 0.0
    %5311 = vmatpush1.xpose.msra.mxu0 0.0
    %5312 = vmatprep.subr.mxu0 0.0
    %5313 = vmatpush1.xpose.msra.mxu0 0.0
    %5314 = vmatprep.subr.mxu0 0.0
    %5315 = vmatpush1.xpose.msra.mxu0 0.0
    %5316 = vmatprep.subr.mxu0 0.0
    %5317 = vmatpush1.xpose.msra.mxu0 0.0
    %5318 = vmatprep.subr.mxu0 0.0
    %5319 = vmatpush1.xpose.msra.mxu0 0.0
    %5320 = vmatprep.subr.mxu0 0.0
    %5321 = vmatpush1.xpose.msra.mxu0 0.0
    %5322 = vmatprep.subr.mxu0 0.0
    %5323 = vmatpush1.xpose.msra.mxu0 0.0
    %5324 = vmatprep.subr.mxu0 0.0
    %5325 = vmatpush1.xpose.msra.mxu0 0.0
    %5326 = vmatprep.subr.mxu0 0.0
    %5327 = vmatpush1.xpose.msra.mxu0 0.0
    %5328 = vmatprep.subr.mxu0 0.0
    %5329 = vmatpush1.xpose.msra.mxu0 0.0
    %5330 = vmatprep.subr.mxu0 0.0
    %5331 = vmatpush1.xpose.msra.mxu0 0.0
    %5332 = vmatprep.subr.mxu0 0.0
    %5333 = vmatpush1.xpose.msra.mxu0 0.0
    %5334 = vmatprep.subr.mxu0 0.0
    %5335 = vmatpush1.xpose.msra.mxu0 0.0
    %5336 = vmatprep.subr.mxu0 0.0
    %5337 = vmatpush1.xpose.msra.mxu0 0.0
    %5338 = vmatprep.subr.mxu0 0.0
    %5339 = vmatpush1.xpose.msra.mxu0 0.0
    %5340 = vmatprep.subr.mxu0 0.0
    %5341 = vmatpush1.xpose.msra.mxu0 0.0
    %5342 = vmatprep.subr.mxu0 0.0
    %5343 = vmatpush1.xpose.msra.mxu0 0.0
    %5344 = vmatprep.subr.mxu0 0.0
    %5345 = vmatpush1.xpose.msra.mxu0 0.0
    %5346 = vmatprep.subr.mxu0 0.0
    %5347 = vmatpush1.xpose.msra.mxu0 0.0
    %5348 = vmatprep.subr.mxu0 0.0
    %5349 = vmatpush1.xpose.msra.mxu0 0.0
    %5350 = vmatprep.subr.mxu0 0.0
    %5351 = vmatpush1.xpose.msra.mxu0 0.0
    %5352 = vmatprep.mubr.f32.mxu0 0.0
    %5353 = vmatmul.mubr.f32.gmra.mrb[0].mxu0 %v5283
    %v5354 = vpop.f32.mrb[0].mxu0
    %v5355 = vadd.f32 %v130, %v5354
    %v5356 = vpop.f32.mrb[0].mxu0
    %5357 = vdwg.mxu0
    %v5359 = vsel %vm1114, %v4519, 0
    %v5362 = vsel %vm1114, %v4823, 0
    %5364 = vmatprep.subr.mxu0 0.0
    %5365 = vmatpush1.xpose.msra.mxu0 %v5362
    %5366 = vmatprep.subr.mxu0 0.0
    %5367 = vmatpush1.xpose.msra.mxu0 0.0
    %5368 = vmatprep.subr.mxu0 0.0
    %5369 = vmatpush1.xpose.msra.mxu0 0.0
    %5370 = vmatprep.subr.mxu0 0.0
    %5371 = vmatpush1.xpose.msra.mxu0 0.0
    %5372 = vmatprep.subr.mxu0 0.0
    %5373 = vmatpush1.xpose.msra.mxu0 0.0
    %5374 = vmatprep.subr.mxu0 0.0
    %5375 = vmatpush1.xpose.msra.mxu0 0.0
    %5376 = vmatprep.subr.mxu0 0.0
    %5377 = vmatpush1.xpose.msra.mxu0 0.0
    %5378 = vmatprep.subr.mxu0 0.0
    %5379 = vmatpush1.xpose.msra.mxu0 0.0
    %5380 = vmatprep.subr.mxu0 0.0
    %5381 = vmatpush1.xpose.msra.mxu0 0.0
    %5382 = vmatprep.subr.mxu0 0.0
    %5383 = vmatpush1.xpose.msra.mxu0 0.0
    %5384 = vmatprep.subr.mxu0 0.0
    %5385 = vmatpush1.xpose.msra.mxu0 0.0
    %5386 = vmatprep.subr.mxu0 0.0
    %5387 = vmatpush1.xpose.msra.mxu0 0.0
    %5388 = vmatprep.subr.mxu0 0.0
    %5389 = vmatpush1.xpose.msra.mxu0 0.0
    %5390 = vmatprep.subr.mxu0 0.0
    %5391 = vmatpush1.xpose.msra.mxu0 0.0
    %5392 = vmatprep.subr.mxu0 0.0
    %5393 = vmatpush1.xpose.msra.mxu0 0.0
    %5394 = vmatprep.subr.mxu0 0.0
    %5395 = vmatpush1.xpose.msra.mxu0 0.0
    %5396 = vmatprep.subr.mxu0 0.0
    %5397 = vmatpush1.xpose.msra.mxu0 0.0
    %5398 = vmatprep.subr.mxu0 0.0
    %5399 = vmatpush1.xpose.msra.mxu0 0.0
    %5400 = vmatprep.subr.mxu0 0.0
    %5401 = vmatpush1.xpose.msra.mxu0 0.0
    %5402 = vmatprep.subr.mxu0 0.0
    %5403 = vmatpush1.xpose.msra.mxu0 0.0
    %5404 = vmatprep.subr.mxu0 0.0
    %5405 = vmatpush1.xpose.msra.mxu0 0.0
    %5406 = vmatprep.subr.mxu0 0.0
    %5407 = vmatpush1.xpose.msra.mxu0 0.0
    %5408 = vmatprep.subr.mxu0 0.0
    %5409 = vmatpush1.xpose.msra.mxu0 0.0
    %5410 = vmatprep.subr.mxu0 0.0
    %5411 = vmatpush1.xpose.msra.mxu0 0.0
    %5412 = vmatprep.subr.mxu0 0.0
    %5413 = vmatpush1.xpose.msra.mxu0 0.0
    %5414 = vmatprep.subr.mxu0 0.0
    %5415 = vmatpush1.xpose.msra.mxu0 0.0
    %5416 = vmatprep.subr.mxu0 0.0
    %5417 = vmatpush1.xpose.msra.mxu0 0.0
    %5418 = vmatprep.subr.mxu0 0.0
    %5419 = vmatpush1.xpose.msra.mxu0 0.0
    %5420 = vmatprep.subr.mxu0 0.0
    %5421 = vmatpush1.xpose.msra.mxu0 0.0
    %5422 = vmatprep.subr.mxu0 0.0
    %5423 = vmatpush1.xpose.msra.mxu0 0.0
    %5424 = vmatprep.subr.mxu0 0.0
    %5425 = vmatpush1.xpose.msra.mxu0 0.0
    %5426 = vmatprep.subr.mxu0 0.0
    %5427 = vmatpush1.xpose.msra.mxu0 0.0
    %5428 = vmatprep.mubr.f32.mxu0 0.0
    %5429 = vmatmul.mubr.f32.gmra.mrb[0].mxu0 %v5359
    %v5430 = vpop.f32.mrb[0].mxu0
    %v5431 = vadd.f32 %v130, %v5430
    %v5432 = vpop.f32.mrb[0].mxu0
    %5433 = vdwg.mxu0
    %v5434 = vsel %vm1114, %v5203, -inf
    %5435 = vmax.xlane.f32.xlu0 %v5434
    %v5436 = vpop.xlane.xlu0 %5435
    %v5437 = vsel %vm1114, %v5279, -inf
    %5438 = vmax.xlane.f32.xlu0 %v5437
    %v5439 = vpop.xlane.xlu0 %5438
    %v5440 = vsel %vm1114, %v5355, -inf
    %5441 = vmax.xlane.f32.xlu0 %v5440
    %v5442 = vpop.xlane.xlu0 %5441
    %v5443 = vsel %vm1114, %v5431, -inf
    %5444 = vmax.xlane.f32.xlu0 %v5443
    %v5445 = vpop.xlane.xlu0 %5444
    %v5446 = vsub.f32 %v5203, %v5436
    %v5447 = vsub.f32 %v5279, %v5439
    %v5448 = vsub.f32 %v5355, %v5442
    %v5449 = vsub.f32 %v5431, %v5445
    %v5450 = vmul.f32 %v5446, 1.442695
    %v5451 = vpow.pop %v5450
    %v5452 = vmul.f32 %v5447, 1.442695
    %v5453 = vpow.pop %v5452
    %v5454 = vmul.f32 %v5448, 1.442695
    %v5455 = vpow.pop %v5454
    %v5456 = vmul.f32 %v5449, 1.442695
    %v5457 = vpow.pop %v5456
    %v5458 = vsel %vm1114, %v5451, 0.0
    %5459 = vadd.xlane.f32.xlu0 %v5458
    %v5460 = vpop.xlane.xlu0 %5459
    %v5461 = vsel %vm1114, %v5453, 0.0
    %5462 = vadd.xlane.f32.xlu0 %v5461
    %v5463 = vpop.xlane.xlu0 %5462
    %v5464 = vsel %vm1114, %v5455, 0.0
    %5465 = vadd.xlane.f32.xlu0 %v5464
    %v5466 = vpop.xlane.xlu0 %5465
    %v5467 = vsel %vm1114, %v5457, 0.0
    %5468 = vadd.xlane.f32.xlu0 %v5467
    %v5469 = vpop.xlane.xlu0 %5468
    %v5470 = vrcp.pop %v5460
    %v5471 = vrcp.pop %v5463
    %v5472 = vrcp.pop %v5466
    %v5473 = vrcp.pop %v5469
    %v5474 = vmul.f32 %v5451, %v5470
    %v5475 = vmul.f32 %v5453, %v5471
    %v5476 = vmul.f32 %v5455, %v5472
    %v5477 = vmul.f32 %v5457, %v5473
    %v5479 = vsel %vm1114, %v5474, 0
    %5481 = vmatprep.subr.mxu0 0.0
    %5482 = vmatpush1.msra.mxu0 %v4917
    %5483 = vmatprep.subr.mxu0 0.0
    %5484 = vmatpush1.msra.mxu0 0.0
    %5485 = vmatprep.subr.mxu0 0.0
    %5486 = vmatpush1.msra.mxu0 0.0
    %5487 = vmatprep.subr.mxu0 0.0
    %5488 = vmatpush1.msra.mxu0 0.0
    %5489 = vmatprep.subr.mxu0 0.0
    %5490 = vmatpush1.msra.mxu0 0.0
    %5491 = vmatprep.subr.mxu0 0.0
    %5492 = vmatpush1.msra.mxu0 0.0
    %5493 = vmatprep.subr.mxu0 0.0
    %5494 = vmatpush1.msra.mxu0 0.0
    %5495 = vmatprep.subr.mxu0 0.0
    %5496 = vmatpush1.msra.mxu0 0.0
    %5497 = vmatprep.subr.mxu0 0.0
    %5498 = vmatpush1.msra.mxu0 0.0
    %5499 = vmatprep.subr.mxu0 0.0
    %5500 = vmatpush1.msra.mxu0 0.0
    %5501 = vmatprep.subr.mxu0 0.0
    %5502 = vmatpush1.msra.mxu0 0.0
    %5503 = vmatprep.subr.mxu0 0.0
    %5504 = vmatpush1.msra.mxu0 0.0
    %5505 = vmatprep.subr.mxu0 0.0
    %5506 = vmatpush1.msra.mxu0 0.0
    %5507 = vmatprep.subr.mxu0 0.0
    %5508 = vmatpush1.msra.mxu0 0.0
    %5509 = vmatprep.subr.mxu0 0.0
    %5510 = vmatpush1.msra.mxu0 0.0
    %5511 = vmatprep.subr.mxu0 0.0
    %5512 = vmatpush1.msra.mxu0 0.0
    %5513 = vmatprep.subr.mxu0 0.0
    %5514 = vmatpush1.msra.mxu0 0.0
    %5515 = vmatprep.subr.mxu0 0.0
    %5516 = vmatpush1.msra.mxu0 0.0
    %5517 = vmatprep.subr.mxu0 0.0
    %5518 = vmatpush1.msra.mxu0 0.0
    %5519 = vmatprep.subr.mxu0 0.0
    %5520 = vmatpush1.msra.mxu0 0.0
    %5521 = vmatprep.subr.mxu0 0.0
    %5522 = vmatpush1.msra.mxu0 0.0
    %5523 = vmatprep.subr.mxu0 0.0
    %5524 = vmatpush1.msra.mxu0 0.0
    %5525 = vmatprep.subr.mxu0 0.0
    %5526 = vmatpush1.msra.mxu0 0.0
    %5527 = vmatprep.subr.mxu0 0.0
    %5528 = vmatpush1.msra.mxu0 0.0
    %5529 = vmatprep.subr.mxu0 0.0
    %5530 = vmatpush1.msra.mxu0 0.0
    %5531 = vmatprep.subr.mxu0 0.0
    %5532 = vmatpush1.msra.mxu0 0.0
    %5533 = vmatprep.subr.mxu0 0.0
    %5534 = vmatpush1.msra.mxu0 0.0
    %5535 = vmatprep.subr.mxu0 0.0
    %5536 = vmatpush1.msra.mxu0 0.0
    %5537 = vmatprep.subr.mxu0 0.0
    %5538 = vmatpush1.msra.mxu0 0.0
    %5539 = vmatprep.subr.mxu0 0.0
    %5540 = vmatpush1.msra.mxu0 0.0
    %5541 = vmatprep.subr.mxu0 0.0
    %5542 = vmatpush1.msra.mxu0 0.0
    %5543 = vmatprep.subr.mxu0 0.0
    %5544 = vmatpush1.msra.mxu0 0.0
    %5545 = vmatprep.mubr.f32.mxu0 0.0
    %5546 = vmatmul.mubr.f32.gmra.mrb[0].mxu0 %v5479
    %v5547 = vpop.f32.mrb[0].mxu0
    %v5548 = vadd.f32 0.0, %v5547
    %v5549 = vpop.f32.mrb[0].mxu0
    %5550 = vdwg.mxu0
    %v5552 = vsel %vm1114, %v5475, 0
    %5554 = vmatprep.subr.mxu0 0.0
    %5555 = vmatpush1.msra.mxu0 %v4987
    %5556 = vmatprep.subr.mxu0 0.0
    %5557 = vmatpush1.msra.mxu0 0.0
    %5558 = vmatprep.subr.mxu0 0.0
    %5559 = vmatpush1.msra.mxu0 0.0
    %5560 = vmatprep.subr.mxu0 0.0
    %5561 = vmatpush1.msra.mxu0 0.0
    %5562 = vmatprep.subr.mxu0 0.0
    %5563 = vmatpush1.msra.mxu0 0.0
    %5564 = vmatprep.subr.mxu0 0.0
    %5565 = vmatpush1.msra.mxu0 0.0
    %5566 = vmatprep.subr.mxu0 0.0
    %5567 = vmatpush1.msra.mxu0 0.0
    %5568 = vmatprep.subr.mxu0 0.0
    %5569 = vmatpush1.msra.mxu0 0.0
    %5570 = vmatprep.subr.mxu0 0.0
    %5571 = vmatpush1.msra.mxu0 0.0
    %5572 = vmatprep.subr.mxu0 0.0
    %5573 = vmatpush1.msra.mxu0 0.0
    %5574 = vmatprep.subr.mxu0 0.0
    %5575 = vmatpush1.msra.mxu0 0.0
    %5576 = vmatprep.subr.mxu0 0.0
    %5577 = vmatpush1.msra.mxu0 0.0
    %5578 = vmatprep.subr.mxu0 0.0
    %5579 = vmatpush1.msra.mxu0 0.0
    %5580 = vmatprep.subr.mxu0 0.0
    %5581 = vmatpush1.msra.mxu0 0.0
    %5582 = vmatprep.subr.mxu0 0.0
    %5583 = vmatpush1.msra.mxu0 0.0
    %5584 = vmatprep.subr.mxu0 0.0
    %5585 = vmatpush1.msra.mxu0 0.0
    %5586 = vmatprep.subr.mxu0 0.0
    %5587 = vmatpush1.msra.mxu0 0.0
    %5588 = vmatprep.subr.mxu0 0.0
    %5589 = vmatpush1.msra.mxu0 0.0
    %5590 = vmatprep.subr.mxu0 0.0
    %5591 = vmatpush1.msra.mxu0 0.0
    %5592 = vmatprep.subr.mxu0 0.0
    %5593 = vmatpush1.msra.mxu0 0.0
    %5594 = vmatprep.subr.mxu0 0.0
    %5595 = vmatpush1.msra.mxu0 0.0
    %5596 = vmatprep.subr.mxu0 0.0
    %5597 = vmatpush1.msra.mxu0 0.0
    %5598 = vmatprep.subr.mxu0 0.0
    %5599 = vmatpush1.msra.mxu0 0.0
    %5600 = vmatprep.subr.mxu0 0.0
    %5601 = vmatpush1.msra.mxu0 0.0
    %5602 = vmatprep.subr.mxu0 0.0
    %5603 = vmatpush1.msra.mxu0 0.0
    %5604 = vmatprep.subr.mxu0 0.0
    %5605 = vmatpush1.msra.mxu0 0.0
    %5606 = vmatprep.subr.mxu0 0.0
    %5607 = vmatpush1.msra.mxu0 0.0
    %5608 = vmatprep.subr.mxu0 0.0
    %5609 = vmatpush1.msra.mxu0 0.0
    %5610 = vmatprep.subr.mxu0 0.0
    %5611 = vmatpush1.msra.mxu0 0.0
    %5612 = vmatprep.subr.mxu0 0.0
    %5613 = vmatpush1.msra.mxu0 0.0
    %5614 = vmatprep.subr.mxu0 0.0
    %5615 = vmatpush1.msra.mxu0 0.0
    %5616 = vmatprep.subr.mxu0 0.0
    %5617 = vmatpush1.msra.mxu0 0.0
    %5618 = vmatprep.mubr.f32.mxu0 0.0
    %5619 = vmatmul.mubr.f32.gmra.mrb[0].mxu0 %v5552
    %v5620 = vpop.f32.mrb[0].mxu0
    %v5621 = vadd.f32 0.0, %v5620
    %v5622 = vpop.f32.mrb[0].mxu0
    %5623 = vdwg.mxu0
    %v5625 = vsel %vm1114, %v5476, 0
    %5627 = vmatprep.subr.mxu0 0.0
    %5628 = vmatpush1.msra.mxu0 %v5057
    %5629 = vmatprep.subr.mxu0 0.0
    %5630 = vmatpush1.msra.mxu0 0.0
    %5631 = vmatprep.subr.mxu0 0.0
    %5632 = vmatpush1.msra.mxu0 0.0
    %5633 = vmatprep.subr.mxu0 0.0
    %5634 = vmatpush1.msra.mxu0 0.0
    %5635 = vmatprep.subr.mxu0 0.0
    %5636 = vmatpush1.msra.mxu0 0.0
    %5637 = vmatprep.subr.mxu0 0.0
    %5638 = vmatpush1.msra.mxu0 0.0
    %5639 = vmatprep.subr.mxu0 0.0
    %5640 = vmatpush1.msra.mxu0 0.0
    %5641 = vmatprep.subr.mxu0 0.0
    %5642 = vmatpush1.msra.mxu0 0.0
    %5643 = vmatprep.subr.mxu0 0.0
    %5644 = vmatpush1.msra.mxu0 0.0
    %5645 = vmatprep.subr.mxu0 0.0
    %5646 = vmatpush1.msra.mxu0 0.0
    %5647 = vmatprep.subr.mxu0 0.0
    %5648 = vmatpush1.msra.mxu0 0.0
    %5649 = vmatprep.subr.mxu0 0.0
    %5650 = vmatpush1.msra.mxu0 0.0
    %5651 = vmatprep.subr.mxu0 0.0
    %5652 = vmatpush1.msra.mxu0 0.0
    %5653 = vmatprep.subr.mxu0 0.0
    %5654 = vmatpush1.msra.mxu0 0.0
    %5655 = vmatprep.subr.mxu0 0.0
    %5656 = vmatpush1.msra.mxu0 0.0
    %5657 = vmatprep.subr.mxu0 0.0
    %5658 = vmatpush1.msra.mxu0 0.0
    %5659 = vmatprep.subr.mxu0 0.0
    %5660 = vmatpush1.msra.mxu0 0.0
    %5661 = vmatprep.subr.mxu0 0.0
    %5662 = vmatpush1.msra.mxu0 0.0
    %5663 = vmatprep.subr.mxu0 0.0
    %5664 = vmatpush1.msra.mxu0 0.0
    %5665 = vmatprep.subr.mxu0 0.0
    %5666 = vmatpush1.msra.mxu0 0.0
    %5667 = vmatprep.subr.mxu0 0.0
    %5668 = vmatpush1.msra.mxu0 0.0
    %5669 = vmatprep.subr.mxu0 0.0
    %5670 = vmatpush1.msra.mxu0 0.0
    %5671 = vmatprep.subr.mxu0 0.0
    %5672 = vmatpush1.msra.mxu0 0.0
    %5673 = vmatprep.subr.mxu0 0.0
    %5674 = vmatpush1.msra.mxu0 0.0
    %5675 = vmatprep.subr.mxu0 0.0
    %5676 = vmatpush1.msra.mxu0 0.0
    %5677 = vmatprep.subr.mxu0 0.0
    %5678 = vmatpush1.msra.mxu0 0.0
    %5679 = vmatprep.subr.mxu0 0.0
    %5680 = vmatpush1.msra.mxu0 0.0
    %5681 = vmatprep.subr.mxu0 0.0
    %5682 = vmatpush1.msra.mxu0 0.0
    %5683 = vmatprep.subr.mxu0 0.0
    %5684 = vmatpush1.msra.mxu0 0.0
    %5685 = vmatprep.subr.mxu0 0.0
    %5686 = vmatpush1.msra.mxu0 0.0
    %5687 = vmatprep.subr.mxu0 0.0
    %5688 = vmatpush1.msra.mxu0 0.0
    %5689 = vmatprep.subr.mxu0 0.0
    %5690 = vmatpush1.msra.mxu0 0.0
    %5691 = vmatprep.mubr.f32.mxu0 0.0
    %5692 = vmatmul.mubr.f32.gmra.mrb[0].mxu0 %v5625
    %v5693 = vpop.f32.mrb[0].mxu0
    %v5694 = vadd.f32 0.0, %v5693
    %v5695 = vpop.f32.mrb[0].mxu0
    %5696 = vdwg.mxu0
    %v5698 = vsel %vm1114, %v5477, 0
    %5700 = vmatprep.subr.mxu0 0.0
    %5701 = vmatpush1.msra.mxu0 %v5127
    %5702 = vmatprep.subr.mxu0 0.0
    %5703 = vmatpush1.msra.mxu0 0.0
    %5704 = vmatprep.subr.mxu0 0.0
    %5705 = vmatpush1.msra.mxu0 0.0
    %5706 = vmatprep.subr.mxu0 0.0
    %5707 = vmatpush1.msra.mxu0 0.0
    %5708 = vmatprep.subr.mxu0 0.0
    %5709 = vmatpush1.msra.mxu0 0.0
    %5710 = vmatprep.subr.mxu0 0.0
    %5711 = vmatpush1.msra.mxu0 0.0
    %5712 = vmatprep.subr.mxu0 0.0
    %5713 = vmatpush1.msra.mxu0 0.0
    %5714 = vmatprep.subr.mxu0 0.0
    %5715 = vmatpush1.msra.mxu0 0.0
    %5716 = vmatprep.subr.mxu0 0.0
    %5717 = vmatpush1.msra.mxu0 0.0
    %5718 = vmatprep.subr.mxu0 0.0
    %5719 = vmatpush1.msra.mxu0 0.0
    %5720 = vmatprep.subr.mxu0 0.0
    %5721 = vmatpush1.msra.mxu0 0.0
    %5722 = vmatprep.subr.mxu0 0.0
    %5723 = vmatpush1.msra.mxu0 0.0
    %5724 = vmatprep.subr.mxu0 0.0
    %5725 = vmatpush1.msra.mxu0 0.0
    %5726 = vmatprep.subr.mxu0 0.0
    %5727 = vmatpush1.msra.mxu0 0.0
    %5728 = vmatprep.subr.mxu0 0.0
    %5729 = vmatpush1.msra.mxu0 0.0
    %5730 = vmatprep.subr.mxu0 0.0
    %5731 = vmatpush1.msra.mxu0 0.0
    %5732 = vmatprep.subr.mxu0 0.0
    %5733 = vmatpush1.msra.mxu0 0.0
    %5734 = vmatprep.subr.mxu0 0.0
    %5735 = vmatpush1.msra.mxu0 0.0
    %5736 = vmatprep.subr.mxu0 0.0
    %5737 = vmatpush1.msra.mxu0 0.0
    %5738 = vmatprep.subr.mxu0 0.0
    %5739 = vmatpush1.msra.mxu0 0.0
    %5740 = vmatprep.subr.mxu0 0.0
    %5741 = vmatpush1.msra.mxu0 0.0
    %5742 = vmatprep.subr.mxu0 0.0
    %5743 = vmatpush1.msra.mxu0 0.0
    %5744 = vmatprep.subr.mxu0 0.0
    %5745 = vmatpush1.msra.mxu0 0.0
    %5746 = vmatprep.subr.mxu0 0.0
    %5747 = vmatpush1.msra.mxu0 0.0
    %5748 = vmatprep.subr.mxu0 0.0
    %5749 = vmatpush1.msra.mxu0 0.0
    %5750 = vmatprep.subr.mxu0 0.0
    %5751 = vmatpush1.msra.mxu0 0.0
    %5752 = vmatprep.subr.mxu0 0.0
    %5753 = vmatpush1.msra.mxu0 0.0
    %5754 = vmatprep.subr.mxu0 0.0
    %5755 = vmatpush1.msra.mxu0 0.0
    %5756 = vmatprep.subr.mxu0 0.0
    %5757 = vmatpush1.msra.mxu0 0.0
    %5758 = vmatprep.subr.mxu0 0.0
    %5759 = vmatpush1.msra.mxu0 0.0
    %5760 = vmatprep.subr.mxu0 0.0
    %5761 = vmatpush1.msra.mxu0 0.0
    %5762 = vmatprep.subr.mxu0 0.0
    %5763 = vmatpush1.msra.mxu0 0.0
    %5764 = vmatprep.mubr.f32.mxu0 0.0
    %5765 = vmatmul.mubr.f32.gmra.mrb[0].mxu0 %v5698
    %v5766 = vpop.f32.mrb[0].mxu0
    %v5767 = vadd.f32 0.0, %v5766
    %v5768 = vpop.f32.mrb[0].mxu0
    %5769 = vdwg.mxu0
    %v5771 = vsel %vm1114, %v5548, 0
    %5773 = vmatprep.subr.mxu0 0.0
    %5774 = vmatpush1.msra.mxu0 %v4211
    %5775 = vmatprep.subr.mxu0 0.0
    %5776 = vmatpush1.msra.mxu0 0.0
    %5777 = vmatprep.subr.mxu0 0.0
    %5778 = vmatpush1.msra.mxu0 0.0
    %5779 = vmatprep.subr.mxu0 0.0
    %5780 = vmatpush1.msra.mxu0 0.0
    %5781 = vmatprep.subr.mxu0 0.0
    %5782 = vmatpush1.msra.mxu0 0.0
    %5783 = vmatprep.subr.mxu0 0.0
    %5784 = vmatpush1.msra.mxu0 0.0
    %5785 = vmatprep.subr.mxu0 0.0
    %5786 = vmatpush1.msra.mxu0 0.0
    %5787 = vmatprep.subr.mxu0 0.0
    %5788 = vmatpush1.msra.mxu0 0.0
    %5789 = vmatprep.subr.mxu0 0.0
    %5790 = vmatpush1.msra.mxu0 0.0
    %5791 = vmatprep.subr.mxu0 0.0
    %5792 = vmatpush1.msra.mxu0 0.0
    %5793 = vmatprep.subr.mxu0 0.0
    %5794 = vmatpush1.msra.mxu0 0.0
    %5795 = vmatprep.subr.mxu0 0.0
    %5796 = vmatpush1.msra.mxu0 0.0
    %5797 = vmatprep.subr.mxu0 0.0
    %5798 = vmatpush1.msra.mxu0 0.0
    %5799 = vmatprep.subr.mxu0 0.0
    %5800 = vmatpush1.msra.mxu0 0.0
    %5801 = vmatprep.subr.mxu0 0.0
    %5802 = vmatpush1.msra.mxu0 0.0
    %5803 = vmatprep.subr.mxu0 0.0
    %5804 = vmatpush1.msra.mxu0 0.0
    %5805 = vmatprep.subr.mxu0 0.0
    %5806 = vmatpush1.msra.mxu0 0.0
    %5807 = vmatprep.subr.mxu0 0.0
    %5808 = vmatpush1.msra.mxu0 0.0
    %5809 = vmatprep.subr.mxu0 0.0
    %5810 = vmatpush1.msra.mxu0 0.0
    %5811 = vmatprep.subr.mxu0 0.0
    %5812 = vmatpush1.msra.mxu0 0.0
    %5813 = vmatprep.subr.mxu0 0.0
    %5814 = vmatpush1.msra.mxu0 0.0
    %5815 = vmatprep.subr.mxu0 0.0
    %5816 = vmatpush1.msra.mxu0 0.0
    %5817 = vmatprep.subr.mxu0 0.0
    %5818 = vmatpush1.msra.mxu0 0.0
    %5819 = vmatprep.subr.mxu0 0.0
    %5820 = vmatpush1.msra.mxu0 0.0
    %5821 = vmatprep.subr.mxu0 0.0
    %5822 = vmatpush1.msra.mxu0 0.0
    %5823 = vmatprep.subr.mxu0 0.0
    %5824 = vmatpush1.msra.mxu0 0.0
    %5825 = vmatprep.subr.mxu0 0.0
    %5826 = vmatpush1.msra.mxu0 0.0
    %5827 = vmatprep.subr.mxu0 0.0
    %5828 = vmatpush1.msra.mxu0 0.0
    %5829 = vmatprep.subr.mxu0 0.0
    %5830 = vmatpush1.msra.mxu0 0.0
    %5831 = vmatprep.subr.mxu0 0.0
    %5832 = vmatpush1.msra.mxu0 0.0
    %5833 = vmatprep.subr.mxu0 0.0
    %5834 = vmatpush1.msra.mxu0 0.0
    %5835 = vmatprep.subr.mxu0 0.0
    %5836 = vmatpush1.msra.mxu0 0.0
    %5837 = vmatprep.mubr.f32.mxu0 0.0
    %5838 = vmatmul.mubr.f32.gmra.mrb[0].mxu0 %v5771
    %v5839 = vpop.f32.mrb[0].mxu0
    %v5840 = vadd.f32 0.0, %v5839
    %v5841 = vpop.f32.mrb[0].mxu0
    %5842 = vdwg.mxu0
    %v5844 = vsel %vm1114, %v5621, 0
    %5846 = vmatprep.subr.mxu0 0.0
    %5847 = vmatpush1.msra.mxu0 %v4212
    %5848 = vmatprep.subr.mxu0 0.0
    %5849 = vmatpush1.msra.mxu0 0.0
    %5850 = vmatprep.subr.mxu0 0.0
    %5851 = vmatpush1.msra.mxu0 0.0
    %5852 = vmatprep.subr.mxu0 0.0
    %5853 = vmatpush1.msra.mxu0 0.0
    %5854 = vmatprep.subr.mxu0 0.0
    %5855 = vmatpush1.msra.mxu0 0.0
    %5856 = vmatprep.subr.mxu0 0.0
    %5857 = vmatpush1.msra.mxu0 0.0
    %5858 = vmatprep.subr.mxu0 0.0
    %5859 = vmatpush1.msra.mxu0 0.0
    %5860 = vmatprep.subr.mxu0 0.0
    %5861 = vmatpush1.msra.mxu0 0.0
    %5862 = vmatprep.subr.mxu0 0.0
    %5863 = vmatpush1.msra.mxu0 0.0
    %5864 = vmatprep.subr.mxu0 0.0
    %5865 = vmatpush1.msra.mxu0 0.0
    %5866 = vmatprep.subr.mxu0 0.0
    %5867 = vmatpush1.msra.mxu0 0.0
    %5868 = vmatprep.subr.mxu0 0.0
    %5869 = vmatpush1.msra.mxu0 0.0
    %5870 = vmatprep.subr.mxu0 0.0
    %5871 = vmatpush1.msra.mxu0 0.0
    %5872 = vmatprep.subr.mxu0 0.0
    %5873 = vmatpush1.msra.mxu0 0.0
    %5874 = vmatprep.subr.mxu0 0.0
    %5875 = vmatpush1.msra.mxu0 0.0
    %5876 = vmatprep.subr.mxu0 0.0
    %5877 = vmatpush1.msra.mxu0 0.0
    %5878 = vmatprep.subr.mxu0 0.0
    %5879 = vmatpush1.msra.mxu0 0.0
    %5880 = vmatprep.subr.mxu0 0.0
    %5881 = vmatpush1.msra.mxu0 0.0
    %5882 = vmatprep.subr.mxu0 0.0
    %5883 = vmatpush1.msra.mxu0 0.0
    %5884 = vmatprep.subr.mxu0 0.0
    %5885 = vmatpush1.msra.mxu0 0.0
    %5886 = vmatprep.subr.mxu0 0.0
    %5887 = vmatpush1.msra.mxu0 0.0
    %5888 = vmatprep.subr.mxu0 0.0
    %5889 = vmatpush1.msra.mxu0 0.0
    %5890 = vmatprep.subr.mxu0 0.0
    %5891 = vmatpush1.msra.mxu0 0.0
    %5892 = vmatprep.subr.mxu0 0.0
    %5893 = vmatpush1.msra.mxu0 0.0
    %5894 = vmatprep.subr.mxu0 0.0
    %5895 = vmatpush1.msra.mxu0 0.0
    %5896 = vmatprep.subr.mxu0 0.0
    %5897 = vmatpush1.msra.mxu0 0.0
    %5898 = vmatprep.subr.mxu0 0.0
    %5899 = vmatpush1.msra.mxu0 0.0
    %5900 = vmatprep.subr.mxu0 0.0
    %5901 = vmatpush1.msra.mxu0 0.0
    %5902 = vmatprep.subr.mxu0 0.0
    %5903 = vmatpush1.msra.mxu0 0.0
    %5904 = vmatprep.subr.mxu0 0.0
    %5905 = vmatpush1.msra.mxu0 0.0
    %5906 = vmatprep.subr.mxu0 0.0
    %5907 = vmatpush1.msra.mxu0 0.0
    %5908 = vmatprep.subr.mxu0 0.0
    %5909 = vmatpush1.msra.mxu0 0.0
    %5910 = vmatprep.mubr.f32.mxu0 0.0
    %5911 = vmatmul.mubr.f32.gmra.mrb[0].mxu0 %v5844
    %v5912 = vpop.f32.mrb[0].mxu0
    %v5913 = vadd.f32 0.0, %v5912
    %v5914 = vpop.f32.mrb[0].mxu0
    %5915 = vdwg.mxu0
    %v5917 = vsel %vm1114, %v5694, 0
    %5919 = vmatprep.subr.mxu0 0.0
    %5920 = vmatpush1.msra.mxu0 %v4213
    %5921 = vmatprep.subr.mxu0 0.0
    %5922 = vmatpush1.msra.mxu0 0.0
    %5923 = vmatprep.subr.mxu0 0.0
    %5924 = vmatpush1.msra.mxu0 0.0
    %5925 = vmatprep.subr.mxu0 0.0
    %5926 = vmatpush1.msra.mxu0 0.0
    %5927 = vmatprep.subr.mxu0 0.0
    %5928 = vmatpush1.msra.mxu0 0.0
    %5929 = vmatprep.subr.mxu0 0.0
    %5930 = vmatpush1.msra.mxu0 0.0
    %5931 = vmatprep.subr.mxu0 0.0
    %5932 = vmatpush1.msra.mxu0 0.0
    %5933 = vmatprep.subr.mxu0 0.0
    %5934 = vmatpush1.msra.mxu0 0.0
    %5935 = vmatprep.subr.mxu0 0.0
    %5936 = vmatpush1.msra.mxu0 0.0
    %5937 = vmatprep.subr.mxu0 0.0
    %5938 = vmatpush1.msra.mxu0 0.0
    %5939 = vmatprep.subr.mxu0 0.0
    %5940 = vmatpush1.msra.mxu0 0.0
    %5941 = vmatprep.subr.mxu0 0.0
    %5942 = vmatpush1.msra.mxu0 0.0
    %5943 = vmatprep.subr.mxu0 0.0
    %5944 = vmatpush1.msra.mxu0 0.0
    %5945 = vmatprep.subr.mxu0 0.0
    %5946 = vmatpush1.msra.mxu0 0.0
    %5947 = vmatprep.subr.mxu0 0.0
    %5948 = vmatpush1.msra.mxu0 0.0
    %5949 = vmatprep.subr.mxu0 0.0
    %5950 = vmatpush1.msra.mxu0 0.0
    %5951 = vmatprep.subr.mxu0 0.0
    %5952 = vmatpush1.msra.mxu0 0.0
    %5953 = vmatprep.subr.mxu0 0.0
    %5954 = vmatpush1.msra.mxu0 0.0
    %5955 = vmatprep.subr.mxu0 0.0
    %5956 = vmatpush1.msra.mxu0 0.0
    %5957 = vmatprep.subr.mxu0 0.0
    %5958 = vmatpush1.msra.mxu0 0.0
    %5959 = vmatprep.subr.mxu0 0.0
    %5960 = vmatpush1.msra.mxu0 0.0
    %5961 = vmatprep.subr.mxu0 0.0
    %5962 = vmatpush1.msra.mxu0 0.0
    %5963 = vmatprep.subr.mxu0 0.0
    %5964 = vmatpush1.msra.mxu0 0.0
    %5965 = vmatprep.subr.mxu0 0.0
    %5966 = vmatpush1.msra.mxu0 0.0
    %5967 = vmatprep.subr.mxu0 0.0
    %5968 = vmatpush1.msra.mxu0 0.0
    %5969 = vmatprep.subr.mxu0 0.0
    %5970 = vmatpush1.msra.mxu0 0.0
    %5971 = vmatprep.subr.mxu0 0.0
    %5972 = vmatpush1.msra.mxu0 0.0
    %5973 = vmatprep.subr.mxu0 0.0
    %5974 = vmatpush1.msra.mxu0 0.0
    %5975 = vmatprep.subr.mxu0 0.0
    %5976 = vmatpush1.msra.mxu0 0.0
    %5977 = vmatprep.subr.mxu0 0.0
    %5978 = vmatpush1.msra.mxu0 0.0
    %5979 = vmatprep.subr.mxu0 0.0
    %5980 = vmatpush1.msra.mxu0 0.0
    %5981 = vmatprep.subr.mxu0 0.0
    %5982 = vmatpush1.msra.mxu0 0.0
    %5983 = vmatprep.mubr.f32.mxu0 0.0
    %5984 = vmatmul.mubr.f32.gmra.mrb[0].mxu0 %v5917
    %v5985 = vpop.f32.mrb[0].mxu0
    %v5986 = vadd.f32 0.0, %v5985
    %v5987 = vpop.f32.mrb[0].mxu0
    %5988 = vdwg.mxu0
    %v5990 = vsel %vm1114, %v5767, 0
    %5992 = vmatprep.subr.mxu0 0.0
    %5993 = vmatpush1.msra.mxu0 %v4214
    %5994 = vmatprep.subr.mxu0 0.0
    %5995 = vmatpush1.msra.mxu0 0.0
    %5996 = vmatprep.subr.mxu0 0.0
    %5997 = vmatpush1.msra.mxu0 0.0
    %5998 = vmatprep.subr.mxu0 0.0
    %5999 = vmatpush1.msra.mxu0 0.0
    %6000 = vmatprep.subr.mxu0 0.0
    %6001 = vmatpush1.msra.mxu0 0.0
    %6002 = vmatprep.subr.mxu0 0.0
    %6003 = vmatpush1.msra.mxu0 0.0
    %6004 = vmatprep.subr.mxu0 0.0
    %6005 = vmatpush1.msra.mxu0 0.0
    %6006 = vmatprep.subr.mxu0 0.0
    %6007 = vmatpush1.msra.mxu0 0.0
    %6008 = vmatprep.subr.mxu0 0.0
    %6009 = vmatpush1.msra.mxu0 0.0
    %6010 = vmatprep.subr.mxu0 0.0
    %6011 = vmatpush1.msra.mxu0 0.0
    %6012 = vmatprep.subr.mxu0 0.0
    %6013 = vmatpush1.msra.mxu0 0.0
    %6014 = vmatprep.subr.mxu0 0.0
    %6015 = vmatpush1.msra.mxu0 0.0
    %6016 = vmatprep.subr.mxu0 0.0
    %6017 = vmatpush1.msra.mxu0 0.0
    %6018 = vmatprep.subr.mxu0 0.0
    %6019 = vmatpush1.msra.mxu0 0.0
    %6020 = vmatprep.subr.mxu0 0.0
    %6021 = vmatpush1.msra.mxu0 0.0
    %6022 = vmatprep.subr.mxu0 0.0
    %6023 = vmatpush1.msra.mxu0 0.0
    %6024 = vmatprep.subr.mxu0 0.0
    %6025 = vmatpush1.msra.mxu0 0.0
    %6026 = vmatprep.subr.mxu0 0.0
    %6027 = vmatpush1.msra.mxu0 0.0
    %6028 = vmatprep.subr.mxu0 0.0
    %6029 = vmatpush1.msra.mxu0 0.0
    %6030 = vmatprep.subr.mxu0 0.0
    %6031 = vmatpush1.msra.mxu0 0.0
    %6032 = vmatprep.subr.mxu0 0.0
    %6033 = vmatpush1.msra.mxu0 0.0
    %6034 = vmatprep.subr.mxu0 0.0
    %6035 = vmatpush1.msra.mxu0 0.0
    %6036 = vmatprep.subr.mxu0 0.0
    %6037 = vmatpush1.msra.mxu0 0.0
    %6038 = vmatprep.subr.mxu0 0.0
    %6039 = vmatpush1.msra.mxu0 0.0
    %6040 = vmatprep.subr.mxu0 0.0
    %6041 = vmatpush1.msra.mxu0 0.0
    %6042 = vmatprep.subr.mxu0 0.0
    %6043 = vmatpush1.msra.mxu0 0.0
    %6044 = vmatprep.subr.mxu0 0.0
    %6045 = vmatpush1.msra.mxu0 0.0
    %6046 = vmatprep.subr.mxu0 0.0
    %6047 = vmatpush1.msra.mxu0 0.0
    %6048 = vmatprep.subr.mxu0 0.0
    %6049 = vmatpush1.msra.mxu0 0.0
    %6050 = vmatprep.subr.mxu0 0.0
    %6051 = vmatpush1.msra.mxu0 0.0
    %6052 = vmatprep.subr.mxu0 0.0
    %6053 = vmatpush1.msra.mxu0 0.0
    %6054 = vmatprep.subr.mxu0 0.0
    %6055 = vmatpush1.msra.mxu0 0.0
    %6056 = vmatprep.mubr.f32.mxu0 0.0
    %6057 = vmatmul.mubr.f32.gmra.mrb[0].mxu0 %v5990
    %v6058 = vpop.f32.mrb[0].mxu0
    %v6059 = vadd.f32 0.0, %v6058
    %v6060 = vpop.f32.mrb[0].mxu0
    %6061 = vdwg.mxu0
    %v6062 = vsel %vm82, %v5840, 0.0
    %v6063 = vsel %vm82, %v5913, 0.0
    %v6064 = vadd.f32 %v6062, %v6063
    %v6065 = vsel %vm82, %v5986, 0.0
    %v6066 = vadd.f32 %v6064, %v6065
    %v6067 = vsel %vm82, %v6059, 0.0
    %v6068 = vadd.f32 %v6066, %v6067
    %v6070 = vsel %vm82, %v4143, 0
    %6072 = vmatprep.subr.mxu0 0.0
    %6073 = vmatpush1.msra.mxu0 %v4145
    %6074 = vmatprep.subr.mxu0 0.0
    %6075 = vmatpush1.msra.mxu0 %v4146
    %6076 = vmatprep.subr.mxu0 0.0
    %6077 = vmatpush1.msra.mxu0 %v4147
    %6078 = vmatprep.subr.mxu0 0.0
    %6079 = vmatpush1.msra.mxu0 %v4148
    %6080 = vmatprep.subr.mxu0 0.0
    %6081 = vmatpush1.msra.mxu0 0.0
    %6082 = vmatprep.subr.mxu0 0.0
    %6083 = vmatpush1.msra.mxu0 0.0
    %6084 = vmatprep.subr.mxu0 0.0
    %6085 = vmatpush1.msra.mxu0 0.0
    %6086 = vmatprep.subr.mxu0 0.0
    %6087 = vmatpush1.msra.mxu0 0.0
    %6088 = vmatprep.subr.mxu0 0.0
    %6089 = vmatpush1.msra.mxu0 0.0
    %6090 = vmatprep.subr.mxu0 0.0
    %6091 = vmatpush1.msra.mxu0 0.0
    %6092 = vmatprep.subr.mxu0 0.0
    %6093 = vmatpush1.msra.mxu0 0.0
    %6094 = vmatprep.subr.mxu0 0.0
    %6095 = vmatpush1.msra.mxu0 0.0
    %6096 = vmatprep.subr.mxu0 0.0
    %6097 = vmatpush1.msra.mxu0 0.0
    %6098 = vmatprep.subr.mxu0 0.0
    %6099 = vmatpush1.msra.mxu0 0.0
    %6100 = vmatprep.subr.mxu0 0.0
    %6101 = vmatpush1.msra.mxu0 0.0
    %6102 = vmatprep.subr.mxu0 0.0
    %6103 = vmatpush1.msra.mxu0 0.0
    %6104 = vmatprep.subr.mxu0 0.0
    %6105 = vmatpush1.msra.mxu0 0.0
    %6106 = vmatprep.subr.mxu0 0.0
    %6107 = vmatpush1.msra.mxu0 0.0
    %6108 = vmatprep.subr.mxu0 0.0
    %6109 = vmatpush1.msra.mxu0 0.0
    %6110 = vmatprep.subr.mxu0 0.0
    %6111 = vmatpush1.msra.mxu0 0.0
    %6112 = vmatprep.subr.mxu0 0.0
    %6113 = vmatpush1.msra.mxu0 0.0
    %6114 = vmatprep.subr.mxu0 0.0
    %6115 = vmatpush1.msra.mxu0 0.0
    %6116 = vmatprep.subr.mxu0 0.0
    %6117 = vmatpush1.msra.mxu0 0.0
    %6118 = vmatprep.subr.mxu0 0.0
    %6119 = vmatpush1.msra.mxu0 0.0
    %6120 = vmatprep.subr.mxu0 0.0
    %6121 = vmatpush1.msra.mxu0 0.0
    %6122 = vmatprep.subr.mxu0 0.0
    %6123 = vmatpush1.msra.mxu0 0.0
    %6124 = vmatprep.subr.mxu0 0.0
    %6125 = vmatpush1.msra.mxu0 0.0
    %6126 = vmatprep.subr.mxu0 0.0
    %6127 = vmatpush1.msra.mxu0 0.0
    %6128 = vmatprep.subr.mxu0 0.0
    %6129 = vmatpush1.msra.mxu0 0.0
    %6130 = vmatprep.subr.mxu0 0.0
    %6131 = vmatpush1.msra.mxu0 0.0
    %6132 = vmatprep.subr.mxu0 0.0
    %6133 = vmatpush1.msra.mxu0 0.0
    %6134 = vmatprep.subr.mxu0 0.0
    %6135 = vmatpush1.msra.mxu0 0.0
    %6136 = vmatprep.mubr.f32.mxu0 0.0
    %6137 = vmatmul.mubr.f32.gmra.mrb[0].mxu0 %v6070
    %v6138 = vpop.f32.mrb[0].mxu0
    %v6139 = vadd.f32 %v4222, %v6138
    %v6140 = vpop.f32.mrb[0].mxu0
    %6141 = vdwg.mxu0
    %6142 = vmatprep.subr.mxu0 0.0
    %6143 = vmatpush1.msra.mxu0 %v4149
    %6144 = vmatprep.subr.mxu0 0.0
    %6145 = vmatpush1.msra.mxu0 %v4150
    %6146 = vmatprep.subr.mxu0 0.0
    %6147 = vmatpush1.msra.mxu0 %v4151
    %6148 = vmatprep.subr.mxu0 0.0
    %6149 = vmatpush1.msra.mxu0 %v4152
    %6150 = vmatprep.subr.mxu0 0.0
    %6151 = vmatpush1.msra.mxu0 0.0
    %6152 = vmatprep.subr.mxu0 0.0
    %6153 = vmatpush1.msra.mxu0 0.0
    %6154 = vmatprep.subr.mxu0 0.0
    %6155 = vmatpush1.msra.mxu0 0.0
    %6156 = vmatprep.subr.mxu0 0.0
    %6157 = vmatpush1.msra.mxu0 0.0
    %6158 = vmatprep.subr.mxu0 0.0
    %6159 = vmatpush1.msra.mxu0 0.0
    %6160 = vmatprep.subr.mxu0 0.0
    %6161 = vmatpush1.msra.mxu0 0.0
    %6162 = vmatprep.subr.mxu0 0.0
    %6163 = vmatpush1.msra.mxu0 0.0
    %6164 = vmatprep.subr.mxu0 0.0
    %6165 = vmatpush1.msra.mxu0 0.0
    %6166 = vmatprep.subr.mxu0 0.0
    %6167 = vmatpush1.msra.mxu0 0.0
    %6168 = vmatprep.subr.mxu0 0.0
    %6169 = vmatpush1.msra.mxu0 0.0
    %6170 = vmatprep.subr.mxu0 0.0
    %6171 = vmatpush1.msra.mxu0 0.0
    %6172 = vmatprep.subr.mxu0 0.0
    %6173 = vmatpush1.msra.mxu0 0.0
    %6174 = vmatprep.subr.mxu0 0.0
    %6175 = vmatpush1.msra.mxu0 0.0
    %6176 = vmatprep.subr.mxu0 0.0
    %6177 = vmatpush1.msra.mxu0 0.0
    %6178 = vmatprep.subr.mxu0 0.0
    %6179 = vmatpush1.msra.mxu0 0.0
    %6180 = vmatprep.subr.mxu0 0.0
    %6181 = vmatpush1.msra.mxu0 0.0
    %6182 = vmatprep.subr.mxu0 0.0
    %6183 = vmatpush1.msra.mxu0 0.0
    %6184 = vmatprep.subr.mxu0 0.0
    %6185 = vmatpush1.msra.mxu0 0.0
    %6186 = vmatprep.subr.mxu0 0.0
    %6187 = vmatpush1.msra.mxu0 0.0
    %6188 = vmatprep.subr.mxu0 0.0
    %6189 = vmatpush1.msra.mxu0 0.0
    %6190 = vmatprep.subr.mxu0 0.0
    %6191 = vmatpush1.msra.mxu0 0.0
    %6192 = vmatprep.subr.mxu0 0.0
    %6193 = vmatpush1.msra.mxu0 0.0
    %6194 = vmatprep.subr.mxu0 0.0
    %6195 = vmatpush1.msra.mxu0 0.0
    %6196 = vmatprep.subr.mxu0 0.0
    %6197 = vmatpush1.msra.mxu0 0.0
    %6198 = vmatprep.subr.mxu0 0.0
    %6199 = vmatpush1.msra.mxu0 0.0
    %6200 = vmatprep.subr.mxu0 0.0
    %6201 = vmatpush1.msra.mxu0 0.0
    %6202 = vmatprep.subr.mxu0 0.0
    %6203 = vmatpush1.msra.mxu0 0.0
    %6204 = vmatprep.subr.mxu0 0.0
    %6205 = vmatpush1.msra.mxu0 0.0
    %6206 = vmatprep.mubr.f32.mxu0 0.0
    %6207 = vmatmul.mubr.f32.gmra.mrb[0].mxu0 %v6070
    %v6208 = vpop.f32.mrb[0].mxu0
    %v6209 = vadd.f32 %v4226, %v6208
    %v6210 = vpop.f32.mrb[0].mxu0
    %6211 = vdwg.mxu0
    %6212 = vmatprep.subr.mxu0 0.0
    %6213 = vmatpush1.msra.mxu0 %v4153
    %6214 = vmatprep.subr.mxu0 0.0
    %6215 = vmatpush1.msra.mxu0 %v4154
    %6216 = vmatprep.subr.mxu0 0.0
    %6217 = vmatpush1.msra.mxu0 %v4155
    %6218 = vmatprep.subr.mxu0 0.0
    %6219 = vmatpush1.msra.mxu0 %v4156
    %6220 = vmatprep.subr.mxu0 0.0
    %6221 = vmatpush1.msra.mxu0 0.0
    %6222 = vmatprep.subr.mxu0 0.0
    %6223 = vmatpush1.msra.mxu0 0.0
    %6224 = vmatprep.subr.mxu0 0.0
    %6225 = vmatpush1.msra.mxu0 0.0
    %6226 = vmatprep.subr.mxu0 0.0
    %6227 = vmatpush1.msra.mxu0 0.0
    %6228 = vmatprep.subr.mxu0 0.0
    %6229 = vmatpush1.msra.mxu0 0.0
    %6230 = vmatprep.subr.mxu0 0.0
    %6231 = vmatpush1.msra.mxu0 0.0
    %6232 = vmatprep.subr.mxu0 0.0
    %6233 = vmatpush1.msra.mxu0 0.0
    %6234 = vmatprep.subr.mxu0 0.0
    %6235 = vmatpush1.msra.mxu0 0.0
    %6236 = vmatprep.subr.mxu0 0.0
    %6237 = vmatpush1.msra.mxu0 0.0
    %6238 = vmatprep.subr.mxu0 0.0
    %6239 = vmatpush1.msra.mxu0 0.0
    %6240 = vmatprep.subr.mxu0 0.0
    %6241 = vmatpush1.msra.mxu0 0.0
    %6242 = vmatprep.subr.mxu0 0.0
    %6243 = vmatpush1.msra.mxu0 0.0
    %6244 = vmatprep.subr.mxu0 0.0
    %6245 = vmatpush1.msra.mxu0 0.0
    %6246 = vmatprep.subr.mxu0 0.0
    %6247 = vmatpush1.msra.mxu0 0.0
    %6248 = vmatprep.subr.mxu0 0.0
    %6249 = vmatpush1.msra.mxu0 0.0
    %6250 = vmatprep.subr.mxu0 0.0
    %6251 = vmatpush1.msra.mxu0 0.0
    %6252 = vmatprep.subr.mxu0 0.0
    %6253 = vmatpush1.msra.mxu0 0.0
    %6254 = vmatprep.subr.mxu0 0.0
    %6255 = vmatpush1.msra.mxu0 0.0
    %6256 = vmatprep.subr.mxu0 0.0
    %6257 = vmatpush1.msra.mxu0 0.0
    %6258 = vmatprep.subr.mxu0 0.0
    %6259 = vmatpush1.msra.mxu0 0.0
    %6260 = vmatprep.subr.mxu0 0.0
    %6261 = vmatpush1.msra.mxu0 0.0
    %6262 = vmatprep.subr.mxu0 0.0
    %6263 = vmatpush1.msra.mxu0 0.0
    %6264 = vmatprep.subr.mxu0 0.0
    %6265 = vmatpush1.msra.mxu0 0.0
    %6266 = vmatprep.subr.mxu0 0.0
    %6267 = vmatpush1.msra.mxu0 0.0
    %6268 = vmatprep.subr.mxu0 0.0
    %6269 = vmatpush1.msra.mxu0 0.0
    %6270 = vmatprep.subr.mxu0 0.0
    %6271 = vmatpush1.msra.mxu0 0.0
    %6272 = vmatprep.subr.mxu0 0.0
    %6273 = vmatpush1.msra.mxu0 0.0
    %6274 = vmatprep.subr.mxu0 0.0
    %6275 = vmatpush1.msra.mxu0 0.0
    %6276 = vmatprep.mubr.f32.mxu0 0.0
    %6277 = vmatmul.mubr.f32.gmra.mrb[0].mxu0 %v6070
    %v6278 = vpop.f32.mrb[0].mxu0
    %v6279 = vadd.f32 %v4230, %v6278
    %v6280 = vpop.f32.mrb[0].mxu0
    %6281 = vdwg.mxu0
    %6282 = vmatprep.subr.mxu0 0.0
    %6283 = vmatpush1.msra.mxu0 %v4157
    %6284 = vmatprep.subr.mxu0 0.0
    %6285 = vmatpush1.msra.mxu0 %v4158
    %6286 = vmatprep.subr.mxu0 0.0
    %6287 = vmatpush1.msra.mxu0 %v4159
    %6288 = vmatprep.subr.mxu0 0.0
    %6289 = vmatpush1.msra.mxu0 %v4160
    %6290 = vmatprep.subr.mxu0 0.0
    %6291 = vmatpush1.msra.mxu0 0.0
    %6292 = vmatprep.subr.mxu0 0.0
    %6293 = vmatpush1.msra.mxu0 0.0
    %6294 = vmatprep.subr.mxu0 0.0
    %6295 = vmatpush1.msra.mxu0 0.0
    %6296 = vmatprep.subr.mxu0 0.0
    %6297 = vmatpush1.msra.mxu0 0.0
    %6298 = vmatprep.subr.mxu0 0.0
    %6299 = vmatpush1.msra.mxu0 0.0
    %6300 = vmatprep.subr.mxu0 0.0
    %6301 = vmatpush1.msra.mxu0 0.0
    %6302 = vmatprep.subr.mxu0 0.0
    %6303 = vmatpush1.msra.mxu0 0.0
    %6304 = vmatprep.subr.mxu0 0.0
    %6305 = vmatpush1.msra.mxu0 0.0
    %6306 = vmatprep.subr.mxu0 0.0
    %6307 = vmatpush1.msra.mxu0 0.0
    %6308 = vmatprep.subr.mxu0 0.0
    %6309 = vmatpush1.msra.mxu0 0.0
    %6310 = vmatprep.subr.mxu0 0.0
    %6311 = vmatpush1.msra.mxu0 0.0
    %6312 = vmatprep.subr.mxu0 0.0
    %6313 = vmatpush1.msra.mxu0 0.0
    %6314 = vmatprep.subr.mxu0 0.0
    %6315 = vmatpush1.msra.mxu0 0.0
    %6316 = vmatprep.subr.mxu0 0.0
    %6317 = vmatpush1.msra.mxu0 0.0
    %6318 = vmatprep.subr.mxu0 0.0
    %6319 = vmatpush1.msra.mxu0 0.0
    %6320 = vmatprep.subr.mxu0 0.0
    %6321 = vmatpush1.msra.mxu0 0.0
    %6322 = vmatprep.subr.mxu0 0.0
    %6323 = vmatpush1.msra.mxu0 0.0
    %6324 = vmatprep.subr.mxu0 0.0
    %6325 = vmatpush1.msra.mxu0 0.0
    %6326 = vmatprep.subr.mxu0 0.0
    %6327 = vmatpush1.msra.mxu0 0.0
    %6328 = vmatprep.subr.mxu0 0.0
    %6329 = vmatpush1.msra.mxu0 0.0
    %6330 = vmatprep.subr.mxu0 0.0
    %6331 = vmatpush1.msra.mxu0 0.0
    %6332 = vmatprep.subr.mxu0 0.0
    %6333 = vmatpush1.msra.mxu0 0.0
    %6334 = vmatprep.subr.mxu0 0.0
    %6335 = vmatpush1.msra.mxu0 0.0
    %6336 = vmatprep.subr.mxu0 0.0
    %6337 = vmatpush1.msra.mxu0 0.0
    %6338 = vmatprep.subr.mxu0 0.0
    %6339 = vmatpush1.msra.mxu0 0.0
    %6340 = vmatprep.subr.mxu0 0.0
    %6341 = vmatpush1.msra.mxu0 0.0
    %6342 = vmatprep.subr.mxu0 0.0
    %6343 = vmatpush1.msra.mxu0 0.0
    %6344 = vmatprep.subr.mxu0 0.0
    %6345 = vmatpush1.msra.mxu0 0.0
    %6346 = vmatprep.mubr.f32.mxu0 0.0
    %6347 = vmatmul.mubr.f32.gmra.mrb[0].mxu0 %v6070
    %v6348 = vpop.f32.mrb[0].mxu0
    %v6349 = vadd.f32 %v4234, %v6348
    %v6350 = vpop.f32.mrb[0].mxu0
    %6351 = vdwg.mxu0
    %6352 = vmatprep.subr.mxu0 0.0
    %6353 = vmatpush1.msra.mxu0 %v4162
    %6354 = vmatprep.subr.mxu0 0.0
    %6355 = vmatpush1.msra.mxu0 %v4163
    %6356 = vmatprep.subr.mxu0 0.0
    %6357 = vmatpush1.msra.mxu0 %v4164
    %6358 = vmatprep.subr.mxu0 0.0
    %6359 = vmatpush1.msra.mxu0 %v4165
    %6360 = vmatprep.subr.mxu0 0.0
    %6361 = vmatpush1.msra.mxu0 0.0
    %6362 = vmatprep.subr.mxu0 0.0
    %6363 = vmatpush1.msra.mxu0 0.0
    %6364 = vmatprep.subr.mxu0 0.0
    %6365 = vmatpush1.msra.mxu0 0.0
    %6366 = vmatprep.subr.mxu0 0.0
    %6367 = vmatpush1.msra.mxu0 0.0
    %6368 = vmatprep.subr.mxu0 0.0
    %6369 = vmatpush1.msra.mxu0 0.0
    %6370 = vmatprep.subr.mxu0 0.0
    %6371 = vmatpush1.msra.mxu0 0.0
    %6372 = vmatprep.subr.mxu0 0.0
    %6373 = vmatpush1.msra.mxu0 0.0
    %6374 = vmatprep.subr.mxu0 0.0
    %6375 = vmatpush1.msra.mxu0 0.0
    %6376 = vmatprep.subr.mxu0 0.0
    %6377 = vmatpush1.msra.mxu0 0.0
    %6378 = vmatprep.subr.mxu0 0.0
    %6379 = vmatpush1.msra.mxu0 0.0
    %6380 = vmatprep.subr.mxu0 0.0
    %6381 = vmatpush1.msra.mxu0 0.0
    %6382 = vmatprep.subr.mxu0 0.0
    %6383 = vmatpush1.msra.mxu0 0.0
    %6384 = vmatprep.subr.mxu0 0.0
    %6385 = vmatpush1.msra.mxu0 0.0
    %6386 = vmatprep.subr.mxu0 0.0
    %6387 = vmatpush1.msra.mxu0 0.0
    %6388 = vmatprep.subr.mxu0 0.0
    %6389 = vmatpush1.msra.mxu0 0.0
    %6390 = vmatprep.subr.mxu0 0.0
    %6391 = vmatpush1.msra.mxu0 0.0
    %6392 = vmatprep.subr.mxu0 0.0
    %6393 = vmatpush1.msra.mxu0 0.0
    %6394 = vmatprep.subr.mxu0 0.0
    %6395 = vmatpush1.msra.mxu0 0.0
    %6396 = vmatprep.subr.mxu0 0.0
    %6397 = vmatpush1.msra.mxu0 0.0
    %6398 = vmatprep.subr.mxu0 0.0
    %6399 = vmatpush1.msra.mxu0 0.0
    %6400 = vmatprep.subr.mxu0 0.0
    %6401 = vmatpush1.msra.mxu0 0.0
    %6402 = vmatprep.subr.mxu0 0.0
    %6403 = vmatpush1.msra.mxu0 0.0
    %6404 = vmatprep.subr.mxu0 0.0
    %6405 = vmatpush1.msra.mxu0 0.0
    %6406 = vmatprep.subr.mxu0 0.0
    %6407 = vmatpush1.msra.mxu0 0.0
    %6408 = vmatprep.subr.mxu0 0.0
    %6409 = vmatpush1.msra.mxu0 0.0
    %6410 = vmatprep.subr.mxu0 0.0
    %6411 = vmatpush1.msra.mxu0 0.0
    %6412 = vmatprep.subr.mxu0 0.0
    %6413 = vmatpush1.msra.mxu0 0.0
    %6414 = vmatprep.subr.mxu0 0.0
    %6415 = vmatpush1.msra.mxu0 0.0
    %6416 = vmatprep.mubr.f32.mxu0 0.0
    %6417 = vmatmul.mubr.f32.gmra.mrb[0].mxu0 %v6070
    %v6418 = vpop.f32.mrb[0].mxu0
    %v6419 = vadd.f32 %v4529, %v6418
    %v6420 = vpop.f32.mrb[0].mxu0
    %6421 = vdwg.mxu0
    %6422 = vmatprep.subr.mxu0 0.0
    %6423 = vmatpush1.msra.mxu0 %v4166
    %6424 = vmatprep.subr.mxu0 0.0
    %6425 = vmatpush1.msra.mxu0 %v4167
    %6426 = vmatprep.subr.mxu0 0.0
    %6427 = vmatpush1.msra.mxu0 %v4168
    %6428 = vmatprep.subr.mxu0 0.0
    %6429 = vmatpush1.msra.mxu0 %v4169
    %6430 = vmatprep.subr.mxu0 0.0
    %6431 = vmatpush1.msra.mxu0 0.0
    %6432 = vmatprep.subr.mxu0 0.0
    %6433 = vmatpush1.msra.mxu0 0.0
    %6434 = vmatprep.subr.mxu0 0.0
    %6435 = vmatpush1.msra.mxu0 0.0
    %6436 = vmatprep.subr.mxu0 0.0
    %6437 = vmatpush1.msra.mxu0 0.0
    %6438 = vmatprep.subr.mxu0 0.0
    %6439 = vmatpush1.msra.mxu0 0.0
    %6440 = vmatprep.subr.mxu0 0.0
    %6441 = vmatpush1.msra.mxu0 0.0
    %6442 = vmatprep.subr.mxu0 0.0
    %6443 = vmatpush1.msra.mxu0 0.0
    %6444 = vmatprep.subr.mxu0 0.0
    %6445 = vmatpush1.msra.mxu0 0.0
    %6446 = vmatprep.subr.mxu0 0.0
    %6447 = vmatpush1.msra.mxu0 0.0
    %6448 = vmatprep.subr.mxu0 0.0
    %6449 = vmatpush1.msra.mxu0 0.0
    %6450 = vmatprep.subr.mxu0 0.0
    %6451 = vmatpush1.msra.mxu0 0.0
    %6452 = vmatprep.subr.mxu0 0.0
    %6453 = vmatpush1.msra.mxu0 0.0
    %6454 = vmatprep.subr.mxu0 0.0
    %6455 = vmatpush1.msra.mxu0 0.0
    %6456 = vmatprep.subr.mxu0 0.0
    %6457 = vmatpush1.msra.mxu0 0.0
    %6458 = vmatprep.subr.mxu0 0.0
    %6459 = vmatpush1.msra.mxu0 0.0
    %6460 = vmatprep.subr.mxu0 0.0
    %6461 = vmatpush1.msra.mxu0 0.0
    %6462 = vmatprep.subr.mxu0 0.0
    %6463 = vmatpush1.msra.mxu0 0.0
    %6464 = vmatprep.subr.mxu0 0.0
    %6465 = vmatpush1.msra.mxu0 0.0
    %6466 = vmatprep.subr.mxu0 0.0
    %6467 = vmatpush1.msra.mxu0 0.0
    %6468 = vmatprep.subr.mxu0 0.0
    %6469 = vmatpush1.msra.mxu0 0.0
    %6470 = vmatprep.subr.mxu0 0.0
    %6471 = vmatpush1.msra.mxu0 0.0
    %6472 = vmatprep.subr.mxu0 0.0
    %6473 = vmatpush1.msra.mxu0 0.0
    %6474 = vmatprep.subr.mxu0 0.0
    %6475 = vmatpush1.msra.mxu0 0.0
    %6476 = vmatprep.subr.mxu0 0.0
    %6477 = vmatpush1.msra.mxu0 0.0
    %6478 = vmatprep.subr.mxu0 0.0
    %6479 = vmatpush1.msra.mxu0 0.0
    %6480 = vmatprep.subr.mxu0 0.0
    %6481 = vmatpush1.msra.mxu0 0.0
    %6482 = vmatprep.subr.mxu0 0.0
    %6483 = vmatpush1.msra.mxu0 0.0
    %6484 = vmatprep.subr.mxu0 0.0
    %6485 = vmatpush1.msra.mxu0 0.0
    %6486 = vmatprep.mubr.f32.mxu0 0.0
    %6487 = vmatmul.mubr.f32.gmra.mrb[0].mxu0 %v6070
    %v6488 = vpop.f32.mrb[0].mxu0
    %v6489 = vadd.f32 %v4533, %v6488
    %v6490 = vpop.f32.mrb[0].mxu0
    %6491 = vdwg.mxu0
    %6492 = vmatprep.subr.mxu0 0.0
    %6493 = vmatpush1.msra.mxu0 %v4170
    %6494 = vmatprep.subr.mxu0 0.0
    %6495 = vmatpush1.msra.mxu0 %v4171
    %6496 = vmatprep.subr.mxu0 0.0
    %6497 = vmatpush1.msra.mxu0 %v4172
    %6498 = vmatprep.subr.mxu0 0.0
    %6499 = vmatpush1.msra.mxu0 %v4173
    %6500 = vmatprep.subr.mxu0 0.0
    %6501 = vmatpush1.msra.mxu0 0.0
    %6502 = vmatprep.subr.mxu0 0.0
    %6503 = vmatpush1.msra.mxu0 0.0
    %6504 = vmatprep.subr.mxu0 0.0
    %6505 = vmatpush1.msra.mxu0 0.0
    %6506 = vmatprep.subr.mxu0 0.0
    %6507 = vmatpush1.msra.mxu0 0.0
    %6508 = vmatprep.subr.mxu0 0.0
    %6509 = vmatpush1.msra.mxu0 0.0
    %6510 = vmatprep.subr.mxu0 0.0
    %6511 = vmatpush1.msra.mxu0 0.0
    %6512 = vmatprep.subr.mxu0 0.0
    %6513 = vmatpush1.msra.mxu0 0.0
    %6514 = vmatprep.subr.mxu0 0.0
    %6515 = vmatpush1.msra.mxu0 0.0
    %6516 = vmatprep.subr.mxu0 0.0
    %6517 = vmatpush1.msra.mxu0 0.0
    %6518 = vmatprep.subr.mxu0 0.0
    %6519 = vmatpush1.msra.mxu0 0.0
    %6520 = vmatprep.subr.mxu0 0.0
    %6521 = vmatpush1.msra.mxu0 0.0
    %6522 = vmatprep.subr.mxu0 0.0
    %6523 = vmatpush1.msra.mxu0 0.0
    %6524 = vmatprep.subr.mxu0 0.0
    %6525 = vmatpush1.msra.mxu0 0.0
    %6526 = vmatprep.subr.mxu0 0.0
    %6527 = vmatpush1.msra.mxu0 0.0
    %6528 = vmatprep.subr.mxu0 0.0
    %6529 = vmatpush1.msra.mxu0 0.0
    %6530 = vmatprep.subr.mxu0 0.0
    %6531 = vmatpush1.msra.mxu0 0.0
    %6532 = vmatprep.subr.mxu0 0.0
    %6533 = vmatpush1.msra.mxu0 0.0
    %6534 = vmatprep.subr.mxu0 0.0
    %6535 = vmatpush1.msra.mxu0 0.0
    %6536 = vmatprep.subr.mxu0 0.0
    %6537 = vmatpush1.msra.mxu0 0.0
    %6538 = vmatprep.subr.mxu0 0.0
    %6539 = vmatpush1.msra.mxu0 0.0
    %6540 = vmatprep.subr.mxu0 0.0
    %6541 = vmatpush1.msra.mxu0 0.0
    %6542 = vmatprep.subr.mxu0 0.0
    %6543 = vmatpush1.msra.mxu0 0.0
    %6544 = vmatprep.subr.mxu0 0.0
    %6545 = vmatpush1.msra.mxu0 0.0
    %6546 = vmatprep.subr.mxu0 0.0
    %6547 = vmatpush1.msra.mxu0 0.0
    %6548 = vmatprep.subr.mxu0 0.0
    %6549 = vmatpush1.msra.mxu0 0.0
    %6550 = vmatprep.subr.mxu0 0.0
    %6551 = vmatpush1.msra.mxu0 0.0
    %6552 = vmatprep.subr.mxu0 0.0
    %6553 = vmatpush1.msra.mxu0 0.0
    %6554 = vmatprep.subr.mxu0 0.0
    %6555 = vmatpush1.msra.mxu0 0.0
    %6556 = vmatprep.mubr.f32.mxu0 0.0
    %6557 = vmatmul.mubr.f32.gmra.mrb[0].mxu0 %v6070
    %v6558 = vpop.f32.mrb[0].mxu0
    %v6559 = vadd.f32 %v4537, %v6558
    %v6560 = vpop.f32.mrb[0].mxu0
    %6561 = vdwg.mxu0
    %6562 = vmatprep.subr.mxu0 0.0
    %6563 = vmatpush1.msra.mxu0 %v4174
    %6564 = vmatprep.subr.mxu0 0.0
    %6565 = vmatpush1.msra.mxu0 %v4175
    %6566 = vmatprep.subr.mxu0 0.0
    %6567 = vmatpush1.msra.mxu0 %v4176
    %6568 = vmatprep.subr.mxu0 0.0
    %6569 = vmatpush1.msra.mxu0 %v4177
    %6570 = vmatprep.subr.mxu0 0.0
    %6571 = vmatpush1.msra.mxu0 0.0
    %6572 = vmatprep.subr.mxu0 0.0
    %6573 = vmatpush1.msra.mxu0 0.0
    %6574 = vmatprep.subr.mxu0 0.0
    %6575 = vmatpush1.msra.mxu0 0.0
    %6576 = vmatprep.subr.mxu0 0.0
    %6577 = vmatpush1.msra.mxu0 0.0
    %6578 = vmatprep.subr.mxu0 0.0
    %6579 = vmatpush1.msra.mxu0 0.0
    %6580 = vmatprep.subr.mxu0 0.0
    %6581 = vmatpush1.msra.mxu0 0.0
    %6582 = vmatprep.subr.mxu0 0.0
    %6583 = vmatpush1.msra.mxu0 0.0
    %6584 = vmatprep.subr.mxu0 0.0
    %6585 = vmatpush1.msra.mxu0 0.0
    %6586 = vmatprep.subr.mxu0 0.0
    %6587 = vmatpush1.msra.mxu0 0.0
    %6588 = vmatprep.subr.mxu0 0.0
    %6589 = vmatpush1.msra.mxu0 0.0
    %6590 = vmatprep.subr.mxu0 0.0
    %6591 = vmatpush1.msra.mxu0 0.0
    %6592 = vmatprep.subr.mxu0 0.0
    %6593 = vmatpush1.msra.mxu0 0.0
    %6594 = vmatprep.subr.mxu0 0.0
    %6595 = vmatpush1.msra.mxu0 0.0
    %6596 = vmatprep.subr.mxu0 0.0
    %6597 = vmatpush1.msra.mxu0 0.0
    %6598 = vmatprep.subr.mxu0 0.0
    %6599 = vmatpush1.msra.mxu0 0.0
    %6600 = vmatprep.subr.mxu0 0.0
    %6601 = vmatpush1.msra.mxu0 0.0
    %6602 = vmatprep.subr.mxu0 0.0
    %6603 = vmatpush1.msra.mxu0 0.0
    %6604 = vmatprep.subr.mxu0 0.0
    %6605 = vmatpush1.msra.mxu0 0.0
    %6606 = vmatprep.subr.mxu0 0.0
    %6607 = vmatpush1.msra.mxu0 0.0
    %6608 = vmatprep.subr.mxu0 0.0
    %6609 = vmatpush1.msra.mxu0 0.0
    %6610 = vmatprep.subr.mxu0 0.0
    %6611 = vmatpush1.msra.mxu0 0.0
    %6612 = vmatprep.subr.mxu0 0.0
    %6613 = vmatpush1.msra.mxu0 0.0
    %6614 = vmatprep.subr.mxu0 0.0
    %6615 = vmatpush1.msra.mxu0 0.0
    %6616 = vmatprep.subr.mxu0 0.0
    %6617 = vmatpush1.msra.mxu0 0.0
    %6618 = vmatprep.subr.mxu0 0.0
    %6619 = vmatpush1.msra.mxu0 0.0
    %6620 = vmatprep.subr.mxu0 0.0
    %6621 = vmatpush1.msra.mxu0 0.0
    %6622 = vmatprep.subr.mxu0 0.0
    %6623 = vmatpush1.msra.mxu0 0.0
    %6624 = vmatprep.subr.mxu0 0.0
    %6625 = vmatpush1.msra.mxu0 0.0
    %6626 = vmatprep.mubr.f32.mxu0 0.0
    %6627 = vmatmul.mubr.f32.gmra.mrb[0].mxu0 %v6070
    %v6628 = vpop.f32.mrb[0].mxu0
    %v6629 = vadd.f32 %v4541, %v6628
    %v6630 = vpop.f32.mrb[0].mxu0
    %6631 = vdwg.mxu0
    %6632 = vmatprep.subr.mxu0 0.0
    %6633 = vmatpush1.msra.mxu0 %v4179
    %6634 = vmatprep.subr.mxu0 0.0
    %6635 = vmatpush1.msra.mxu0 %v4180
    %6636 = vmatprep.subr.mxu0 0.0
    %6637 = vmatpush1.msra.mxu0 %v4181
    %6638 = vmatprep.subr.mxu0 0.0
    %6639 = vmatpush1.msra.mxu0 %v4182
    %6640 = vmatprep.subr.mxu0 0.0
    %6641 = vmatpush1.msra.mxu0 0.0
    %6642 = vmatprep.subr.mxu0 0.0
    %6643 = vmatpush1.msra.mxu0 0.0
    %6644 = vmatprep.subr.mxu0 0.0
    %6645 = vmatpush1.msra.mxu0 0.0
    %6646 = vmatprep.subr.mxu0 0.0
    %6647 = vmatpush1.msra.mxu0 0.0
    %6648 = vmatprep.subr.mxu0 0.0
    %6649 = vmatpush1.msra.mxu0 0.0
    %6650 = vmatprep.subr.mxu0 0.0
    %6651 = vmatpush1.msra.mxu0 0.0
    %6652 = vmatprep.subr.mxu0 0.0
    %6653 = vmatpush1.msra.mxu0 0.0
    %6654 = vmatprep.subr.mxu0 0.0
    %6655 = vmatpush1.msra.mxu0 0.0
    %6656 = vmatprep.subr.mxu0 0.0
    %6657 = vmatpush1.msra.mxu0 0.0
    %6658 = vmatprep.subr.mxu0 0.0
    %6659 = vmatpush1.msra.mxu0 0.0
    %6660 = vmatprep.subr.mxu0 0.0
    %6661 = vmatpush1.msra.mxu0 0.0
    %6662 = vmatprep.subr.mxu0 0.0
    %6663 = vmatpush1.msra.mxu0 0.0
    %6664 = vmatprep.subr.mxu0 0.0
    %6665 = vmatpush1.msra.mxu0 0.0
    %6666 = vmatprep.subr.mxu0 0.0
    %6667 = vmatpush1.msra.mxu0 0.0
    %6668 = vmatprep.subr.mxu0 0.0
    %6669 = vmatpush1.msra.mxu0 0.0
    %6670 = vmatprep.subr.mxu0 0.0
    %6671 = vmatpush1.msra.mxu0 0.0
    %6672 = vmatprep.subr.mxu0 0.0
    %6673 = vmatpush1.msra.mxu0 0.0
    %6674 = vmatprep.subr.mxu0 0.0
    %6675 = vmatpush1.msra.mxu0 0.0
    %6676 = vmatprep.subr.mxu0 0.0
    %6677 = vmatpush1.msra.mxu0 0.0
    %6678 = vmatprep.subr.mxu0 0.0
    %6679 = vmatpush1.msra.mxu0 0.0
    %6680 = vmatprep.subr.mxu0 0.0
    %6681 = vmatpush1.msra.mxu0 0.0
    %6682 = vmatprep.subr.mxu0 0.0
    %6683 = vmatpush1.msra.mxu0 0.0
    %6684 = vmatprep.subr.mxu0 0.0
    %6685 = vmatpush1.msra.mxu0 0.0
    %6686 = vmatprep.subr.mxu0 0.0
    %6687 = vmatpush1.msra.mxu0 0.0
    %6688 = vmatprep.subr.mxu0 0.0
    %6689 = vmatpush1.msra.mxu0 0.0
    %6690 = vmatprep.subr.mxu0 0.0
    %6691 = vmatpush1.msra.mxu0 0.0
    %6692 = vmatprep.subr.mxu0 0.0
    %6693 = vmatpush1.msra.mxu0 0.0
    %6694 = vmatprep.subr.mxu0 0.0
    %6695 = vmatpush1.msra.mxu0 0.0
    %6696 = vmatprep.mubr.f32.mxu0 0.0
    %6697 = vmatmul.mubr.f32.gmra.mrb[0].mxu0 %v6070
    %v6698 = vpop.f32.mrb[0].mxu0
    %v6699 = vadd.f32 %v4833, %v6698
    %v6700 = vpop.f32.mrb[0].mxu0
    %6701 = vdwg.mxu0
    %6702 = vmatprep.subr.mxu0 0.0
    %6703 = vmatpush1.msra.mxu0 %v4183
    %6704 = vmatprep.subr.mxu0 0.0
    %6705 = vmatpush1.msra.mxu0 %v4184
    %6706 = vmatprep.subr.mxu0 0.0
    %6707 = vmatpush1.msra.mxu0 %v4185
    %6708 = vmatprep.subr.mxu0 0.0
    %6709 = vmatpush1.msra.mxu0 %v4186
    %6710 = vmatprep.subr.mxu0 0.0
    %6711 = vmatpush1.msra.mxu0 0.0
    %6712 = vmatprep.subr.mxu0 0.0
    %6713 = vmatpush1.msra.mxu0 0.0
    %6714 = vmatprep.subr.mxu0 0.0
    %6715 = vmatpush1.msra.mxu0 0.0
    %6716 = vmatprep.subr.mxu0 0.0
    %6717 = vmatpush1.msra.mxu0 0.0
    %6718 = vmatprep.subr.mxu0 0.0
    %6719 = vmatpush1.msra.mxu0 0.0
    %6720 = vmatprep.subr.mxu0 0.0
    %6721 = vmatpush1.msra.mxu0 0.0
    %6722 = vmatprep.subr.mxu0 0.0
    %6723 = vmatpush1.msra.mxu0 0.0
    %6724 = vmatprep.subr.mxu0 0.0
    %6725 = vmatpush1.msra.mxu0 0.0
    %6726 = vmatprep.subr.mxu0 0.0
    %6727 = vmatpush1.msra.mxu0 0.0
    %6728 = vmatprep.subr.mxu0 0.0
    %6729 = vmatpush1.msra.mxu0 0.0
    %6730 = vmatprep.subr.mxu0 0.0
    %6731 = vmatpush1.msra.mxu0 0.0
    %6732 = vmatprep.subr.mxu0 0.0
    %6733 = vmatpush1.msra.mxu0 0.0
    %6734 = vmatprep.subr.mxu0 0.0
    %6735 = vmatpush1.msra.mxu0 0.0
    %6736 = vmatprep.subr.mxu0 0.0
    %6737 = vmatpush1.msra.mxu0 0.0
    %6738 = vmatprep.subr.mxu0 0.0
    %6739 = vmatpush1.msra.mxu0 0.0
    %6740 = vmatprep.subr.mxu0 0.0
    %6741 = vmatpush1.msra.mxu0 0.0
    %6742 = vmatprep.subr.mxu0 0.0
    %6743 = vmatpush1.msra.mxu0 0.0
    %6744 = vmatprep.subr.mxu0 0.0
    %6745 = vmatpush1.msra.mxu0 0.0
    %6746 = vmatprep.subr.mxu0 0.0
    %6747 = vmatpush1.msra.mxu0 0.0
    %6748 = vmatprep.subr.mxu0 0.0
    %6749 = vmatpush1.msra.mxu0 0.0
    %6750 = vmatprep.subr.mxu0 0.0
    %6751 = vmatpush1.msra.mxu0 0.0
    %6752 = vmatprep.subr.mxu0 0.0
    %6753 = vmatpush1.msra.mxu0 0.0
    %6754 = vmatprep.subr.mxu0 0.0
    %6755 = vmatpush1.msra.mxu0 0.0
    %6756 = vmatprep.subr.mxu0 0.0
    %6757 = vmatpush1.msra.mxu0 0.0
    %6758 = vmatprep.subr.mxu0 0.0
    %6759 = vmatpush1.msra.mxu0 0.0
    %6760 = vmatprep.subr.mxu0 0.0
    %6761 = vmatpush1.msra.mxu0 0.0
    %6762 = vmatprep.subr.mxu0 0.0
    %6763 = vmatpush1.msra.mxu0 0.0
    %6764 = vmatprep.subr.mxu0 0.0
    %6765 = vmatpush1.msra.mxu0 0.0
    %6766 = vmatprep.mubr.f32.mxu0 0.0
    %6767 = vmatmul.mubr.f32.gmra.mrb[0].mxu0 %v6070
    %v6768 = vpop.f32.mrb[0].mxu0
    %v6769 = vadd.f32 %v4837, %v6768
    %v6770 = vpop.f32.mrb[0].mxu0
    %6771 = vdwg.mxu0
    %6772 = vmatprep.subr.mxu0 0.0
    %6773 = vmatpush1.msra.mxu0 %v4187
    %6774 = vmatprep.subr.mxu0 0.0
    %6775 = vmatpush1.msra.mxu0 %v4188
    %6776 = vmatprep.subr.mxu0 0.0
    %6777 = vmatpush1.msra.mxu0 %v4189
    %6778 = vmatprep.subr.mxu0 0.0
    %6779 = vmatpush1.msra.mxu0 %v4190
    %6780 = vmatprep.subr.mxu0 0.0
    %6781 = vmatpush1.msra.mxu0 0.0
    %6782 = vmatprep.subr.mxu0 0.0
    %6783 = vmatpush1.msra.mxu0 0.0
    %6784 = vmatprep.subr.mxu0 0.0
    %6785 = vmatpush1.msra.mxu0 0.0
    %6786 = vmatprep.subr.mxu0 0.0
    %6787 = vmatpush1.msra.mxu0 0.0
    %6788 = vmatprep.subr.mxu0 0.0
    %6789 = vmatpush1.msra.mxu0 0.0
    %6790 = vmatprep.subr.mxu0 0.0
    %6791 = vmatpush1.msra.mxu0 0.0
    %6792 = vmatprep.subr.mxu0 0.0
    %6793 = vmatpush1.msra.mxu0 0.0
    %6794 = vmatprep.subr.mxu0 0.0
    %6795 = vmatpush1.msra.mxu0 0.0
    %6796 = vmatprep.subr.mxu0 0.0
    %6797 = vmatpush1.msra.mxu0 0.0
    %6798 = vmatprep.subr.mxu0 0.0
    %6799 = vmatpush1.msra.mxu0 0.0
    %6800 = vmatprep.subr.mxu0 0.0
    %6801 = vmatpush1.msra.mxu0 0.0
    %6802 = vmatprep.subr.mxu0 0.0
    %6803 = vmatpush1.msra.mxu0 0.0
    %6804 = vmatprep.subr.mxu0 0.0
    %6805 = vmatpush1.msra.mxu0 0.0
    %6806 = vmatprep.subr.mxu0 0.0
    %6807 = vmatpush1.msra.mxu0 0.0
    %6808 = vmatprep.subr.mxu0 0.0
    %6809 = vmatpush1.msra.mxu0 0.0
    %6810 = vmatprep.subr.mxu0 0.0
    %6811 = vmatpush1.msra.mxu0 0.0
    %6812 = vmatprep.subr.mxu0 0.0
    %6813 = vmatpush1.msra.mxu0 0.0
    %6814 = vmatprep.subr.mxu0 0.0
    %6815 = vmatpush1.msra.mxu0 0.0
    %6816 = vmatprep.subr.mxu0 0.0
    %6817 = vmatpush1.msra.mxu0 0.0
    %6818 = vmatprep.subr.mxu0 0.0
    %6819 = vmatpush1.msra.mxu0 0.0
    %6820 = vmatprep.subr.mxu0 0.0
    %6821 = vmatpush1.msra.mxu0 0.0
    %6822 = vmatprep.subr.mxu0 0.0
    %6823 = vmatpush1.msra.mxu0 0.0
    %6824 = vmatprep.subr.mxu0 0.0
    %6825 = vmatpush1.msra.mxu0 0.0
    %6826 = vmatprep.subr.mxu0 0.0
    %6827 = vmatpush1.msra.mxu0 0.0
    %6828 = vmatprep.subr.mxu0 0.0
    %6829 = vmatpush1.msra.mxu0 0.0
    %6830 = vmatprep.subr.mxu0 0.0
    %6831 = vmatpush1.msra.mxu0 0.0
    %6832 = vmatprep.subr.mxu0 0.0
    %6833 = vmatpush1.msra.mxu0 0.0
    %6834 = vmatprep.subr.mxu0 0.0
    %6835 = vmatpush1.msra.mxu0 0.0
    %6836 = vmatprep.mubr.f32.mxu0 0.0
    %6837 = vmatmul.mubr.f32.gmra.mrb[0].mxu0 %v6070
    %v6838 = vpop.f32.mrb[0].mxu0
    %v6839 = vadd.f32 %v4841, %v6838
    %v6840 = vpop.f32.mrb[0].mxu0
    %6841 = vdwg.mxu0
    %6842 = vmatprep.subr.mxu0 0.0
    %6843 = vmatpush1.msra.mxu0 %v4191
    %6844 = vmatprep.subr.mxu0 0.0
    %6845 = vmatpush1.msra.mxu0 %v4192
    %6846 = vmatprep.subr.mxu0 0.0
    %6847 = vmatpush1.msra.mxu0 %v4193
    %6848 = vmatprep.subr.mxu0 0.0
    %6849 = vmatpush1.msra.mxu0 %v4194
    %6850 = vmatprep.subr.mxu0 0.0
    %6851 = vmatpush1.msra.mxu0 0.0
    %6852 = vmatprep.subr.mxu0 0.0
    %6853 = vmatpush1.msra.mxu0 0.0
    %6854 = vmatprep.subr.mxu0 0.0
    %6855 = vmatpush1.msra.mxu0 0.0
    %6856 = vmatprep.subr.mxu0 0.0
    %6857 = vmatpush1.msra.mxu0 0.0
    %6858 = vmatprep.subr.mxu0 0.0
    %6859 = vmatpush1.msra.mxu0 0.0
    %6860 = vmatprep.subr.mxu0 0.0
    %6861 = vmatpush1.msra.mxu0 0.0
    %6862 = vmatprep.subr.mxu0 0.0
    %6863 = vmatpush1.msra.mxu0 0.0
    %6864 = vmatprep.subr.mxu0 0.0
    %6865 = vmatpush1.msra.mxu0 0.0
    %6866 = vmatprep.subr.mxu0 0.0
    %6867 = vmatpush1.msra.mxu0 0.0
    %6868 = vmatprep.subr.mxu0 0.0
    %6869 = vmatpush1.msra.mxu0 0.0
    %6870 = vmatprep.subr.mxu0 0.0
    %6871 = vmatpush1.msra.mxu0 0.0
    %6872 = vmatprep.subr.mxu0 0.0
    %6873 = vmatpush1.msra.mxu0 0.0
    %6874 = vmatprep.subr.mxu0 0.0
    %6875 = vmatpush1.msra.mxu0 0.0
    %6876 = vmatprep.subr.mxu0 0.0
    %6877 = vmatpush1.msra.mxu0 0.0
    %6878 = vmatprep.subr.mxu0 0.0
    %6879 = vmatpush1.msra.mxu0 0.0
    %6880 = vmatprep.subr.mxu0 0.0
    %6881 = vmatpush1.msra.mxu0 0.0
    %6882 = vmatprep.subr.mxu0 0.0
    %6883 = vmatpush1.msra.mxu0 0.0
    %6884 = vmatprep.subr.mxu0 0.0
    %6885 = vmatpush1.msra.mxu0 0.0
    %6886 = vmatprep.subr.mxu0 0.0
    %6887 = vmatpush1.msra.mxu0 0.0
    %6888 = vmatprep.subr.mxu0 0.0
    %6889 = vmatpush1.msra.mxu0 0.0
    %6890 = vmatprep.subr.mxu0 0.0
    %6891 = vmatpush1.msra.mxu0 0.0
    %6892 = vmatprep.subr.mxu0 0.0
    %6893 = vmatpush1.msra.mxu0 0.0
    %6894 = vmatprep.subr.mxu0 0.0
    %6895 = vmatpush1.msra.mxu0 0.0
    %6896 = vmatprep.subr.mxu0 0.0
    %6897 = vmatpush1.msra.mxu0 0.0
    %6898 = vmatprep.subr.mxu0 0.0
    %6899 = vmatpush1.msra.mxu0 0.0
    %6900 = vmatprep.subr.mxu0 0.0
    %6901 = vmatpush1.msra.mxu0 0.0
    %6902 = vmatprep.subr.mxu0 0.0
    %6903 = vmatpush1.msra.mxu0 0.0
    %6904 = vmatprep.subr.mxu0 0.0
    %6905 = vmatpush1.msra.mxu0 0.0
    %6906 = vmatprep.mubr.f32.mxu0 0.0
    %6907 = vmatmul.mubr.f32.gmra.mrb[0].mxu0 %v6070
    %v6908 = vpop.f32.mrb[0].mxu0
    %v6909 = vadd.f32 %v4845, %v6908
    %v6910 = vpop.f32.mrb[0].mxu0
    %6911 = vdwg.mxu0
    %v6913 = vsel %vm1114, %v6139, 0
    %v6916 = vsel %vm1114, %v6419, 0
    %6918 = vmatprep.subr.mxu0 0.0
    %6919 = vmatpush1.xpose.msra.mxu0 %v6916
    %6920 = vmatprep.subr.mxu0 0.0
    %6921 = vmatpush1.xpose.msra.mxu0 0.0
    %6922 = vmatprep.subr.mxu0 0.0
    %6923 = vmatpush1.xpose.msra.mxu0 0.0
    %6924 = vmatprep.subr.mxu0 0.0
    %6925 = vmatpush1.xpose.msra.mxu0 0.0
    %6926 = vmatprep.subr.mxu0 0.0
    %6927 = vmatpush1.xpose.msra.mxu0 0.0
    %6928 = vmatprep.subr.mxu0 0.0
    %6929 = vmatpush1.xpose.msra.mxu0 0.0
    %6930 = vmatprep.subr.mxu0 0.0
    %6931 = vmatpush1.xpose.msra.mxu0 0.0
    %6932 = vmatprep.subr.mxu0 0.0
    %6933 = vmatpush1.xpose.msra.mxu0 0.0
    %6934 = vmatprep.subr.mxu0 0.0
    %6935 = vmatpush1.xpose.msra.mxu0 0.0
    %6936 = vmatprep.subr.mxu0 0.0
    %6937 = vmatpush1.xpose.msra.mxu0 0.0
    %6938 = vmatprep.subr.mxu0 0.0
    %6939 = vmatpush1.xpose.msra.mxu0 0.0
    %6940 = vmatprep.subr.mxu0 0.0
    %6941 = vmatpush1.xpose.msra.mxu0 0.0
    %6942 = vmatprep.subr.mxu0 0.0
    %6943 = vmatpush1.xpose.msra.mxu0 0.0
    %6944 = vmatprep.subr.mxu0 0.0
    %6945 = vmatpush1.xpose.msra.mxu0 0.0
    %6946 = vmatprep.subr.mxu0 0.0
    %6947 = vmatpush1.xpose.msra.mxu0 0.0
    %6948 = vmatprep.subr.mxu0 0.0
    %6949 = vmatpush1.xpose.msra.mxu0 0.0
    %6950 = vmatprep.subr.mxu0 0.0
    %6951 = vmatpush1.xpose.msra.mxu0 0.0
    %6952 = vmatprep.subr.mxu0 0.0
    %6953 = vmatpush1.xpose.msra.mxu0 0.0
    %6954 = vmatprep.subr.mxu0 0.0
    %6955 = vmatpush1.xpose.msra.mxu0 0.0
    %6956 = vmatprep.subr.mxu0 0.0
    %6957 = vmatpush1.xpose.msra.mxu0 0.0
    %6958 = vmatprep.subr.mxu0 0.0
    %6959 = vmatpush1.xpose.msra.mxu0 0.0
    %6960 = vmatprep.subr.mxu0 0.0
    %6961 = vmatpush1.xpose.msra.mxu0 0.0
    %6962 = vmatprep.subr.mxu0 0.0
    %6963 = vmatpush1.xpose.msra.mxu0 0.0
    %6964 = vmatprep.subr.mxu0 0.0
    %6965 = vmatpush1.xpose.msra.mxu0 0.0
    %6966 = vmatprep.subr.mxu0 0.0
    %6967 = vmatpush1.xpose.msra.mxu0 0.0
    %6968 = vmatprep.subr.mxu0 0.0
    %6969 = vmatpush1.xpose.msra.mxu0 0.0
    %6970 = vmatprep.subr.mxu0 0.0
    %6971 = vmatpush1.xpose.msra.mxu0 0.0
    %6972 = vmatprep.subr.mxu0 0.0
    %6973 = vmatpush1.xpose.msra.mxu0 0.0
    %6974 = vmatprep.subr.mxu0 0.0
    %6975 = vmatpush1.xpose.msra.mxu0 0.0
    %6976 = vmatprep.subr.mxu0 0.0
    %6977 = vmatpush1.xpose.msra.mxu0 0.0
    %6978 = vmatprep.subr.mxu0 0.0
    %6979 = vmatpush1.xpose.msra.mxu0 0.0
    %6980 = vmatprep.subr.mxu0 0.0
    %6981 = vmatpush1.xpose.msra.mxu0 0.0
    %6982 = vmatprep.mubr.f32.mxu0 0.0
    %6983 = vmatmul.mubr.f32.gmra.mrb[0].mxu0 %v6913
    %v6984 = vpop.f32.mrb[0].mxu0
    %v6985 = vadd.f32 %v134, %v6984
    %v6986 = vpop.f32.mrb[0].mxu0
    %6987 = vdwg.mxu0
    %v6989 = vsel %vm1114, %v6209, 0
    %v6992 = vsel %vm1114, %v6489, 0
    %6994 = vmatprep.subr.mxu0 0.0
    %6995 = vmatpush1.xpose.msra.mxu0 %v6992
    %6996 = vmatprep.subr.mxu0 0.0
    %6997 = vmatpush1.xpose.msra.mxu0 0.0
    %6998 = vmatprep.subr.mxu0 0.0
    %6999 = vmatpush1.xpose.msra.mxu0 0.0
    %7000 = vmatprep.subr.mxu0 0.0
    %7001 = vmatpush1.xpose.msra.mxu0 0.0
    %7002 = vmatprep.subr.mxu0 0.0
    %7003 = vmatpush1.xpose.msra.mxu0 0.0
    %7004 = vmatprep.subr.mxu0 0.0
    %7005 = vmatpush1.xpose.msra.mxu0 0.0
    %7006 = vmatprep.subr.mxu0 0.0
    %7007 = vmatpush1.xpose.msra.mxu0 0.0
    %7008 = vmatprep.subr.mxu0 0.0
    %7009 = vmatpush1.xpose.msra.mxu0 0.0
    %7010 = vmatprep.subr.mxu0 0.0
    %7011 = vmatpush1.xpose.msra.mxu0 0.0
    %7012 = vmatprep.subr.mxu0 0.0
    %7013 = vmatpush1.xpose.msra.mxu0 0.0
    %7014 = vmatprep.subr.mxu0 0.0
    %7015 = vmatpush1.xpose.msra.mxu0 0.0
    %7016 = vmatprep.subr.mxu0 0.0
    %7017 = vmatpush1.xpose.msra.mxu0 0.0
    %7018 = vmatprep.subr.mxu0 0.0
    %7019 = vmatpush1.xpose.msra.mxu0 0.0
    %7020 = vmatprep.subr.mxu0 0.0
    %7021 = vmatpush1.xpose.msra.mxu0 0.0
    %7022 = vmatprep.subr.mxu0 0.0
    %7023 = vmatpush1.xpose.msra.mxu0 0.0
    %7024 = vmatprep.subr.mxu0 0.0
    %7025 = vmatpush1.xpose.msra.mxu0 0.0
    %7026 = vmatprep.subr.mxu0 0.0
    %7027 = vmatpush1.xpose.msra.mxu0 0.0
    %7028 = vmatprep.subr.mxu0 0.0
    %7029 = vmatpush1.xpose.msra.mxu0 0.0
    %7030 = vmatprep.subr.mxu0 0.0
    %7031 = vmatpush1.xpose.msra.mxu0 0.0
    %7032 = vmatprep.subr.mxu0 0.0
    %7033 = vmatpush1.xpose.msra.mxu0 0.0
    %7034 = vmatprep.subr.mxu0 0.0
    %7035 = vmatpush1.xpose.msra.mxu0 0.0
    %7036 = vmatprep.subr.mxu0 0.0
    %7037 = vmatpush1.xpose.msra.mxu0 0.0
    %7038 = vmatprep.subr.mxu0 0.0
    %7039 = vmatpush1.xpose.msra.mxu0 0.0
    %7040 = vmatprep.subr.mxu0 0.0
    %7041 = vmatpush1.xpose.msra.mxu0 0.0
    %7042 = vmatprep.subr.mxu0 0.0
    %7043 = vmatpush1.xpose.msra.mxu0 0.0
    %7044 = vmatprep.subr.mxu0 0.0
    %7045 = vmatpush1.xpose.msra.mxu0 0.0
    %7046 = vmatprep.subr.mxu0 0.0
    %7047 = vmatpush1.xpose.msra.mxu0 0.0
    %7048 = vmatprep.subr.mxu0 0.0
    %7049 = vmatpush1.xpose.msra.mxu0 0.0
    %7050 = vmatprep.subr.mxu0 0.0
    %7051 = vmatpush1.xpose.msra.mxu0 0.0
    %7052 = vmatprep.subr.mxu0 0.0
    %7053 = vmatpush1.xpose.msra.mxu0 0.0
    %7054 = vmatprep.subr.mxu0 0.0
    %7055 = vmatpush1.xpose.msra.mxu0 0.0
    %7056 = vmatprep.subr.mxu0 0.0
    %7057 = vmatpush1.xpose.msra.mxu0 0.0
    %7058 = vmatprep.mubr.f32.mxu0 0.0
    %7059 = vmatmul.mubr.f32.gmra.mrb[0].mxu0 %v6989
    %v7060 = vpop.f32.mrb[0].mxu0
    %v7061 = vadd.f32 %v134, %v7060
    %v7062 = vpop.f32.mrb[0].mxu0
    %7063 = vdwg.mxu0
    %v7065 = vsel %vm1114, %v6279, 0
    %v7068 = vsel %vm1114, %v6559, 0
    %7070 = vmatprep.subr.mxu0 0.0
    %7071 = vmatpush1.xpose.msra.mxu0 %v7068
    %7072 = vmatprep.subr.mxu0 0.0
    %7073 = vmatpush1.xpose.msra.mxu0 0.0
    %7074 = vmatprep.subr.mxu0 0.0
    %7075 = vmatpush1.xpose.msra.mxu0 0.0
    %7076 = vmatprep.subr.mxu0 0.0
    %7077 = vmatpush1.xpose.msra.mxu0 0.0
    %7078 = vmatprep.subr.mxu0 0.0
    %7079 = vmatpush1.xpose.msra.mxu0 0.0
    %7080 = vmatprep.subr.mxu0 0.0
    %7081 = vmatpush1.xpose.msra.mxu0 0.0
    %7082 = vmatprep.subr.mxu0 0.0
    %7083 = vmatpush1.xpose.msra.mxu0 0.0
    %7084 = vmatprep.subr.mxu0 0.0
    %7085 = vmatpush1.xpose.msra.mxu0 0.0
    %7086 = vmatprep.subr.mxu0 0.0
    %7087 = vmatpush1.xpose.msra.mxu0 0.0
    %7088 = vmatprep.subr.mxu0 0.0
    %7089 = vmatpush1.xpose.msra.mxu0 0.0
    %7090 = vmatprep.subr.mxu0 0.0
    %7091 = vmatpush1.xpose.msra.mxu0 0.0
    %7092 = vmatprep.subr.mxu0 0.0
    %7093 = vmatpush1.xpose.msra.mxu0 0.0
    %7094 = vmatprep.subr.mxu0 0.0
    %7095 = vmatpush1.xpose.msra.mxu0 0.0
    %7096 = vmatprep.subr.mxu0 0.0
    %7097 = vmatpush1.xpose.msra.mxu0 0.0
    %7098 = vmatprep.subr.mxu0 0.0
    %7099 = vmatpush1.xpose.msra.mxu0 0.0
    %7100 = vmatprep.subr.mxu0 0.0
    %7101 = vmatpush1.xpose.msra.mxu0 0.0
    %7102 = vmatprep.subr.mxu0 0.0
    %7103 = vmatpush1.xpose.msra.mxu0 0.0
    %7104 = vmatprep.subr.mxu0 0.0
    %7105 = vmatpush1.xpose.msra.mxu0 0.0
    %7106 = vmatprep.subr.mxu0 0.0
    %7107 = vmatpush1.xpose.msra.mxu0 0.0
    %7108 = vmatprep.subr.mxu0 0.0
    %7109 = vmatpush1.xpose.msra.mxu0 0.0
    %7110 = vmatprep.subr.mxu0 0.0
    %7111 = vmatpush1.xpose.msra.mxu0 0.0
    %7112 = vmatprep.subr.mxu0 0.0
    %7113 = vmatpush1.xpose.msra.mxu0 0.0
    %7114 = vmatprep.subr.mxu0 0.0
    %7115 = vmatpush1.xpose.msra.mxu0 0.0
    %7116 = vmatprep.subr.mxu0 0.0
    %7117 = vmatpush1.xpose.msra.mxu0 0.0
    %7118 = vmatprep.subr.mxu0 0.0
    %7119 = vmatpush1.xpose.msra.mxu0 0.0
    %7120 = vmatprep.subr.mxu0 0.0
    %7121 = vmatpush1.xpose.msra.mxu0 0.0
    %7122 = vmatprep.subr.mxu0 0.0
    %7123 = vmatpush1.xpose.msra.mxu0 0.0
    %7124 = vmatprep.subr.mxu0 0.0
    %7125 = vmatpush1.xpose.msra.mxu0 0.0
    %7126 = vmatprep.subr.mxu0 0.0
    %7127 = vmatpush1.xpose.msra.mxu0 0.0
    %7128 = vmatprep.subr.mxu0 0.0
    %7129 = vmatpush1.xpose.msra.mxu0 0.0
    %7130 = vmatprep.subr.mxu0 0.0
    %7131 = vmatpush1.xpose.msra.mxu0 0.0
    %7132 = vmatprep.subr.mxu0 0.0
    %7133 = vmatpush1.xpose.msra.mxu0 0.0
    %7134 = vmatprep.mubr.f32.mxu0 0.0
    %7135 = vmatmul.mubr.f32.gmra.mrb[0].mxu0 %v7065
    %v7136 = vpop.f32.mrb[0].mxu0
    %v7137 = vadd.f32 %v134, %v7136
    %v7138 = vpop.f32.mrb[0].mxu0
    %7139 = vdwg.mxu0
    %v7141 = vsel %vm1114, %v6349, 0
    %v7144 = vsel %vm1114, %v6629, 0
    %7146 = vmatprep.subr.mxu0 0.0
    %7147 = vmatpush1.xpose.msra.mxu0 %v7144
    %7148 = vmatprep.subr.mxu0 0.0
    %7149 = vmatpush1.xpose.msra.mxu0 0.0
    %7150 = vmatprep.subr.mxu0 0.0
    %7151 = vmatpush1.xpose.msra.mxu0 0.0
    %7152 = vmatprep.subr.mxu0 0.0
    %7153 = vmatpush1.xpose.msra.mxu0 0.0
    %7154 = vmatprep.subr.mxu0 0.0
    %7155 = vmatpush1.xpose.msra.mxu0 0.0
    %7156 = vmatprep.subr.mxu0 0.0
    %7157 = vmatpush1.xpose.msra.mxu0 0.0
    %7158 = vmatprep.subr.mxu0 0.0
    %7159 = vmatpush1.xpose.msra.mxu0 0.0
    %7160 = vmatprep.subr.mxu0 0.0
    %7161 = vmatpush1.xpose.msra.mxu0 0.0
    %7162 = vmatprep.subr.mxu0 0.0
    %7163 = vmatpush1.xpose.msra.mxu0 0.0
    %7164 = vmatprep.subr.mxu0 0.0
    %7165 = vmatpush1.xpose.msra.mxu0 0.0
    %7166 = vmatprep.subr.mxu0 0.0
    %7167 = vmatpush1.xpose.msra.mxu0 0.0
    %7168 = vmatprep.subr.mxu0 0.0
    %7169 = vmatpush1.xpose.msra.mxu0 0.0
    %7170 = vmatprep.subr.mxu0 0.0
    %7171 = vmatpush1.xpose.msra.mxu0 0.0
    %7172 = vmatprep.subr.mxu0 0.0
    %7173 = vmatpush1.xpose.msra.mxu0 0.0
    %7174 = vmatprep.subr.mxu0 0.0
    %7175 = vmatpush1.xpose.msra.mxu0 0.0
    %7176 = vmatprep.subr.mxu0 0.0
    %7177 = vmatpush1.xpose.msra.mxu0 0.0
    %7178 = vmatprep.subr.mxu0 0.0
    %7179 = vmatpush1.xpose.msra.mxu0 0.0
    %7180 = vmatprep.subr.mxu0 0.0
    %7181 = vmatpush1.xpose.msra.mxu0 0.0
    %7182 = vmatprep.subr.mxu0 0.0
    %7183 = vmatpush1.xpose.msra.mxu0 0.0
    %7184 = vmatprep.subr.mxu0 0.0
    %7185 = vmatpush1.xpose.msra.mxu0 0.0
    %7186 = vmatprep.subr.mxu0 0.0
    %7187 = vmatpush1.xpose.msra.mxu0 0.0
    %7188 = vmatprep.subr.mxu0 0.0
    %7189 = vmatpush1.xpose.msra.mxu0 0.0
    %7190 = vmatprep.subr.mxu0 0.0
    %7191 = vmatpush1.xpose.msra.mxu0 0.0
    %7192 = vmatprep.subr.mxu0 0.0
    %7193 = vmatpush1.xpose.msra.mxu0 0.0
    %7194 = vmatprep.subr.mxu0 0.0
    %7195 = vmatpush1.xpose.msra.mxu0 0.0
    %7196 = vmatprep.subr.mxu0 0.0
    %7197 = vmatpush1.xpose.msra.mxu0 0.0
    %7198 = vmatprep.subr.mxu0 0.0
    %7199 = vmatpush1.xpose.msra.mxu0 0.0
    %7200 = vmatprep.subr.mxu0 0.0
    %7201 = vmatpush1.xpose.msra.mxu0 0.0
    %7202 = vmatprep.subr.mxu0 0.0
    %7203 = vmatpush1.xpose.msra.mxu0 0.0
    %7204 = vmatprep.subr.mxu0 0.0
    %7205 = vmatpush1.xpose.msra.mxu0 0.0
    %7206 = vmatprep.subr.mxu0 0.0
    %7207 = vmatpush1.xpose.msra.mxu0 0.0
    %7208 = vmatprep.subr.mxu0 0.0
    %7209 = vmatpush1.xpose.msra.mxu0 0.0
    %7210 = vmatprep.mubr.f32.mxu0 0.0
    %7211 = vmatmul.mubr.f32.gmra.mrb[0].mxu0 %v7141
    %v7212 = vpop.f32.mrb[0].mxu0
    %v7213 = vadd.f32 %v134, %v7212
    %v7214 = vpop.f32.mrb[0].mxu0
    %7215 = vdwg.mxu0
    %v7216 = vsel %vm1114, %v6985, -inf
    %7217 = vmax.xlane.f32.xlu0 %v7216
    %v7218 = vpop.xlane.xlu0 %7217
    %v7219 = vsel %vm1114, %v7061, -inf
    %7220 = vmax.xlane.f32.xlu0 %v7219
    %v7221 = vpop.xlane.xlu0 %7220
    %v7222 = vsel %vm1114, %v7137, -inf
    %7223 = vmax.xlane.f32.xlu0 %v7222
    %v7224 = vpop.xlane.xlu0 %7223
    %v7225 = vsel %vm1114, %v7213, -inf
    %7226 = vmax.xlane.f32.xlu0 %v7225
    %v7227 = vpop.xlane.xlu0 %7226
    %v7228 = vsub.f32 %v6985, %v7218
    %v7229 = vsub.f32 %v7061, %v7221
    %v7230 = vsub.f32 %v7137, %v7224
    %v7231 = vsub.f32 %v7213, %v7227
    %v7232 = vmul.f32 %v7228, 1.442695
    %v7233 = vpow.pop %v7232
    %v7234 = vmul.f32 %v7229, 1.442695
    %v7235 = vpow.pop %v7234
    %v7236 = vmul.f32 %v7230, 1.442695
    %v7237 = vpow.pop %v7236
    %v7238 = vmul.f32 %v7231, 1.442695
    %v7239 = vpow.pop %v7238
    %v7240 = vsel %vm1114, %v7233, 0.0
    %7241 = vadd.xlane.f32.xlu0 %v7240
    %v7242 = vpop.xlane.xlu0 %7241
    %v7243 = vsel %vm1114, %v7235, 0.0
    %7244 = vadd.xlane.f32.xlu0 %v7243
    %v7245 = vpop.xlane.xlu0 %7244
    %v7246 = vsel %vm1114, %v7237, 0.0
    %7247 = vadd.xlane.f32.xlu0 %v7246
    %v7248 = vpop.xlane.xlu0 %7247
    %v7249 = vsel %vm1114, %v7239, 0.0
    %7250 = vadd.xlane.f32.xlu0 %v7249
    %v7251 = vpop.xlane.xlu0 %7250
    %v7252 = vrcp.pop %v7242
    %v7253 = vrcp.pop %v7245
    %v7254 = vrcp.pop %v7248
    %v7255 = vrcp.pop %v7251
    %v7256 = vmul.f32 %v7233, %v7252
    %v7257 = vmul.f32 %v7235, %v7253
    %v7258 = vmul.f32 %v7237, %v7254
    %v7259 = vmul.f32 %v7239, %v7255
    %v7261 = vsel %vm1114, %v7256, 0
    %7263 = vmatprep.subr.mxu0 0.0
    %7264 = vmatpush1.msra.mxu0 %v6699
    %7265 = vmatprep.subr.mxu0 0.0
    %7266 = vmatpush1.msra.mxu0 0.0
    %7267 = vmatprep.subr.mxu0 0.0
    %7268 = vmatpush1.msra.mxu0 0.0
    %7269 = vmatprep.subr.mxu0 0.0
    %7270 = vmatpush1.msra.mxu0 0.0
    %7271 = vmatprep.subr.mxu0 0.0
    %7272 = vmatpush1.msra.mxu0 0.0
    %7273 = vmatprep.subr.mxu0 0.0
    %7274 = vmatpush1.msra.mxu0 0.0
    %7275 = vmatprep.subr.mxu0 0.0
    %7276 = vmatpush1.msra.mxu0 0.0
    %7277 = vmatprep.subr.mxu0 0.0
    %7278 = vmatpush1.msra.mxu0 0.0
    %7279 = vmatprep.subr.mxu0 0.0
    %7280 = vmatpush1.msra.mxu0 0.0
    %7281 = vmatprep.subr.mxu0 0.0
    %7282 = vmatpush1.msra.mxu0 0.0
    %7283 = vmatprep.subr.mxu0 0.0
    %7284 = vmatpush1.msra.mxu0 0.0
    %7285 = vmatprep.subr.mxu0 0.0
    %7286 = vmatpush1.msra.mxu0 0.0
    %7287 = vmatprep.subr.mxu0 0.0
    %7288 = vmatpush1.msra.mxu0 0.0
    %7289 = vmatprep.subr.mxu0 0.0
    %7290 = vmatpush1.msra.mxu0 0.0
    %7291 = vmatprep.subr.mxu0 0.0
    %7292 = vmatpush1.msra.mxu0 0.0
    %7293 = vmatprep.subr.mxu0 0.0
    %7294 = vmatpush1.msra.mxu0 0.0
    %7295 = vmatprep.subr.mxu0 0.0
    %7296 = vmatpush1.msra.mxu0 0.0
    %7297 = vmatprep.subr.mxu0 0.0
    %7298 = vmatpush1.msra.mxu0 0.0
    %7299 = vmatprep.subr.mxu0 0.0
    %7300 = vmatpush1.msra.mxu0 0.0
    %7301 = vmatprep.subr.mxu0 0.0
    %7302 = vmatpush1.msra.mxu0 0.0
    %7303 = vmatprep.subr.mxu0 0.0
    %7304 = vmatpush1.msra.mxu0 0.0
    %7305 = vmatprep.subr.mxu0 0.0
    %7306 = vmatpush1.msra.mxu0 0.0
    %7307 = vmatprep.subr.mxu0 0.0
    %7308 = vmatpush1.msra.mxu0 0.0
    %7309 = vmatprep.subr.mxu0 0.0
    %7310 = vmatpush1.msra.mxu0 0.0
    %7311 = vmatprep.subr.mxu0 0.0
    %7312 = vmatpush1.msra.mxu0 0.0
    %7313 = vmatprep.subr.mxu0 0.0
    %7314 = vmatpush1.msra.mxu0 0.0
    %7315 = vmatprep.subr.mxu0 0.0
    %7316 = vmatpush1.msra.mxu0 0.0
    %7317 = vmatprep.subr.mxu0 0.0
    %7318 = vmatpush1.msra.mxu0 0.0
    %7319 = vmatprep.subr.mxu0 0.0
    %7320 = vmatpush1.msra.mxu0 0.0
    %7321 = vmatprep.subr.mxu0 0.0
    %7322 = vmatpush1.msra.mxu0 0.0
    %7323 = vmatprep.subr.mxu0 0.0
    %7324 = vmatpush1.msra.mxu0 0.0
    %7325 = vmatprep.subr.mxu0 0.0
    %7326 = vmatpush1.msra.mxu0 0.0
    %7327 = vmatprep.mubr.f32.mxu0 0.0
    %7328 = vmatmul.mubr.f32.gmra.mrb[0].mxu0 %v7261
    %v7329 = vpop.f32.mrb[0].mxu0
    %v7330 = vadd.f32 0.0, %v7329
    %v7331 = vpop.f32.mrb[0].mxu0
    %7332 = vdwg.mxu0
    %v7334 = vsel %vm1114, %v7257, 0
    %7336 = vmatprep.subr.mxu0 0.0
    %7337 = vmatpush1.msra.mxu0 %v6769
    %7338 = vmatprep.subr.mxu0 0.0
    %7339 = vmatpush1.msra.mxu0 0.0
    %7340 = vmatprep.subr.mxu0 0.0
    %7341 = vmatpush1.msra.mxu0 0.0
    %7342 = vmatprep.subr.mxu0 0.0
    %7343 = vmatpush1.msra.mxu0 0.0
    %7344 = vmatprep.subr.mxu0 0.0
    %7345 = vmatpush1.msra.mxu0 0.0
    %7346 = vmatprep.subr.mxu0 0.0
    %7347 = vmatpush1.msra.mxu0 0.0
    %7348 = vmatprep.subr.mxu0 0.0
    %7349 = vmatpush1.msra.mxu0 0.0
    %7350 = vmatprep.subr.mxu0 0.0
    %7351 = vmatpush1.msra.mxu0 0.0
    %7352 = vmatprep.subr.mxu0 0.0
    %7353 = vmatpush1.msra.mxu0 0.0
    %7354 = vmatprep.subr.mxu0 0.0
    %7355 = vmatpush1.msra.mxu0 0.0
    %7356 = vmatprep.subr.mxu0 0.0
    %7357 = vmatpush1.msra.mxu0 0.0
    %7358 = vmatprep.subr.mxu0 0.0
    %7359 = vmatpush1.msra.mxu0 0.0
    %7360 = vmatprep.subr.mxu0 0.0
    %7361 = vmatpush1.msra.mxu0 0.0
    %7362 = vmatprep.subr.mxu0 0.0
    %7363 = vmatpush1.msra.mxu0 0.0
    %7364 = vmatprep.subr.mxu0 0.0
    %7365 = vmatpush1.msra.mxu0 0.0
    %7366 = vmatprep.subr.mxu0 0.0
    %7367 = vmatpush1.msra.mxu0 0.0
    %7368 = vmatprep.subr.mxu0 0.0
    %7369 = vmatpush1.msra.mxu0 0.0
    %7370 = vmatprep.subr.mxu0 0.0
    %7371 = vmatpush1.msra.mxu0 0.0
    %7372 = vmatprep.subr.mxu0 0.0
    %7373 = vmatpush1.msra.mxu0 0.0
    %7374 = vmatprep.subr.mxu0 0.0
    %7375 = vmatpush1.msra.mxu0 0.0
    %7376 = vmatprep.subr.mxu0 0.0
    %7377 = vmatpush1.msra.mxu0 0.0
    %7378 = vmatprep.subr.mxu0 0.0
    %7379 = vmatpush1.msra.mxu0 0.0
    %7380 = vmatprep.subr.mxu0 0.0
    %7381 = vmatpush1.msra.mxu0 0.0
    %7382 = vmatprep.subr.mxu0 0.0
    %7383 = vmatpush1.msra.mxu0 0.0
    %7384 = vmatprep.subr.mxu0 0.0
    %7385 = vmatpush1.msra.mxu0 0.0
    %7386 = vmatprep.subr.mxu0 0.0
    %7387 = vmatpush1.msra.mxu0 0.0
    %7388 = vmatprep.subr.mxu0 0.0
    %7389 = vmatpush1.msra.mxu0 0.0
    %7390 = vmatprep.subr.mxu0 0.0
    %7391 = vmatpush1.msra.mxu0 0.0
    %7392 = vmatprep.subr.mxu0 0.0
    %7393 = vmatpush1.msra.mxu0 0.0
    %7394 = vmatprep.subr.mxu0 0.0
    %7395 = vmatpush1.msra.mxu0 0.0
    %7396 = vmatprep.subr.mxu0 0.0
    %7397 = vmatpush1.msra.mxu0 0.0
    %7398 = vmatprep.subr.mxu0 0.0
    %7399 = vmatpush1.msra.mxu0 0.0
    %7400 = vmatprep.mubr.f32.mxu0 0.0
    %7401 = vmatmul.mubr.f32.gmra.mrb[0].mxu0 %v7334
    %v7402 = vpop.f32.mrb[0].mxu0
    %v7403 = vadd.f32 0.0, %v7402
    %v7404 = vpop.f32.mrb[0].mxu0
    %7405 = vdwg.mxu0
    %v7407 = vsel %vm1114, %v7258, 0
    %7409 = vmatprep.subr.mxu0 0.0
    %7410 = vmatpush1.msra.mxu0 %v6839
    %7411 = vmatprep.subr.mxu0 0.0
    %7412 = vmatpush1.msra.mxu0 0.0
    %7413 = vmatprep.subr.mxu0 0.0
    %7414 = vmatpush1.msra.mxu0 0.0
    %7415 = vmatprep.subr.mxu0 0.0
    %7416 = vmatpush1.msra.mxu0 0.0
    %7417 = vmatprep.subr.mxu0 0.0
    %7418 = vmatpush1.msra.mxu0 0.0
    %7419 = vmatprep.subr.mxu0 0.0
    %7420 = vmatpush1.msra.mxu0 0.0
    %7421 = vmatprep.subr.mxu0 0.0
    %7422 = vmatpush1.msra.mxu0 0.0
    %7423 = vmatprep.subr.mxu0 0.0
    %7424 = vmatpush1.msra.mxu0 0.0
    %7425 = vmatprep.subr.mxu0 0.0
    %7426 = vmatpush1.msra.mxu0 0.0
    %7427 = vmatprep.subr.mxu0 0.0
    %7428 = vmatpush1.msra.mxu0 0.0
    %7429 = vmatprep.subr.mxu0 0.0
    %7430 = vmatpush1.msra.mxu0 0.0
    %7431 = vmatprep.subr.mxu0 0.0
    %7432 = vmatpush1.msra.mxu0 0.0
    %7433 = vmatprep.subr.mxu0 0.0
    %7434 = vmatpush1.msra.mxu0 0.0
    %7435 = vmatprep.subr.mxu0 0.0
    %7436 = vmatpush1.msra.mxu0 0.0
    %7437 = vmatprep.subr.mxu0 0.0
    %7438 = vmatpush1.msra.mxu0 0.0
    %7439 = vmatprep.subr.mxu0 0.0
    %7440 = vmatpush1.msra.mxu0 0.0
    %7441 = vmatprep.subr.mxu0 0.0
    %7442 = vmatpush1.msra.mxu0 0.0
    %7443 = vmatprep.subr.mxu0 0.0
    %7444 = vmatpush1.msra.mxu0 0.0
    %7445 = vmatprep.subr.mxu0 0.0
    %7446 = vmatpush1.msra.mxu0 0.0
    %7447 = vmatprep.subr.mxu0 0.0
    %7448 = vmatpush1.msra.mxu0 0.0
    %7449 = vmatprep.subr.mxu0 0.0
    %7450 = vmatpush1.msra.mxu0 0.0
    %7451 = vmatprep.subr.mxu0 0.0
    %7452 = vmatpush1.msra.mxu0 0.0
    %7453 = vmatprep.subr.mxu0 0.0
    %7454 = vmatpush1.msra.mxu0 0.0
    %7455 = vmatprep.subr.mxu0 0.0
    %7456 = vmatpush1.msra.mxu0 0.0
    %7457 = vmatprep.subr.mxu0 0.0
    %7458 = vmatpush1.msra.mxu0 0.0
    %7459 = vmatprep.subr.mxu0 0.0
    %7460 = vmatpush1.msra.mxu0 0.0
    %7461 = vmatprep.subr.mxu0 0.0
    %7462 = vmatpush1.msra.mxu0 0.0
    %7463 = vmatprep.subr.mxu0 0.0
    %7464 = vmatpush1.msra.mxu0 0.0
    %7465 = vmatprep.subr.mxu0 0.0
    %7466 = vmatpush1.msra.mxu0 0.0
    %7467 = vmatprep.subr.mxu0 0.0
    %7468 = vmatpush1.msra.mxu0 0.0
    %7469 = vmatprep.subr.mxu0 0.0
    %7470 = vmatpush1.msra.mxu0 0.0
    %7471 = vmatprep.subr.mxu0 0.0
    %7472 = vmatpush1.msra.mxu0 0.0
    %7473 = vmatprep.mubr.f32.mxu0 0.0
    %7474 = vmatmul.mubr.f32.gmra.mrb[0].mxu0 %v7407
    %v7475 = vpop.f32.mrb[0].mxu0
    %v7476 = vadd.f32 0.0, %v7475
    %v7477 = vpop.f32.mrb[0].mxu0
    %7478 = vdwg.mxu0
    %v7480 = vsel %vm1114, %v7259, 0
    %7482 = vmatprep.subr.mxu0 0.0
    %7483 = vmatpush1.msra.mxu0 %v6909
    %7484 = vmatprep.subr.mxu0 0.0
    %7485 = vmatpush1.msra.mxu0 0.0
    %7486 = vmatprep.subr.mxu0 0.0
    %7487 = vmatpush1.msra.mxu0 0.0
    %7488 = vmatprep.subr.mxu0 0.0
    %7489 = vmatpush1.msra.mxu0 0.0
    %7490 = vmatprep.subr.mxu0 0.0
    %7491 = vmatpush1.msra.mxu0 0.0
    %7492 = vmatprep.subr.mxu0 0.0
    %7493 = vmatpush1.msra.mxu0 0.0
    %7494 = vmatprep.subr.mxu0 0.0
    %7495 = vmatpush1.msra.mxu0 0.0
    %7496 = vmatprep.subr.mxu0 0.0
    %7497 = vmatpush1.msra.mxu0 0.0
    %7498 = vmatprep.subr.mxu0 0.0
    %7499 = vmatpush1.msra.mxu0 0.0
    %7500 = vmatprep.subr.mxu0 0.0
    %7501 = vmatpush1.msra.mxu0 0.0
    %7502 = vmatprep.subr.mxu0 0.0
    %7503 = vmatpush1.msra.mxu0 0.0
    %7504 = vmatprep.subr.mxu0 0.0
    %7505 = vmatpush1.msra.mxu0 0.0
    %7506 = vmatprep.subr.mxu0 0.0
    %7507 = vmatpush1.msra.mxu0 0.0
    %7508 = vmatprep.subr.mxu0 0.0
    %7509 = vmatpush1.msra.mxu0 0.0
    %7510 = vmatprep.subr.mxu0 0.0
    %7511 = vmatpush1.msra.mxu0 0.0
    %7512 = vmatprep.subr.mxu0 0.0
    %7513 = vmatpush1.msra.mxu0 0.0
    %7514 = vmatprep.subr.mxu0 0.0
    %7515 = vmatpush1.msra.mxu0 0.0
    %7516 = vmatprep.subr.mxu0 0.0
    %7517 = vmatpush1.msra.mxu0 0.0
    %7518 = vmatprep.subr.mxu0 0.0
    %7519 = vmatpush1.msra.mxu0 0.0
    %7520 = vmatprep.subr.mxu0 0.0
    %7521 = vmatpush1.msra.mxu0 0.0
    %7522 = vmatprep.subr.mxu0 0.0
    %7523 = vmatpush1.msra.mxu0 0.0
    %7524 = vmatprep.subr.mxu0 0.0
    %7525 = vmatpush1.msra.mxu0 0.0
    %7526 = vmatprep.subr.mxu0 0.0
    %7527 = vmatpush1.msra.mxu0 0.0
    %7528 = vmatprep.subr.mxu0 0.0
    %7529 = vmatpush1.msra.mxu0 0.0
    %7530 = vmatprep.subr.mxu0 0.0
    %7531 = vmatpush1.msra.mxu0 0.0
    %7532 = vmatprep.subr.mxu0 0.0
    %7533 = vmatpush1.msra.mxu0 0.0
    %7534 = vmatprep.subr.mxu0 0.0
    %7535 = vmatpush1.msra.mxu0 0.0
    %7536 = vmatprep.subr.mxu0 0.0
    %7537 = vmatpush1.msra.mxu0 0.0
    %7538 = vmatprep.subr.mxu0 0.0
    %7539 = vmatpush1.msra.mxu0 0.0
    %7540 = vmatprep.subr.mxu0 0.0
    %7541 = vmatpush1.msra.mxu0 0.0
    %7542 = vmatprep.subr.mxu0 0.0
    %7543 = vmatpush1.msra.mxu0 0.0
    %7544 = vmatprep.subr.mxu0 0.0
    %7545 = vmatpush1.msra.mxu0 0.0
    %7546 = vmatprep.mubr.f32.mxu0 0.0
    %7547 = vmatmul.mubr.f32.gmra.mrb[0].mxu0 %v7480
    %v7548 = vpop.f32.mrb[0].mxu0
    %v7549 = vadd.f32 0.0, %v7548
    %v7550 = vpop.f32.mrb[0].mxu0
    %7551 = vdwg.mxu0
    %v7553 = vsel %vm1114, %v7330, 0
    %7555 = vmatprep.subr.mxu0 0.0
    %7556 = vmatpush1.msra.mxu0 %v4211
    %7557 = vmatprep.subr.mxu0 0.0
    %7558 = vmatpush1.msra.mxu0 0.0
    %7559 = vmatprep.subr.mxu0 0.0
    %7560 = vmatpush1.msra.mxu0 0.0
    %7561 = vmatprep.subr.mxu0 0.0
    %7562 = vmatpush1.msra.mxu0 0.0
    %7563 = vmatprep.subr.mxu0 0.0
    %7564 = vmatpush1.msra.mxu0 0.0
    %7565 = vmatprep.subr.mxu0 0.0
    %7566 = vmatpush1.msra.mxu0 0.0
    %7567 = vmatprep.subr.mxu0 0.0
    %7568 = vmatpush1.msra.mxu0 0.0
    %7569 = vmatprep.subr.mxu0 0.0
    %7570 = vmatpush1.msra.mxu0 0.0
    %7571 = vmatprep.subr.mxu0 0.0
    %7572 = vmatpush1.msra.mxu0 0.0
    %7573 = vmatprep.subr.mxu0 0.0
    %7574 = vmatpush1.msra.mxu0 0.0
    %7575 = vmatprep.subr.mxu0 0.0
    %7576 = vmatpush1.msra.mxu0 0.0
    %7577 = vmatprep.subr.mxu0 0.0
    %7578 = vmatpush1.msra.mxu0 0.0
    %7579 = vmatprep.subr.mxu0 0.0
    %7580 = vmatpush1.msra.mxu0 0.0
    %7581 = vmatprep.subr.mxu0 0.0
    %7582 = vmatpush1.msra.mxu0 0.0
    %7583 = vmatprep.subr.mxu0 0.0
    %7584 = vmatpush1.msra.mxu0 0.0
    %7585 = vmatprep.subr.mxu0 0.0
    %7586 = vmatpush1.msra.mxu0 0.0
    %7587 = vmatprep.subr.mxu0 0.0
    %7588 = vmatpush1.msra.mxu0 0.0
    %7589 = vmatprep.subr.mxu0 0.0
    %7590 = vmatpush1.msra.mxu0 0.0
    %7591 = vmatprep.subr.mxu0 0.0
    %7592 = vmatpush1.msra.mxu0 0.0
    %7593 = vmatprep.subr.mxu0 0.0
    %7594 = vmatpush1.msra.mxu0 0.0
    %7595 = vmatprep.subr.mxu0 0.0
    %7596 = vmatpush1.msra.mxu0 0.0
    %7597 = vmatprep.subr.mxu0 0.0
    %7598 = vmatpush1.msra.mxu0 0.0
    %7599 = vmatprep.subr.mxu0 0.0
    %7600 = vmatpush1.msra.mxu0 0.0
    %7601 = vmatprep.subr.mxu0 0.0
    %7602 = vmatpush1.msra.mxu0 0.0
    %7603 = vmatprep.subr.mxu0 0.0
    %7604 = vmatpush1.msra.mxu0 0.0
    %7605 = vmatprep.subr.mxu0 0.0
    %7606 = vmatpush1.msra.mxu0 0.0
    %7607 = vmatprep.subr.mxu0 0.0
    %7608 = vmatpush1.msra.mxu0 0.0
    %7609 = vmatprep.subr.mxu0 0.0
    %7610 = vmatpush1.msra.mxu0 0.0
    %7611 = vmatprep.subr.mxu0 0.0
    %7612 = vmatpush1.msra.mxu0 0.0
    %7613 = vmatprep.subr.mxu0 0.0
    %7614 = vmatpush1.msra.mxu0 0.0
    %7615 = vmatprep.subr.mxu0 0.0
    %7616 = vmatpush1.msra.mxu0 0.0
    %7617 = vmatprep.subr.mxu0 0.0
    %7618 = vmatpush1.msra.mxu0 0.0
    %7619 = vmatprep.mubr.f32.mxu0 0.0
    %7620 = vmatmul.mubr.f32.gmra.mrb[0].mxu0 %v7553
    %v7621 = vpop.f32.mrb[0].mxu0
    %v7622 = vadd.f32 0.0, %v7621
    %v7623 = vpop.f32.mrb[0].mxu0
    %7624 = vdwg.mxu0
    %v7626 = vsel %vm1114, %v7403, 0
    %7628 = vmatprep.subr.mxu0 0.0
    %7629 = vmatpush1.msra.mxu0 %v4212
    %7630 = vmatprep.subr.mxu0 0.0
    %7631 = vmatpush1.msra.mxu0 0.0
    %7632 = vmatprep.subr.mxu0 0.0
    %7633 = vmatpush1.msra.mxu0 0.0
    %7634 = vmatprep.subr.mxu0 0.0
    %7635 = vmatpush1.msra.mxu0 0.0
    %7636 = vmatprep.subr.mxu0 0.0
    %7637 = vmatpush1.msra.mxu0 0.0
    %7638 = vmatprep.subr.mxu0 0.0
    %7639 = vmatpush1.msra.mxu0 0.0
    %7640 = vmatprep.subr.mxu0 0.0
    %7641 = vmatpush1.msra.mxu0 0.0
    %7642 = vmatprep.subr.mxu0 0.0
    %7643 = vmatpush1.msra.mxu0 0.0
    %7644 = vmatprep.subr.mxu0 0.0
    %7645 = vmatpush1.msra.mxu0 0.0
    %7646 = vmatprep.subr.mxu0 0.0
    %7647 = vmatpush1.msra.mxu0 0.0
    %7648 = vmatprep.subr.mxu0 0.0
    %7649 = vmatpush1.msra.mxu0 0.0
    %7650 = vmatprep.subr.mxu0 0.0
    %7651 = vmatpush1.msra.mxu0 0.0
    %7652 = vmatprep.subr.mxu0 0.0
    %7653 = vmatpush1.msra.mxu0 0.0
    %7654 = vmatprep.subr.mxu0 0.0
    %7655 = vmatpush1.msra.mxu0 0.0
    %7656 = vmatprep.subr.mxu0 0.0
    %7657 = vmatpush1.msra.mxu0 0.0
    %7658 = vmatprep.subr.mxu0 0.0
    %7659 = vmatpush1.msra.mxu0 0.0
    %7660 = vmatprep.subr.mxu0 0.0
    %7661 = vmatpush1.msra.mxu0 0.0
    %7662 = vmatprep.subr.mxu0 0.0
    %7663 = vmatpush1.msra.mxu0 0.0
    %7664 = vmatprep.subr.mxu0 0.0
    %7665 = vmatpush1.msra.mxu0 0.0
    %7666 = vmatprep.subr.mxu0 0.0
    %7667 = vmatpush1.msra.mxu0 0.0
    %7668 = vmatprep.subr.mxu0 0.0
    %7669 = vmatpush1.msra.mxu0 0.0
    %7670 = vmatprep.subr.mxu0 0.0
    %7671 = vmatpush1.msra.mxu0 0.0
    %7672 = vmatprep.subr.mxu0 0.0
    %7673 = vmatpush1.msra.mxu0 0.0
    %7674 = vmatprep.subr.mxu0 0.0
    %7675 = vmatpush1.msra.mxu0 0.0
    %7676 = vmatprep.subr.mxu0 0.0
    %7677 = vmatpush1.msra.mxu0 0.0
    %7678 = vmatprep.subr.mxu0 0.0
    %7679 = vmatpush1.msra.mxu0 0.0
    %7680 = vmatprep.subr.mxu0 0.0
    %7681 = vmatpush1.msra.mxu0 0.0
    %7682 = vmatprep.subr.mxu0 0.0
    %7683 = vmatpush1.msra.mxu0 0.0
    %7684 = vmatprep.subr.mxu0 0.0
    %7685 = vmatpush1.msra.mxu0 0.0
    %7686 = vmatprep.subr.mxu0 0.0
    %7687 = vmatpush1.msra.mxu0 0.0
    %7688 = vmatprep.subr.mxu0 0.0
    %7689 = vmatpush1.msra.mxu0 0.0
    %7690 = vmatprep.subr.mxu0 0.0
    %7691 = vmatpush1.msra.mxu0 0.0
    %7692 = vmatprep.mubr.f32.mxu0 0.0
    %7693 = vmatmul.mubr.f32.gmra.mrb[0].mxu0 %v7626
    %v7694 = vpop.f32.mrb[0].mxu0
    %v7695 = vadd.f32 0.0, %v7694
    %v7696 = vpop.f32.mrb[0].mxu0
    %7697 = vdwg.mxu0
    %v7699 = vsel %vm1114, %v7476, 0
    %7701 = vmatprep.subr.mxu0 0.0
    %7702 = vmatpush1.msra.mxu0 %v4213
    %7703 = vmatprep.subr.mxu0 0.0
    %7704 = vmatpush1.msra.mxu0 0.0
    %7705 = vmatprep.subr.mxu0 0.0
    %7706 = vmatpush1.msra.mxu0 0.0
    %7707 = vmatprep.subr.mxu0 0.0
    %7708 = vmatpush1.msra.mxu0 0.0
    %7709 = vmatprep.subr.mxu0 0.0
    %7710 = vmatpush1.msra.mxu0 0.0
    %7711 = vmatprep.subr.mxu0 0.0
    %7712 = vmatpush1.msra.mxu0 0.0
    %7713 = vmatprep.subr.mxu0 0.0
    %7714 = vmatpush1.msra.mxu0 0.0
    %7715 = vmatprep.subr.mxu0 0.0
    %7716 = vmatpush1.msra.mxu0 0.0
    %7717 = vmatprep.subr.mxu0 0.0
    %7718 = vmatpush1.msra.mxu0 0.0
    %7719 = vmatprep.subr.mxu0 0.0
    %7720 = vmatpush1.msra.mxu0 0.0
    %7721 = vmatprep.subr.mxu0 0.0
    %7722 = vmatpush1.msra.mxu0 0.0
    %7723 = vmatprep.subr.mxu0 0.0
    %7724 = vmatpush1.msra.mxu0 0.0
    %7725 = vmatprep.subr.mxu0 0.0
    %7726 = vmatpush1.msra.mxu0 0.0
    %7727 = vmatprep.subr.mxu0 0.0
    %7728 = vmatpush1.msra.mxu0 0.0
    %7729 = vmatprep.subr.mxu0 0.0
    %7730 = vmatpush1.msra.mxu0 0.0
    %7731 = vmatprep.subr.mxu0 0.0
    %7732 = vmatpush1.msra.mxu0 0.0
    %7733 = vmatprep.subr.mxu0 0.0
    %7734 = vmatpush1.msra.mxu0 0.0
    %7735 = vmatprep.subr.mxu0 0.0
    %7736 = vmatpush1.msra.mxu0 0.0
    %7737 = vmatprep.subr.mxu0 0.0
    %7738 = vmatpush1.msra.mxu0 0.0
    %7739 = vmatprep.subr.mxu0 0.0
    %7740 = vmatpush1.msra.mxu0 0.0
    %7741 = vmatprep.subr.mxu0 0.0
    %7742 = vmatpush1.msra.mxu0 0.0
    %7743 = vmatprep.subr.mxu0 0.0
    %7744 = vmatpush1.msra.mxu0 0.0
    %7745 = vmatprep.subr.mxu0 0.0
    %7746 = vmatpush1.msra.mxu0 0.0
    %7747 = vmatprep.subr.mxu0 0.0
    %7748 = vmatpush1.msra.mxu0 0.0
    %7749 = vmatprep.subr.mxu0 0.0
    %7750 = vmatpush1.msra.mxu0 0.0
    %7751 = vmatprep.subr.mxu0 0.0
    %7752 = vmatpush1.msra.mxu0 0.0
    %7753 = vmatprep.subr.mxu0 0.0
    %7754 = vmatpush1.msra.mxu0 0.0
    %7755 = vmatprep.subr.mxu0 0.0
    %7756 = vmatpush1.msra.mxu0 0.0
    %7757 = vmatprep.subr.mxu0 0.0
    %7758 = vmatpush1.msra.mxu0 0.0
    %7759 = vmatprep.subr.mxu0 0.0
    %7760 = vmatpush1.msra.mxu0 0.0
    %7761 = vmatprep.subr.mxu0 0.0
    %7762 = vmatpush1.msra.mxu0 0.0
    %7763 = vmatprep.subr.mxu0 0.0
    %7764 = vmatpush1.msra.mxu0 0.0
    %7765 = vmatprep.mubr.f32.mxu0 0.0
    %7766 = vmatmul.mubr.f32.gmra.mrb[0].mxu0 %v7699
    %v7767 = vpop.f32.mrb[0].mxu0
    %v7768 = vadd.f32 0.0, %v7767
    %v7769 = vpop.f32.mrb[0].mxu0
    %7770 = vdwg.mxu0
    %v7772 = vsel %vm1114, %v7549, 0
    %7774 = vmatprep.subr.mxu0 0.0
    %7775 = vmatpush1.msra.mxu0 %v4214
    %7776 = vmatprep.subr.mxu0 0.0
    %7777 = vmatpush1.msra.mxu0 0.0
    %7778 = vmatprep.subr.mxu0 0.0
    %7779 = vmatpush1.msra.mxu0 0.0
    %7780 = vmatprep.subr.mxu0 0.0
    %7781 = vmatpush1.msra.mxu0 0.0
    %7782 = vmatprep.subr.mxu0 0.0
    %7783 = vmatpush1.msra.mxu0 0.0
    %7784 = vmatprep.subr.mxu0 0.0
    %7785 = vmatpush1.msra.mxu0 0.0
    %7786 = vmatprep.subr.mxu0 0.0
    %7787 = vmatpush1.msra.mxu0 0.0
    %7788 = vmatprep.subr.mxu0 0.0
    %7789 = vmatpush1.msra.mxu0 0.0
    %7790 = vmatprep.subr.mxu0 0.0
    %7791 = vmatpush1.msra.mxu0 0.0
    %7792 = vmatprep.subr.mxu0 0.0
    %7793 = vmatpush1.msra.mxu0 0.0
    %7794 = vmatprep.subr.mxu0 0.0
    %7795 = vmatpush1.msra.mxu0 0.0
    %7796 = vmatprep.subr.mxu0 0.0
    %7797 = vmatpush1.msra.mxu0 0.0
    %7798 = vmatprep.subr.mxu0 0.0
    %7799 = vmatpush1.msra.mxu0 0.0
    %7800 = vmatprep.subr.mxu0 0.0
    %7801 = vmatpush1.msra.mxu0 0.0
    %7802 = vmatprep.subr.mxu0 0.0
    %7803 = vmatpush1.msra.mxu0 0.0
    %7804 = vmatprep.subr.mxu0 0.0
    %7805 = vmatpush1.msra.mxu0 0.0
    %7806 = vmatprep.subr.mxu0 0.0
    %7807 = vmatpush1.msra.mxu0 0.0
    %7808 = vmatprep.subr.mxu0 0.0
    %7809 = vmatpush1.msra.mxu0 0.0
    %7810 = vmatprep.subr.mxu0 0.0
    %7811 = vmatpush1.msra.mxu0 0.0
    %7812 = vmatprep.subr.mxu0 0.0
    %7813 = vmatpush1.msra.mxu0 0.0
    %7814 = vmatprep.subr.mxu0 0.0
    %7815 = vmatpush1.msra.mxu0 0.0
    %7816 = vmatprep.subr.mxu0 0.0
    %7817 = vmatpush1.msra.mxu0 0.0
    %7818 = vmatprep.subr.mxu0 0.0
    %7819 = vmatpush1.msra.mxu0 0.0
    %7820 = vmatprep.subr.mxu0 0.0
    %7821 = vmatpush1.msra.mxu0 0.0
    %7822 = vmatprep.subr.mxu0 0.0
    %7823 = vmatpush1.msra.mxu0 0.0
    %7824 = vmatprep.subr.mxu0 0.0
    %7825 = vmatpush1.msra.mxu0 0.0
    %7826 = vmatprep.subr.mxu0 0.0
    %7827 = vmatpush1.msra.mxu0 0.0
    %7828 = vmatprep.subr.mxu0 0.0
    %7829 = vmatpush1.msra.mxu0 0.0
    %7830 = vmatprep.subr.mxu0 0.0
    %7831 = vmatpush1.msra.mxu0 0.0
    %7832 = vmatprep.subr.mxu0 0.0
    %7833 = vmatpush1.msra.mxu0 0.0
    %7834 = vmatprep.subr.mxu0 0.0
    %7835 = vmatpush1.msra.mxu0 0.0
    %7836 = vmatprep.subr.mxu0 0.0
    %7837 = vmatpush1.msra.mxu0 0.0
    %7838 = vmatprep.mubr.f32.mxu0 0.0
    %7839 = vmatmul.mubr.f32.gmra.mrb[0].mxu0 %v7772
    %v7840 = vpop.f32.mrb[0].mxu0
    %v7841 = vadd.f32 0.0, %v7840
    %v7842 = vpop.f32.mrb[0].mxu0
    %7843 = vdwg.mxu0
    %v7844 = vsel %vm82, %v7622, 0.0
    %v7845 = vsel %vm82, %v7695, 0.0
    %v7846 = vadd.f32 %v7844, %v7845
    %v7847 = vsel %vm82, %v7768, 0.0
    %v7848 = vadd.f32 %v7846, %v7847
    %v7849 = vsel %vm82, %v7841, 0.0
    %v7850 = vadd.f32 %v7848, %v7849
    %s7851 = scalar_lea.vmem %s11, 1
    %v7852 = vld [vmem:[%s7851] sm:$0x1]
    %v7854 = vlaneseq
    %v7855 = vshrl.u32 %v7854, 7
    %v7856 = vsub.s32 0, %v7855
    %v7857 = vrot.slane %v7852, %v7856
    %v7859 = vadd.f32 %v6068, %v7857
    %v7860 = vadd.f32 %v7850, %v7857
    %v7861 = vadd.f32 %v4142, %v7859
    %v7862 = vadd.f32 %v4143, %v7860
    %s7863 = scalar_lea.vmem %s12, 1
    %v7864 = vld [vmem:[%s7863] sm:$0x1]
    %s7865 = scalar_lea.vmem %s13, 1
    %v7866 = vld [vmem:[%s7865] sm:$0x1]
    %v7867 = vsel %vm82, %v7861, 0.0
    %7868 = vadd.xlane.f32.xlu0 %v7867
    %v7869 = vpop.xlane.xlu0 %7868
    %v7870 = vsel %vm82, %v7862, 0.0
    %7871 = vadd.xlane.f32.xlu0 %v7870
    %v7872 = vpop.xlane.xlu0 %7871
    %v7873 = vmul.f32 %v7869, %v89
    %v7874 = vmul.f32 %v7872, %v89
    %v7875 = vsub.f32 %v7861, %v7873
    %v7876 = vsub.f32 %v7862, %v7874
    %v7877 = vmul.f32 %v7875, %v7875
    %v7878 = vmul.f32 %v7876, %v7876
    %v7879 = vsel %vm82, %v7877, 0.0
    %7880 = vadd.xlane.f32.xlu0 %v7879
    %v7881 = vpop.xlane.xlu0 %7880
    %v7882 = vsel %vm82, %v7878, 0.0
    %7883 = vadd.xlane.f32.xlu0 %v7882
    %v7884 = vpop.xlane.xlu0 %7883
    %v7885 = vmul.f32 %v7881, %v89
    %v7886 = vmul.f32 %v7884, %v89
    %v7887 = vadd.f32 %v7885, 1e-12
    %v7888 = vadd.f32 %v7886, 1e-12
    %v7889 = vrsqrt.pop %v7887
    %v7890 = vrsqrt.pop %v7888
    %v7891 = vmul.f32 %v7875, %v7889
    %v7892 = vmul.f32 %v7876, %v7890
    %v7894 = vlaneseq
    %v7895 = vshrl.u32 %v7894, 7
    %v7896 = vsub.s32 0, %v7895
    %v7897 = vrot.slane %v7864, %v7896
    %v7899 = vmul.f32 %v7891, %v7897
    %v7900 = vmul.f32 %v7892, %v7897
    %v7902 = vlaneseq
    %v7903 = vshrl.u32 %v7902, 7
    %v7904 = vsub.s32 0, %v7903
    %v7905 = vrot.slane %v7866, %v7904
    %v7907 = vadd.f32 %v7899, %v7905
    %v7908 = vadd.f32 %v7900, %v7905
    %s7909 = scalar_lea.vmem %s14, 32
    %v7910 = vld [vmem:[%s7909] sm:$0xff]
    %v7911 = vld [vmem:[%s7909 + $0x8] sm:$0xff]
    %v7912 = vld [vmem:[%s7909 + $0x10] sm:$0xff]
    %v7913 = vld [vmem:[%s7909 + $0x18] sm:$0xff]
    %s7914 = scalar_lea.vmem %s15, 1
    %v7915 = vld [vmem:[%s7914] sm:$0x1]
    %v7917 = vlaneseq
    %v7918 = vshrl.u32 %v7917, 7
    %v7919 = vsub.s32 0, %v7918
    %v7920 = vrot.slane %v7915, %v7919
    %v7923 = vsel %vm82, %v7907, 0
    %v7926 = vsel %vm82, %v7908, 0
    %7928 = vmatprep.subr.mxu0 0.0
    %7929 = vmatpush1.msra.mxu0 %v7910
    %7930 = vmatprep.subr.mxu0 0.0
    %7931 = vmatpush1.msra.mxu0 %v7911
    %7932 = vmatprep.subr.mxu0 0.0
    %7933 = vmatpush1.msra.mxu0 %v7912
    %7934 = vmatprep.subr.mxu0 0.0
    %7935 = vmatpush1.msra.mxu0 %v7913
    %7936 = vmatprep.subr.mxu0 0.0
    %7937 = vmatpush1.msra.mxu0 0.0
    %7938 = vmatprep.subr.mxu0 0.0
    %7939 = vmatpush1.msra.mxu0 0.0
    %7940 = vmatprep.subr.mxu0 0.0
    %7941 = vmatpush1.msra.mxu0 0.0
    %7942 = vmatprep.subr.mxu0 0.0
    %7943 = vmatpush1.msra.mxu0 0.0
    %7944 = vmatprep.subr.mxu0 0.0
    %7945 = vmatpush1.msra.mxu0 0.0
    %7946 = vmatprep.subr.mxu0 0.0
    %7947 = vmatpush1.msra.mxu0 0.0
    %7948 = vmatprep.subr.mxu0 0.0
    %7949 = vmatpush1.msra.mxu0 0.0
    %7950 = vmatprep.subr.mxu0 0.0
    %7951 = vmatpush1.msra.mxu0 0.0
    %7952 = vmatprep.subr.mxu0 0.0
    %7953 = vmatpush1.msra.mxu0 0.0
    %7954 = vmatprep.subr.mxu0 0.0
    %7955 = vmatpush1.msra.mxu0 0.0
    %7956 = vmatprep.subr.mxu0 0.0
    %7957 = vmatpush1.msra.mxu0 0.0
    %7958 = vmatprep.subr.mxu0 0.0
    %7959 = vmatpush1.msra.mxu0 0.0
    %7960 = vmatprep.subr.mxu0 0.0
    %7961 = vmatpush1.msra.mxu0 0.0
    %7962 = vmatprep.subr.mxu0 0.0
    %7963 = vmatpush1.msra.mxu0 0.0
    %7964 = vmatprep.subr.mxu0 0.0
    %7965 = vmatpush1.msra.mxu0 0.0
    %7966 = vmatprep.subr.mxu0 0.0
    %7967 = vmatpush1.msra.mxu0 0.0
    %7968 = vmatprep.subr.mxu0 0.0
    %7969 = vmatpush1.msra.mxu0 0.0
    %7970 = vmatprep.subr.mxu0 0.0
    %7971 = vmatpush1.msra.mxu0 0.0
    %7972 = vmatprep.subr.mxu0 0.0
    %7973 = vmatpush1.msra.mxu0 0.0
    %7974 = vmatprep.subr.mxu0 0.0
    %7975 = vmatpush1.msra.mxu0 0.0
    %7976 = vmatprep.subr.mxu0 0.0
    %7977 = vmatpush1.msra.mxu0 0.0
    %7978 = vmatprep.subr.mxu0 0.0
    %7979 = vmatpush1.msra.mxu0 0.0
    %7980 = vmatprep.subr.mxu0 0.0
    %7981 = vmatpush1.msra.mxu0 0.0
    %7982 = vmatprep.subr.mxu0 0.0
    %7983 = vmatpush1.msra.mxu0 0.0
    %7984 = vmatprep.subr.mxu0 0.0
    %7985 = vmatpush1.msra.mxu0 0.0
    %7986 = vmatprep.subr.mxu0 0.0
    %7987 = vmatpush1.msra.mxu0 0.0
    %7988 = vmatprep.subr.mxu0 0.0
    %7989 = vmatpush1.msra.mxu0 0.0
    %7990 = vmatprep.subr.mxu0 0.0
    %7991 = vmatpush1.msra.mxu0 0.0
    %7992 = vmatprep.mubr.f32.mxu0 0.0
    %7993 = vmatmul.mubr.f32.gmra.mrb[0].mxu0 %v7923
    %v7994 = vpop.f32.mrb[0].mxu0
    %v7995 = vadd.f32 %v7920, %v7994
    %v7996 = vpop.f32.mrb[0].mxu0
    %7997 = vmatprep.mubr.f32.mxu0 0.0
    %7998 = vmatmul.mubr.f32.gmra.mrb[0].mxu0 %v7926
    %v7999 = vpop.f32.mrb[0].mxu0
    %v8000 = vadd.f32 %v7920, %v7999
    %v8001 = vpop.f32.mrb[0].mxu0
    %8002 = vdwg.mxu0
    %v8003 = vmul.f32 %v7995, %v7995
    %v8004 = vmul.f32 %v8000, %v8000
    %v8005 = vmul.f32 %v7995, %v8003
    %v8006 = vmul.f32 %v8000, %v8004
    %v8007 = vmul.f32 %v8005, 0.044715
    %v8008 = vmul.f32 %v8006, 0.044715
    %v8009 = vadd.f32 %v7995, %v8007
    %v8010 = vadd.f32 %v8000, %v8008
    %v8011 = vmul.f32 %v8009, 0.7978846
    %v8012 = vmul.f32 %v8010, 0.7978846
    %v8013 = vtanh.pop %v8011
    %v8014 = vtanh.pop %v8012
    %v8015 = vadd.f32 %v8013, 1.0
    %v8016 = vadd.f32 %v8014, 1.0
    %v8017 = vmul.f32 %v8015, 0.5
    %v8018 = vmul.f32 %v8016, 0.5
    %v8019 = vmul.f32 %v7995, %v8017
    %v8020 = vmul.f32 %v8000, %v8018
    %s8021 = scalar_lea.vmem %s16, 64
    %v8022 = vld [vmem:[%s8021] sm:$0xff]
    %v8023 = vld [vmem:[%s8021 + $0x8] sm:$0xff]
    %v8024 = vld [vmem:[%s8021 + $0x10] sm:$0xff]
    %v8025 = vld [vmem:[%s8021 + $0x18] sm:$0xff]
    %v8026 = vld [vmem:[%s8021 + $0x20] sm:$0xff]
    %v8027 = vld [vmem:[%s8021 + $0x28] sm:$0xff]
    %v8028 = vld [vmem:[%s8021 + $0x30] sm:$0xff]
    %v8029 = vld [vmem:[%s8021 + $0x38] sm:$0xff]
    %s8030 = scalar_lea.vmem %s17, 1
    %v8031 = vld [vmem:[%s8030] sm:$0x1]
    %v8033 = vlaneseq
    %v8034 = vshrl.u32 %v8033, 7
    %v8035 = vsub.s32 0, %v8034
    %v8036 = vrot.slane %v8031, %v8035
    %v8039 = vsel %vm4016, %v8019, 0
    %v8042 = vsel %vm4016, %v8020, 0
    %8044 = vmatprep.subr.mxu0 0.0
    %8045 = vmatpush1.msra.mxu0 %v8022
    %8046 = vmatprep.subr.mxu0 0.0
    %8047 = vmatpush1.msra.mxu0 %v8023
    %8048 = vmatprep.subr.mxu0 0.0
    %8049 = vmatpush1.msra.mxu0 %v8024
    %8050 = vmatprep.subr.mxu0 0.0
    %8051 = vmatpush1.msra.mxu0 %v8025
    %8052 = vmatprep.subr.mxu0 0.0
    %8053 = vmatpush1.msra.mxu0 %v8026
    %8054 = vmatprep.subr.mxu0 0.0
    %8055 = vmatpush1.msra.mxu0 %v8027
    %8056 = vmatprep.subr.mxu0 0.0
    %8057 = vmatpush1.msra.mxu0 %v8028
    %8058 = vmatprep.subr.mxu0 0.0
    %8059 = vmatpush1.msra.mxu0 %v8029
    %8060 = vmatprep.subr.mxu0 0.0
    %8061 = vmatpush1.msra.mxu0 0.0
    %8062 = vmatprep.subr.mxu0 0.0
    %8063 = vmatpush1.msra.mxu0 0.0
    %8064 = vmatprep.subr.mxu0 0.0
    %8065 = vmatpush1.msra.mxu0 0.0
    %8066 = vmatprep.subr.mxu0 0.0
    %8067 = vmatpush1.msra.mxu0 0.0
    %8068 = vmatprep.subr.mxu0 0.0
    %8069 = vmatpush1.msra.mxu0 0.0
    %8070 = vmatprep.subr.mxu0 0.0
    %8071 = vmatpush1.msra.mxu0 0.0
    %8072 = vmatprep.subr.mxu0 0.0
    %8073 = vmatpush1.msra.mxu0 0.0
    %8074 = vmatprep.subr.mxu0 0.0
    %8075 = vmatpush1.msra.mxu0 0.0
    %8076 = vmatprep.subr.mxu0 0.0
    %8077 = vmatpush1.msra.mxu0 0.0
    %8078 = vmatprep.subr.mxu0 0.0
    %8079 = vmatpush1.msra.mxu0 0.0
    %8080 = vmatprep.subr.mxu0 0.0
    %8081 = vmatpush1.msra.mxu0 0.0
    %8082 = vmatprep.subr.mxu0 0.0
    %8083 = vmatpush1.msra.mxu0 0.0
    %8084 = vmatprep.subr.mxu0 0.0
    %8085 = vmatpush1.msra.mxu0 0.0
    %8086 = vmatprep.subr.mxu0 0.0
    %8087 = vmatpush1.msra.mxu0 0.0
    %8088 = vmatprep.subr.mxu0 0.0
    %8089 = vmatpush1.msra.mxu0 0.0
    %8090 = vmatprep.subr.mxu0 0.0
    %8091 = vmatpush1.msra.mxu0 0.0
    %8092 = vmatprep.subr.mxu0 0.0
    %8093 = vmatpush1.msra.mxu0 0.0
    %8094 = vmatprep.subr.mxu0 0.0
    %8095 = vmatpush1.msra.mxu0 0.0
    %8096 = vmatprep.subr.mxu0 0.0
    %8097 = vmatpush1.msra.mxu0 0.0
    %8098 = vmatprep.subr.mxu0 0.0
    %8099 = vmatpush1.msra.mxu0 0.0
    %8100 = vmatprep.subr.mxu0 0.0
    %8101 = vmatpush1.msra.mxu0 0.0
    %8102 = vmatprep.subr.mxu0 0.0
    %8103 = vmatpush1.msra.mxu0 0.0
    %8104 = vmatprep.subr.mxu0 0.0
    %8105 = vmatpush1.msra.mxu0 0.0
    %8106 = vmatprep.subr.mxu0 0.0
    %8107 = vmatpush1.msra.mxu0 0.0
    %8108 = vmatprep.mubr.f32.mxu0 0.0
    %8109 = vmatmul.mubr.f32.gmra.mrb[0].mxu0 %v8039
    %v8110 = vpop.f32.mrb[0].mxu0
    %v8111 = vadd.f32 %v8036, %v8110
    %v8112 = vpop.f32.mrb[0].mxu0
    %8113 = vmatprep.mubr.f32.mxu0 0.0
    %8114 = vmatmul.mubr.f32.gmra.mrb[0].mxu0 %v8042
    %v8115 = vpop.f32.mrb[0].mxu0
    %v8116 = vadd.f32 %v8036, %v8115
    %v8117 = vpop.f32.mrb[0].mxu0
    %8118 = vdwg.mxu0
    %v8119 = vadd.f32 %v7907, %v8111
    %v8120 = vadd.f32 %v7908, %v8116
    %s8121 = scalar_lea.vmem %s18, 1
    %v8122 = vld [vmem:[%s8121] sm:$0x1]
    %s8123 = scalar_lea.vmem %s19, 1
    %v8124 = vld [vmem:[%s8123] sm:$0x1]
    %v8125 = vsel %vm82, %v8119, 0.0
    %8126 = vadd.xlane.f32.xlu0 %v8125
    %v8127 = vpop.xlane.xlu0 %8126
    %v8128 = vsel %vm82, %v8120, 0.0
    %8129 = vadd.xlane.f32.xlu0 %v8128
    %v8130 = vpop.xlane.xlu0 %8129
    %v8131 = vmul.f32 %v8127, %v89
    %v8132 = vmul.f32 %v8130, %v89
    %v8133 = vsub.f32 %v8119, %v8131
    %v8134 = vsub.f32 %v8120, %v8132
    %v8135 = vmul.f32 %v8133, %v8133
    %v8136 = vmul.f32 %v8134, %v8134
    %v8137 = vsel %vm82, %v8135, 0.0
    %8138 = vadd.xlane.f32.xlu0 %v8137
    %v8139 = vpop.xlane.xlu0 %8138
    %v8140 = vsel %vm82, %v8136, 0.0
    %8141 = vadd.xlane.f32.xlu0 %v8140
    %v8142 = vpop.xlane.xlu0 %8141
    %v8143 = vmul.f32 %v8139, %v89
    %v8144 = vmul.f32 %v8142, %v89
    %v8145 = vadd.f32 %v8143, 1e-12
    %v8146 = vadd.f32 %v8144, 1e-12
    %v8147 = vrsqrt.pop %v8145
    %v8148 = vrsqrt.pop %v8146
    %v8149 = vmul.f32 %v8133, %v8147
    %v8150 = vmul.f32 %v8134, %v8148
    %v8152 = vlaneseq
    %v8153 = vshrl.u32 %v8152, 7
    %v8154 = vsub.s32 0, %v8153
    %v8155 = vrot.slane %v8122, %v8154
    %v8157 = vmul.f32 %v8149, %v8155
    %v8158 = vmul.f32 %v8150, %v8155
    %v8160 = vlaneseq
    %v8161 = vshrl.u32 %v8160, 7
    %v8162 = vsub.s32 0, %v8161
    %v8163 = vrot.slane %v8124, %v8162
    %v8165 = vadd.f32 %v8157, %v8163
    %v8166 = vadd.f32 %v8158, %v8163
    %v8168 = vrot.slane %v8166, 7
    %vm8170 = vcmask 1040384
    %v8171 = vsel %vm8170, %v8165, %v8168
    %v8172 = vld [vmem:[%s20] sm:$0xff]
    %v8173 = vld [vmem:[%s20 + $0x8] sm:$0xff]
    %v8174 = vld [vmem:[%s20 + $0x10] sm:$0xff]
    %v8175 = vld [vmem:[%s20 + $0x18] sm:$0xff]
    %v8176 = vld [vmem:[%s21] sm:$0x1]
    %v8178 = vlaneseq
    %v8179 = vshrl.u32 %v8178, 7
    %v8180 = vsub.s32 0, %v8179
    %v8181 = vrot.slane %v8176, %v8180
    %v8184 = vsel %vm82, %v8171, 0
    %8186 = vmatprep.subr.mxu0 0.0
    %8187 = vmatpush1.msra.mxu0 %v8172
    %8188 = vmatprep.subr.mxu0 0.0
    %8189 = vmatpush1.msra.mxu0 %v8173
    %8190 = vmatprep.subr.mxu0 0.0
    %8191 = vmatpush1.msra.mxu0 %v8174
    %8192 = vmatprep.subr.mxu0 0.0
    %8193 = vmatpush1.msra.mxu0 %v8175
    %8194 = vmatprep.subr.mxu0 0.0
    %8195 = vmatpush1.msra.mxu0 0.0
    %8196 = vmatprep.subr.mxu0 0.0
    %8197 = vmatpush1.msra.mxu0 0.0
    %8198 = vmatprep.subr.mxu0 0.0
    %8199 = vmatpush1.msra.mxu0 0.0
    %8200 = vmatprep.subr.mxu0 0.0
    %8201 = vmatpush1.msra.mxu0 0.0
    %8202 = vmatprep.subr.mxu0 0.0
    %8203 = vmatpush1.msra.mxu0 0.0
    %8204 = vmatprep.subr.mxu0 0.0
    %8205 = vmatpush1.msra.mxu0 0.0
    %8206 = vmatprep.subr.mxu0 0.0
    %8207 = vmatpush1.msra.mxu0 0.0
    %8208 = vmatprep.subr.mxu0 0.0
    %8209 = vmatpush1.msra.mxu0 0.0
    %8210 = vmatprep.subr.mxu0 0.0
    %8211 = vmatpush1.msra.mxu0 0.0
    %8212 = vmatprep.subr.mxu0 0.0
    %8213 = vmatpush1.msra.mxu0 0.0
    %8214 = vmatprep.subr.mxu0 0.0
    %8215 = vmatpush1.msra.mxu0 0.0
    %8216 = vmatprep.subr.mxu0 0.0
    %8217 = vmatpush1.msra.mxu0 0.0
    %8218 = vmatprep.subr.mxu0 0.0
    %8219 = vmatpush1.msra.mxu0 0.0
    %8220 = vmatprep.subr.mxu0 0.0
    %8221 = vmatpush1.msra.mxu0 0.0
    %8222 = vmatprep.subr.mxu0 0.0
    %8223 = vmatpush1.msra.mxu0 0.0
    %8224 = vmatprep.subr.mxu0 0.0
    %8225 = vmatpush1.msra.mxu0 0.0
    %8226 = vmatprep.subr.mxu0 0.0
    %8227 = vmatpush1.msra.mxu0 0.0
    %8228 = vmatprep.subr.mxu0 0.0
    %8229 = vmatpush1.msra.mxu0 0.0
    %8230 = vmatprep.subr.mxu0 0.0
    %8231 = vmatpush1.msra.mxu0 0.0
    %8232 = vmatprep.subr.mxu0 0.0
    %8233 = vmatpush1.msra.mxu0 0.0
    %8234 = vmatprep.subr.mxu0 0.0
    %8235 = vmatpush1.msra.mxu0 0.0
    %8236 = vmatprep.subr.mxu0 0.0
    %8237 = vmatpush1.msra.mxu0 0.0
    %8238 = vmatprep.subr.mxu0 0.0
    %8239 = vmatpush1.msra.mxu0 0.0
    %8240 = vmatprep.subr.mxu0 0.0
    %8241 = vmatpush1.msra.mxu0 0.0
    %8242 = vmatprep.subr.mxu0 0.0
    %8243 = vmatpush1.msra.mxu0 0.0
    %8244 = vmatprep.subr.mxu0 0.0
    %8245 = vmatpush1.msra.mxu0 0.0
    %8246 = vmatprep.subr.mxu0 0.0
    %8247 = vmatpush1.msra.mxu0 0.0
    %8248 = vmatprep.subr.mxu0 0.0
    %8249 = vmatpush1.msra.mxu0 0.0
    %8250 = vmatprep.mubr.f32.mxu0 0.0
    %8251 = vmatmul.mubr.f32.gmra.mrb[0].mxu0 %v8184
    %v8252 = vpop.f32.mrb[0].mxu0
    %v8253 = vadd.f32 %v8181, %v8252
    %v8254 = vpop.f32.mrb[0].mxu0
    %8255 = vdwg.mxu0
    %v8256 = vtanh.pop %v8253
    %v8257 = vld [vmem:[%s22] sm:$0xff]
    %v8258 = vld [vmem:[%s22 + $0x8] sm:$0xff]
    %v8259 = vld [vmem:[%s22 + $0x10] sm:$0xff]
    %v8260 = vld [vmem:[%s22 + $0x18] sm:$0xff]
    %v8261 = vld [vmem:[%s23] sm:$0x1]
    %v8263 = vlaneseq
    %v8264 = vshrl.u32 %v8263, 7
    %v8265 = vsub.s32 0, %v8264
    %v8266 = vrot.slane %v8261, %v8265
    %v8269 = vsel %vm82, %v8256, 0
    %8271 = vmatprep.subr.mxu0 0.0
    %8272 = vmatpush1.msra.mxu0 %v8257
    %8273 = vmatprep.subr.mxu0 0.0
    %8274 = vmatpush1.msra.mxu0 %v8258
    %8275 = vmatprep.subr.mxu0 0.0
    %8276 = vmatpush1.msra.mxu0 %v8259
    %8277 = vmatprep.subr.mxu0 0.0
    %8278 = vmatpush1.msra.mxu0 %v8260
    %8279 = vmatprep.subr.mxu0 0.0
    %8280 = vmatpush1.msra.mxu0 0.0
    %8281 = vmatprep.subr.mxu0 0.0
    %8282 = vmatpush1.msra.mxu0 0.0
    %8283 = vmatprep.subr.mxu0 0.0
    %8284 = vmatpush1.msra.mxu0 0.0
    %8285 = vmatprep.subr.mxu0 0.0
    %8286 = vmatpush1.msra.mxu0 0.0
    %8287 = vmatprep.subr.mxu0 0.0
    %8288 = vmatpush1.msra.mxu0 0.0
    %8289 = vmatprep.subr.mxu0 0.0
    %8290 = vmatpush1.msra.mxu0 0.0
    %8291 = vmatprep.subr.mxu0 0.0
    %8292 = vmatpush1.msra.mxu0 0.0
    %8293 = vmatprep.subr.mxu0 0.0
    %8294 = vmatpush1.msra.mxu0 0.0
    %8295 = vmatprep.subr.mxu0 0.0
    %8296 = vmatpush1.msra.mxu0 0.0
    %8297 = vmatprep.subr.mxu0 0.0
    %8298 = vmatpush1.msra.mxu0 0.0
    %8299 = vmatprep.subr.mxu0 0.0
    %8300 = vmatpush1.msra.mxu0 0.0
    %8301 = vmatprep.subr.mxu0 0.0
    %8302 = vmatpush1.msra.mxu0 0.0
    %8303 = vmatprep.subr.mxu0 0.0
    %8304 = vmatpush1.msra.mxu0 0.0
    %8305 = vmatprep.subr.mxu0 0.0
    %8306 = vmatpush1.msra.mxu0 0.0
    %8307 = vmatprep.subr.mxu0 0.0
    %8308 = vmatpush1.msra.mxu0 0.0
    %8309 = vmatprep.subr.mxu0 0.0
    %8310 = vmatpush1.msra.mxu0 0.0
    %8311 = vmatprep.subr.mxu0 0.0
    %8312 = vmatpush1.msra.mxu0 0.0
    %8313 = vmatprep.subr.mxu0 0.0
    %8314 = vmatpush1.msra.mxu0 0.0
    %8315 = vmatprep.subr.mxu0 0.0
    %8316 = vmatpush1.msra.mxu0 0.0
    %8317 = vmatprep.subr.mxu0 0.0
    %8318 = vmatpush1.msra.mxu0 0.0
    %8319 = vmatprep.subr.mxu0 0.0
    %8320 = vmatpush1.msra.mxu0 0.0
    %8321 = vmatprep.subr.mxu0 0.0
    %8322 = vmatpush1.msra.mxu0 0.0
    %8323 = vmatprep.subr.mxu0 0.0
    %8324 = vmatpush1.msra.mxu0 0.0
    %8325 = vmatprep.subr.mxu0 0.0
    %8326 = vmatpush1.msra.mxu0 0.0
    %8327 = vmatprep.subr.mxu0 0.0
    %8328 = vmatpush1.msra.mxu0 0.0
    %8329 = vmatprep.subr.mxu0 0.0
    %8330 = vmatpush1.msra.mxu0 0.0
    %8331 = vmatprep.subr.mxu0 0.0
    %8332 = vmatpush1.msra.mxu0 0.0
    %8333 = vmatprep.subr.mxu0 0.0
    %8334 = vmatpush1.msra.mxu0 0.0
    %8335 = vmatprep.mubr.f32.mxu0 0.0
    %8336 = vmatmul.mubr.f32.gmra.mrb[0].mxu0 %v8269
    %v8337 = vpop.f32.mrb[0].mxu0
    %v8338 = vadd.f32 %v8266, %v8337
    %v8339 = vpop.f32.mrb[0].mxu0
    %8340 = vdwg.mxu0
    %8341 = vst [vmem:[#allocation2] sm:$0x3] %v8338
    // Predicated region
    $region98: #{distilbert_class_forward.1} parent=1 // pred_check
      _
    $region99: #{distilbert_class_forward.1} parent=1 // pred_check_branch
      %8343 = sbr.rel (0) target = $region101
    $region100: #{distilbert_class_forward.1} parent=1 // pred_region
      %s8345 = ssub.s32 32, 32
      %8346 = vsyncadd [#allocation3], %s8345
      %s8348 = sshll.u32 [#allocation2], 4
      %s8349 = int_to_ptr.vmem [resolvable:$true] %s8348
      %8351 = dma.vmem_to_hbm [thread:$0]  %s8349, 32, %s24, [#allocation3]
    $region101: #{distilbert_class_forward.1} parent=1 // pred_fallthru
      _
    // Predicated region
    $region102: #{distilbert_class_forward.1} parent=1 // pred_check
      _
    $region103: #{distilbert_class_forward.1} parent=1 // pred_check_branch
      %8353 = sbr.rel (0) target = $region105
    $region104: #{distilbert_class_forward.1} parent=1 // pred_region
      %8354 = dma.done [#allocation3], 32
    $region105: #{distilbert_class_forward.1} parent=1 // pred_fallthru
      _
    %8355 = vsyncpa [#allocation3], 1

</llo_original>
